<compile_context>
chip_gen: v6e
topology: v6e:2x2x1
jax: 0.10.0
libtpu: 0.0.40
codegen_flags: <defaults>
</compile_context>

<pallas_src>
import numpy as np
import jax
import jax.numpy as jnp
from jax.experimental import pallas as pl
from jax.experimental.pallas import tpu as pltpu

_LANE = 128


def _round_up(n, m):
    return (n + m - 1) // m * m


def _device_kind():
    try:
        return jax.devices()[0].device_kind.lower()
    except Exception:
        return ""


def _pick_tile_h(H, B, Wp, Cp, Cm, xbytes, dwbytes, budget_bytes, fixed_bytes):
    """Largest divisor-of-H row tile whose estimated VMEM working set fits the budget."""
    per_row = Wp * (
        4 * Cp * xbytes            # input + output tiles, double-buffered
        + 4 * Cm * 4               # f32 y1 scratch row + y1/left/right live values
        + 3 * Cm * dwbytes         # dw-dtype copies of the three tap tensors
        + Cm * 4                   # f32 depthwise accumulator
        + Cm * 2 + Cp * 4 + Cp * 2  # bf16 y2, f32 y3, bf16 x (matmul operands)
    )
    avail = budget_bytes - fixed_bytes - (2 << 20)
    cap = max(1, avail // max(per_row, 1))
    divs = [d for d in range(1, H + 1) if H % d == 0 and d <= cap]
    if not divs:
        return 1
    if B == 1:
        # v7x megacore: prefer an even number of row tiles so both TensorCores stay busy.
        even = [d for d in divs if (H // d) % 2 == 0]
        if even:
            return max(even)
    return max(divs)


def inverse_bottleneck_pallas(x_nhwc, params, *, tile_h=None):
    """x_nhwc: (B, H, W, Cin) f32/bf16; params: folded parameters (see make_params)."""
    B, H, W, Cin = x_nhwc.shape
    Cmid = params["w1"].shape[1]
    Cout = params["w3"].shape[1]
    if Cin != Cout:
        raise ValueError("InverseBottleneck identity residual requires inplanes == planes")

    x_dtype = x_nhwc.dtype
    xbytes = jnp.dtype(x_dtype).itemsize

    # ---- generation-aware knobs (review #4, #7, #8) -------------------------------------
    kind = _device_kind()
    old_gen = any(s in kind for s in ("v2", "v3", "v4", "v5"))  # no bf16 VALU
    big_vmem = any(s in kind for s in ("v5", "v6"))             # 128 MiB VMEM parts
    dw_dtype = jnp.float32 if old_gen else jnp.bfloat16         # depthwise multiply dtype
    dwbytes = jnp.dtype(dw_dtype).itemsize
    if big_vmem:
        vmem_limit = 100 * 1024 * 1024
        tile_budget = 80 * 1024 * 1024
    else:  # v7x (64 MiB / TC) or unknown: stay conservative
        vmem_limit = 48 * 1024 * 1024
        tile_budget = 40 * 1024 * 1024

    Cp = _round_up(Cin, _LANE)    # lane-dense in/out channels
    Cm = _round_up(Cmid, _LANE)   # lane-dense expansion channels
    sub = 16 if (dwbytes < 4 or xbytes < 4) else 8
    Wp = _round_up(W, sub)        # sublane-aligned width: flatten/reshape never relayouts

    fixed_bytes = 2 * (2 * Cp * Cm * 2) + 4 * (11 * Cm + Cp) + 8 * (Wp * 3)
    if tile_h is None:
        TH = _pick_tile_h(H, B, Wp, Cp, Cm, xbytes, dwbytes, tile_budget, fixed_bytes)
    else:
        TH = int(tile_h)
    if H % TH != 0:
        raise ValueError("tile_h must divide H")
    nT = H // TH
    THW = TH * Wp
    NROW = (TH + 2) * Wp

    # ---- lane/sublane-dense padding (padded channels stay exactly zero) ------------------
    pad_w, pad_c = Wp - W, Cp - Cin
    x_p = jnp.pad(x_nhwc, ((0, 0), (0, 0), (0, pad_w), (0, pad_c))) if (pad_w or pad_c) else x_nhwc
    w1 = jnp.pad(params["w1"], ((0, Cp - Cin), (0, Cm - Cmid))).astype(jnp.bfloat16)
    t1 = jnp.pad(params["t1"], (0, Cm - Cmid)).reshape(1, Cm).astype(jnp.float32)
    k2 = jnp.pad(params["k2"], ((0, 0), (0, 0), (0, Cm - Cmid))).astype(jnp.float32)
    t2 = jnp.pad(params["t2"], (0, Cm - Cmid)).reshape(1, Cm).astype(jnp.float32)
    w3 = jnp.pad(params["w3"], ((0, Cm - Cmid), (0, Cp - Cout))).astype(jnp.bfloat16)
    t3 = jnp.pad(params["t3"], (0, Cp - Cout)).reshape(1, Cp).astype(jnp.float32)

    # Precomputed {0,1} column masks for the W-axis neighbour taps in the flattened
    # (window_row * Wp + w) layout.  They zero the image left/right borders, any padded-W
    # columns, and make the roll wrap-around harmless -> no in-kernel iota/select.
    wcol = np.arange(NROW) % Wp
    lmask = jnp.asarray(((wcol >= 1) & (wcol <= W - 1)).astype(np.float32).reshape(NROW, 1))
    rmask = jnp.asarray((wcol <= W - 2).astype(np.float32).reshape(NROW, 1))

    flops = 2 * B * H * Wp * (2 * Cp * Cm + 9 * Cm)
    bytes_accessed = (xbytes * x_p.size + xbytes * B * H * Wp * Cp
                      + 2 * (w1.size + w3.size)
                      + 4 * (k2.size + t1.size + t2.size + t3.size))

    def build(fast):
        use_roll = fast
        single_buf = fast and ((w1.size + w3.size) * 2 > (2 << 20))  # only for big weights

        def kernel(xt_ref, xm_ref, xb_ref, w1_ref, t1_ref, k2_ref, t2_ref, w3_ref, t3_ref,
                   lm_ref, rm_ref, o_ref, y1_ref):
            f32 = jnp.float32

            # -- conv1 (1x1) + BN1 + ReLU: main tile + 2 halo rows as two MXU matmuls,
            #    written straight into the y1 window scratch (no big input concat). --------
            x_main = xm_ref[0].reshape(THW, Cp)
            y1_main = jnp.dot(x_main.astype(jnp.bfloat16), w1_ref[...],
                              preferred_element_type=f32)
            y1_ref[pl.ds(Wp, THW)] = jnp.maximum(y1_main + t1_ref[...], 0.0)

            x_halo = jnp.concatenate([xt_ref[0, 0], xb_ref[0, 0]], axis=0)   # (2*Wp, Cp)
            y1_halo = jnp.dot(x_halo.astype(jnp.bfloat16), w1_ref[...],
                              preferred_element_type=f32)
            y1_halo = jnp.maximum(y1_halo + t1_ref[...], 0.0)
            y1_ref[pl.ds(0, Wp)] = y1_halo[:Wp]
            y1_ref[pl.ds((TH + 1) * Wp, Wp)] = y1_halo[Wp:]

            # At the image top/bottom the fetched halo row is a clamped duplicate; the
            # reference zero-pads y1 there -> overwrite just that one row (pl.when).
            t = pl.program_id(1)
            nt = pl.num_programs(1)

            @pl.when(t == 0)
            def _():
                y1_ref[pl.ds(0, Wp)] = jnp.zeros((Wp, Cm), f32)

            @pl.when(t == nt - 1)
            def _():
                y1_ref[pl.ds((TH + 1) * Wp, Wp)] = jnp.zeros((Wp, Cm), f32)

            # -- conv2: depthwise 3x3 (stride 1, pad 1) + BN2 + ReLU -----------------------
            y1_all = y1_ref[...]                                       # (NROW, Cm) f32
            if use_roll:
                left_src = pltpu.roll(y1_all, shift=1, axis=0)         # value at w -> y1[w-1]
                right_src = pltpu.roll(y1_all, shift=NROW - 1, axis=0)  # value at w -> y1[w+1]
            else:
                left_src = jnp.concatenate([y1_all[:1], y1_all[:-1]], axis=0)
                right_src = jnp.concatenate([y1_all[1:], y1_all[-1:]], axis=0)
            left_all = left_src * lm_ref[...]      # masks zero borders / pad / wrap-around
            right_all = right_src * rm_ref[...]

            # bf16 multiplies on v6e/v7x (f32 on v5e and older); accumulation stays f32.
            c_all = y1_all.astype(dw_dtype)
            l_all = left_all.astype(dw_dtype)
            r_all = right_all.astype(dw_dtype)

            k2w = k2_ref[...].astype(dw_dtype)                         # load once
            taps = [[k2w[dy, dx].reshape(1, Cm) for dx in range(3)] for dy in range(3)]

            acc = jnp.broadcast_to(t2_ref[...], (THW, Cm)).astype(f32)  # start from BN2 shift
            for dy in range(3):
                lo = dy * Wp
                l = l_all[lo:lo + THW]
                c = c_all[lo:lo + THW]
                r = r_all[lo:lo + THW]
                acc = acc + l * taps[dy][0] + c * taps[dy][1] + r * taps[dy][2]
            y2 = jnp.maximum(acc, 0.0)

            # -- conv3 (1x1) + BN3 + residual add + ReLU -----------------------------------
            y3 = jnp.dot(y2.astype(jnp.bfloat16), w3_ref[...], preferred_element_type=f32)
            y3 = y3 + t3_ref[...] + x_main.astype(f32)                 # identity: Cin == Cout
            o_ref[0] = jnp.maximum(y3, 0.0).reshape(TH, Wp, Cp).astype(o_ref.dtype)

        def _const(shape):
            n = len(shape)
            imap = lambda b, t: (0,) * n
            if single_buf:
                return pl.BlockSpec(shape, imap, pipeline_mode=pl.Buffered(1))
            return pl.BlockSpec(shape, imap)

        h_last = H - 1
        in_specs = [
            # top halo row (row t*TH - 1, clamped at the image top; zeroed in-kernel there)
            pl.BlockSpec((1, 1, Wp, Cp), lambda b, t: (b, jnp.maximum(t * TH - 1, 0), 0, 0)),
            # main TH-row tile
            pl.BlockSpec((1, TH, Wp, Cp), lambda b, t: (b, t, 0, 0)),
            # bottom halo row (row t*TH + TH, clamped at the image bottom)
            pl.BlockSpec((1, 1, Wp, Cp), lambda b, t: (b, jnp.minimum(t * TH + TH, h_last), 0, 0)),
            _const((Cp, Cm)), _const((1, Cm)),
            _const((3, 3, Cm)), _const((1, Cm)),
            _const((Cm, Cp)), _const((1, Cp)),
            _const((NROW, 1)), _const((NROW, 1)),
        ]
        out_specs = pl.BlockSpec((1, TH, Wp, Cp), lambda b, t: (b, t, 0, 0))

        return pl.pallas_call(
            kernel,
            out_shape=jax.ShapeDtypeStruct((B, H, Wp, Cp), x_dtype),
            grid=(B, nT),
            in_specs=in_specs,
            out_specs=out_specs,
            scratch_shapes=[pltpu.VMEM((NROW, Cm), jnp.float32)],
            compiler_params=pltpu.CompilerParams(
                dimension_semantics=("parallel", "parallel"),
                vmem_limit_bytes=vmem_limit,
            ),
            cost_estimate=pl.CostEstimate(
                flops=int(flops), transcendentals=0, bytes_accessed=int(bytes_accessed)),
        )

    args = (x_p, x_p, x_p, w1, t1, k2, t2, w3, t3, lmask, rmask)
    try:
        out = build(True)(*args)
    except Exception:
        # Fallback if pltpu.roll (sublane rotate) / pl.Buffered is unavailable on this
        # jax/Mosaic version: concatenate-based W shifts, plain double-buffered weights.
        out = build(False)(*args)

    if Wp != W or Cp != Cout:
        out = out[:, :, :W, :Cout]
    return out


def make_params(key, inplanes, planes, eps=1e-5):
    """Deterministic parameters mirroring the PyTorch module, with conv bias and
    inference-mode BatchNorm folded: BN scales into the conv/depthwise weights,
    BN shifts (+ conv bias) kept as per-channel adds t1/t2/t3."""
    Cin, Cmid, Cout = inplanes, planes, planes
    ks = jax.random.split(key, 8)

    def bn(k, c):
        gamma = jax.random.uniform(k, (c,), minval=0.5, maxval=1.5)
        beta = jax.random.normal(jax.random.fold_in(k, 1), (c,)) * 0.1
        mean = jax.random.normal(jax.random.fold_in(k, 2), (c,)) * 0.1
        var = jax.random.uniform(jax.random.fold_in(k, 3), (c,), minval=0.5, maxval=1.5)
        return gamma, beta, mean, var

    # conv1: 1x1, Cin -> Cmid, bias=True ; BN1
    w1 = jax.random.normal(ks[0], (Cin, Cmid)) * 0.2
    b1 = jax.random.normal(ks[1], (Cmid,)) * 0.05
    g1, be1, m1, v1 = bn(ks[2], Cmid)
    s1 = g1 / jnp.sqrt(v1 + eps)
    w1f, t1 = w1 * s1, (b1 - m1) * s1 + be1

    # conv2: depthwise 3x3, bias=False ; BN2
    k2 = jax.random.normal(ks[3], (3, 3, Cmid)) * 0.2
    g2, be2, m2, v2 = bn(ks[4], Cmid)
    s2 = g2 / jnp.sqrt(v2 + eps)
    k2f, t2 = k2 * s2, be2 - m2 * s2

    # conv3: 1x1, Cmid -> Cout, bias=True ; BN3
    w3 = jax.random.normal(ks[5], (Cmid, Cout)) * 0.2
    b3 = jax.random.normal(ks[6], (Cout,)) * 0.05
    g3, be3, m3, v3 = bn(ks[7], Cout)
    s3 = g3 / jnp.sqrt(v3 + eps)
    w3f, t3 = w3 * s3, (b3 - m3) * s3 + be3

    f32 = lambda a: a.astype(jnp.float32)
    return {"w1": f32(w1f), "t1": f32(t1),
            "k2": f32(k2f), "t2": f32(t2),
            "w3": f32(w3f), "t3": f32(t3)}


def reference_jax(x_nhwc, p):
    """Plain-JAX f32 reference with the module's math (folded-BN form)."""
    B, H, W, _ = x_nhwc.shape
    y = jnp.einsum("bhwc,cd->bhwd", x_nhwc, p["w1"]) + p["t1"]
    y = jnp.maximum(y, 0.0)
    yp = jnp.pad(y, ((0, 0), (1, 1), (1, 1), (0, 0)))
    acc = jnp.zeros_like(y)
    for dy in range(3):
        for dx in range(3):
            acc = acc + yp[:, dy:dy + H, dx:dx + W, :] * p["k2"][dy, dx]
    y = jnp.maximum(acc + p["t2"], 0.0)
    y = jnp.einsum("bhwc,cd->bhwd", y, p["w3"]) + p["t3"]
    return jnp.maximum(y + x_nhwc, 0.0)


if __name__ == "__main__":
    key = jax.random.PRNGKey(0)
    kx, kp = jax.random.split(key)

    B, C, Hh, Ww = 2, 4, 16, 16          # inplanes = planes = 4 (residual needs Cin == Cout)
    x_nchw = jax.random.normal(kx, (B, C, Hh, Ww), dtype=jnp.float32)
    x_nhwc = jnp.transpose(x_nchw, (0, 2, 3, 1))   # NCHW -> NHWC for the kernel

    params = make_params(kp, inplanes=C, planes=C)

    out = inverse_bottleneck_pallas(x_nhwc, params)
    out = jax.block_until_ready(out)

    ref = reference_jax(x_nhwc, params)
    assert out.shape == (B, Hh, Ww, C)
    # bf16 MXU matmuls + bf16 depthwise multiplies (f32 accumulation) vs an f32 reference.
    assert jnp.allclose(out, ref, atol=5e-2, rtol=5e-2), "mismatch vs JAX reference"

    print("KERNEL_OK")
</pallas_src>

<mosaic_0001>
module attributes {stable_mosaic.version = 11 : i64} {
  func.func @kernel(%arg0: i32, %arg1: i32, %arg2: memref<1x1x16x128xf32, #tpu.memory_space<vmem>>, %arg3: memref<1x16x16x128xf32, #tpu.memory_space<vmem>>, %arg4: memref<1x1x16x128xf32, #tpu.memory_space<vmem>>, %arg5: memref<128x128xbf16, #tpu.memory_space<vmem>>, %arg6: memref<1x128xf32, #tpu.memory_space<vmem>>, %arg7: memref<3x3x128xf32, #tpu.memory_space<vmem>>, %arg8: memref<1x128xf32, #tpu.memory_space<vmem>>, %arg9: memref<128x128xbf16, #tpu.memory_space<vmem>>, %arg10: memref<1x128xf32, #tpu.memory_space<vmem>>, %arg11: memref<288x1xf32, #tpu.memory_space<vmem>>, %arg12: memref<288x1xf32, #tpu.memory_space<vmem>>, %arg13: memref<1x16x16x128xf32, #tpu.memory_space<vmem>>, %arg14: memref<288x128xf32, #tpu.memory_space<vmem>>) attributes {dimension_semantics = [#tpu.dimension_semantics<parallel>, #tpu.dimension_semantics<parallel>], iteration_bounds = array<i64: 2, 1>, scalar_prefetch = 0 : i64, scratch_operands = 1 : i64, tpu.core_type = #tpu.core_type<tc>, window_params = [{transform_indices = @transform_0, window_bounds = array<i64: 1, 1, 16, 128>}, {transform_indices = @transform_1, window_bounds = array<i64: 1, 16, 16, 128>}, {transform_indices = @transform_2, window_bounds = array<i64: 1, 1, 16, 128>}, {pipeline_mode = #tpu.pipeline_mode<synchronous>, transform_indices = @transform_3, window_bounds = array<i64: 128, 128>}, {pipeline_mode = #tpu.pipeline_mode<synchronous>, transform_indices = @transform_4, window_bounds = array<i64: 1, 128>}, {pipeline_mode = #tpu.pipeline_mode<synchronous>, transform_indices = @transform_5, window_bounds = array<i64: 3, 3, 128>}, {pipeline_mode = #tpu.pipeline_mode<synchronous>, transform_indices = @transform_6, window_bounds = array<i64: 1, 128>}, {pipeline_mode = #tpu.pipeline_mode<synchronous>, transform_indices = @transform_7, window_bounds = array<i64: 128, 128>}, {pipeline_mode = #tpu.pipeline_mode<synchronous>, transform_indices = @transform_8, window_bounds = array<i64: 1, 128>}, {pipeline_mode = #tpu.pipeline_mode<synchronous>, transform_indices = @transform_9, window_bounds = array<i64: 288, 1>}, {pipeline_mode = #tpu.pipeline_mode<synchronous>, transform_indices = @transform_10, window_bounds = array<i64: 288, 1>}, {transform_indices = @transform_11, window_bounds = array<i64: 1, 16, 16, 128>}]} {
    %c0 = arith.constant 0 : index
    %c0_0 = arith.constant 0 : index
    %c0_1 = arith.constant 0 : index
    %c0_2 = arith.constant 0 : index
    %0 = vector.load %arg3[%c0, %c0_0, %c0_1, %c0_2] : memref<1x16x16x128xf32, #tpu.memory_space<vmem>>, vector<1x16x16x128xf32>
    %1 = vector.shape_cast %0 : vector<1x16x16x128xf32> to vector<16x16x128xf32>
    %2 = vector.shape_cast %1 : vector<16x16x128xf32> to vector<256x128xf32>
    %3 = arith.truncf %2 : vector<256x128xf32> to vector<256x128xbf16>
    %c0_3 = arith.constant 0 : index
    %c0_4 = arith.constant 0 : index
    %4 = vector.load %arg5[%c0_3, %c0_4] : memref<128x128xbf16, #tpu.memory_space<vmem>>, vector<128x128xbf16>
    %cst = arith.constant dense<0.000000e+00> : vector<256x128xf32>
    %5 = tpu.matmul %3, %4, %cst {dimension_numbers = #tpu.dot_dimension_numbers<[1], [0], [0], [1], [0, 0, 1, 1], [], []>} : vector<256x128xbf16>, vector<128x128xbf16>, vector<256x128xf32> -> vector<256x128xf32>
    %c0_5 = arith.constant 0 : index
    %c0_6 = arith.constant 0 : index
    %6 = vector.load %arg6[%c0_5, %c0_6] : memref<1x128xf32, #tpu.memory_space<vmem>>, vector<1x128xf32>
    %7 = vector.broadcast %6 : vector<1x128xf32> to vector<256x128xf32>
    %8 = arith.addf %5, %7 : vector<256x128xf32>
    %cst_7 = arith.constant 0.000000e+00 : f32
    %9 = vector.broadcast %cst_7 : f32 to vector<256x128xf32>
    %10 = arith.maximumf %8, %9 : vector<256x128xf32>
    %c16 = arith.constant 16 : index
    %c0_8 = arith.constant 0 : index
    %11 = vector.load %arg14[%c16, %c0_8] : memref<288x128xf32, #tpu.memory_space<vmem>>, vector<256x128xf32>
    tpu.vector_store %arg14[%c16, %c0_8], %10 {strides = array<i32>} : memref<288x128xf32, #tpu.memory_space<vmem>>, vector<256x128xf32>,
    %c0_9 = arith.constant 0 : index
    %c0_10 = arith.constant 0 : index
    %c0_11 = arith.constant 0 : index
    %c0_12 = arith.constant 0 : index
    %12 = vector.load %arg2[%c0_9, %c0_10, %c0_11, %c0_12] : memref<1x1x16x128xf32, #tpu.memory_space<vmem>>, vector<1x1x16x128xf32>
    %13 = vector.shape_cast %12 : vector<1x1x16x128xf32> to vector<16x128xf32>
    %c0_13 = arith.constant 0 : index
    %c0_14 = arith.constant 0 : index
    %c0_15 = arith.constant 0 : index
    %c0_16 = arith.constant 0 : index
    %14 = vector.load %arg4[%c0_13, %c0_14, %c0_15, %c0_16] : memref<1x1x16x128xf32, #tpu.memory_space<vmem>>, vector<1x1x16x128xf32>
    %15 = vector.shape_cast %14 : vector<1x1x16x128xf32> to vector<16x128xf32>
    %16 = tpu.concatenate %13, %15 in 0 : vector<16x128xf32>, vector<16x128xf32> -> vector<32x128xf32>
    %17 = arith.truncf %16 : vector<32x128xf32> to vector<32x128xbf16>
    %c0_17 = arith.constant 0 : index
    %c0_18 = arith.constant 0 : index
    %18 = vector.load %arg5[%c0_17, %c0_18] : memref<128x128xbf16, #tpu.memory_space<vmem>>, vector<128x128xbf16>
    %cst_19 = arith.constant dense<0.000000e+00> : vector<32x128xf32>
    %19 = tpu.matmul %17, %18, %cst_19 {dimension_numbers = #tpu.dot_dimension_numbers<[1], [0], [0], [1], [0, 0, 1, 1], [], []>} : vector<32x128xbf16>, vector<128x128xbf16>, vector<32x128xf32> -> vector<32x128xf32>
    %c0_20 = arith.constant 0 : index
    %c0_21 = arith.constant 0 : index
    %20 = vector.load %arg6[%c0_20, %c0_21] : memref<1x128xf32, #tpu.memory_space<vmem>>, vector<1x128xf32>
    %21 = vector.broadcast %20 : vector<1x128xf32> to vector<32x128xf32>
    %22 = arith.addf %19, %21 : vector<32x128xf32>
    %cst_22 = arith.constant 0.000000e+00 : f32
    %23 = vector.broadcast %cst_22 : f32 to vector<32x128xf32>
    %24 = arith.maximumf %22, %23 : vector<32x128xf32>
    %25 = vector.extract_strided_slice %24 {offsets = [0, 0], sizes = [16, 128], strides = [1, 1]} : vector<32x128xf32> to vector<16x128xf32>
    %c0_23 = arith.constant 0 : index
    %c0_24 = arith.constant 0 : index
    %26 = vector.load %arg14[%c0_23, %c0_24] : memref<288x128xf32, #tpu.memory_space<vmem>>, vector<16x128xf32>
    tpu.vector_store %arg14[%c0_23, %c0_24], %25 {strides = array<i32>} : memref<288x128xf32, #tpu.memory_space<vmem>>, vector<16x128xf32>,
    %27 = vector.extract_strided_slice %24 {offsets = [16, 0], sizes = [16, 128], strides = [1, 1]} : vector<32x128xf32> to vector<16x128xf32>
    %c272 = arith.constant 272 : index
    %c0_25 = arith.constant 0 : index
    %28 = vector.load %arg14[%c272, %c0_25] : memref<288x128xf32, #tpu.memory_space<vmem>>, vector<16x128xf32>
    tpu.vector_store %arg14[%c272, %c0_25], %27 {strides = array<i32>} : memref<288x128xf32, #tpu.memory_space<vmem>>, vector<16x128xf32>,
    %c0_i32 = arith.constant 0 : i32
    %29 = arith.cmpi eq, %arg1, %c0_i32 : i32
    %30 = arith.extui %29 : i1 to i32
    %c0_i32_26 = arith.constant 0 : i32
    %31 = arith.cmpi ne, %30, %c0_i32_26 : i32
    scf.if %31 {
      %cst_51 = arith.constant 0.000000e+00 : f32
      %139 = vector.broadcast %cst_51 : f32 to vector<16x128xf32>
      %c0_52 = arith.constant 0 : index
      %c0_53 = arith.constant 0 : index
      %140 = vector.load %arg14[%c0_52, %c0_53] : memref<288x128xf32, #tpu.memory_space<vmem>>, vector<16x128xf32>
      tpu.vector_store %arg14[%c0_52, %c0_53], %139 {strides = array<i32>} : memref<288x128xf32, #tpu.memory_space<vmem>>, vector<16x128xf32>,
    } else {
    }
    %c0_i32_27 = arith.constant 0 : i32
    %32 = arith.cmpi eq, %arg1, %c0_i32_27 : i32
    %33 = arith.extui %32 : i1 to i32
    %c0_i32_28 = arith.constant 0 : i32
    %34 = arith.cmpi ne, %33, %c0_i32_28 : i32
    scf.if %34 {
      %cst_51 = arith.constant 0.000000e+00 : f32
      %139 = vector.broadcast %cst_51 : f32 to vector<16x128xf32>
      %c272_52 = arith.constant 272 : index
      %c0_53 = arith.constant 0 : index
      %140 = vector.load %arg14[%c272_52, %c0_53] : memref<288x128xf32, #tpu.memory_space<vmem>>, vector<16x128xf32>
      tpu.vector_store %arg14[%c272_52, %c0_53], %139 {strides = array<i32>} : memref<288x128xf32, #tpu.memory_space<vmem>>, vector<16x128xf32>,
    } else {
    }
    %c0_29 = arith.constant 0 : index
    %c0_30 = arith.constant 0 : index
    %35 = vector.load %arg14[%c0_29, %c0_30] : memref<288x128xf32, #tpu.memory_space<vmem>>, vector<288x128xf32>
    %c1_i32 = arith.constant 1 : i32
    %36 = tpu.dynamic_rotate %35 by %c1_i32 dim 0 : vector<288x128xf32>, i32 -> vector<288x128xf32>
    %c287_i32 = arith.constant 287 : i32
    %37 = tpu.dynamic_rotate %35 by %c287_i32 dim 0 : vector<288x128xf32>, i32 -> vector<288x128xf32>
    %c0_31 = arith.constant 0 : index
    %c0_32 = arith.constant 0 : index
    %38 = vector.load %arg11[%c0_31, %c0_32] : memref<288x1xf32, #tpu.memory_space<vmem>>, vector<288x1xf32>
    %39 = vector.broadcast %38 : vector<288x1xf32> to vector<288x128xf32>
    %40 = arith.mulf %36, %39 : vector<288x128xf32>
    %c0_33 = arith.constant 0 : index
    %c0_34 = arith.constant 0 : index
    %41 = vector.load %arg12[%c0_33, %c0_34] : memref<288x1xf32, #tpu.memory_space<vmem>>, vector<288x1xf32>
    %42 = vector.broadcast %41 : vector<288x1xf32> to vector<288x128xf32>
    %43 = arith.mulf %37, %42 : vector<288x128xf32>
    %44 = arith.truncf %35 : vector<288x128xf32> to vector<288x128xbf16>
    %45 = arith.truncf %40 : vector<288x128xf32> to vector<288x128xbf16>
    %46 = arith.truncf %43 : vector<288x128xf32> to vector<288x128xbf16>
    %c0_35 = arith.constant 0 : index
    %c0_36 = arith.constant 0 : index
    %c0_37 = arith.constant 0 : index
    %47 = vector.load %arg7[%c0_35, %c0_36, %c0_37] : memref<3x3x128xf32, #tpu.memory_space<vmem>>, vector<3x3x128xf32>
    %48 = arith.truncf %47 : vector<3x3x128xf32> to vector<3x3x128xbf16>
    %49 = vector.extract_strided_slice %48 {offsets = [0, 0, 0], sizes = [1, 1, 128], strides = [1, 1, 1]} : vector<3x3x128xbf16> to vector<1x1x128xbf16>
    %50 = vector.shape_cast %49 : vector<1x1x128xbf16> to vector<128xbf16>
    %51 = vector.shape_cast %50 : vector<128xbf16> to vector<1x128xbf16>
    %52 = vector.extract_strided_slice %48 {offsets = [0, 1, 0], sizes = [1, 1, 128], strides = [1, 1, 1]} : vector<3x3x128xbf16> to vector<1x1x128xbf16>
    %53 = vector.shape_cast %52 : vector<1x1x128xbf16> to vector<128xbf16>
    %54 = vector.shape_cast %53 : vector<128xbf16> to vector<1x128xbf16>
    %55 = vector.extract_strided_slice %48 {offsets = [0, 2, 0], sizes = [1, 1, 128], strides = [1, 1, 1]} : vector<3x3x128xbf16> to vector<1x1x128xbf16>
    %56 = vector.shape_cast %55 : vector<1x1x128xbf16> to vector<128xbf16>
    %57 = vector.shape_cast %56 : vector<128xbf16> to vector<1x128xbf16>
    %58 = vector.extract_strided_slice %48 {offsets = [1, 0, 0], sizes = [1, 1, 128], strides = [1, 1, 1]} : vector<3x3x128xbf16> to vector<1x1x128xbf16>
    %59 = vector.shape_cast %58 : vector<1x1x128xbf16> to vector<128xbf16>
    %60 = vector.shape_cast %59 : vector<128xbf16> to vector<1x128xbf16>
    %61 = vector.extract_strided_slice %48 {offsets = [1, 1, 0], sizes = [1, 1, 128], strides = [1, 1, 1]} : vector<3x3x128xbf16> to vector<1x1x128xbf16>
    %62 = vector.shape_cast %61 : vector<1x1x128xbf16> to vector<128xbf16>
    %63 = vector.shape_cast %62 : vector<128xbf16> to vector<1x128xbf16>
    %64 = vector.extract_strided_slice %48 {offsets = [1, 2, 0], sizes = [1, 1, 128], strides = [1, 1, 1]} : vector<3x3x128xbf16> to vector<1x1x128xbf16>
    %65 = vector.shape_cast %64 : vector<1x1x128xbf16> to vector<128xbf16>
    %66 = vector.shape_cast %65 : vector<128xbf16> to vector<1x128xbf16>
    %67 = vector.extract_strided_slice %48 {offsets = [2, 0, 0], sizes = [1, 1, 128], strides = [1, 1, 1]} : vector<3x3x128xbf16> to vector<1x1x128xbf16>
    %68 = vector.shape_cast %67 : vector<1x1x128xbf16> to vector<128xbf16>
    %69 = vector.shape_cast %68 : vector<128xbf16> to vector<1x128xbf16>
    %70 = vector.extract_strided_slice %48 {offsets = [2, 1, 0], sizes = [1, 1, 128], strides = [1, 1, 1]} : vector<3x3x128xbf16> to vector<1x1x128xbf16>
    %71 = vector.shape_cast %70 : vector<1x1x128xbf16> to vector<128xbf16>
    %72 = vector.shape_cast %71 : vector<128xbf16> to vector<1x128xbf16>
    %73 = vector.extract_strided_slice %48 {offsets = [2, 2, 0], sizes = [1, 1, 128], strides = [1, 1, 1]} : vector<3x3x128xbf16> to vector<1x1x128xbf16>
    %74 = vector.shape_cast %73 : vector<1x1x128xbf16> to vector<128xbf16>
    %75 = vector.shape_cast %74 : vector<128xbf16> to vector<1x128xbf16>
    %c0_38 = arith.constant 0 : index
    %c0_39 = arith.constant 0 : index
    %76 = vector.load %arg8[%c0_38, %c0_39] : memref<1x128xf32, #tpu.memory_space<vmem>>, vector<1x128xf32>
    %77 = vector.shape_cast %76 : vector<1x128xf32> to vector<1x128xf32>
    %78 = vector.broadcast %77 : vector<1x128xf32> to vector<256x128xf32>
    %79 = vector.extract_strided_slice %45 {offsets = [0, 0], sizes = [256, 128], strides = [1, 1]} : vector<288x128xbf16> to vector<256x128xbf16>
    %80 = vector.extract_strided_slice %44 {offsets = [0, 0], sizes = [256, 128], strides = [1, 1]} : vector<288x128xbf16> to vector<256x128xbf16>
    %81 = vector.extract_strided_slice %46 {offsets = [0, 0], sizes = [256, 128], strides = [1, 1]} : vector<288x128xbf16> to vector<256x128xbf16>
    %82 = vector.broadcast %51 : vector<1x128xbf16> to vector<256x128xbf16>
    %83 = arith.mulf %79, %82 : vector<256x128xbf16>
    %84 = arith.extf %83 : vector<256x128xbf16> to vector<256x128xf32>
    %85 = arith.addf %78, %84 : vector<256x128xf32>
    %86 = vector.broadcast %54 : vector<1x128xbf16> to vector<256x128xbf16>
    %87 = arith.mulf %80, %86 : vector<256x128xbf16>
    %88 = arith.extf %87 : vector<256x128xbf16> to vector<256x128xf32>
    %89 = arith.addf %85, %88 : vector<256x128xf32>
    %90 = vector.broadcast %57 : vector<1x128xbf16> to vector<256x128xbf16>
    %91 = arith.mulf %81, %90 : vector<256x128xbf16>
    %92 = arith.extf %91 : vector<256x128xbf16> to vector<256x128xf32>
    %93 = arith.addf %89, %92 : vector<256x128xf32>
    %94 = vector.extract_strided_slice %45 {offsets = [16, 0], sizes = [256, 128], strides = [1, 1]} : vector<288x128xbf16> to vector<256x128xbf16>
    %95 = vector.extract_strided_slice %44 {offsets = [16, 0], sizes = [256, 128], strides = [1, 1]} : vector<288x128xbf16> to vector<256x128xbf16>
    %96 = vector.extract_strided_slice %46 {offsets = [16, 0], sizes = [256, 128], strides = [1, 1]} : vector<288x128xbf16> to vector<256x128xbf16>
    %97 = vector.broadcast %60 : vector<1x128xbf16> to vector<256x128xbf16>
    %98 = arith.mulf %94, %97 : vector<256x128xbf16>
    %99 = arith.extf %98 : vector<256x128xbf16> to vector<256x128xf32>
    %100 = arith.addf %93, %99 : vector<256x128xf32>
    %101 = vector.broadcast %63 : vector<1x128xbf16> to vector<256x128xbf16>
    %102 = arith.mulf %95, %101 : vector<256x128xbf16>
    %103 = arith.extf %102 : vector<256x128xbf16> to vector<256x128xf32>
    %104 = arith.addf %100, %103 : vector<256x128xf32>
    %105 = vector.broadcast %66 : vector<1x128xbf16> to vector<256x128xbf16>
    %106 = arith.mulf %96, %105 : vector<256x128xbf16>
    %107 = arith.extf %106 : vector<256x128xbf16> to vector<256x128xf32>
    %108 = arith.addf %104, %107 : vector<256x128xf32>
    %109 = vector.extract_strided_slice %45 {offsets = [32, 0], sizes = [256, 128], strides = [1, 1]} : vector<288x128xbf16> to vector<256x128xbf16>
    %110 = vector.extract_strided_slice %44 {offsets = [32, 0], sizes = [256, 128], strides = [1, 1]} : vector<288x128xbf16> to vector<256x128xbf16>
    %111 = vector.extract_strided_slice %46 {offsets = [32, 0], sizes = [256, 128], strides = [1, 1]} : vector<288x128xbf16> to vector<256x128xbf16>
    %112 = vector.broadcast %69 : vector<1x128xbf16> to vector<256x128xbf16>
    %113 = arith.mulf %109, %112 : vector<256x128xbf16>
    %114 = arith.extf %113 : vector<256x128xbf16> to vector<256x128xf32>
    %115 = arith.addf %108, %114 : vector<256x128xf32>
    %116 = vector.broadcast %72 : vector<1x128xbf16> to vector<256x128xbf16>
    %117 = arith.mulf %110, %116 : vector<256x128xbf16>
    %118 = arith.extf %117 : vector<256x128xbf16> to vector<256x128xf32>
    %119 = arith.addf %115, %118 : vector<256x128xf32>
    %120 = vector.broadcast %75 : vector<1x128xbf16> to vector<256x128xbf16>
    %121 = arith.mulf %111, %120 : vector<256x128xbf16>
    %122 = arith.extf %121 : vector<256x128xbf16> to vector<256x128xf32>
    %123 = arith.addf %119, %122 : vector<256x128xf32>
    %cst_40 = arith.constant 0.000000e+00 : f32
    %124 = vector.broadcast %cst_40 : f32 to vector<256x128xf32>
    %125 = arith.maximumf %123, %124 : vector<256x128xf32>
    %126 = arith.truncf %125 : vector<256x128xf32> to vector<256x128xbf16>
    %c0_41 = arith.constant 0 : index
    %c0_42 = arith.constant 0 : index
    %127 = vector.load %arg9[%c0_41, %c0_42] : memref<128x128xbf16, #tpu.memory_space<vmem>>, vector<128x128xbf16>
    %cst_43 = arith.constant dense<0.000000e+00> : vector<256x128xf32>
    %128 = tpu.matmul %126, %127, %cst_43 {dimension_numbers = #tpu.dot_dimension_numbers<[1], [0], [0], [1], [0, 0, 1, 1], [], []>} : vector<256x128xbf16>, vector<128x128xbf16>, vector<256x128xf32> -> vector<256x128xf32>
    %c0_44 = arith.constant 0 : index
    %c0_45 = arith.constant 0 : index
    %129 = vector.load %arg10[%c0_44, %c0_45] : memref<1x128xf32, #tpu.memory_space<vmem>>, vector<1x128xf32>
    %130 = vector.broadcast %129 : vector<1x128xf32> to vector<256x128xf32>
    %131 = arith.addf %128, %130 : vector<256x128xf32>
    %132 = arith.addf %131, %2 : vector<256x128xf32>
    %cst_46 = arith.constant 0.000000e+00 : f32
    %133 = vector.broadcast %cst_46 : f32 to vector<256x128xf32>
    %134 = arith.maximumf %132, %133 : vector<256x128xf32>
    %135 = vector.shape_cast %134 : vector<256x128xf32> to vector<16x16x128xf32>
    %c0_47 = arith.constant 0 : index
    %c0_48 = arith.constant 0 : index
    %c0_49 = arith.constant 0 : index
    %c0_50 = arith.constant 0 : index
    %136 = vector.load %arg13[%c0_47, %c0_48, %c0_49, %c0_50] : memref<1x16x16x128xf32, #tpu.memory_space<vmem>>, vector<1x16x16x128xf32>
    %137 = vector.shape_cast %136 : vector<1x16x16x128xf32> to vector<16x16x128xf32>
    %138 = vector.shape_cast %135 : vector<16x16x128xf32> to vector<1x16x16x128xf32>
    tpu.vector_store %arg13[%c0_47, %c0_48, %c0_49, %c0_50], %138 {strides = array<i32>} : memref<1x16x16x128xf32, #tpu.memory_space<vmem>>, vector<1x16x16x128xf32>,
    return
  }
  func.func @transform_0(%arg0: i32, %arg1: i32) -> (i32, i32, i32, i32) {
    %c16_i32 = arith.constant 16 : i32
    %0 = arith.muli %arg1, %c16_i32 : i32
    %c1_i32 = arith.constant 1 : i32
    %1 = arith.subi %0, %c1_i32 : i32
    %c0_i32 = arith.constant 0 : i32
    %2 = arith.maxsi %1, %c0_i32 : i32
    %c0_i32_0 = arith.constant 0 : i32
    %c0_i32_1 = arith.constant 0 : i32
    %c0_i32_2 = arith.constant 0 : i32
    return %arg0, %2, %c0_i32_0, %c0_i32_1 : i32, i32, i32, i32
  }
  func.func @transform_1(%arg0: i32, %arg1: i32) -> (i32, i32, i32, i32) {
    %c0_i32 = arith.constant 0 : i32
    %c0_i32_0 = arith.constant 0 : i32
    %c0_i32_1 = arith.constant 0 : i32
    return %arg0, %arg1, %c0_i32, %c0_i32_0 : i32, i32, i32, i32
  }
  func.func @transform_2(%arg0: i32, %arg1: i32) -> (i32, i32, i32, i32) {
    %c16_i32 = arith.constant 16 : i32
    %0 = arith.muli %arg1, %c16_i32 : i32
    %c16_i32_0 = arith.constant 16 : i32
    %1 = arith.addi %0, %c16_i32_0 : i32
    %c15_i32 = arith.constant 15 : i32
    %2 = arith.minsi %1, %c15_i32 : i32
    %c0_i32 = arith.constant 0 : i32
    %c0_i32_1 = arith.constant 0 : i32
    %c0_i32_2 = arith.constant 0 : i32
    return %arg0, %2, %c0_i32, %c0_i32_1 : i32, i32, i32, i32
  }
  func.func @transform_3(%arg0: i32, %arg1: i32) -> (i32, i32) {
    %c0_i32 = arith.constant 0 : i32
    %c0_i32_0 = arith.constant 0 : i32
    %c0_i32_1 = arith.constant 0 : i32
    return %c0_i32, %c0_i32_0 : i32, i32
  }
  func.func @transform_4(%arg0: i32, %arg1: i32) -> (i32, i32) {
    %c0_i32 = arith.constant 0 : i32
    %c0_i32_0 = arith.constant 0 : i32
    %c0_i32_1 = arith.constant 0 : i32
    return %c0_i32, %c0_i32_0 : i32, i32
  }
  func.func @transform_5(%arg0: i32, %arg1: i32) -> (i32, i32, i32) {
    %c0_i32 = arith.constant 0 : i32
    %c0_i32_0 = arith.constant 0 : i32
    %c0_i32_1 = arith.constant 0 : i32
    %c0_i32_2 = arith.constant 0 : i32
    return %c0_i32, %c0_i32_0, %c0_i32_1 : i32, i32, i32
  }
  func.func @transform_6(%arg0: i32, %arg1: i32) -> (i32, i32) {
    %c0_i32 = arith.constant 0 : i32
    %c0_i32_0 = arith.constant 0 : i32
    %c0_i32_1 = arith.constant 0 : i32
    return %c0_i32, %c0_i32_0 : i32, i32
  }
  func.func @transform_7(%arg0: i32, %arg1: i32) -> (i32, i32) {
    %c0_i32 = arith.constant 0 : i32
    %c0_i32_0 = arith.constant 0 : i32
    %c0_i32_1 = arith.constant 0 : i32
    return %c0_i32, %c0_i32_0 : i32, i32
  }
  func.func @transform_8(%arg0: i32, %arg1: i32) -> (i32, i32) {
    %c0_i32 = arith.constant 0 : i32
    %c0_i32_0 = arith.constant 0 : i32
    %c0_i32_1 = arith.constant 0 : i32
    return %c0_i32, %c0_i32_0 : i32, i32
  }
  func.func @transform_9(%arg0: i32, %arg1: i32) -> (i32, i32) {
    %c0_i32 = arith.constant 0 : i32
    %c0_i32_0 = arith.constant 0 : i32
    %c0_i32_1 = arith.constant 0 : i32
    return %c0_i32, %c0_i32_0 : i32, i32
  }
  func.func @transform_10(%arg0: i32, %arg1: i32) -> (i32, i32) {
    %c0_i32 = arith.constant 0 : i32
    %c0_i32_0 = arith.constant 0 : i32
    %c0_i32_1 = arith.constant 0 : i32
    return %c0_i32, %c0_i32_0 : i32, i32
  }
  func.func @transform_11(%arg0: i32, %arg1: i32) -> (i32, i32, i32, i32) {
    %c0_i32 = arith.constant 0 : i32
    %c0_i32_0 = arith.constant 0 : i32
    %c0_i32_1 = arith.constant 0 : i32
    return %arg0, %arg1, %c0_i32, %c0_i32_0 : i32, i32, i32, i32
  }
}

module attributes {stable_mosaic.version = 11 : i64} {
  func.func @kernel(%arg0: i32, %arg1: i32, %arg2: memref<1x1x16x128xf32, #tpu.memory_space<vmem>>, %arg3: memref<1x16x16x128xf32, #tpu.memory_space<vmem>>, %arg4: memref<1x1x16x128xf32, #tpu.memory_space<vmem>>, %arg5: memref<128x128xbf16, #tpu.memory_space<vmem>>, %arg6: memref<1x128xf32, #tpu.memory_space<vmem>>, %arg7: memref<3x3x128xf32, #tpu.memory_space<vmem>>, %arg8: memref<1x128xf32, #tpu.memory_space<vmem>>, %arg9: memref<128x128xbf16, #tpu.memory_space<vmem>>, %arg10: memref<1x128xf32, #tpu.memory_space<vmem>>, %arg11: memref<288x1xf32, #tpu.memory_space<vmem>>, %arg12: memref<288x1xf32, #tpu.memory_space<vmem>>, %arg13: memref<1x16x16x128xf32, #tpu.memory_space<vmem>>, %arg14: memref<288x128xf32, #tpu.memory_space<vmem>>) attributes {dimension_semantics = [#tpu.dimension_semantics<parallel>, #tpu.dimension_semantics<parallel>], iteration_bounds = array<i64: 2, 1>, scalar_prefetch = 0 : i64, scratch_operands = 1 : i64, tpu.core_type = #tpu.core_type<tc>, window_params = [{transform_indices = @transform_0, window_bounds = array<i64: 1, 1, 16, 128>}, {transform_indices = @transform_1, window_bounds = array<i64: 1, 16, 16, 128>}, {transform_indices = @transform_2, window_bounds = array<i64: 1, 1, 16, 128>}, {pipeline_mode = #tpu.pipeline_mode<synchronous>, transform_indices = @transform_3, window_bounds = array<i64: 128, 128>}, {pipeline_mode = #tpu.pipeline_mode<synchronous>, transform_indices = @transform_4, window_bounds = array<i64: 1, 128>}, {pipeline_mode = #tpu.pipeline_mode<synchronous>, transform_indices = @transform_5, window_bounds = array<i64: 3, 3, 128>}, {pipeline_mode = #tpu.pipeline_mode<synchronous>, transform_indices = @transform_6, window_bounds = array<i64: 1, 128>}, {pipeline_mode = #tpu.pipeline_mode<synchronous>, transform_indices = @transform_7, window_bounds = array<i64: 128, 128>}, {pipeline_mode = #tpu.pipeline_mode<synchronous>, transform_indices = @transform_8, window_bounds = array<i64: 1, 128>}, {pipeline_mode = #tpu.pipeline_mode<synchronous>, transform_indices = @transform_9, window_bounds = array<i64: 288, 1>}, {pipeline_mode = #tpu.pipeline_mode<synchronous>, transform_indices = @transform_10, window_bounds = array<i64: 288, 1>}, {transform_indices = @transform_11, window_bounds = array<i64: 1, 16, 16, 128>}]} {
    %c0 = arith.constant 0 : index
    %c0_0 = arith.constant 0 : index
    %c0_1 = arith.constant 0 : index
    %c0_2 = arith.constant 0 : index
    %0 = vector.load %arg3[%c0, %c0_0, %c0_1, %c0_2] : memref<1x16x16x128xf32, #tpu.memory_space<vmem>>, vector<1x16x16x128xf32>
    %1 = vector.shape_cast %0 : vector<1x16x16x128xf32> to vector<16x16x128xf32>
    %2 = vector.shape_cast %1 : vector<16x16x128xf32> to vector<256x128xf32>
    %3 = arith.truncf %2 : vector<256x128xf32> to vector<256x128xbf16>
    %c0_3 = arith.constant 0 : index
    %c0_4 = arith.constant 0 : index
    %4 = vector.load %arg5[%c0_3, %c0_4] : memref<128x128xbf16, #tpu.memory_space<vmem>>, vector<128x128xbf16>
    %cst = arith.constant dense<0.000000e+00> : vector<256x128xf32>
    %5 = tpu.matmul %3, %4, %cst {dimension_numbers = #tpu.dot_dimension_numbers<[1], [0], [0], [1], [0, 0, 1, 1], [], []>} : vector<256x128xbf16>, vector<128x128xbf16>, vector<256x128xf32> -> vector<256x128xf32>
    %c0_5 = arith.constant 0 : index
    %c0_6 = arith.constant 0 : index
    %6 = vector.load %arg6[%c0_5, %c0_6] : memref<1x128xf32, #tpu.memory_space<vmem>>, vector<1x128xf32>
    %7 = vector.broadcast %6 : vector<1x128xf32> to vector<256x128xf32>
    %8 = arith.addf %5, %7 : vector<256x128xf32>
    %cst_7 = arith.constant 0.000000e+00 : f32
    %9 = vector.broadcast %cst_7 : f32 to vector<256x128xf32>
    %10 = arith.maximumf %8, %9 : vector<256x128xf32>
    %c16 = arith.constant 16 : index
    %c0_8 = arith.constant 0 : index
    %11 = vector.load %arg14[%c16, %c0_8] : memref<288x128xf32, #tpu.memory_space<vmem>>, vector<256x128xf32>
    tpu.vector_store %arg14[%c16, %c0_8], %10 {strides = array<i32>} : memref<288x128xf32, #tpu.memory_space<vmem>>, vector<256x128xf32>,
    %c0_9 = arith.constant 0 : index
    %c0_10 = arith.constant 0 : index
    %c0_11 = arith.constant 0 : index
    %c0_12 = arith.constant 0 : index
    %12 = vector.load %arg2[%c0_9, %c0_10, %c0_11, %c0_12] : memref<1x1x16x128xf32, #tpu.memory_space<vmem>>, vector<1x1x16x128xf32>
    %13 = vector.shape_cast %12 : vector<1x1x16x128xf32> to vector<16x128xf32>
    %c0_13 = arith.constant 0 : index
    %c0_14 = arith.constant 0 : index
    %c0_15 = arith.constant 0 : index
    %c0_16 = arith.constant 0 : index
    %14 = vector.load %arg4[%c0_13, %c0_14, %c0_15, %c0_16] : memref<1x1x16x128xf32, #tpu.memory_space<vmem>>, vector<1x1x16x128xf32>
    %15 = vector.shape_cast %14 : vector<1x1x16x128xf32> to vector<16x128xf32>
    %16 = tpu.concatenate %13, %15 in 0 : vector<16x128xf32>, vector<16x128xf32> -> vector<32x128xf32>
    %17 = arith.truncf %16 : vector<32x128xf32> to vector<32x128xbf16>
    %c0_17 = arith.constant 0 : index
    %c0_18 = arith.constant 0 : index
    %18 = vector.load %arg5[%c0_17, %c0_18] : memref<128x128xbf16, #tpu.memory_space<vmem>>, vector<128x128xbf16>
    %cst_19 = arith.constant dense<0.000000e+00> : vector<32x128xf32>
    %19 = tpu.matmul %17, %18, %cst_19 {dimension_numbers = #tpu.dot_dimension_numbers<[1], [0], [0], [1], [0, 0, 1, 1], [], []>} : vector<32x128xbf16>, vector<128x128xbf16>, vector<32x128xf32> -> vector<32x128xf32>
    %c0_20 = arith.constant 0 : index
    %c0_21 = arith.constant 0 : index
    %20 = vector.load %arg6[%c0_20, %c0_21] : memref<1x128xf32, #tpu.memory_space<vmem>>, vector<1x128xf32>
    %21 = vector.broadcast %20 : vector<1x128xf32> to vector<32x128xf32>
    %22 = arith.addf %19, %21 : vector<32x128xf32>
    %cst_22 = arith.constant 0.000000e+00 : f32
    %23 = vector.broadcast %cst_22 : f32 to vector<32x128xf32>
    %24 = arith.maximumf %22, %23 : vector<32x128xf32>
    %25 = vector.extract_strided_slice %24 {offsets = [0, 0], sizes = [16, 128], strides = [1, 1]} : vector<32x128xf32> to vector<16x128xf32>
    %c0_23 = arith.constant 0 : index
    %c0_24 = arith.constant 0 : index
    %26 = vector.load %arg14[%c0_23, %c0_24] : memref<288x128xf32, #tpu.memory_space<vmem>>, vector<16x128xf32>
    tpu.vector_store %arg14[%c0_23, %c0_24], %25 {strides = array<i32>} : memref<288x128xf32, #tpu.memory_space<vmem>>, vector<16x128xf32>,
    %27 = vector.extract_strided_slice %24 {offsets = [16, 0], sizes = [16, 128], strides = [1, 1]} : vector<32x128xf32> to vector<16x128xf32>
    %c272 = arith.constant 272 : index
    %c0_25 = arith.constant 0 : index
    %28 = vector.load %arg14[%c272, %c0_25] : memref<288x128xf32, #tpu.memory_space<vmem>>, vector<16x128xf32>
    tpu.vector_store %arg14[%c272, %c0_25], %27 {strides = array<i32>} : memref<288x128xf32, #tpu.memory_space<vmem>>, vector<16x128xf32>,
    %c0_i32 = arith.constant 0 : i32
    %29 = arith.cmpi eq, %arg1, %c0_i32 : i32
    %30 = arith.extui %29 : i1 to i32
    %c0_i32_26 = arith.constant 0 : i32
    %31 = arith.cmpi ne, %30, %c0_i32_26 : i32
    scf.if %31 {
      %cst_51 = arith.constant 0.000000e+00 : f32
      %143 = vector.broadcast %cst_51 : f32 to vector<16x128xf32>
      %c0_52 = arith.constant 0 : index
      %c0_53 = arith.constant 0 : index
      %144 = vector.load %arg14[%c0_52, %c0_53] : memref<288x128xf32, #tpu.memory_space<vmem>>, vector<16x128xf32>
      tpu.vector_store %arg14[%c0_52, %c0_53], %143 {strides = array<i32>} : memref<288x128xf32, #tpu.memory_space<vmem>>, vector<16x128xf32>,
    } else {
    }
    %c0_i32_27 = arith.constant 0 : i32
    %32 = arith.cmpi eq, %arg1, %c0_i32_27 : i32
    %33 = arith.extui %32 : i1 to i32
    %c0_i32_28 = arith.constant 0 : i32
    %34 = arith.cmpi ne, %33, %c0_i32_28 : i32
    scf.if %34 {
      %cst_51 = arith.constant 0.000000e+00 : f32
      %143 = vector.broadcast %cst_51 : f32 to vector<16x128xf32>
      %c272_52 = arith.constant 272 : index
      %c0_53 = arith.constant 0 : index
      %144 = vector.load %arg14[%c272_52, %c0_53] : memref<288x128xf32, #tpu.memory_space<vmem>>, vector<16x128xf32>
      tpu.vector_store %arg14[%c272_52, %c0_53], %143 {strides = array<i32>} : memref<288x128xf32, #tpu.memory_space<vmem>>, vector<16x128xf32>,
    } else {
    }
    %c0_29 = arith.constant 0 : index
    %c0_30 = arith.constant 0 : index
    %35 = vector.load %arg14[%c0_29, %c0_30] : memref<288x128xf32, #tpu.memory_space<vmem>>, vector<288x128xf32>
    %36 = vector.extract_strided_slice %35 {offsets = [0, 0], sizes = [1, 128], strides = [1, 1]} : vector<288x128xf32> to vector<1x128xf32>
    %37 = vector.extract_strided_slice %35 {offsets = [0, 0], sizes = [287, 128], strides = [1, 1]} : vector<288x128xf32> to vector<287x128xf32>
    %38 = tpu.concatenate %36, %37 in 0 : vector<1x128xf32>, vector<287x128xf32> -> vector<288x128xf32>
    %39 = vector.extract_strided_slice %35 {offsets = [1, 0], sizes = [287, 128], strides = [1, 1]} : vector<288x128xf32> to vector<287x128xf32>
    %40 = vector.extract_strided_slice %35 {offsets = [287, 0], sizes = [1, 128], strides = [1, 1]} : vector<288x128xf32> to vector<1x128xf32>
    %41 = tpu.concatenate %39, %40 in 0 : vector<287x128xf32>, vector<1x128xf32> -> vector<288x128xf32>
    %c0_31 = arith.constant 0 : index
    %c0_32 = arith.constant 0 : index
    %42 = vector.load %arg11[%c0_31, %c0_32] : memref<288x1xf32, #tpu.memory_space<vmem>>, vector<288x1xf32>
    %43 = vector.broadcast %42 : vector<288x1xf32> to vector<288x128xf32>
    %44 = arith.mulf %38, %43 : vector<288x128xf32>
    %c0_33 = arith.constant 0 : index
    %c0_34 = arith.constant 0 : index
    %45 = vector.load %arg12[%c0_33, %c0_34] : memref<288x1xf32, #tpu.memory_space<vmem>>, vector<288x1xf32>
    %46 = vector.broadcast %45 : vector<288x1xf32> to vector<288x128xf32>
    %47 = arith.mulf %41, %46 : vector<288x128xf32>
    %48 = arith.truncf %35 : vector<288x128xf32> to vector<288x128xbf16>
    %49 = arith.truncf %44 : vector<288x128xf32> to vector<288x128xbf16>
    %50 = arith.truncf %47 : vector<288x128xf32> to vector<288x128xbf16>
    %c0_35 = arith.constant 0 : index
    %c0_36 = arith.constant 0 : index
    %c0_37 = arith.constant 0 : index
    %51 = vector.load %arg7[%c0_35, %c0_36, %c0_37] : memref<3x3x128xf32, #tpu.memory_space<vmem>>, vector<3x3x128xf32>
    %52 = arith.truncf %51 : vector<3x3x128xf32> to vector<3x3x128xbf16>
    %53 = vector.extract_strided_slice %52 {offsets = [0, 0, 0], sizes = [1, 1, 128], strides = [1, 1, 1]} : vector<3x3x128xbf16> to vector<1x1x128xbf16>
    %54 = vector.shape_cast %53 : vector<1x1x128xbf16> to vector<128xbf16>
    %55 = vector.shape_cast %54 : vector<128xbf16> to vector<1x128xbf16>
    %56 = vector.extract_strided_slice %52 {offsets = [0, 1, 0], sizes = [1, 1, 128], strides = [1, 1, 1]} : vector<3x3x128xbf16> to vector<1x1x128xbf16>
    %57 = vector.shape_cast %56 : vector<1x1x128xbf16> to vector<128xbf16>
    %58 = vector.shape_cast %57 : vector<128xbf16> to vector<1x128xbf16>
    %59 = vector.extract_strided_slice %52 {offsets = [0, 2, 0], sizes = [1, 1, 128], strides = [1, 1, 1]} : vector<3x3x128xbf16> to vector<1x1x128xbf16>
    %60 = vector.shape_cast %59 : vector<1x1x128xbf16> to vector<128xbf16>
    %61 = vector.shape_cast %60 : vector<128xbf16> to vector<1x128xbf16>
    %62 = vector.extract_strided_slice %52 {offsets = [1, 0, 0], sizes = [1, 1, 128], strides = [1, 1, 1]} : vector<3x3x128xbf16> to vector<1x1x128xbf16>
    %63 = vector.shape_cast %62 : vector<1x1x128xbf16> to vector<128xbf16>
    %64 = vector.shape_cast %63 : vector<128xbf16> to vector<1x128xbf16>
    %65 = vector.extract_strided_slice %52 {offsets = [1, 1, 0], sizes = [1, 1, 128], strides = [1, 1, 1]} : vector<3x3x128xbf16> to vector<1x1x128xbf16>
    %66 = vector.shape_cast %65 : vector<1x1x128xbf16> to vector<128xbf16>
    %67 = vector.shape_cast %66 : vector<128xbf16> to vector<1x128xbf16>
    %68 = vector.extract_strided_slice %52 {offsets = [1, 2, 0], sizes = [1, 1, 128], strides = [1, 1, 1]} : vector<3x3x128xbf16> to vector<1x1x128xbf16>
    %69 = vector.shape_cast %68 : vector<1x1x128xbf16> to vector<128xbf16>
    %70 = vector.shape_cast %69 : vector<128xbf16> to vector<1x128xbf16>
    %71 = vector.extract_strided_slice %52 {offsets = [2, 0, 0], sizes = [1, 1, 128], strides = [1, 1, 1]} : vector<3x3x128xbf16> to vector<1x1x128xbf16>
    %72 = vector.shape_cast %71 : vector<1x1x128xbf16> to vector<128xbf16>
    %73 = vector.shape_cast %72 : vector<128xbf16> to vector<1x128xbf16>
    %74 = vector.extract_strided_slice %52 {offsets = [2, 1, 0], sizes = [1, 1, 128], strides = [1, 1, 1]} : vector<3x3x128xbf16> to vector<1x1x128xbf16>
    %75 = vector.shape_cast %74 : vector<1x1x128xbf16> to vector<128xbf16>
    %76 = vector.shape_cast %75 : vector<128xbf16> to vector<1x128xbf16>
    %77 = vector.extract_strided_slice %52 {offsets = [2, 2, 0], sizes = [1, 1, 128], strides = [1, 1, 1]} : vector<3x3x128xbf16> to vector<1x1x128xbf16>
    %78 = vector.shape_cast %77 : vector<1x1x128xbf16> to vector<128xbf16>
    %79 = vector.shape_cast %78 : vector<128xbf16> to vector<1x128xbf16>
    %c0_38 = arith.constant 0 : index
    %c0_39 = arith.constant 0 : index
    %80 = vector.load %arg8[%c0_38, %c0_39] : memref<1x128xf32, #tpu.memory_space<vmem>>, vector<1x128xf32>
    %81 = vector.shape_cast %80 : vector<1x128xf32> to vector<1x128xf32>
    %82 = vector.broadcast %81 : vector<1x128xf32> to vector<256x128xf32>
    %83 = vector.extract_strided_slice %49 {offsets = [0, 0], sizes = [256, 128], strides = [1, 1]} : vector<288x128xbf16> to vector<256x128xbf16>
    %84 = vector.extract_strided_slice %48 {offsets = [0, 0], sizes = [256, 128], strides = [1, 1]} : vector<288x128xbf16> to vector<256x128xbf16>
    %85 = vector.extract_strided_slice %50 {offsets = [0, 0], sizes = [256, 128], strides = [1, 1]} : vector<288x128xbf16> to vector<256x128xbf16>
    %86 = vector.broadcast %55 : vector<1x128xbf16> to vector<256x128xbf16>
    %87 = arith.mulf %83, %86 : vector<256x128xbf16>
    %88 = arith.extf %87 : vector<256x128xbf16> to vector<256x128xf32>
    %89 = arith.addf %82, %88 : vector<256x128xf32>
    %90 = vector.broadcast %58 : vector<1x128xbf16> to vector<256x128xbf16>
    %91 = arith.mulf %84, %90 : vector<256x128xbf16>
    %92 = arith.extf %91 : vector<256x128xbf16> to vector<256x128xf32>
    %93 = arith.addf %89, %92 : vector<256x128xf32>
    %94 = vector.broadcast %61 : vector<1x128xbf16> to vector<256x128xbf16>
    %95 = arith.mulf %85, %94 : vector<256x128xbf16>
    %96 = arith.extf %95 : vector<256x128xbf16> to vector<256x128xf32>
    %97 = arith.addf %93, %96 : vector<256x128xf32>
    %98 = vector.extract_strided_slice %49 {offsets = [16, 0], sizes = [256, 128], strides = [1, 1]} : vector<288x128xbf16> to vector<256x128xbf16>
    %99 = vector.extract_strided_slice %48 {offsets = [16, 0], sizes = [256, 128], strides = [1, 1]} : vector<288x128xbf16> to vector<256x128xbf16>
    %100 = vector.extract_strided_slice %50 {offsets = [16, 0], sizes = [256, 128], strides = [1, 1]} : vector<288x128xbf16> to vector<256x128xbf16>
    %101 = vector.broadcast %64 : vector<1x128xbf16> to vector<256x128xbf16>
    %102 = arith.mulf %98, %101 : vector<256x128xbf16>
    %103 = arith.extf %102 : vector<256x128xbf16> to vector<256x128xf32>
    %104 = arith.addf %97, %103 : vector<256x128xf32>
    %105 = vector.broadcast %67 : vector<1x128xbf16> to vector<256x128xbf16>
    %106 = arith.mulf %99, %105 : vector<256x128xbf16>
    %107 = arith.extf %106 : vector<256x128xbf16> to vector<256x128xf32>
    %108 = arith.addf %104, %107 : vector<256x128xf32>
    %109 = vector.broadcast %70 : vector<1x128xbf16> to vector<256x128xbf16>
    %110 = arith.mulf %100, %109 : vector<256x128xbf16>
    %111 = arith.extf %110 : vector<256x128xbf16> to vector<256x128xf32>
    %112 = arith.addf %108, %111 : vector<256x128xf32>
    %113 = vector.extract_strided_slice %49 {offsets = [32, 0], sizes = [256, 128], strides = [1, 1]} : vector<288x128xbf16> to vector<256x128xbf16>
    %114 = vector.extract_strided_slice %48 {offsets = [32, 0], sizes = [256, 128], strides = [1, 1]} : vector<288x128xbf16> to vector<256x128xbf16>
    %115 = vector.extract_strided_slice %50 {offsets = [32, 0], sizes = [256, 128], strides = [1, 1]} : vector<288x128xbf16> to vector<256x128xbf16>
    %116 = vector.broadcast %73 : vector<1x128xbf16> to vector<256x128xbf16>
    %117 = arith.mulf %113, %116 : vector<256x128xbf16>
    %118 = arith.extf %117 : vector<256x128xbf16> to vector<256x128xf32>
    %119 = arith.addf %112, %118 : vector<256x128xf32>
    %120 = vector.broadcast %76 : vector<1x128xbf16> to vector<256x128xbf16>
    %121 = arith.mulf %114, %120 : vector<256x128xbf16>
    %122 = arith.extf %121 : vector<256x128xbf16> to vector<256x128xf32>
    %123 = arith.addf %119, %122 : vector<256x128xf32>
    %124 = vector.broadcast %79 : vector<1x128xbf16> to vector<256x128xbf16>
    %125 = arith.mulf %115, %124 : vector<256x128xbf16>
    %126 = arith.extf %125 : vector<256x128xbf16> to vector<256x128xf32>
    %127 = arith.addf %123, %126 : vector<256x128xf32>
    %cst_40 = arith.constant 0.000000e+00 : f32
    %128 = vector.broadcast %cst_40 : f32 to vector<256x128xf32>
    %129 = arith.maximumf %127, %128 : vector<256x128xf32>
    %130 = arith.truncf %129 : vector<256x128xf32> to vector<256x128xbf16>
    %c0_41 = arith.constant 0 : index
    %c0_42 = arith.constant 0 : index
    %131 = vector.load %arg9[%c0_41, %c0_42] : memref<128x128xbf16, #tpu.memory_space<vmem>>, vector<128x128xbf16>
    %cst_43 = arith.constant dense<0.000000e+00> : vector<256x128xf32>
    %132 = tpu.matmul %130, %131, %cst_43 {dimension_numbers = #tpu.dot_dimension_numbers<[1], [0], [0], [1], [0, 0, 1, 1], [], []>} : vector<256x128xbf16>, vector<128x128xbf16>, vector<256x128xf32> -> vector<256x128xf32>
    %c0_44 = arith.constant 0 : index
    %c0_45 = arith.constant 0 : index
    %133 = vector.load %arg10[%c0_44, %c0_45] : memref<1x128xf32, #tpu.memory_space<vmem>>, vector<1x128xf32>
    %134 = vector.broadcast %133 : vector<1x128xf32> to vector<256x128xf32>
    %135 = arith.addf %132, %134 : vector<256x128xf32>
    %136 = arith.addf %135, %2 : vector<256x128xf32>
    %cst_46 = arith.constant 0.000000e+00 : f32
    %137 = vector.broadcast %cst_46 : f32 to vector<256x128xf32>
    %138 = arith.maximumf %136, %137 : vector<256x128xf32>
    %139 = vector.shape_cast %138 : vector<256x128xf32> to vector<16x16x128xf32>
    %c0_47 = arith.constant 0 : index
    %c0_48 = arith.constant 0 : index
    %c0_49 = arith.constant 0 : index
    %c0_50 = arith.constant 0 : index
    %140 = vector.load %arg13[%c0_47, %c0_48, %c0_49, %c0_50] : memref<1x16x16x128xf32, #tpu.memory_space<vmem>>, vector<1x16x16x128xf32>
    %141 = vector.shape_cast %140 : vector<1x16x16x128xf32> to vector<16x16x128xf32>
    %142 = vector.shape_cast %139 : vector<16x16x128xf32> to vector<1x16x16x128xf32>
    tpu.vector_store %arg13[%c0_47, %c0_48, %c0_49, %c0_50], %142 {strides = array<i32>} : memref<1x16x16x128xf32, #tpu.memory_space<vmem>>, vector<1x16x16x128xf32>,
    return
  }
  func.func @transform_0(%arg0: i32, %arg1: i32) -> (i32, i32, i32, i32) {
    %c16_i32 = arith.constant 16 : i32
    %0 = arith.muli %arg1, %c16_i32 : i32
    %c1_i32 = arith.constant 1 : i32
    %1 = arith.subi %0, %c1_i32 : i32
    %c0_i32 = arith.constant 0 : i32
    %2 = arith.maxsi %1, %c0_i32 : i32
    %c0_i32_0 = arith.constant 0 : i32
    %c0_i32_1 = arith.constant 0 : i32
    %c0_i32_2 = arith.constant 0 : i32
    return %arg0, %2, %c0_i32_0, %c0_i32_1 : i32, i32, i32, i32
  }
  func.func @transform_1(%arg0: i32, %arg1: i32) -> (i32, i32, i32, i32) {
    %c0_i32 = arith.constant 0 : i32
    %c0_i32_0 = arith.constant 0 : i32
    %c0_i32_1 = arith.constant 0 : i32
    return %arg0, %arg1, %c0_i32, %c0_i32_0 : i32, i32, i32, i32
  }
  func.func @transform_2(%arg0: i32, %arg1: i32) -> (i32, i32, i32, i32) {
    %c16_i32 = arith.constant 16 : i32
    %0 = arith.muli %arg1, %c16_i32 : i32
    %c16_i32_0 = arith.constant 16 : i32
    %1 = arith.addi %0, %c16_i32_0 : i32
    %c15_i32 = arith.constant 15 : i32
    %2 = arith.minsi %1, %c15_i32 : i32
    %c0_i32 = arith.constant 0 : i32
    %c0_i32_1 = arith.constant 0 : i32
    %c0_i32_2 = arith.constant 0 : i32
    return %arg0, %2, %c0_i32, %c0_i32_1 : i32, i32, i32, i32
  }
  func.func @transform_3(%arg0: i32, %arg1: i32) -> (i32, i32) {
    %c0_i32 = arith.constant 0 : i32
    %c0_i32_0 = arith.constant 0 : i32
    %c0_i32_1 = arith.constant 0 : i32
    return %c0_i32, %c0_i32_0 : i32, i32
  }
  func.func @transform_4(%arg0: i32, %arg1: i32) -> (i32, i32) {
    %c0_i32 = arith.constant 0 : i32
    %c0_i32_0 = arith.constant 0 : i32
    %c0_i32_1 = arith.constant 0 : i32
    return %c0_i32, %c0_i32_0 : i32, i32
  }
  func.func @transform_5(%arg0: i32, %arg1: i32) -> (i32, i32, i32) {
    %c0_i32 = arith.constant 0 : i32
    %c0_i32_0 = arith.constant 0 : i32
    %c0_i32_1 = arith.constant 0 : i32
    %c0_i32_2 = arith.constant 0 : i32
    return %c0_i32, %c0_i32_0, %c0_i32_1 : i32, i32, i32
  }
  func.func @transform_6(%arg0: i32, %arg1: i32) -> (i32, i32) {
    %c0_i32 = arith.constant 0 : i32
    %c0_i32_0 = arith.constant 0 : i32
    %c0_i32_1 = arith.constant 0 : i32
    return %c0_i32, %c0_i32_0 : i32, i32
  }
  func.func @transform_7(%arg0: i32, %arg1: i32) -> (i32, i32) {
    %c0_i32 = arith.constant 0 : i32
    %c0_i32_0 = arith.constant 0 : i32
    %c0_i32_1 = arith.constant 0 : i32
    return %c0_i32, %c0_i32_0 : i32, i32
  }
  func.func @transform_8(%arg0: i32, %arg1: i32) -> (i32, i32) {
    %c0_i32 = arith.constant 0 : i32
    %c0_i32_0 = arith.constant 0 : i32
    %c0_i32_1 = arith.constant 0 : i32
    return %c0_i32, %c0_i32_0 : i32, i32
  }
  func.func @transform_9(%arg0: i32, %arg1: i32) -> (i32, i32) {
    %c0_i32 = arith.constant 0 : i32
    %c0_i32_0 = arith.constant 0 : i32
    %c0_i32_1 = arith.constant 0 : i32
    return %c0_i32, %c0_i32_0 : i32, i32
  }
  func.func @transform_10(%arg0: i32, %arg1: i32) -> (i32, i32) {
    %c0_i32 = arith.constant 0 : i32
    %c0_i32_0 = arith.constant 0 : i32
    %c0_i32_1 = arith.constant 0 : i32
    return %c0_i32, %c0_i32_0 : i32, i32
  }
  func.func @transform_11(%arg0: i32, %arg1: i32) -> (i32, i32, i32, i32) {
    %c0_i32 = arith.constant 0 : i32
    %c0_i32_0 = arith.constant 0 : i32
    %c0_i32_1 = arith.constant 0 : i32
    return %arg0, %arg1, %c0_i32, %c0_i32_0 : i32, i32, i32, i32
  }
}

</mosaic_0001>

<llo_original>
// kernel: tpu_custom_call.1
$region0: #{tpu_custom_call.1}
  #allocation0 [shape = 'u32[]', space=smem, size = 0x4, offset = 0x4, fixed_abs, tag = 'smem constant byte address 0x4 - core index']
  #allocation1 [shape = 'u32[144,128]{1,0:T(1,128)}', space=vmem, size = 0x12000, scoped, tag = 'internal scratch']
  #allocation2 [shape = 'f32[288,128]{1,0:T(8,128)}', space=vmem, size = 0x24000, scoped, tag = 'scratch operand']
  %s0 = inlined_call_operand.vmem [shape: f32[2,16,16,128], index: 0, kind: input, shape index: {}]
  %s1 = inlined_call_operand.hbm [shape: f32[2,16,16,128], index: 1, kind: input, shape index: {}]
  %s2 = inlined_call_operand.hbm [shape: f32[2,16,16,128], index: 2, kind: input, shape index: {}]
  %s3 = inlined_call_operand.vmem [shape: bf16[128,128], index: 3, kind: input, shape index: {}]
  %s4 = inlined_call_operand.hbm [shape: f32[1,128], index: 4, kind: input, shape index: {}]
  %s5 = inlined_call_operand.vmem [shape: f32[3,3,128], index: 5, kind: input, shape index: {}]
  %s6 = inlined_call_operand.hbm [shape: f32[1,128], index: 6, kind: input, shape index: {}]
  %s7 = inlined_call_operand.hbm [shape: bf16[128,128], index: 7, kind: input, shape index: {}]
  %s8 = inlined_call_operand.vmem [shape: f32[1,128], index: 8, kind: input, shape index: {}]
  %s9 = inlined_call_operand.vmem [shape: f32[288,1], index: 9, kind: input, shape index: {}]
  %s10 = inlined_call_operand.vmem [shape: f32[288,1], index: 10, kind: input, shape index: {}]
  %s11 = inlined_call_operand.hbm [shape: f32[2,16,16,128], index: 11, kind: output, shape index: {}]
  %s12 = sld [smem:[#allocation0]]
  $region101: #{tpu_custom_call.1} parent=0
    _
  %s14 = ssub.s32 1, %s12
  %s15 = scalar_select 0, %s14, %s12
  $region1: #{tpu_custom_call.1} parent=0
    #allocation3 [shape = 'u8[262144]{0}', space=vmem, size = 0x40000, scoped, tag = 'input window, operand 1']
    #allocation4 [shape = 's32[2]{0}', space=sflag, size = 0x8, scoped, tag = 'scoped memory for tpu_custom_call.1']
    #allocation5 [shape = 's32[2]{0}', space=sflag, size = 0x8, scoped, tag = 'scoped memory for tpu_custom_call.1']
    #allocation6 [shape = 'u8[16384]{0}', space=vmem, size = 0x4000, scoped, tag = 'input window, operand 2']
    #allocation7 [shape = 's32[2]{0}', space=sflag, size = 0x8, scoped, tag = 'scoped memory for tpu_custom_call.1']
    #allocation8 [shape = 'u8[512]{0}', space=vmem, size = 0x400, scoped, tag = 'input window, operand 4, single buffered']
    #allocation9 [shape = 'u8[512]{0}', space=vmem, size = 0x400, scoped, tag = 'input window, operand 6, single buffered']
    #allocation10 [shape = 's32[1]{0}', space=sflag, size = 0x4, scoped, tag = 'scoped memory for tpu_custom_call.1']
    #allocation11 [shape = 'u8[32768]{0}', space=vmem, size = 0x8000, scoped, tag = 'input window, operand 7, single buffered']
    #allocation12 [shape = 'u8[262144]{0}', space=vmem, size = 0x40000, scoped, tag = 'output window, operand 0']
    %16 = vsyncpa [#allocation4], 0
    %s17 = scalar_lea.sflag [#allocation4], 1
    %18 = vsyncpa %s17, 0
    %19 = vsyncpa [#allocation7], 0
    %s20 = scalar_lea.sflag [#allocation7], 1
    %21 = vsyncpa %s20, 0
    %22 = vsyncpa [#allocation10], 0
    %23 = vsyncpa [#allocation5], 0
    %s24 = scalar_lea.sflag [#allocation5], 1
    %25 = vsyncpa %s24, 0
    loop: start=0, step=1, limit=4
    $region2: #{tpu_custom_call.1} parent=1 // loop_pre_header
      _
    $region3: #{tpu_custom_call.1} parent=1 // loop_header
      %s27 = sphi 0, %s31
      %p28 = scmp.ge.s32.totalorder %s27, 4
      %s34 = sphi 0, %s46
      %s35 = sphi 0, %s42
      %s36 = sphi 0, %s34
      %s37 = sphi 0, %s35
      %s38 = sphi 0, %s36
      %s39 = sphi 0, %s37
      %s59 = sphi 0, %s61
      %s62 = sphi 0, %s59
      %s63 = sphi 0, %s62
      %s79 = sphi 0, %s63
      %s87 = sphi 0, %s89
      %s90 = sphi 0, %s87
      %s91 = sphi 0, %s90
      %s107 = sphi 0, %s91
      %s123 = sphi 0, %s125
      %s126 = sphi 0, %s123
      %s127 = sphi 0, %s126
      %s143 = sphi 0, %s127
      %s147 = sphi 0, %s147
      %s149 = sphi 0, %s147
      %s150 = sphi 0, %s149
      %s164 = sphi 0, %s150
      %s168 = sphi 0, %s168
      %s170 = sphi 0, %s168
      %s171 = sphi 0, %s170
      %s185 = sphi 0, %s171
      %s189 = sphi 0, %s189
      %s191 = sphi 0, %s189
      %s192 = sphi 0, %s191
      %s206 = sphi 0, %s192
      %s210 = sphi 0, %s210
      %s212 = sphi 0, %s210
      %s213 = sphi 0, %s212
      %s227 = sphi 0, %s213
      %s231 = sphi 0, %s231
      %s233 = sphi 0, %s231
      %s234 = sphi 0, %s233
      %s248 = sphi 0, %s234
      %s252 = sphi 0, %s252
      %s254 = sphi 0, %s252
      %s255 = sphi 0, %s254
      %s269 = sphi 0, %s255
      %s273 = sphi 0, %s273
      %s275 = sphi 0, %s273
      %s276 = sphi 0, %s275
      %s290 = sphi 0, %s276
      %s294 = sphi 0, %s294
      %s296 = sphi 0, %s294
      %s297 = sphi 0, %s296
      %s311 = sphi 0, %s297
      %s319 = sphi 0, %s321
      %s322 = sphi 0, %s319
      %s323 = sphi 0, %s322
      %s339 = sphi 0, %s323
    $region4: #{tpu_custom_call.1} parent=1 // loop_header_branch
      %30 = sbr.rel (%p28) target = $region8
    $region5: #{tpu_custom_call.1} parent=1 // loop_body
      %s32 = ssub.s32 %s27, 1
      %s33 = ssub.s32 %s27, 2
      %s40 = sadd.s32 1, %s35
      %p41 = scmp.ge.s32.totalorder %s40, 1
      %s42 = scalar_select %p41, 0, %s40
      %s43 = sadd.s32 1, %s34
      %s44 = scalar_select %p41, %s43, %s34
      %p45 = scmp.ge.s32.totalorder %s44, 2
      %s46 = scalar_select %p45, 0, %s44
      %s47 = smul.u32 %s35, 16
      %s48 = ssub.s32 %s47, 1
      %p49 = scmp.gt.s32.totalorder %s48, 0
      %s50 = scalar_select %p49, %s48, 0
      %s51 = smul.u32 %s42, 16
      %s52 = ssub.s32 %s51, 1
      %p53 = scmp.gt.s32.totalorder %s52, 0
      %s54 = scalar_select %p53, %s52, 0
      %s55 = ssub.s32 %s34, %s46
      %s56 = ssub.s32 %s50, %s54
      %s57 = sor.u32 %s55, %s56
      %p58 = scmp.eq.s32.totalorder %s57, 0
      %s60 = sadd.s32 %s59, 1
      %s61 = scalar_select %p58, %s59, %s60
      %p64 = pneg %p58
      %p65 = scmp.eq.s32.totalorder %s27, 1
      %p66 = por %p64, %p65
      %p67 = scmp.ne.s32.totalorder %s59, %s62
      %p68 = scmp.eq.s32.totalorder %s27, 0
      %p69 = por %p67, %p68
      %p70 = scmp.ne.s32.totalorder %s59, %s62
      %p71 = scmp.eq.s32.totalorder %s32, 1
      %p72 = por %p70, %p71
      %p73 = scmp.ne.s32.totalorder %s62, %s63
      %p74 = scmp.eq.s32.totalorder %s32, 0
      %p75 = por %p73, %p74
      %p76 = scmp.ne.s32.totalorder %s62, %s63
      %p77 = scmp.eq.s32.totalorder %s33, 1
      %p78 = por %p76, %p77
      %p80 = scmp.ne.s32.totalorder %s63, %s79
      %p81 = scmp.eq.s32.totalorder %s33, 0
      %p82 = por %p80, %p81
      %s83 = ssub.s32 %s34, %s46
      %s84 = ssub.s32 %s35, %s42
      %s85 = sor.u32 %s83, %s84
      %p86 = scmp.eq.s32.totalorder %s85, 0
      %s88 = sadd.s32 %s87, 1
      %s89 = scalar_select %p86, %s87, %s88
      %p92 = pneg %p86
      %p93 = scmp.eq.s32.totalorder %s27, 1
      %p94 = por %p92, %p93
      %p95 = scmp.ne.s32.totalorder %s87, %s90
      %p96 = scmp.eq.s32.totalorder %s27, 0
      %p97 = por %p95, %p96
      %p98 = scmp.ne.s32.totalorder %s87, %s90
      %p99 = scmp.eq.s32.totalorder %s32, 1
      %p100 = por %p98, %p99
      %p101 = scmp.ne.s32.totalorder %s90, %s91
      %p102 = scmp.eq.s32.totalorder %s32, 0
      %p103 = por %p101, %p102
      %p104 = scmp.ne.s32.totalorder %s90, %s91
      %p105 = scmp.eq.s32.totalorder %s33, 1
      %p106 = por %p104, %p105
      %p108 = scmp.ne.s32.totalorder %s91, %s107
      %p109 = scmp.eq.s32.totalorder %s33, 0
      %p110 = por %p108, %p109
      %s111 = smul.u32 %s35, 16
      %s112 = sadd.s32 %s111, 16
      %p113 = scmp.lt.s32.totalorder %s112, 15
      %s114 = scalar_select %p113, %s112, 15
      %s115 = smul.u32 %s42, 16
      %s116 = sadd.s32 %s115, 16
      %p117 = scmp.lt.s32.totalorder %s116, 15
      %s118 = scalar_select %p117, %s116, 15
      %s119 = ssub.s32 %s34, %s46
      %s120 = ssub.s32 %s114, %s118
      %s121 = sor.u32 %s119, %s120
      %p122 = scmp.eq.s32.totalorder %s121, 0
      %s124 = sadd.s32 %s123, 1
      %s125 = scalar_select %p122, %s123, %s124
      %p128 = pneg %p122
      %p129 = scmp.eq.s32.totalorder %s27, 1
      %p130 = por %p128, %p129
      %p131 = scmp.ne.s32.totalorder %s123, %s126
      %p132 = scmp.eq.s32.totalorder %s27, 0
      %p133 = por %p131, %p132
      %p134 = scmp.ne.s32.totalorder %s123, %s126
      %p135 = scmp.eq.s32.totalorder %s32, 1
      %p136 = por %p134, %p135
      %p137 = scmp.ne.s32.totalorder %s126, %s127
      %p138 = scmp.eq.s32.totalorder %s32, 0
      %p139 = por %p137, %p138
      %p140 = scmp.ne.s32.totalorder %s126, %s127
      %p141 = scmp.eq.s32.totalorder %s33, 1
      %p142 = por %p140, %p141
      %p144 = scmp.ne.s32.totalorder %s127, %s143
      %p145 = scmp.eq.s32.totalorder %s33, 0
      %p146 = por %p144, %p145
      %s148 = sadd.s32 %s147, 1
      %p151 = scmp.eq.s32.totalorder %s27, 1
      %p152 = scmp.ne.s32.totalorder %s147, %s149
      %p153 = scmp.eq.s32.totalorder %s27, 0
      %p154 = por %p152, %p153
      %p155 = scmp.ne.s32.totalorder %s147, %s149
      %p156 = scmp.eq.s32.totalorder %s32, 1
      %p157 = por %p155, %p156
      %p158 = scmp.ne.s32.totalorder %s149, %s150
      %p159 = scmp.eq.s32.totalorder %s32, 0
      %p160 = por %p158, %p159
      %p161 = scmp.ne.s32.totalorder %s149, %s150
      %p162 = scmp.eq.s32.totalorder %s33, 1
      %p163 = por %p161, %p162
      %p165 = scmp.ne.s32.totalorder %s150, %s164
      %p166 = scmp.eq.s32.totalorder %s33, 0
      %p167 = por %p165, %p166
      %s169 = sadd.s32 %s168, 1
      %p172 = scmp.eq.s32.totalorder %s27, 1
      %p173 = scmp.ne.s32.totalorder %s168, %s170
      %p174 = scmp.eq.s32.totalorder %s27, 0
      %p175 = por %p173, %p174
      %p176 = scmp.ne.s32.totalorder %s168, %s170
      %p177 = scmp.eq.s32.totalorder %s32, 1
      %p178 = por %p176, %p177
      %p179 = scmp.ne.s32.totalorder %s170, %s171
      %p180 = scmp.eq.s32.totalorder %s32, 0
      %p181 = por %p179, %p180
      %p182 = scmp.ne.s32.totalorder %s170, %s171
      %p183 = scmp.eq.s32.totalorder %s33, 1
      %p184 = por %p182, %p183
      %p186 = scmp.ne.s32.totalorder %s171, %s185
      %p187 = scmp.eq.s32.totalorder %s33, 0
      %p188 = por %p186, %p187
      %s190 = sadd.s32 %s189, 1
      %p193 = scmp.eq.s32.totalorder %s27, 1
      %p194 = scmp.ne.s32.totalorder %s189, %s191
      %p195 = scmp.eq.s32.totalorder %s27, 0
      %p196 = por %p194, %p195
      %p197 = scmp.ne.s32.totalorder %s189, %s191
      %p198 = scmp.eq.s32.totalorder %s32, 1
      %p199 = por %p197, %p198
      %p200 = scmp.ne.s32.totalorder %s191, %s192
      %p201 = scmp.eq.s32.totalorder %s32, 0
      %p202 = por %p200, %p201
      %p203 = scmp.ne.s32.totalorder %s191, %s192
      %p204 = scmp.eq.s32.totalorder %s33, 1
      %p205 = por %p203, %p204
      %p207 = scmp.ne.s32.totalorder %s192, %s206
      %p208 = scmp.eq.s32.totalorder %s33, 0
      %p209 = por %p207, %p208
      %s211 = sadd.s32 %s210, 1
      %p214 = scmp.eq.s32.totalorder %s27, 1
      %p215 = scmp.ne.s32.totalorder %s210, %s212
      %p216 = scmp.eq.s32.totalorder %s27, 0
      %p217 = por %p215, %p216
      %p218 = scmp.ne.s32.totalorder %s210, %s212
      %p219 = scmp.eq.s32.totalorder %s32, 1
      %p220 = por %p218, %p219
      %p221 = scmp.ne.s32.totalorder %s212, %s213
      %p222 = scmp.eq.s32.totalorder %s32, 0
      %p223 = por %p221, %p222
      %p224 = scmp.ne.s32.totalorder %s212, %s213
      %p225 = scmp.eq.s32.totalorder %s33, 1
      %p226 = por %p224, %p225
      %p228 = scmp.ne.s32.totalorder %s213, %s227
      %p229 = scmp.eq.s32.totalorder %s33, 0
      %p230 = por %p228, %p229
      %s232 = sadd.s32 %s231, 1
      %p235 = scmp.eq.s32.totalorder %s27, 1
      %p236 = scmp.ne.s32.totalorder %s231, %s233
      %p237 = scmp.eq.s32.totalorder %s27, 0
      %p238 = por %p236, %p237
      %p239 = scmp.ne.s32.totalorder %s231, %s233
      %p240 = scmp.eq.s32.totalorder %s32, 1
      %p241 = por %p239, %p240
      %p242 = scmp.ne.s32.totalorder %s233, %s234
      %p243 = scmp.eq.s32.totalorder %s32, 0
      %p244 = por %p242, %p243
      %p245 = scmp.ne.s32.totalorder %s233, %s234
      %p246 = scmp.eq.s32.totalorder %s33, 1
      %p247 = por %p245, %p246
      %p249 = scmp.ne.s32.totalorder %s234, %s248
      %p250 = scmp.eq.s32.totalorder %s33, 0
      %p251 = por %p249, %p250
      %s253 = sadd.s32 %s252, 1
      %p256 = scmp.eq.s32.totalorder %s27, 1
      %p257 = scmp.ne.s32.totalorder %s252, %s254
      %p258 = scmp.eq.s32.totalorder %s27, 0
      %p259 = por %p257, %p258
      %p260 = scmp.ne.s32.totalorder %s252, %s254
      %p261 = scmp.eq.s32.totalorder %s32, 1
      %p262 = por %p260, %p261
      %p263 = scmp.ne.s32.totalorder %s254, %s255
      %p264 = scmp.eq.s32.totalorder %s32, 0
      %p265 = por %p263, %p264
      %p266 = scmp.ne.s32.totalorder %s254, %s255
      %p267 = scmp.eq.s32.totalorder %s33, 1
      %p268 = por %p266, %p267
      %p270 = scmp.ne.s32.totalorder %s255, %s269
      %p271 = scmp.eq.s32.totalorder %s33, 0
      %p272 = por %p270, %p271
      %s274 = sadd.s32 %s273, 1
      %p277 = scmp.eq.s32.totalorder %s27, 1
      %p278 = scmp.ne.s32.totalorder %s273, %s275
      %p279 = scmp.eq.s32.totalorder %s27, 0
      %p280 = por %p278, %p279
      %p281 = scmp.ne.s32.totalorder %s273, %s275
      %p282 = scmp.eq.s32.totalorder %s32, 1
      %p283 = por %p281, %p282
      %p284 = scmp.ne.s32.totalorder %s275, %s276
      %p285 = scmp.eq.s32.totalorder %s32, 0
      %p286 = por %p284, %p285
      %p287 = scmp.ne.s32.totalorder %s275, %s276
      %p288 = scmp.eq.s32.totalorder %s33, 1
      %p289 = por %p287, %p288
      %p291 = scmp.ne.s32.totalorder %s276, %s290
      %p292 = scmp.eq.s32.totalorder %s33, 0
      %p293 = por %p291, %p292
      %s295 = sadd.s32 %s294, 1
      %p298 = scmp.eq.s32.totalorder %s27, 1
      %p299 = scmp.ne.s32.totalorder %s294, %s296
      %p300 = scmp.eq.s32.totalorder %s27, 0
      %p301 = por %p299, %p300
      %p302 = scmp.ne.s32.totalorder %s294, %s296
      %p303 = scmp.eq.s32.totalorder %s32, 1
      %p304 = por %p302, %p303
      %p305 = scmp.ne.s32.totalorder %s296, %s297
      %p306 = scmp.eq.s32.totalorder %s32, 0
      %p307 = por %p305, %p306
      %p308 = scmp.ne.s32.totalorder %s296, %s297
      %p309 = scmp.eq.s32.totalorder %s33, 1
      %p310 = por %p308, %p309
      %p312 = scmp.ne.s32.totalorder %s297, %s311
      %p313 = scmp.eq.s32.totalorder %s33, 0
      %p314 = por %p312, %p313
      %s315 = ssub.s32 %s34, %s46
      %s316 = ssub.s32 %s35, %s42
      %s317 = sor.u32 %s315, %s316
      %p318 = scmp.eq.s32.totalorder %s317, 0
      %s320 = sadd.s32 %s319, 1
      %s321 = scalar_select %p318, %s319, %s320
      %p324 = pneg %p318
      %p325 = scmp.eq.s32.totalorder %s27, 1
      %p326 = por %p324, %p325
      %p327 = scmp.ne.s32.totalorder %s319, %s322
      %p328 = scmp.eq.s32.totalorder %s27, 0
      %p329 = por %p327, %p328
      %p330 = scmp.ne.s32.totalorder %s319, %s322
      %p331 = scmp.eq.s32.totalorder %s32, 1
      %p332 = por %p330, %p331
      %p333 = scmp.ne.s32.totalorder %s322, %s323
      %p334 = scmp.eq.s32.totalorder %s32, 0
      %p335 = por %p333, %p334
      %p336 = scmp.ne.s32.totalorder %s322, %s323
      %p337 = scmp.eq.s32.totalorder %s33, 1
      %p338 = por %p336, %p337
      %p340 = scmp.ne.s32.totalorder %s323, %s339
      %p341 = scmp.eq.s32.totalorder %s33, 0
      %p342 = por %p340, %p341
      %p343 = scmp.le.s32.totalorder 1, %s27
      %p344 = scmp.lt.s32.totalorder %s27, 3
      %p345 = pnand %p343, %p344
      %p346 = pneg %p345
      // Predicated region
      $region9: #{tpu_custom_call.1} parent=5 // pred_check
        _
      $region10: #{tpu_custom_call.1} parent=5 // pred_check_branch
        %348 = sbr.rel (%p345) target = $region12
      $region11: #{tpu_custom_call.1} parent=5 // pred_region
        %s349 = ssub.s32 %s27, 1
        // Predicated region
        $region13: #{tpu_custom_call.1} parent=11 // pred_check
          %p350 = pneg %p160
        $region14: #{tpu_custom_call.1} parent=11 // pred_check_branch
          %352 = sbr.rel (%p350) target = $region16
        $region15: #{tpu_custom_call.1} parent=11 // pred_region
          _
        $region16: #{tpu_custom_call.1} parent=11 // pred_fallthru
          _
        // Predicated region
        $region17: #{tpu_custom_call.1} parent=11 // pred_check
          %p353 = pneg %p181
        $region18: #{tpu_custom_call.1} parent=11 // pred_check_branch
          %355 = sbr.rel (%p353) target = $region20
        $region19: #{tpu_custom_call.1} parent=11 // pred_region
          %s357 = ssub.s32 16, 16
          %358 = vsyncadd [#allocation7], %s357
          %s360 = sshll.u32 [#allocation8], 4
          %s361 = int_to_ptr.vmem [resolvable:$true] %s360
          %363 = dma.hbm_to_vmem [thread:$0]  %s4, 16, %s361, [#allocation7]
        $region20: #{tpu_custom_call.1} parent=11 // pred_fallthru
          _
        // Predicated region
        $region21: #{tpu_custom_call.1} parent=11 // pred_check
          %p364 = pneg %p202
        $region22: #{tpu_custom_call.1} parent=11 // pred_check_branch
          %366 = sbr.rel (%p364) target = $region24
        $region23: #{tpu_custom_call.1} parent=11 // pred_region
          _
        $region24: #{tpu_custom_call.1} parent=11 // pred_fallthru
          _
        // Predicated region
        $region25: #{tpu_custom_call.1} parent=11 // pred_check
          %p367 = pneg %p223
        $region26: #{tpu_custom_call.1} parent=11 // pred_check_branch
          %369 = sbr.rel (%p367) target = $region28
        $region27: #{tpu_custom_call.1} parent=11 // pred_region
          %s371 = ssub.s32 16, 16
          %372 = vsyncadd [#allocation10], %s371
          %s374 = sshll.u32 [#allocation9], 4
          %s375 = int_to_ptr.vmem [resolvable:$true] %s374
          %377 = dma.hbm_to_vmem [thread:$0]  %s6, 16, %s375, [#allocation10]
        $region28: #{tpu_custom_call.1} parent=11 // pred_fallthru
          _
        // Predicated region
        $region29: #{tpu_custom_call.1} parent=11 // pred_check
          %p378 = pneg %p244
        $region30: #{tpu_custom_call.1} parent=11 // pred_check_branch
          %380 = sbr.rel (%p378) target = $region32
        $region31: #{tpu_custom_call.1} parent=11 // pred_region
          %s382 = ssub.s32 1024, 1024
          %383 = vsyncadd [#allocation10], %s382
          %s384 = sshll.u32 [#allocation11], 4
          %s385 = int_to_ptr.vmem [resolvable:$true] %s384
          %390 = dma.hbm_to_vmem [thread:$0]  %s7, 1024, %s385, [#allocation10], 64, 64, 4
        $region32: #{tpu_custom_call.1} parent=11 // pred_fallthru
          _
        // Predicated region
        $region33: #{tpu_custom_call.1} parent=11 // pred_check
          %p391 = pneg %p265
        $region34: #{tpu_custom_call.1} parent=11 // pred_check_branch
          %393 = sbr.rel (%p391) target = $region36
        $region35: #{tpu_custom_call.1} parent=11 // pred_region
          _
        $region36: #{tpu_custom_call.1} parent=11 // pred_fallthru
          _
        // Predicated region
        $region37: #{tpu_custom_call.1} parent=11 // pred_check
          %p394 = pneg %p286
        $region38: #{tpu_custom_call.1} parent=11 // pred_check_branch
          %396 = sbr.rel (%p394) target = $region40
        $region39: #{tpu_custom_call.1} parent=11 // pred_region
          _
        $region40: #{tpu_custom_call.1} parent=11 // pred_fallthru
          _
        // Predicated region
        $region41: #{tpu_custom_call.1} parent=11 // pred_check
          %p397 = pneg %p307
        $region42: #{tpu_custom_call.1} parent=11 // pred_check_branch
          %399 = sbr.rel (%p397) target = $region44
        $region43: #{tpu_custom_call.1} parent=11 // pred_region
          _
        $region44: #{tpu_custom_call.1} parent=11 // pred_fallthru
          _
      $region12: #{tpu_custom_call.1} parent=5 // pred_fallthru
        _
      %p400 = scmp.lt.s32.totalorder %s27, 2
      // Predicated region
      $region45: #{tpu_custom_call.1} parent=5 // pred_check
        %p401 = pneg %p400
      $region46: #{tpu_custom_call.1} parent=5 // pred_check_branch
        %403 = sbr.rel (%p401) target = $region48
      $region47: #{tpu_custom_call.1} parent=5 // pred_region
        // Predicated region
        $region49: #{tpu_custom_call.1} parent=47 // pred_check
          %p404 = pneg %p69
        $region50: #{tpu_custom_call.1} parent=47 // pred_check_branch
          %406 = sbr.rel (%p404) target = $region52
        $region51: #{tpu_custom_call.1} parent=47 // pred_region
          %s407 = smul.u32 %s35, 16
          %s408 = ssub.s32 %s407, 1
          %p409 = scmp.gt.s32.totalorder %s408, 0
          %s410 = scalar_select %p409, %s408, 0
          %p411 = scmp.lt.s32.totalorder %s34, 1
          %s412 = scalar_select %p411, %s34, 1
          %p413 = scmp.lt.s32.totalorder %s410, 15
          %s414 = scalar_select %p413, %s410, 15
          %s415 = smul.addr %s414, 2
          %s416 = smul.addr %s412, 32
          %s417 = sadd.s32 %s415, %s416
          %s418 = smul.addr %s417, 8
          %s419 = scalar_lea.vmem %s0, %s418
          %s420 = smul.u32 %s35, 16
          %s421 = ssub.s32 %s420, 1
          %p422 = scmp.gt.s32.totalorder %s421, 0
          %s423 = scalar_select %p422, %s421, 0
        $region52: #{tpu_custom_call.1} parent=47 // pred_fallthru
          _
        // Predicated region
        $region53: #{tpu_custom_call.1} parent=47 // pred_check
          %p424 = pneg %p97
        $region54: #{tpu_custom_call.1} parent=47 // pred_check_branch
          %426 = sbr.rel (%p424) target = $region56
        $region55: #{tpu_custom_call.1} parent=47 // pred_region
          %s427 = sand.u32 %s87, 1
          %s428 = scalar_lea.sflag [#allocation4], %s427
          %s429 = sand.u32 %s87, 1
          %s430 = smul.addr %s429, 256
          %s431 = scalar_lea.vmem [#allocation3], %s430
          %s432 = smul.u32 16, %s35
          %s434 = ssub.s32 4096, 4096
          %435 = vsyncadd %s428, %s434
          %s436 = smul.addr %s432, 2
          %s437 = smul.addr %s34, 32
          %s438 = sadd.s32 %s436, %s437
          %s439 = smul.addr %s438, 128
          %s440 = scalar_lea.hbm %s1, %s439
          %s441 = sshll.u32 %s431, 4
          %s442 = int_to_ptr.vmem [resolvable:$true] %s441
          %447 = dma.hbm_to_vmem [thread:$0]  %s440, 4096, %s442, %s428, 128, 128, 8
        $region56: #{tpu_custom_call.1} parent=47 // pred_fallthru
          _
        // Predicated region
        $region57: #{tpu_custom_call.1} parent=47 // pred_check
          %p448 = pneg %p133
        $region58: #{tpu_custom_call.1} parent=47 // pred_check_branch
          %450 = sbr.rel (%p448) target = $region60
        $region59: #{tpu_custom_call.1} parent=47 // pred_region
          %s451 = sand.u32 %s27, 1
          %s452 = scalar_lea.sflag [#allocation7], %s451
          %s453 = sand.u32 %s123, 1
          %s454 = smul.addr %s453, 16
          %s455 = scalar_lea.vmem [#allocation6], %s454
          %s456 = smul.u32 %s35, 16
          %s457 = sadd.s32 %s456, 16
          %p458 = scmp.lt.s32.totalorder %s457, 15
          %s459 = scalar_select %p458, %s457, 15
          %s461 = ssub.s32 256, 256
          %462 = vsyncadd %s452, %s461
          %s463 = smul.addr %s459, 2
          %s464 = smul.addr %s34, 32
          %s465 = sadd.s32 %s463, %s464
          %s466 = smul.addr %s465, 128
          %s467 = scalar_lea.hbm %s2, %s466
          %s468 = sshll.u32 %s455, 4
          %s469 = int_to_ptr.vmem [resolvable:$true] %s468
          %474 = dma.hbm_to_vmem [thread:$0]  %s467, 256, %s469, %s452, 128, 128, 8
        $region60: #{tpu_custom_call.1} parent=47 // pred_fallthru
          _
      $region48: #{tpu_custom_call.1} parent=5 // pred_fallthru
        _
      %p475 = scmp.le.s32.totalorder 1, %s27
      %p476 = scmp.lt.s32.totalorder %s27, 3
      %p477 = pnand %p475, %p476
      %p478 = pneg %p477
      // Predicated region
      $region61: #{tpu_custom_call.1} parent=5 // pred_check
        _
      $region62: #{tpu_custom_call.1} parent=5 // pred_check_branch
        %480 = sbr.rel (%p477) target = $region64
      $region63: #{tpu_custom_call.1} parent=5 // pred_region
        %s481 = ssub.s32 %s27, 1
        %s482 = sand.u32 %s90, 1
        %s483 = scalar_lea.sflag [#allocation4], %s482
        %s484 = sand.u32 %s90, 1
        %s485 = smul.addr %s484, 256
        %s486 = scalar_lea.vmem [#allocation3], %s485
        // Predicated region
        $region65: #{tpu_custom_call.1} parent=63 // pred_check
          %p487 = pneg %p103
        $region66: #{tpu_custom_call.1} parent=63 // pred_check_branch
          %489 = sbr.rel (%p487) target = $region68
        $region67: #{tpu_custom_call.1} parent=63 // pred_region
          %490 = dma.done %s483, 4096
        $region68: #{tpu_custom_call.1} parent=63 // pred_fallthru
          _
        %s491 = sand.u32 %s32, 1
        %s492 = scalar_lea.sflag [#allocation7], %s491
        %s493 = sand.u32 %s126, 1
        %s494 = smul.addr %s493, 16
        %s495 = scalar_lea.vmem [#allocation6], %s494
        // Predicated region
        $region69: #{tpu_custom_call.1} parent=63 // pred_check
          %p496 = pneg %p139
        $region70: #{tpu_custom_call.1} parent=63 // pred_check_branch
          %498 = sbr.rel (%p496) target = $region72
        $region71: #{tpu_custom_call.1} parent=63 // pred_region
          %499 = dma.done %s492, 256
        $region72: #{tpu_custom_call.1} parent=63 // pred_fallthru
          _
        // Predicated region
        $region73: #{tpu_custom_call.1} parent=63 // pred_check
          %p500 = pneg %p181
        $region74: #{tpu_custom_call.1} parent=63 // pred_check_branch
          %502 = sbr.rel (%p500) target = $region76
        $region75: #{tpu_custom_call.1} parent=63 // pred_region
          %503 = dma.done [#allocation7], 16
        $region76: #{tpu_custom_call.1} parent=63 // pred_fallthru
          _
        // Predicated region
        $region77: #{tpu_custom_call.1} parent=63 // pred_check
          %p504 = pneg %p223
        $region78: #{tpu_custom_call.1} parent=63 // pred_check_branch
          %506 = sbr.rel (%p504) target = $region80
        $region79: #{tpu_custom_call.1} parent=63 // pred_region
          %507 = dma.done [#allocation10], 16
        $region80: #{tpu_custom_call.1} parent=63 // pred_fallthru
          _
        // Predicated region
        $region81: #{tpu_custom_call.1} parent=63 // pred_check
          %p508 = pneg %p244
        $region82: #{tpu_custom_call.1} parent=63 // pred_check_branch
          %510 = sbr.rel (%p508) target = $region84
        $region83: #{tpu_custom_call.1} parent=63 // pred_region
          %511 = dma.done [#allocation10], 1024
        $region84: #{tpu_custom_call.1} parent=63 // pred_fallthru
          _
        %s512 = smul.u32 %s37, 16
        %s513 = ssub.s32 %s512, 1
        %p514 = scmp.gt.s32.totalorder %s513, 0
        %s515 = scalar_select %p514, %s513, 0
        %p516 = scmp.lt.s32.totalorder %s36, 1
        %s517 = scalar_select %p516, %s36, 1
        %p518 = scmp.lt.s32.totalorder %s515, 15
        %s519 = scalar_select %p518, %s515, 15
        %s520 = smul.addr %s519, 2
        %s521 = smul.addr %s517, 32
        %s522 = sadd.s32 %s520, %s521
        %s523 = smul.addr %s522, 8
        %s524 = scalar_lea.vmem %s0, %s523
        %p525 = pneg %p75
        %p526 = pneg %p72
        %s527 = sand.u32 %s90, 1
        %s528 = scalar_lea.sflag [#allocation4], %s527
        %s529 = sand.u32 %s90, 1
        %s530 = smul.addr %s529, 256
        %s531 = scalar_lea.vmem [#allocation3], %s530
        %p532 = pneg %p103
        %p533 = pneg %p100
        %s534 = sand.u32 %s32, 1
        %s535 = scalar_lea.sflag [#allocation7], %s534
        %s536 = sand.u32 %s126, 1
        %s537 = smul.addr %s536, 16
        %s538 = scalar_lea.vmem [#allocation6], %s537
        %p539 = pneg %p139
        %p540 = pneg %p136
        %p541 = pneg %p160
        %p542 = pneg %p157
        %p543 = pneg %p181
        %p544 = pneg %p178
        %p545 = pneg %p202
        %p546 = pneg %p199
        %p547 = pneg %p223
        %p548 = pneg %p220
        %p549 = pneg %p244
        %p550 = pneg %p241
        %p551 = pneg %p265
        %p552 = pneg %p262
        %p553 = pneg %p286
        %p554 = pneg %p283
        %p555 = pneg %p307
        %p556 = pneg %p304
        %p557 = pneg %p335
        %p558 = pneg %p332
        %s559 = sand.u32 %s322, 1
        %s560 = scalar_lea.sflag [#allocation5], %s559
        %s561 = sand.u32 %s322, 1
        %s562 = smul.addr %s561, 256
        %s563 = scalar_lea.vmem [#allocation12], %s562
        %s564 = smul.u32 %s37, 16
        %s565 = ssub.s32 %s564, 1
        %p566 = scmp.gt.s32.totalorder %s565, 0
        %s567 = scalar_select %p566, %s565, 0
        %p568 = scmp.lt.s32.totalorder %s36, 1
        %s569 = scalar_select %p568, %s36, 1
        %p570 = scmp.lt.s32.totalorder %s567, 15
        %s571 = scalar_select %p570, %s567, 15
        %s572 = smul.addr %s571, 2
        %s573 = smul.addr %s569, 32
        %s574 = sadd.s32 %s572, %s573
        %s575 = smul.addr %s574, 8
        %s576 = scalar_lea.vmem %s0, %s575
        %s577 = smul.u32 %s37, 16
        %s578 = ssub.s32 %s577, 1
        %p579 = scmp.gt.s32.totalorder %s578, 0
        %s580 = scalar_select %p579, %s578, 0
        %s581 = smul.u32 16, %s37
        %s582 = smul.u32 %s37, 16
        %s583 = sadd.s32 %s582, 16
        %p584 = scmp.lt.s32.totalorder %s583, 15
        %s585 = scalar_select %p584, %s583, 15
        %s586 = smul.u32 16, %s37
        %v588 = vld [vmem:[%s486] sm:$0xff]
        %v589 = vld [vmem:[%s486 + $0x8] sm:$0xff]
        %v590 = vld [vmem:[%s486 + $0x10] sm:$0xff]
        %v591 = vld [vmem:[%s486 + $0x18] sm:$0xff]
        %v592 = vld [vmem:[%s486 + $0x20] sm:$0xff]
        %v593 = vld [vmem:[%s486 + $0x28] sm:$0xff]
        %v594 = vld [vmem:[%s486 + $0x30] sm:$0xff]
        %v595 = vld [vmem:[%s486 + $0x38] sm:$0xff]
        %v596 = vld [vmem:[%s486 + $0x40] sm:$0xff]
        %v597 = vld [vmem:[%s486 + $0x48] sm:$0xff]
        %v598 = vld [vmem:[%s486 + $0x50] sm:$0xff]
        %v599 = vld [vmem:[%s486 + $0x58] sm:$0xff]
        %v600 = vld [vmem:[%s486 + $0x60] sm:$0xff]
        %v601 = vld [vmem:[%s486 + $0x68] sm:$0xff]
        %v602 = vld [vmem:[%s486 + $0x70] sm:$0xff]
        %v603 = vld [vmem:[%s486 + $0x78] sm:$0xff]
        %v604 = vld [vmem:[%s486 + $0x80] sm:$0xff]
        %v605 = vld [vmem:[%s486 + $0x88] sm:$0xff]
        %v606 = vld [vmem:[%s486 + $0x90] sm:$0xff]
        %v607 = vld [vmem:[%s486 + $0x98] sm:$0xff]
        %v608 = vld [vmem:[%s486 + $0xa0] sm:$0xff]
        %v609 = vld [vmem:[%s486 + $0xa8] sm:$0xff]
        %v610 = vld [vmem:[%s486 + $0xb0] sm:$0xff]
        %v611 = vld [vmem:[%s486 + $0xb8] sm:$0xff]
        %v612 = vld [vmem:[%s486 + $0xc0] sm:$0xff]
        %v613 = vld [vmem:[%s486 + $0xc8] sm:$0xff]
        %v614 = vld [vmem:[%s486 + $0xd0] sm:$0xff]
        %v615 = vld [vmem:[%s486 + $0xd8] sm:$0xff]
        %v616 = vld [vmem:[%s486 + $0xe0] sm:$0xff]
        %v617 = vld [vmem:[%s486 + $0xe8] sm:$0xff]
        %v618 = vld [vmem:[%s486 + $0xf0] sm:$0xff]
        %v619 = vld [vmem:[%s486 + $0xf8] sm:$0xff]
        %v620 = vpack.c.bf16 %v589, %v588
        %v621 = vpack.c.bf16 %v591, %v590
        %v622 = vpack.c.bf16 %v593, %v592
        %v623 = vpack.c.bf16 %v595, %v594
        %v624 = vpack.c.bf16 %v597, %v596
        %v625 = vpack.c.bf16 %v599, %v598
        %v626 = vpack.c.bf16 %v601, %v600
        %v627 = vpack.c.bf16 %v603, %v602
        %v628 = vpack.c.bf16 %v605, %v604
        %v629 = vpack.c.bf16 %v607, %v606
        %v630 = vpack.c.bf16 %v609, %v608
        %v631 = vpack.c.bf16 %v611, %v610
        %v632 = vpack.c.bf16 %v613, %v612
        %v633 = vpack.c.bf16 %v615, %v614
        %v634 = vpack.c.bf16 %v617, %v616
        %v635 = vpack.c.bf16 %v619, %v618
        %v636 = vld [vmem:[%s3] sm:$0xf]
        %v637 = vld [vmem:[%s3 + $0x4] sm:$0xf]
        %v638 = vld [vmem:[%s3 + $0x8] sm:$0xf]
        %v639 = vld [vmem:[%s3 + $0xc] sm:$0xf]
        %v640 = vld [vmem:[%s3 + $0x10] sm:$0xf]
        %v641 = vld [vmem:[%s3 + $0x14] sm:$0xf]
        %v642 = vld [vmem:[%s3 + $0x18] sm:$0xf]
        %v643 = vld [vmem:[%s3 + $0x1c] sm:$0xf]
        %v644 = vld [vmem:[%s3 + $0x20] sm:$0xf]
        %v645 = vld [vmem:[%s3 + $0x24] sm:$0xf]
        %v646 = vld [vmem:[%s3 + $0x28] sm:$0xf]
        %v647 = vld [vmem:[%s3 + $0x2c] sm:$0xf]
        %v648 = vld [vmem:[%s3 + $0x30] sm:$0xf]
        %v649 = vld [vmem:[%s3 + $0x34] sm:$0xf]
        %v650 = vld [vmem:[%s3 + $0x38] sm:$0xf]
        %v651 = vld [vmem:[%s3 + $0x3c] sm:$0xf]
        %v652 = vld [vmem:[#allocation8] sm:$0x1]
        %v654 = vlaneseq
        %v655 = vshrl.u32 %v654, 7
        %v656 = vsub.s32 0, %v655
        %v657 = vrot.slane %v652, %v656
        %v675 = vunpack.c.l.b16 %v636
        %v676 = vunpack.c.l.b16 %v637
        %v677 = vunpack.c.l.b16 %v638
        %v678 = vunpack.c.l.b16 %v639
        %v679 = vunpack.c.l.b16 %v640
        %v680 = vunpack.c.l.b16 %v641
        %v681 = vunpack.c.l.b16 %v642
        %v682 = vunpack.c.l.b16 %v643
        %v683 = vunpack.c.l.b16 %v644
        %v684 = vunpack.c.l.b16 %v645
        %v685 = vunpack.c.l.b16 %v646
        %v686 = vunpack.c.l.b16 %v647
        %v687 = vunpack.c.l.b16 %v648
        %v688 = vunpack.c.l.b16 %v649
        %v689 = vunpack.c.l.b16 %v650
        %v690 = vunpack.c.l.b16 %v651
        %v691 = vpack.c.b16 %v676, %v675
        %v692 = vpack.c.b16 %v678, %v677
        %v693 = vpack.c.b16 %v680, %v679
        %v694 = vpack.c.b16 %v682, %v681
        %v695 = vpack.c.b16 %v684, %v683
        %v696 = vpack.c.b16 %v686, %v685
        %v697 = vpack.c.b16 %v688, %v687
        %v698 = vpack.c.b16 %v690, %v689
        %707 = vmatprep.subr.bf16.mxu0 0
        %708 = vmatpush1.bf16.msra.mxu0 %v698
        %709 = vmatprep.subr.bf16.mxu0 0
        %710 = vmatpush1.bf16.msra.mxu0 %v697
        %711 = vmatprep.subr.bf16.mxu0 0
        %712 = vmatpush1.bf16.msra.mxu0 %v696
        %713 = vmatprep.subr.bf16.mxu0 0
        %714 = vmatpush1.bf16.msra.mxu0 %v695
        %715 = vmatprep.subr.bf16.mxu0 0
        %716 = vmatpush1.bf16.msra.mxu0 %v694
        %717 = vmatprep.subr.bf16.mxu0 0
        %718 = vmatpush1.bf16.msra.mxu0 %v693
        %719 = vmatprep.subr.bf16.mxu0 0
        %720 = vmatpush1.bf16.msra.mxu0 %v692
        %721 = vmatprep.subr.bf16.mxu0 0
        %722 = vmatpush1.bf16.msra.mxu0 %v691
        %723 = vmatprep.subr.bf16.mxu0 0
        %724 = vmatpush2.bf16.msra.mxu0 0
        %725 = vmatprep.subr.bf16.mxu0 0
        %726 = vmatpush2.bf16.msra.mxu0 0
        %727 = vmatprep.subr.bf16.mxu0 0
        %728 = vmatpush2.bf16.msra.mxu0 0
        %729 = vmatprep.subr.bf16.mxu0 0
        %730 = vmatpush2.bf16.msra.mxu0 0
        %731 = vmatprep.subr.bf16.mxu0 0
        %732 = vmatpush2.bf16.msra.mxu0 0
        %733 = vmatprep.subr.bf16.mxu0 0
        %734 = vmatpush2.bf16.msra.mxu0 0
        %735 = vmatprep.subr.bf16.mxu0 0
        %736 = vmatpush2.bf16.msra.mxu0 0
        %737 = vmatprep.subr.bf16.mxu0 0
        %738 = vmatpush2.bf16.msra.mxu0 0
        %739 = vmatprep.mubr.bf16.mxu0 0
        %740 = vmatmul.mubr.bf16.gmra.mxu0 %v620
        %v741 = vpop.f32.mrf.mxu0
        %v742 = vadd.f32 %v657, %v741
        %v743 = vpop.f32.mrf.mxu0
        %v744 = vpop.f32.mrf.mxu0
        %v745 = vadd.f32 %v657, %v744
        %v746 = vpop.f32.mrf.mxu0
        %747 = vmatprep.mubr.bf16.mxu0 0
        %748 = vmatmul.mubr.bf16.gmra.mxu0 %v621
        %v749 = vpop.f32.mrf.mxu0
        %v750 = vadd.f32 %v657, %v749
        %v751 = vpop.f32.mrf.mxu0
        %v752 = vpop.f32.mrf.mxu0
        %v753 = vadd.f32 %v657, %v752
        %v754 = vpop.f32.mrf.mxu0
        %755 = vmatprep.mubr.bf16.mxu0 0
        %756 = vmatmul.mubr.bf16.gmra.mxu0 %v622
        %v757 = vpop.f32.mrf.mxu0
        %v758 = vadd.f32 %v657, %v757
        %v759 = vpop.f32.mrf.mxu0
        %v760 = vpop.f32.mrf.mxu0
        %v761 = vadd.f32 %v657, %v760
        %v762 = vpop.f32.mrf.mxu0
        %763 = vmatprep.mubr.bf16.mxu0 0
        %764 = vmatmul.mubr.bf16.gmra.mxu0 %v623
        %v765 = vpop.f32.mrf.mxu0
        %v766 = vadd.f32 %v657, %v765
        %v767 = vpop.f32.mrf.mxu0
        %v768 = vpop.f32.mrf.mxu0
        %v769 = vadd.f32 %v657, %v768
        %v770 = vpop.f32.mrf.mxu0
        %771 = vmatprep.mubr.bf16.mxu0 0
        %772 = vmatmul.mubr.bf16.gmra.mxu0 %v624
        %v773 = vpop.f32.mrf.mxu0
        %v774 = vadd.f32 %v657, %v773
        %v775 = vpop.f32.mrf.mxu0
        %v776 = vpop.f32.mrf.mxu0
        %v777 = vadd.f32 %v657, %v776
        %v778 = vpop.f32.mrf.mxu0
        %779 = vmatprep.mubr.bf16.mxu0 0
        %780 = vmatmul.mubr.bf16.gmra.mxu0 %v625
        %v781 = vpop.f32.mrf.mxu0
        %v782 = vadd.f32 %v657, %v781
        %v783 = vpop.f32.mrf.mxu0
        %v784 = vpop.f32.mrf.mxu0
        %v785 = vadd.f32 %v657, %v784
        %v786 = vpop.f32.mrf.mxu0
        %787 = vmatprep.mubr.bf16.mxu0 0
        %788 = vmatmul.mubr.bf16.gmra.mxu0 %v626
        %v789 = vpop.f32.mrf.mxu0
        %v790 = vadd.f32 %v657, %v789
        %v791 = vpop.f32.mrf.mxu0
        %v792 = vpop.f32.mrf.mxu0
        %v793 = vadd.f32 %v657, %v792
        %v794 = vpop.f32.mrf.mxu0
        %795 = vmatprep.mubr.bf16.mxu0 0
        %796 = vmatmul.mubr.bf16.gmra.mxu0 %v627
        %v797 = vpop.f32.mrf.mxu0
        %v798 = vadd.f32 %v657, %v797
        %v799 = vpop.f32.mrf.mxu0
        %v800 = vpop.f32.mrf.mxu0
        %v801 = vadd.f32 %v657, %v800
        %v802 = vpop.f32.mrf.mxu0
        %803 = vmatprep.mubr.bf16.mxu0 0
        %804 = vmatmul.mubr.bf16.gmra.mxu0 %v628
        %v805 = vpop.f32.mrf.mxu0
        %v806 = vadd.f32 %v657, %v805
        %v807 = vpop.f32.mrf.mxu0
        %v808 = vpop.f32.mrf.mxu0
        %v809 = vadd.f32 %v657, %v808
        %v810 = vpop.f32.mrf.mxu0
        %811 = vmatprep.mubr.bf16.mxu0 0
        %812 = vmatmul.mubr.bf16.gmra.mxu0 %v629
        %v813 = vpop.f32.mrf.mxu0
        %v814 = vadd.f32 %v657, %v813
        %v815 = vpop.f32.mrf.mxu0
        %v816 = vpop.f32.mrf.mxu0
        %v817 = vadd.f32 %v657, %v816
        %v818 = vpop.f32.mrf.mxu0
        %819 = vmatprep.mubr.bf16.mxu0 0
        %820 = vmatmul.mubr.bf16.gmra.mxu0 %v630
        %v821 = vpop.f32.mrf.mxu0
        %v822 = vadd.f32 %v657, %v821
        %v823 = vpop.f32.mrf.mxu0
        %v824 = vpop.f32.mrf.mxu0
        %v825 = vadd.f32 %v657, %v824
        %v826 = vpop.f32.mrf.mxu0
        %827 = vmatprep.mubr.bf16.mxu0 0
        %828 = vmatmul.mubr.bf16.gmra.mxu0 %v631
        %v829 = vpop.f32.mrf.mxu0
        %v830 = vadd.f32 %v657, %v829
        %v831 = vpop.f32.mrf.mxu0
        %v832 = vpop.f32.mrf.mxu0
        %v833 = vadd.f32 %v657, %v832
        %v834 = vpop.f32.mrf.mxu0
        %835 = vmatprep.mubr.bf16.mxu0 0
        %836 = vmatmul.mubr.bf16.gmra.mxu0 %v632
        %v837 = vpop.f32.mrf.mxu0
        %v838 = vadd.f32 %v657, %v837
        %v839 = vpop.f32.mrf.mxu0
        %v840 = vpop.f32.mrf.mxu0
        %v841 = vadd.f32 %v657, %v840
        %v842 = vpop.f32.mrf.mxu0
        %843 = vmatprep.mubr.bf16.mxu0 0
        %844 = vmatmul.mubr.bf16.gmra.mxu0 %v633
        %v845 = vpop.f32.mrf.mxu0
        %v846 = vadd.f32 %v657, %v845
        %v847 = vpop.f32.mrf.mxu0
        %v848 = vpop.f32.mrf.mxu0
        %v849 = vadd.f32 %v657, %v848
        %v850 = vpop.f32.mrf.mxu0
        %851 = vmatprep.mubr.bf16.mxu0 0
        %852 = vmatmul.mubr.bf16.gmra.mxu0 %v634
        %v853 = vpop.f32.mrf.mxu0
        %v854 = vadd.f32 %v657, %v853
        %v855 = vpop.f32.mrf.mxu0
        %v856 = vpop.f32.mrf.mxu0
        %v857 = vadd.f32 %v657, %v856
        %v858 = vpop.f32.mrf.mxu0
        %859 = vmatprep.mubr.bf16.mxu0 0
        %860 = vmatmul.mubr.bf16.gmra.mxu0 %v635
        %v861 = vpop.f32.mrf.mxu0
        %v862 = vadd.f32 %v657, %v861
        %v863 = vpop.f32.mrf.mxu0
        %v864 = vpop.f32.mrf.mxu0
        %v865 = vadd.f32 %v657, %v864
        %v866 = vpop.f32.mrf.mxu0
        %867 = vdwg.mxu0
        %v868 = vmax.f32 %v742, 0.0
        %v869 = vmax.f32 %v745, 0.0
        %v870 = vmax.f32 %v750, 0.0
        %v871 = vmax.f32 %v753, 0.0
        %v872 = vmax.f32 %v758, 0.0
        %v873 = vmax.f32 %v761, 0.0
        %v874 = vmax.f32 %v766, 0.0
        %v875 = vmax.f32 %v769, 0.0
        %v876 = vmax.f32 %v774, 0.0
        %v877 = vmax.f32 %v777, 0.0
        %v878 = vmax.f32 %v782, 0.0
        %v879 = vmax.f32 %v785, 0.0
        %v880 = vmax.f32 %v790, 0.0
        %v881 = vmax.f32 %v793, 0.0
        %v882 = vmax.f32 %v798, 0.0
        %v883 = vmax.f32 %v801, 0.0
        %v884 = vmax.f32 %v806, 0.0
        %v885 = vmax.f32 %v809, 0.0
        %v886 = vmax.f32 %v814, 0.0
        %v887 = vmax.f32 %v817, 0.0
        %v888 = vmax.f32 %v822, 0.0
        %v889 = vmax.f32 %v825, 0.0
        %v890 = vmax.f32 %v830, 0.0
        %v891 = vmax.f32 %v833, 0.0
        %v892 = vmax.f32 %v838, 0.0
        %v893 = vmax.f32 %v841, 0.0
        %v894 = vmax.f32 %v846, 0.0
        %v895 = vmax.f32 %v849, 0.0
        %v896 = vmax.f32 %v854, 0.0
        %v897 = vmax.f32 %v857, 0.0
        %v898 = vmax.f32 %v862, 0.0
        %v899 = vmax.f32 %v865, 0.0
        %900 = vst [vmem:[#allocation2 + $0x10] sm:$0xff] %v868
        %901 = vst [vmem:[#allocation2 + $0x18] sm:$0xff] %v869
        %902 = vst [vmem:[#allocation2 + $0x20] sm:$0xff] %v870
        %903 = vst [vmem:[#allocation2 + $0x28] sm:$0xff] %v871
        %904 = vst [vmem:[#allocation2 + $0x30] sm:$0xff] %v872
        %905 = vst [vmem:[#allocation2 + $0x38] sm:$0xff] %v873
        %906 = vst [vmem:[#allocation2 + $0x40] sm:$0xff] %v874
        %907 = vst [vmem:[#allocation2 + $0x48] sm:$0xff] %v875
        %908 = vst [vmem:[#allocation2 + $0x50] sm:$0xff] %v876
        %909 = vst [vmem:[#allocation2 + $0x58] sm:$0xff] %v877
        %910 = vst [vmem:[#allocation2 + $0x60] sm:$0xff] %v878
        %911 = vst [vmem:[#allocation2 + $0x68] sm:$0xff] %v879
        %912 = vst [vmem:[#allocation2 + $0x70] sm:$0xff] %v880
        %913 = vst [vmem:[#allocation2 + $0x78] sm:$0xff] %v881
        %914 = vst [vmem:[#allocation2 + $0x80] sm:$0xff] %v882
        %915 = vst [vmem:[#allocation2 + $0x88] sm:$0xff] %v883
        %916 = vst [vmem:[#allocation2 + $0x90] sm:$0xff] %v884
        %917 = vst [vmem:[#allocation2 + $0x98] sm:$0xff] %v885
        %918 = vst [vmem:[#allocation2 + $0xa0] sm:$0xff] %v886
        %919 = vst [vmem:[#allocation2 + $0xa8] sm:$0xff] %v887
        %920 = vst [vmem:[#allocation2 + $0xb0] sm:$0xff] %v888
        %921 = vst [vmem:[#allocation2 + $0xb8] sm:$0xff] %v889
        %922 = vst [vmem:[#allocation2 + $0xc0] sm:$0xff] %v890
        %923 = vst [vmem:[#allocation2 + $0xc8] sm:$0xff] %v891
        %924 = vst [vmem:[#allocation2 + $0xd0] sm:$0xff] %v892
        %925 = vst [vmem:[#allocation2 + $0xd8] sm:$0xff] %v893
        %926 = vst [vmem:[#allocation2 + $0xe0] sm:$0xff] %v894
        %927 = vst [vmem:[#allocation2 + $0xe8] sm:$0xff] %v895
        %928 = vst [vmem:[#allocation2 + $0xf0] sm:$0xff] %v896
        %929 = vst [vmem:[#allocation2 + $0xf8] sm:$0xff] %v897
        %930 = vst [vmem:[#allocation2 + $0x100] sm:$0xff] %v898
        %931 = vst [vmem:[#allocation2 + $0x108] sm:$0xff] %v899
        %v932 = vld [vmem:[%s576] sm:$0xff]
        %v933 = vld [vmem:[%s576 + $0x8] sm:$0xff]
        %v934 = vld [vmem:[%s495] sm:$0xff]
        %v935 = vld [vmem:[%s495 + $0x8] sm:$0xff]
        %v936 = vpack.c.bf16 %v933, %v932
        %v937 = vpack.c.bf16 %v935, %v934
        %v938 = vld [vmem:[%s3] sm:$0xf]
        %v939 = vld [vmem:[%s3 + $0x4] sm:$0xf]
        %v940 = vld [vmem:[%s3 + $0x8] sm:$0xf]
        %v941 = vld [vmem:[%s3 + $0xc] sm:$0xf]
        %v942 = vld [vmem:[%s3 + $0x10] sm:$0xf]
        %v943 = vld [vmem:[%s3 + $0x14] sm:$0xf]
        %v944 = vld [vmem:[%s3 + $0x18] sm:$0xf]
        %v945 = vld [vmem:[%s3 + $0x1c] sm:$0xf]
        %v946 = vld [vmem:[%s3 + $0x20] sm:$0xf]
        %v947 = vld [vmem:[%s3 + $0x24] sm:$0xf]
        %v948 = vld [vmem:[%s3 + $0x28] sm:$0xf]
        %v949 = vld [vmem:[%s3 + $0x2c] sm:$0xf]
        %v950 = vld [vmem:[%s3 + $0x30] sm:$0xf]
        %v951 = vld [vmem:[%s3 + $0x34] sm:$0xf]
        %v952 = vld [vmem:[%s3 + $0x38] sm:$0xf]
        %v953 = vld [vmem:[%s3 + $0x3c] sm:$0xf]
        %v954 = vld [vmem:[#allocation8] sm:$0x1]
        %v956 = vlaneseq
        %v957 = vshrl.u32 %v956, 7
        %v958 = vsub.s32 0, %v957
        %v959 = vrot.slane %v954, %v958
        %v977 = vunpack.c.l.b16 %v938
        %v978 = vunpack.c.l.b16 %v939
        %v979 = vunpack.c.l.b16 %v940
        %v980 = vunpack.c.l.b16 %v941
        %v981 = vunpack.c.l.b16 %v942
        %v982 = vunpack.c.l.b16 %v943
        %v983 = vunpack.c.l.b16 %v944
        %v984 = vunpack.c.l.b16 %v945
        %v985 = vunpack.c.l.b16 %v946
        %v986 = vunpack.c.l.b16 %v947
        %v987 = vunpack.c.l.b16 %v948
        %v988 = vunpack.c.l.b16 %v949
        %v989 = vunpack.c.l.b16 %v950
        %v990 = vunpack.c.l.b16 %v951
        %v991 = vunpack.c.l.b16 %v952
        %v992 = vunpack.c.l.b16 %v953
        %v993 = vpack.c.b16 %v978, %v977
        %v994 = vpack.c.b16 %v980, %v979
        %v995 = vpack.c.b16 %v982, %v981
        %v996 = vpack.c.b16 %v984, %v983
        %v997 = vpack.c.b16 %v986, %v985
        %v998 = vpack.c.b16 %v988, %v987
        %v999 = vpack.c.b16 %v990, %v989
        %v1000 = vpack.c.b16 %v992, %v991
        %1009 = vmatprep.subr.bf16.mxu0 0
        %1010 = vmatpush1.bf16.msra.mxu0 %v1000
        %1011 = vmatprep.subr.bf16.mxu0 0
        %1012 = vmatpush1.bf16.msra.mxu0 %v999
        %1013 = vmatprep.subr.bf16.mxu0 0
        %1014 = vmatpush1.bf16.msra.mxu0 %v998
        %1015 = vmatprep.subr.bf16.mxu0 0
        %1016 = vmatpush1.bf16.msra.mxu0 %v997
        %1017 = vmatprep.subr.bf16.mxu0 0
        %1018 = vmatpush1.bf16.msra.mxu0 %v996
        %1019 = vmatprep.subr.bf16.mxu0 0
        %1020 = vmatpush1.bf16.msra.mxu0 %v995
        %1021 = vmatprep.subr.bf16.mxu0 0
        %1022 = vmatpush1.bf16.msra.mxu0 %v994
        %1023 = vmatprep.subr.bf16.mxu0 0
        %1024 = vmatpush1.bf16.msra.mxu0 %v993
        %1025 = vmatprep.subr.bf16.mxu0 0
        %1026 = vmatpush2.bf16.msra.mxu0 0
        %1027 = vmatprep.subr.bf16.mxu0 0
        %1028 = vmatpush2.bf16.msra.mxu0 0
        %1029 = vmatprep.subr.bf16.mxu0 0
        %1030 = vmatpush2.bf16.msra.mxu0 0
        %1031 = vmatprep.subr.bf16.mxu0 0
        %1032 = vmatpush2.bf16.msra.mxu0 0
        %1033 = vmatprep.subr.bf16.mxu0 0
        %1034 = vmatpush2.bf16.msra.mxu0 0
        %1035 = vmatprep.subr.bf16.mxu0 0
        %1036 = vmatpush2.bf16.msra.mxu0 0
        %1037 = vmatprep.subr.bf16.mxu0 0
        %1038 = vmatpush2.bf16.msra.mxu0 0
        %1039 = vmatprep.subr.bf16.mxu0 0
        %1040 = vmatpush2.bf16.msra.mxu0 0
        %1041 = vmatprep.mubr.bf16.mxu0 0
        %1042 = vmatmul.mubr.bf16.gmra.mxu0 %v936
        %v1043 = vpop.f32.mrf.mxu0
        %v1044 = vadd.f32 %v959, %v1043
        %v1045 = vpop.f32.mrf.mxu0
        %v1046 = vpop.f32.mrf.mxu0
        %v1047 = vadd.f32 %v959, %v1046
        %v1048 = vpop.f32.mrf.mxu0
        %1049 = vmatprep.mubr.bf16.mxu0 0
        %1050 = vmatmul.mubr.bf16.gmra.mxu0 %v937
        %v1051 = vpop.f32.mrf.mxu0
        %v1052 = vadd.f32 %v959, %v1051
        %v1053 = vpop.f32.mrf.mxu0
        %v1054 = vpop.f32.mrf.mxu0
        %v1055 = vadd.f32 %v959, %v1054
        %v1056 = vpop.f32.mrf.mxu0
        %1057 = vdwg.mxu0
        %v1058 = vmax.f32 %v1044, 0.0
        %v1059 = vmax.f32 %v1047, 0.0
        %v1060 = vmax.f32 %v1052, 0.0
        %v1061 = vmax.f32 %v1055, 0.0
        %1062 = vst [vmem:[#allocation2] sm:$0xff] %v1058
        %1063 = vst [vmem:[#allocation2 + $0x8] sm:$0xff] %v1059
        %1064 = vst [vmem:[#allocation2 + $0x110] sm:$0xff] %v1060
        %1065 = vst [vmem:[#allocation2 + $0x118] sm:$0xff] %v1061
        %p1066 = scmp.eq.s32.totalorder %s37, 0
        // Predicated region
        $region85: #{tpu_custom_call.1} parent=63 // pred_check
          %p1067 = pneg %p1066
        $region86: #{tpu_custom_call.1} parent=63 // pred_check_branch
          %1069 = sbr.rel (%p1067) target = $region88
        $region87: #{tpu_custom_call.1} parent=63 // pred_region
          %1070 = vst [vmem:[#allocation2] sm:$0xff] 0.0
          %1071 = vst [vmem:[#allocation2 + $0x8] sm:$0xff] 0.0
          %1072 = vst [vmem:[#allocation2 + $0x110] sm:$0xff] 0.0
          %1073 = vst [vmem:[#allocation2 + $0x118] sm:$0xff] 0.0
        $region88: #{tpu_custom_call.1} parent=63 // pred_fallthru
          _
        %v1074 = vld [vmem:[#allocation2] sm:$0xff]
        %v1075 = vld [vmem:[#allocation2 + $0x8] sm:$0xff]
        %v1076 = vld [vmem:[#allocation2 + $0x10] sm:$0xff]
        %v1077 = vld [vmem:[#allocation2 + $0x18] sm:$0xff]
        %v1078 = vld [vmem:[#allocation2 + $0x20] sm:$0xff]
        %v1079 = vld [vmem:[#allocation2 + $0x28] sm:$0xff]
        %v1080 = vld [vmem:[#allocation2 + $0x30] sm:$0xff]
        %v1081 = vld [vmem:[#allocation2 + $0x38] sm:$0xff]
        %v1082 = vld [vmem:[#allocation2 + $0x40] sm:$0xff]
        %v1083 = vld [vmem:[#allocation2 + $0x48] sm:$0xff]
        %v1084 = vld [vmem:[#allocation2 + $0x50] sm:$0xff]
        %v1085 = vld [vmem:[#allocation2 + $0x58] sm:$0xff]
        %v1086 = vld [vmem:[#allocation2 + $0x60] sm:$0xff]
        %v1087 = vld [vmem:[#allocation2 + $0x68] sm:$0xff]
        %v1088 = vld [vmem:[#allocation2 + $0x70] sm:$0xff]
        %v1089 = vld [vmem:[#allocation2 + $0x78] sm:$0xff]
        %v1090 = vld [vmem:[#allocation2 + $0x80] sm:$0xff]
        %v1091 = vld [vmem:[#allocation2 + $0x88] sm:$0xff]
        %v1092 = vld [vmem:[#allocation2 + $0x90] sm:$0xff]
        %v1093 = vld [vmem:[#allocation2 + $0x98] sm:$0xff]
        %v1094 = vld [vmem:[#allocation2 + $0xa0] sm:$0xff]
        %v1095 = vld [vmem:[#allocation2 + $0xa8] sm:$0xff]
        %v1096 = vld [vmem:[#allocation2 + $0xb0] sm:$0xff]
        %v1097 = vld [vmem:[#allocation2 + $0xb8] sm:$0xff]
        %v1098 = vld [vmem:[#allocation2 + $0xc0] sm:$0xff]
        %v1099 = vld [vmem:[#allocation2 + $0xc8] sm:$0xff]
        %v1100 = vld [vmem:[#allocation2 + $0xd0] sm:$0xff]
        %v1101 = vld [vmem:[#allocation2 + $0xd8] sm:$0xff]
        %v1102 = vld [vmem:[#allocation2 + $0xe0] sm:$0xff]
        %v1103 = vld [vmem:[#allocation2 + $0xe8] sm:$0xff]
        %v1104 = vld [vmem:[#allocation2 + $0xf0] sm:$0xff]
        %v1105 = vld [vmem:[#allocation2 + $0xf8] sm:$0xff]
        %v1106 = vld [vmem:[#allocation2 + $0x100] sm:$0xff]
        %v1107 = vld [vmem:[#allocation2 + $0x108] sm:$0xff]
        %v1108 = vld [vmem:[#allocation2 + $0x110] sm:$0xff]
        %v1109 = vld [vmem:[#allocation2 + $0x118] sm:$0xff]
        %v1110 = vrot.slane %v1074, 7
        %v1111 = vrot.slane %v1075, 7
        %v1112 = vrot.slane %v1076, 7
        %v1113 = vrot.slane %v1077, 7
        %v1114 = vrot.slane %v1078, 7
        %v1115 = vrot.slane %v1079, 7
        %v1116 = vrot.slane %v1080, 7
        %v1117 = vrot.slane %v1081, 7
        %v1118 = vrot.slane %v1082, 7
        %v1119 = vrot.slane %v1083, 7
        %v1120 = vrot.slane %v1084, 7
        %v1121 = vrot.slane %v1085, 7
        %v1122 = vrot.slane %v1086, 7
        %v1123 = vrot.slane %v1087, 7
        %v1124 = vrot.slane %v1088, 7
        %v1125 = vrot.slane %v1089, 7
        %v1126 = vrot.slane %v1090, 7
        %v1127 = vrot.slane %v1091, 7
        %v1128 = vrot.slane %v1092, 7
        %v1129 = vrot.slane %v1093, 7
        %v1130 = vrot.slane %v1094, 7
        %v1131 = vrot.slane %v1095, 7
        %v1132 = vrot.slane %v1096, 7
        %v1133 = vrot.slane %v1097, 7
        %v1134 = vrot.slane %v1098, 7
        %v1135 = vrot.slane %v1099, 7
        %v1136 = vrot.slane %v1100, 7
        %v1137 = vrot.slane %v1101, 7
        %v1138 = vrot.slane %v1102, 7
        %v1139 = vrot.slane %v1103, 7
        %v1140 = vrot.slane %v1104, 7
        %v1141 = vrot.slane %v1105, 7
        %v1142 = vrot.slane %v1106, 7
        %v1143 = vrot.slane %v1107, 7
        %v1144 = vrot.slane %v1108, 7
        %v1145 = vrot.slane %v1109, 7
        %v1146 = vlaneseq
        %v1147 = vshrl.u32 %v1146, 7
        %vm1148 = vcmp.lt.s32.totalorder %v1147, 1
        %v1149 = vsel %vm1148, %v1144, %v1145
        %v1150 = vsel %vm1148, %v1143, %v1144
        %v1151 = vsel %vm1148, %v1142, %v1143
        %v1152 = vsel %vm1148, %v1141, %v1142
        %v1153 = vsel %vm1148, %v1140, %v1141
        %v1154 = vsel %vm1148, %v1139, %v1140
        %v1155 = vsel %vm1148, %v1138, %v1139
        %v1156 = vsel %vm1148, %v1137, %v1138
        %v1157 = vsel %vm1148, %v1136, %v1137
        %v1158 = vsel %vm1148, %v1135, %v1136
        %v1159 = vsel %vm1148, %v1134, %v1135
        %v1160 = vsel %vm1148, %v1133, %v1134
        %v1161 = vsel %vm1148, %v1132, %v1133
        %v1162 = vsel %vm1148, %v1131, %v1132
        %v1163 = vsel %vm1148, %v1130, %v1131
        %v1164 = vsel %vm1148, %v1129, %v1130
        %v1165 = vsel %vm1148, %v1128, %v1129
        %v1166 = vsel %vm1148, %v1127, %v1128
        %v1167 = vsel %vm1148, %v1126, %v1127
        %v1168 = vsel %vm1148, %v1125, %v1126
        %v1169 = vsel %vm1148, %v1124, %v1125
        %v1170 = vsel %vm1148, %v1123, %v1124
        %v1171 = vsel %vm1148, %v1122, %v1123
        %v1172 = vsel %vm1148, %v1121, %v1122
        %v1173 = vsel %vm1148, %v1120, %v1121
        %v1174 = vsel %vm1148, %v1119, %v1120
        %v1175 = vsel %vm1148, %v1118, %v1119
        %v1176 = vsel %vm1148, %v1117, %v1118
        %v1177 = vsel %vm1148, %v1116, %v1117
        %v1178 = vsel %vm1148, %v1115, %v1116
        %v1179 = vsel %vm1148, %v1114, %v1115
        %v1180 = vsel %vm1148, %v1113, %v1114
        %v1181 = vsel %vm1148, %v1112, %v1113
        %v1182 = vsel %vm1148, %v1111, %v1112
        %v1183 = vsel %vm1148, %v1110, %v1111
        %v1184 = vsel %vm1148, %v1145, %v1110
        %v1185 = vrot.slane %v1074, 1
        %v1186 = vrot.slane %v1075, 1
        %v1187 = vrot.slane %v1076, 1
        %v1188 = vrot.slane %v1077, 1
        %v1189 = vrot.slane %v1078, 1
        %v1190 = vrot.slane %v1079, 1
        %v1191 = vrot.slane %v1080, 1
        %v1192 = vrot.slane %v1081, 1
        %v1193 = vrot.slane %v1082, 1
        %v1194 = vrot.slane %v1083, 1
        %v1195 = vrot.slane %v1084, 1
        %v1196 = vrot.slane %v1085, 1
        %v1197 = vrot.slane %v1086, 1
        %v1198 = vrot.slane %v1087, 1
        %v1199 = vrot.slane %v1088, 1
        %v1200 = vrot.slane %v1089, 1
        %v1201 = vrot.slane %v1090, 1
        %v1202 = vrot.slane %v1091, 1
        %v1203 = vrot.slane %v1092, 1
        %v1204 = vrot.slane %v1093, 1
        %v1205 = vrot.slane %v1094, 1
        %v1206 = vrot.slane %v1095, 1
        %v1207 = vrot.slane %v1096, 1
        %v1208 = vrot.slane %v1097, 1
        %v1209 = vrot.slane %v1098, 1
        %v1210 = vrot.slane %v1099, 1
        %v1211 = vrot.slane %v1100, 1
        %v1212 = vrot.slane %v1101, 1
        %v1213 = vrot.slane %v1102, 1
        %v1214 = vrot.slane %v1103, 1
        %v1215 = vrot.slane %v1104, 1
        %v1216 = vrot.slane %v1105, 1
        %v1217 = vrot.slane %v1106, 1
        %v1218 = vrot.slane %v1107, 1
        %v1219 = vrot.slane %v1108, 1
        %v1220 = vrot.slane %v1109, 1
        %vm1221 = vcmp.lt.s32.totalorder %v1147, 7
        %v1222 = vsel %vm1221, %v1219, %v1220
        %v1223 = vsel %vm1221, %v1218, %v1219
        %v1224 = vsel %vm1221, %v1217, %v1218
        %v1225 = vsel %vm1221, %v1216, %v1217
        %v1226 = vsel %vm1221, %v1215, %v1216
        %v1227 = vsel %vm1221, %v1214, %v1215
        %v1228 = vsel %vm1221, %v1213, %v1214
        %v1229 = vsel %vm1221, %v1212, %v1213
        %v1230 = vsel %vm1221, %v1211, %v1212
        %v1231 = vsel %vm1221, %v1210, %v1211
        %v1232 = vsel %vm1221, %v1209, %v1210
        %v1233 = vsel %vm1221, %v1208, %v1209
        %v1234 = vsel %vm1221, %v1207, %v1208
        %v1235 = vsel %vm1221, %v1206, %v1207
        %v1236 = vsel %vm1221, %v1205, %v1206
        %v1237 = vsel %vm1221, %v1204, %v1205
        %v1238 = vsel %vm1221, %v1203, %v1204
        %v1239 = vsel %vm1221, %v1202, %v1203
        %v1240 = vsel %vm1221, %v1201, %v1202
        %v1241 = vsel %vm1221, %v1200, %v1201
        %v1242 = vsel %vm1221, %v1199, %v1200
        %v1243 = vsel %vm1221, %v1198, %v1199
        %v1244 = vsel %vm1221, %v1197, %v1198
        %v1245 = vsel %vm1221, %v1196, %v1197
        %v1246 = vsel %vm1221, %v1195, %v1196
        %v1247 = vsel %vm1221, %v1194, %v1195
        %v1248 = vsel %vm1221, %v1193, %v1194
        %v1249 = vsel %vm1221, %v1192, %v1193
        %v1250 = vsel %vm1221, %v1191, %v1192
        %v1251 = vsel %vm1221, %v1190, %v1191
        %v1252 = vsel %vm1221, %v1189, %v1190
        %v1253 = vsel %vm1221, %v1188, %v1189
        %v1254 = vsel %vm1221, %v1187, %v1188
        %v1255 = vsel %vm1221, %v1186, %v1187
        %v1256 = vsel %vm1221, %v1185, %v1186
        %v1257 = vsel %vm1221, %v1220, %v1185
        %v1258 = vld [vmem:[%s9] sm:$0xff]
        %v1259 = vld [vmem:[%s9 + $0x8] sm:$0xff]
        %v1260 = vld [vmem:[%s9 + $0x10] sm:$0xff]
        %v1261 = vld [vmem:[%s9 + $0x18] sm:$0xff]
        %v1262 = vld [vmem:[%s9 + $0x20] sm:$0xff]
        %v1263 = vld [vmem:[%s9 + $0x28] sm:$0xff]
        %v1264 = vld [vmem:[%s9 + $0x30] sm:$0xff]
        %v1265 = vld [vmem:[%s9 + $0x38] sm:$0xff]
        %v1266 = vld [vmem:[%s9 + $0x40] sm:$0xff]
        %v1267 = vld [vmem:[%s9 + $0x48] sm:$0xff]
        %v1268 = vld [vmem:[%s9 + $0x50] sm:$0xff]
        %v1269 = vld [vmem:[%s9 + $0x58] sm:$0xff]
        %v1270 = vld [vmem:[%s9 + $0x60] sm:$0xff]
        %v1271 = vld [vmem:[%s9 + $0x68] sm:$0xff]
        %v1272 = vld [vmem:[%s9 + $0x70] sm:$0xff]
        %v1273 = vld [vmem:[%s9 + $0x78] sm:$0xff]
        %v1274 = vld [vmem:[%s9 + $0x80] sm:$0xff]
        %v1275 = vld [vmem:[%s9 + $0x88] sm:$0xff]
        %v1276 = vld [vmem:[%s9 + $0x90] sm:$0xff]
        %v1277 = vld [vmem:[%s9 + $0x98] sm:$0xff]
        %v1278 = vld [vmem:[%s9 + $0xa0] sm:$0xff]
        %v1279 = vld [vmem:[%s9 + $0xa8] sm:$0xff]
        %v1280 = vld [vmem:[%s9 + $0xb0] sm:$0xff]
        %v1281 = vld [vmem:[%s9 + $0xb8] sm:$0xff]
        %v1282 = vld [vmem:[%s9 + $0xc0] sm:$0xff]
        %v1283 = vld [vmem:[%s9 + $0xc8] sm:$0xff]
        %v1284 = vld [vmem:[%s9 + $0xd0] sm:$0xff]
        %v1285 = vld [vmem:[%s9 + $0xd8] sm:$0xff]
        %v1286 = vld [vmem:[%s9 + $0xe0] sm:$0xff]
        %v1287 = vld [vmem:[%s9 + $0xe8] sm:$0xff]
        %v1288 = vld [vmem:[%s9 + $0xf0] sm:$0xff]
        %v1289 = vld [vmem:[%s9 + $0xf8] sm:$0xff]
        %v1290 = vld [vmem:[%s9 + $0x100] sm:$0xff]
        %v1291 = vld [vmem:[%s9 + $0x108] sm:$0xff]
        %v1292 = vld [vmem:[%s9 + $0x110] sm:$0xff]
        %v1293 = vld [vmem:[%s9 + $0x118] sm:$0xff]
        %1295 = vset.pattern.permute.xlu0 0
        %1296 = vperm.xlu0 %1295, %v1258
        %v1297 = vpop.permute.xlu0 %1296
        %1300 = vset.pattern.permute.xlu0 0
        %1301 = vperm.xlu0 %1300, %v1259
        %v1302 = vpop.permute.xlu0 %1301
        %1305 = vset.pattern.permute.xlu0 0
        %1306 = vperm.xlu0 %1305, %v1260
        %v1307 = vpop.permute.xlu0 %1306
        %1310 = vset.pattern.permute.xlu0 0
        %1311 = vperm.xlu0 %1310, %v1261
        %v1312 = vpop.permute.xlu0 %1311
        %1315 = vset.pattern.permute.xlu0 0
        %1316 = vperm.xlu0 %1315, %v1262
        %v1317 = vpop.permute.xlu0 %1316
        %1320 = vset.pattern.permute.xlu0 0
        %1321 = vperm.xlu0 %1320, %v1263
        %v1322 = vpop.permute.xlu0 %1321
        %1325 = vset.pattern.permute.xlu0 0
        %1326 = vperm.xlu0 %1325, %v1264
        %v1327 = vpop.permute.xlu0 %1326
        %1330 = vset.pattern.permute.xlu0 0
        %1331 = vperm.xlu0 %1330, %v1265
        %v1332 = vpop.permute.xlu0 %1331
        %1335 = vset.pattern.permute.xlu0 0
        %1336 = vperm.xlu0 %1335, %v1266
        %v1337 = vpop.permute.xlu0 %1336
        %1340 = vset.pattern.permute.xlu0 0
        %1341 = vperm.xlu0 %1340, %v1267
        %v1342 = vpop.permute.xlu0 %1341
        %1345 = vset.pattern.permute.xlu0 0
        %1346 = vperm.xlu0 %1345, %v1268
        %v1347 = vpop.permute.xlu0 %1346
        %1350 = vset.pattern.permute.xlu0 0
        %1351 = vperm.xlu0 %1350, %v1269
        %v1352 = vpop.permute.xlu0 %1351
        %1355 = vset.pattern.permute.xlu0 0
        %1356 = vperm.xlu0 %1355, %v1270
        %v1357 = vpop.permute.xlu0 %1356
        %1360 = vset.pattern.permute.xlu0 0
        %1361 = vperm.xlu0 %1360, %v1271
        %v1362 = vpop.permute.xlu0 %1361
        %1365 = vset.pattern.permute.xlu0 0
        %1366 = vperm.xlu0 %1365, %v1272
        %v1367 = vpop.permute.xlu0 %1366
        %1370 = vset.pattern.permute.xlu0 0
        %1371 = vperm.xlu0 %1370, %v1273
        %v1372 = vpop.permute.xlu0 %1371
        %1375 = vset.pattern.permute.xlu0 0
        %1376 = vperm.xlu0 %1375, %v1274
        %v1377 = vpop.permute.xlu0 %1376
        %1380 = vset.pattern.permute.xlu0 0
        %1381 = vperm.xlu0 %1380, %v1275
        %v1382 = vpop.permute.xlu0 %1381
        %1385 = vset.pattern.permute.xlu0 0
        %1386 = vperm.xlu0 %1385, %v1276
        %v1387 = vpop.permute.xlu0 %1386
        %1390 = vset.pattern.permute.xlu0 0
        %1391 = vperm.xlu0 %1390, %v1277
        %v1392 = vpop.permute.xlu0 %1391
        %1395 = vset.pattern.permute.xlu0 0
        %1396 = vperm.xlu0 %1395, %v1278
        %v1397 = vpop.permute.xlu0 %1396
        %1400 = vset.pattern.permute.xlu0 0
        %1401 = vperm.xlu0 %1400, %v1279
        %v1402 = vpop.permute.xlu0 %1401
        %1405 = vset.pattern.permute.xlu0 0
        %1406 = vperm.xlu0 %1405, %v1280
        %v1407 = vpop.permute.xlu0 %1406
        %1410 = vset.pattern.permute.xlu0 0
        %1411 = vperm.xlu0 %1410, %v1281
        %v1412 = vpop.permute.xlu0 %1411
        %1415 = vset.pattern.permute.xlu0 0
        %1416 = vperm.xlu0 %1415, %v1282
        %v1417 = vpop.permute.xlu0 %1416
        %1420 = vset.pattern.permute.xlu0 0
        %1421 = vperm.xlu0 %1420, %v1283
        %v1422 = vpop.permute.xlu0 %1421
        %1425 = vset.pattern.permute.xlu0 0
        %1426 = vperm.xlu0 %1425, %v1284
        %v1427 = vpop.permute.xlu0 %1426
        %1430 = vset.pattern.permute.xlu0 0
        %1431 = vperm.xlu0 %1430, %v1285
        %v1432 = vpop.permute.xlu0 %1431
        %1435 = vset.pattern.permute.xlu0 0
        %1436 = vperm.xlu0 %1435, %v1286
        %v1437 = vpop.permute.xlu0 %1436
        %1440 = vset.pattern.permute.xlu0 0
        %1441 = vperm.xlu0 %1440, %v1287
        %v1442 = vpop.permute.xlu0 %1441
        %1445 = vset.pattern.permute.xlu0 0
        %1446 = vperm.xlu0 %1445, %v1288
        %v1447 = vpop.permute.xlu0 %1446
        %1450 = vset.pattern.permute.xlu0 0
        %1451 = vperm.xlu0 %1450, %v1289
        %v1452 = vpop.permute.xlu0 %1451
        %1455 = vset.pattern.permute.xlu0 0
        %1456 = vperm.xlu0 %1455, %v1290
        %v1457 = vpop.permute.xlu0 %1456
        %1460 = vset.pattern.permute.xlu0 0
        %1461 = vperm.xlu0 %1460, %v1291
        %v1462 = vpop.permute.xlu0 %1461
        %1465 = vset.pattern.permute.xlu0 0
        %1466 = vperm.xlu0 %1465, %v1292
        %v1467 = vpop.permute.xlu0 %1466
        %1470 = vset.pattern.permute.xlu0 0
        %1471 = vperm.xlu0 %1470, %v1293
        %v1472 = vpop.permute.xlu0 %1471
        %v1474 = vmul.f32 %v1184, %v1297
        %v1475 = vmul.f32 %v1183, %v1302
        %v1476 = vmul.f32 %v1182, %v1307
        %v1477 = vmul.f32 %v1181, %v1312
        %v1478 = vmul.f32 %v1180, %v1317
        %v1479 = vmul.f32 %v1179, %v1322
        %v1480 = vmul.f32 %v1178, %v1327
        %v1481 = vmul.f32 %v1177, %v1332
        %v1482 = vmul.f32 %v1176, %v1337
        %v1483 = vmul.f32 %v1175, %v1342
        %v1484 = vmul.f32 %v1174, %v1347
        %v1485 = vmul.f32 %v1173, %v1352
        %v1486 = vmul.f32 %v1172, %v1357
        %v1487 = vmul.f32 %v1171, %v1362
        %v1488 = vmul.f32 %v1170, %v1367
        %v1489 = vmul.f32 %v1169, %v1372
        %v1490 = vmul.f32 %v1168, %v1377
        %v1491 = vmul.f32 %v1167, %v1382
        %v1492 = vmul.f32 %v1166, %v1387
        %v1493 = vmul.f32 %v1165, %v1392
        %v1494 = vmul.f32 %v1164, %v1397
        %v1495 = vmul.f32 %v1163, %v1402
        %v1496 = vmul.f32 %v1162, %v1407
        %v1497 = vmul.f32 %v1161, %v1412
        %v1498 = vmul.f32 %v1160, %v1417
        %v1499 = vmul.f32 %v1159, %v1422
        %v1500 = vmul.f32 %v1158, %v1427
        %v1501 = vmul.f32 %v1157, %v1432
        %v1502 = vmul.f32 %v1156, %v1437
        %v1503 = vmul.f32 %v1155, %v1442
        %v1504 = vmul.f32 %v1154, %v1447
        %v1505 = vmul.f32 %v1153, %v1452
        %v1506 = vmul.f32 %v1152, %v1457
        %v1507 = vmul.f32 %v1151, %v1462
        %v1508 = vmul.f32 %v1150, %v1467
        %v1509 = vmul.f32 %v1149, %v1472
        %v1510 = vld [vmem:[%s10] sm:$0xff]
        %v1511 = vld [vmem:[%s10 + $0x8] sm:$0xff]
        %v1512 = vld [vmem:[%s10 + $0x10] sm:$0xff]
        %v1513 = vld [vmem:[%s10 + $0x18] sm:$0xff]
        %v1514 = vld [vmem:[%s10 + $0x20] sm:$0xff]
        %v1515 = vld [vmem:[%s10 + $0x28] sm:$0xff]
        %v1516 = vld [vmem:[%s10 + $0x30] sm:$0xff]
        %v1517 = vld [vmem:[%s10 + $0x38] sm:$0xff]
        %v1518 = vld [vmem:[%s10 + $0x40] sm:$0xff]
        %v1519 = vld [vmem:[%s10 + $0x48] sm:$0xff]
        %v1520 = vld [vmem:[%s10 + $0x50] sm:$0xff]
        %v1521 = vld [vmem:[%s10 + $0x58] sm:$0xff]
        %v1522 = vld [vmem:[%s10 + $0x60] sm:$0xff]
        %v1523 = vld [vmem:[%s10 + $0x68] sm:$0xff]
        %v1524 = vld [vmem:[%s10 + $0x70] sm:$0xff]
        %v1525 = vld [vmem:[%s10 + $0x78] sm:$0xff]
        %v1526 = vld [vmem:[%s10 + $0x80] sm:$0xff]
        %v1527 = vld [vmem:[%s10 + $0x88] sm:$0xff]
        %v1528 = vld [vmem:[%s10 + $0x90] sm:$0xff]
        %v1529 = vld [vmem:[%s10 + $0x98] sm:$0xff]
        %v1530 = vld [vmem:[%s10 + $0xa0] sm:$0xff]
        %v1531 = vld [vmem:[%s10 + $0xa8] sm:$0xff]
        %v1532 = vld [vmem:[%s10 + $0xb0] sm:$0xff]
        %v1533 = vld [vmem:[%s10 + $0xb8] sm:$0xff]
        %v1534 = vld [vmem:[%s10 + $0xc0] sm:$0xff]
        %v1535 = vld [vmem:[%s10 + $0xc8] sm:$0xff]
        %v1536 = vld [vmem:[%s10 + $0xd0] sm:$0xff]
        %v1537 = vld [vmem:[%s10 + $0xd8] sm:$0xff]
        %v1538 = vld [vmem:[%s10 + $0xe0] sm:$0xff]
        %v1539 = vld [vmem:[%s10 + $0xe8] sm:$0xff]
        %v1540 = vld [vmem:[%s10 + $0xf0] sm:$0xff]
        %v1541 = vld [vmem:[%s10 + $0xf8] sm:$0xff]
        %v1542 = vld [vmem:[%s10 + $0x100] sm:$0xff]
        %v1543 = vld [vmem:[%s10 + $0x108] sm:$0xff]
        %v1544 = vld [vmem:[%s10 + $0x110] sm:$0xff]
        %v1545 = vld [vmem:[%s10 + $0x118] sm:$0xff]
        %1547 = vset.pattern.permute.xlu0 0
        %1548 = vperm.xlu0 %1547, %v1510
        %v1549 = vpop.permute.xlu0 %1548
        %1552 = vset.pattern.permute.xlu0 0
        %1553 = vperm.xlu0 %1552, %v1511
        %v1554 = vpop.permute.xlu0 %1553
        %1557 = vset.pattern.permute.xlu0 0
        %1558 = vperm.xlu0 %1557, %v1512
        %v1559 = vpop.permute.xlu0 %1558
        %1562 = vset.pattern.permute.xlu0 0
        %1563 = vperm.xlu0 %1562, %v1513
        %v1564 = vpop.permute.xlu0 %1563
        %1567 = vset.pattern.permute.xlu0 0
        %1568 = vperm.xlu0 %1567, %v1514
        %v1569 = vpop.permute.xlu0 %1568
        %1572 = vset.pattern.permute.xlu0 0
        %1573 = vperm.xlu0 %1572, %v1515
        %v1574 = vpop.permute.xlu0 %1573
        %1577 = vset.pattern.permute.xlu0 0
        %1578 = vperm.xlu0 %1577, %v1516
        %v1579 = vpop.permute.xlu0 %1578
        %1582 = vset.pattern.permute.xlu0 0
        %1583 = vperm.xlu0 %1582, %v1517
        %v1584 = vpop.permute.xlu0 %1583
        %1587 = vset.pattern.permute.xlu0 0
        %1588 = vperm.xlu0 %1587, %v1518
        %v1589 = vpop.permute.xlu0 %1588
        %1592 = vset.pattern.permute.xlu0 0
        %1593 = vperm.xlu0 %1592, %v1519
        %v1594 = vpop.permute.xlu0 %1593
        %1597 = vset.pattern.permute.xlu0 0
        %1598 = vperm.xlu0 %1597, %v1520
        %v1599 = vpop.permute.xlu0 %1598
        %1602 = vset.pattern.permute.xlu0 0
        %1603 = vperm.xlu0 %1602, %v1521
        %v1604 = vpop.permute.xlu0 %1603
        %1607 = vset.pattern.permute.xlu0 0
        %1608 = vperm.xlu0 %1607, %v1522
        %v1609 = vpop.permute.xlu0 %1608
        %1612 = vset.pattern.permute.xlu0 0
        %1613 = vperm.xlu0 %1612, %v1523
        %v1614 = vpop.permute.xlu0 %1613
        %1617 = vset.pattern.permute.xlu0 0
        %1618 = vperm.xlu0 %1617, %v1524
        %v1619 = vpop.permute.xlu0 %1618
        %1622 = vset.pattern.permute.xlu0 0
        %1623 = vperm.xlu0 %1622, %v1525
        %v1624 = vpop.permute.xlu0 %1623
        %1627 = vset.pattern.permute.xlu0 0
        %1628 = vperm.xlu0 %1627, %v1526
        %v1629 = vpop.permute.xlu0 %1628
        %1632 = vset.pattern.permute.xlu0 0
        %1633 = vperm.xlu0 %1632, %v1527
        %v1634 = vpop.permute.xlu0 %1633
        %1637 = vset.pattern.permute.xlu0 0
        %1638 = vperm.xlu0 %1637, %v1528
        %v1639 = vpop.permute.xlu0 %1638
        %1642 = vset.pattern.permute.xlu0 0
        %1643 = vperm.xlu0 %1642, %v1529
        %v1644 = vpop.permute.xlu0 %1643
        %1647 = vset.pattern.permute.xlu0 0
        %1648 = vperm.xlu0 %1647, %v1530
        %v1649 = vpop.permute.xlu0 %1648
        %1652 = vset.pattern.permute.xlu0 0
        %1653 = vperm.xlu0 %1652, %v1531
        %v1654 = vpop.permute.xlu0 %1653
        %1657 = vset.pattern.permute.xlu0 0
        %1658 = vperm.xlu0 %1657, %v1532
        %v1659 = vpop.permute.xlu0 %1658
        %1662 = vset.pattern.permute.xlu0 0
        %1663 = vperm.xlu0 %1662, %v1533
        %v1664 = vpop.permute.xlu0 %1663
        %1667 = vset.pattern.permute.xlu0 0
        %1668 = vperm.xlu0 %1667, %v1534
        %v1669 = vpop.permute.xlu0 %1668
        %1672 = vset.pattern.permute.xlu0 0
        %1673 = vperm.xlu0 %1672, %v1535
        %v1674 = vpop.permute.xlu0 %1673
        %1677 = vset.pattern.permute.xlu0 0
        %1678 = vperm.xlu0 %1677, %v1536
        %v1679 = vpop.permute.xlu0 %1678
        %1682 = vset.pattern.permute.xlu0 0
        %1683 = vperm.xlu0 %1682, %v1537
        %v1684 = vpop.permute.xlu0 %1683
        %1687 = vset.pattern.permute.xlu0 0
        %1688 = vperm.xlu0 %1687, %v1538
        %v1689 = vpop.permute.xlu0 %1688
        %1692 = vset.pattern.permute.xlu0 0
        %1693 = vperm.xlu0 %1692, %v1539
        %v1694 = vpop.permute.xlu0 %1693
        %1697 = vset.pattern.permute.xlu0 0
        %1698 = vperm.xlu0 %1697, %v1540
        %v1699 = vpop.permute.xlu0 %1698
        %1702 = vset.pattern.permute.xlu0 0
        %1703 = vperm.xlu0 %1702, %v1541
        %v1704 = vpop.permute.xlu0 %1703
        %1707 = vset.pattern.permute.xlu0 0
        %1708 = vperm.xlu0 %1707, %v1542
        %v1709 = vpop.permute.xlu0 %1708
        %1712 = vset.pattern.permute.xlu0 0
        %1713 = vperm.xlu0 %1712, %v1543
        %v1714 = vpop.permute.xlu0 %1713
        %1717 = vset.pattern.permute.xlu0 0
        %1718 = vperm.xlu0 %1717, %v1544
        %v1719 = vpop.permute.xlu0 %1718
        %1722 = vset.pattern.permute.xlu0 0
        %1723 = vperm.xlu0 %1722, %v1545
        %v1724 = vpop.permute.xlu0 %1723
        %v1726 = vmul.f32 %v1256, %v1549
        %v1727 = vmul.f32 %v1255, %v1554
        %v1728 = vmul.f32 %v1254, %v1559
        %v1729 = vmul.f32 %v1253, %v1564
        %v1730 = vmul.f32 %v1252, %v1569
        %v1731 = vmul.f32 %v1251, %v1574
        %v1732 = vmul.f32 %v1250, %v1579
        %v1733 = vmul.f32 %v1249, %v1584
        %v1734 = vmul.f32 %v1248, %v1589
        %v1735 = vmul.f32 %v1247, %v1594
        %v1736 = vmul.f32 %v1246, %v1599
        %v1737 = vmul.f32 %v1245, %v1604
        %v1738 = vmul.f32 %v1244, %v1609
        %v1739 = vmul.f32 %v1243, %v1614
        %v1740 = vmul.f32 %v1242, %v1619
        %v1741 = vmul.f32 %v1241, %v1624
        %v1742 = vmul.f32 %v1240, %v1629
        %v1743 = vmul.f32 %v1239, %v1634
        %v1744 = vmul.f32 %v1238, %v1639
        %v1745 = vmul.f32 %v1237, %v1644
        %v1746 = vmul.f32 %v1236, %v1649
        %v1747 = vmul.f32 %v1235, %v1654
        %v1748 = vmul.f32 %v1234, %v1659
        %v1749 = vmul.f32 %v1233, %v1664
        %v1750 = vmul.f32 %v1232, %v1669
        %v1751 = vmul.f32 %v1231, %v1674
        %v1752 = vmul.f32 %v1230, %v1679
        %v1753 = vmul.f32 %v1229, %v1684
        %v1754 = vmul.f32 %v1228, %v1689
        %v1755 = vmul.f32 %v1227, %v1694
        %v1756 = vmul.f32 %v1226, %v1699
        %v1757 = vmul.f32 %v1225, %v1704
        %v1758 = vmul.f32 %v1224, %v1709
        %v1759 = vmul.f32 %v1223, %v1714
        %v1760 = vmul.f32 %v1222, %v1719
        %v1761 = vmul.f32 %v1257, %v1724
        %v1762 = vpack.c.bf16 %v1075, %v1074
        %v1763 = vpack.c.bf16 %v1077, %v1076
        %v1764 = vpack.c.bf16 %v1079, %v1078
        %v1765 = vpack.c.bf16 %v1081, %v1080
        %v1766 = vpack.c.bf16 %v1083, %v1082
        %v1767 = vpack.c.bf16 %v1085, %v1084
        %v1768 = vpack.c.bf16 %v1087, %v1086
        %v1769 = vpack.c.bf16 %v1089, %v1088
        %v1770 = vpack.c.bf16 %v1091, %v1090
        %v1771 = vpack.c.bf16 %v1093, %v1092
        %v1772 = vpack.c.bf16 %v1095, %v1094
        %v1773 = vpack.c.bf16 %v1097, %v1096
        %v1774 = vpack.c.bf16 %v1099, %v1098
        %v1775 = vpack.c.bf16 %v1101, %v1100
        %v1776 = vpack.c.bf16 %v1103, %v1102
        %v1777 = vpack.c.bf16 %v1105, %v1104
        %v1778 = vpack.c.bf16 %v1107, %v1106
        %v1779 = vpack.c.bf16 %v1109, %v1108
        %v1780 = vpack.c.bf16 %v1475, %v1474
        %v1781 = vpack.c.bf16 %v1477, %v1476
        %v1782 = vpack.c.bf16 %v1479, %v1478
        %v1783 = vpack.c.bf16 %v1481, %v1480
        %v1784 = vpack.c.bf16 %v1483, %v1482
        %v1785 = vpack.c.bf16 %v1485, %v1484
        %v1786 = vpack.c.bf16 %v1487, %v1486
        %v1787 = vpack.c.bf16 %v1489, %v1488
        %v1788 = vpack.c.bf16 %v1491, %v1490
        %v1789 = vpack.c.bf16 %v1493, %v1492
        %v1790 = vpack.c.bf16 %v1495, %v1494
        %v1791 = vpack.c.bf16 %v1497, %v1496
        %v1792 = vpack.c.bf16 %v1499, %v1498
        %v1793 = vpack.c.bf16 %v1501, %v1500
        %v1794 = vpack.c.bf16 %v1503, %v1502
        %v1795 = vpack.c.bf16 %v1505, %v1504
        %v1796 = vpack.c.bf16 %v1507, %v1506
        %v1797 = vpack.c.bf16 %v1509, %v1508
        %v1798 = vpack.c.bf16 %v1727, %v1726
        %v1799 = vpack.c.bf16 %v1729, %v1728
        %v1800 = vpack.c.bf16 %v1731, %v1730
        %v1801 = vpack.c.bf16 %v1733, %v1732
        %v1802 = vpack.c.bf16 %v1735, %v1734
        %v1803 = vpack.c.bf16 %v1737, %v1736
        %v1804 = vpack.c.bf16 %v1739, %v1738
        %v1805 = vpack.c.bf16 %v1741, %v1740
        %v1806 = vpack.c.bf16 %v1743, %v1742
        %v1807 = vpack.c.bf16 %v1745, %v1744
        %v1808 = vpack.c.bf16 %v1747, %v1746
        %v1809 = vpack.c.bf16 %v1749, %v1748
        %v1810 = vpack.c.bf16 %v1751, %v1750
        %v1811 = vpack.c.bf16 %v1753, %v1752
        %v1812 = vpack.c.bf16 %v1755, %v1754
        %v1813 = vpack.c.bf16 %v1757, %v1756
        %v1814 = vpack.c.bf16 %v1759, %v1758
        %v1815 = vpack.c.bf16 %v1761, %v1760
        %v1816 = vld [vmem:[%s5] sm:$0x7]
        %v1817 = vld [vmem:[%s5 + $0x4] sm:$0x7]
        %v1818 = vld [vmem:[%s5 + $0x8] sm:$0x7]
        %v1819 = vpack.c.bf16 %v1816, %v1816
        %v1820 = vpack.c.bf16 %v1817, %v1817
        %v1821 = vpack.c.bf16 %v1818, %v1818
        %v1822 = vld [vmem:[#allocation9] sm:$0x1]
        %v1824 = vlaneseq
        %v1825 = vshrl.u32 %v1824, 7
        %v1826 = vsub.s32 0, %v1825
        %v1827 = vrot.slane %v1822, %v1826
        %v1830 = vpack.i.b16 %v1819, %v1819
        %v1832 = vlaneseq
        %v1833 = vshrl.u32 %v1832, 7
        %v1834 = vsub.s32 0, %v1833
        %v1835 = vrot.slane %v1830, %v1834
        %v1836 = vmul.bf16 %v1780, %v1835
        %v1837 = vmul.bf16 %v1781, %v1835
        %v1838 = vmul.bf16 %v1782, %v1835
        %v1839 = vmul.bf16 %v1783, %v1835
        %v1840 = vmul.bf16 %v1784, %v1835
        %v1841 = vmul.bf16 %v1785, %v1835
        %v1842 = vmul.bf16 %v1786, %v1835
        %v1843 = vmul.bf16 %v1787, %v1835
        %v1844 = vmul.bf16 %v1788, %v1835
        %v1845 = vmul.bf16 %v1789, %v1835
        %v1846 = vmul.bf16 %v1790, %v1835
        %v1847 = vmul.bf16 %v1791, %v1835
        %v1848 = vmul.bf16 %v1792, %v1835
        %v1849 = vmul.bf16 %v1793, %v1835
        %v1850 = vmul.bf16 %v1794, %v1835
        %v1851 = vmul.bf16 %v1795, %v1835
        %v1852 = vunpack.c.l.bf16 %v1836
        %v1853 = vunpack.c.h.bf16 %v1836
        %v1854 = vunpack.c.l.bf16 %v1837
        %v1855 = vunpack.c.h.bf16 %v1837
        %v1856 = vunpack.c.l.bf16 %v1838
        %v1857 = vunpack.c.h.bf16 %v1838
        %v1858 = vunpack.c.l.bf16 %v1839
        %v1859 = vunpack.c.h.bf16 %v1839
        %v1860 = vunpack.c.l.bf16 %v1840
        %v1861 = vunpack.c.h.bf16 %v1840
        %v1862 = vunpack.c.l.bf16 %v1841
        %v1863 = vunpack.c.h.bf16 %v1841
        %v1864 = vunpack.c.l.bf16 %v1842
        %v1865 = vunpack.c.h.bf16 %v1842
        %v1866 = vunpack.c.l.bf16 %v1843
        %v1867 = vunpack.c.h.bf16 %v1843
        %v1868 = vunpack.c.l.bf16 %v1844
        %v1869 = vunpack.c.h.bf16 %v1844
        %v1870 = vunpack.c.l.bf16 %v1845
        %v1871 = vunpack.c.h.bf16 %v1845
        %v1872 = vunpack.c.l.bf16 %v1846
        %v1873 = vunpack.c.h.bf16 %v1846
        %v1874 = vunpack.c.l.bf16 %v1847
        %v1875 = vunpack.c.h.bf16 %v1847
        %v1876 = vunpack.c.l.bf16 %v1848
        %v1877 = vunpack.c.h.bf16 %v1848
        %v1878 = vunpack.c.l.bf16 %v1849
        %v1879 = vunpack.c.h.bf16 %v1849
        %v1880 = vunpack.c.l.bf16 %v1850
        %v1881 = vunpack.c.h.bf16 %v1850
        %v1882 = vunpack.c.l.bf16 %v1851
        %v1883 = vunpack.c.h.bf16 %v1851
        %v1884 = vadd.f32 %v1827, %v1852
        %v1885 = vadd.f32 %v1827, %v1853
        %v1886 = vadd.f32 %v1827, %v1854
        %v1887 = vadd.f32 %v1827, %v1855
        %v1888 = vadd.f32 %v1827, %v1856
        %v1889 = vadd.f32 %v1827, %v1857
        %v1890 = vadd.f32 %v1827, %v1858
        %v1891 = vadd.f32 %v1827, %v1859
        %v1892 = vadd.f32 %v1827, %v1860
        %v1893 = vadd.f32 %v1827, %v1861
        %v1894 = vadd.f32 %v1827, %v1862
        %v1895 = vadd.f32 %v1827, %v1863
        %v1896 = vadd.f32 %v1827, %v1864
        %v1897 = vadd.f32 %v1827, %v1865
        %v1898 = vadd.f32 %v1827, %v1866
        %v1899 = vadd.f32 %v1827, %v1867
        %v1900 = vadd.f32 %v1827, %v1868
        %v1901 = vadd.f32 %v1827, %v1869
        %v1902 = vadd.f32 %v1827, %v1870
        %v1903 = vadd.f32 %v1827, %v1871
        %v1904 = vadd.f32 %v1827, %v1872
        %v1905 = vadd.f32 %v1827, %v1873
        %v1906 = vadd.f32 %v1827, %v1874
        %v1907 = vadd.f32 %v1827, %v1875
        %v1908 = vadd.f32 %v1827, %v1876
        %v1909 = vadd.f32 %v1827, %v1877
        %v1910 = vadd.f32 %v1827, %v1878
        %v1911 = vadd.f32 %v1827, %v1879
        %v1912 = vadd.f32 %v1827, %v1880
        %v1913 = vadd.f32 %v1827, %v1881
        %v1914 = vadd.f32 %v1827, %v1882
        %v1915 = vadd.f32 %v1827, %v1883
        %v1916 = vshrl.u32 %v1819, 16
        %v1917 = vpack.i.b16 %v1916, %v1916
        %v1919 = vlaneseq
        %v1920 = vshrl.u32 %v1919, 7
        %v1921 = vsub.s32 0, %v1920
        %v1922 = vrot.slane %v1917, %v1921
        %v1923 = vmul.bf16 %v1762, %v1922
        %v1924 = vmul.bf16 %v1763, %v1922
        %v1925 = vmul.bf16 %v1764, %v1922
        %v1926 = vmul.bf16 %v1765, %v1922
        %v1927 = vmul.bf16 %v1766, %v1922
        %v1928 = vmul.bf16 %v1767, %v1922
        %v1929 = vmul.bf16 %v1768, %v1922
        %v1930 = vmul.bf16 %v1769, %v1922
        %v1931 = vmul.bf16 %v1770, %v1922
        %v1932 = vmul.bf16 %v1771, %v1922
        %v1933 = vmul.bf16 %v1772, %v1922
        %v1934 = vmul.bf16 %v1773, %v1922
        %v1935 = vmul.bf16 %v1774, %v1922
        %v1936 = vmul.bf16 %v1775, %v1922
        %v1937 = vmul.bf16 %v1776, %v1922
        %v1938 = vmul.bf16 %v1777, %v1922
        %v1939 = vunpack.c.l.bf16 %v1923
        %v1940 = vunpack.c.h.bf16 %v1923
        %v1941 = vunpack.c.l.bf16 %v1924
        %v1942 = vunpack.c.h.bf16 %v1924
        %v1943 = vunpack.c.l.bf16 %v1925
        %v1944 = vunpack.c.h.bf16 %v1925
        %v1945 = vunpack.c.l.bf16 %v1926
        %v1946 = vunpack.c.h.bf16 %v1926
        %v1947 = vunpack.c.l.bf16 %v1927
        %v1948 = vunpack.c.h.bf16 %v1927
        %v1949 = vunpack.c.l.bf16 %v1928
        %v1950 = vunpack.c.h.bf16 %v1928
        %v1951 = vunpack.c.l.bf16 %v1929
        %v1952 = vunpack.c.h.bf16 %v1929
        %v1953 = vunpack.c.l.bf16 %v1930
        %v1954 = vunpack.c.h.bf16 %v1930
        %v1955 = vunpack.c.l.bf16 %v1931
        %v1956 = vunpack.c.h.bf16 %v1931
        %v1957 = vunpack.c.l.bf16 %v1932
        %v1958 = vunpack.c.h.bf16 %v1932
        %v1959 = vunpack.c.l.bf16 %v1933
        %v1960 = vunpack.c.h.bf16 %v1933
        %v1961 = vunpack.c.l.bf16 %v1934
        %v1962 = vunpack.c.h.bf16 %v1934
        %v1963 = vunpack.c.l.bf16 %v1935
        %v1964 = vunpack.c.h.bf16 %v1935
        %v1965 = vunpack.c.l.bf16 %v1936
        %v1966 = vunpack.c.h.bf16 %v1936
        %v1967 = vunpack.c.l.bf16 %v1937
        %v1968 = vunpack.c.h.bf16 %v1937
        %v1969 = vunpack.c.l.bf16 %v1938
        %v1970 = vunpack.c.h.bf16 %v1938
        %v1971 = vadd.f32 %v1884, %v1939
        %v1972 = vadd.f32 %v1885, %v1940
        %v1973 = vadd.f32 %v1886, %v1941
        %v1974 = vadd.f32 %v1887, %v1942
        %v1975 = vadd.f32 %v1888, %v1943
        %v1976 = vadd.f32 %v1889, %v1944
        %v1977 = vadd.f32 %v1890, %v1945
        %v1978 = vadd.f32 %v1891, %v1946
        %v1979 = vadd.f32 %v1892, %v1947
        %v1980 = vadd.f32 %v1893, %v1948
        %v1981 = vadd.f32 %v1894, %v1949
        %v1982 = vadd.f32 %v1895, %v1950
        %v1983 = vadd.f32 %v1896, %v1951
        %v1984 = vadd.f32 %v1897, %v1952
        %v1985 = vadd.f32 %v1898, %v1953
        %v1986 = vadd.f32 %v1899, %v1954
        %v1987 = vadd.f32 %v1900, %v1955
        %v1988 = vadd.f32 %v1901, %v1956
        %v1989 = vadd.f32 %v1902, %v1957
        %v1990 = vadd.f32 %v1903, %v1958
        %v1991 = vadd.f32 %v1904, %v1959
        %v1992 = vadd.f32 %v1905, %v1960
        %v1993 = vadd.f32 %v1906, %v1961
        %v1994 = vadd.f32 %v1907, %v1962
        %v1995 = vadd.f32 %v1908, %v1963
        %v1996 = vadd.f32 %v1909, %v1964
        %v1997 = vadd.f32 %v1910, %v1965
        %v1998 = vadd.f32 %v1911, %v1966
        %v1999 = vadd.f32 %v1912, %v1967
        %v2000 = vadd.f32 %v1913, %v1968
        %v2001 = vadd.f32 %v1914, %v1969
        %v2002 = vadd.f32 %v1915, %v1970
        %v2003 = vlaneseq
        %v2004 = vshrl.u32 %v2003, 7
        %v2005 = vsub.s32 1, %v2004
        %v2006 = vrot.slane %v1830, %v2005
        %v2007 = vmul.bf16 %v1798, %v2006
        %v2008 = vmul.bf16 %v1799, %v2006
        %v2009 = vmul.bf16 %v1800, %v2006
        %v2010 = vmul.bf16 %v1801, %v2006
        %v2011 = vmul.bf16 %v1802, %v2006
        %v2012 = vmul.bf16 %v1803, %v2006
        %v2013 = vmul.bf16 %v1804, %v2006
        %v2014 = vmul.bf16 %v1805, %v2006
        %v2015 = vmul.bf16 %v1806, %v2006
        %v2016 = vmul.bf16 %v1807, %v2006
        %v2017 = vmul.bf16 %v1808, %v2006
        %v2018 = vmul.bf16 %v1809, %v2006
        %v2019 = vmul.bf16 %v1810, %v2006
        %v2020 = vmul.bf16 %v1811, %v2006
        %v2021 = vmul.bf16 %v1812, %v2006
        %v2022 = vmul.bf16 %v1813, %v2006
        %v2023 = vunpack.c.l.bf16 %v2007
        %v2024 = vunpack.c.h.bf16 %v2007
        %v2025 = vunpack.c.l.bf16 %v2008
        %v2026 = vunpack.c.h.bf16 %v2008
        %v2027 = vunpack.c.l.bf16 %v2009
        %v2028 = vunpack.c.h.bf16 %v2009
        %v2029 = vunpack.c.l.bf16 %v2010
        %v2030 = vunpack.c.h.bf16 %v2010
        %v2031 = vunpack.c.l.bf16 %v2011
        %v2032 = vunpack.c.h.bf16 %v2011
        %v2033 = vunpack.c.l.bf16 %v2012
        %v2034 = vunpack.c.h.bf16 %v2012
        %v2035 = vunpack.c.l.bf16 %v2013
        %v2036 = vunpack.c.h.bf16 %v2013
        %v2037 = vunpack.c.l.bf16 %v2014
        %v2038 = vunpack.c.h.bf16 %v2014
        %v2039 = vunpack.c.l.bf16 %v2015
        %v2040 = vunpack.c.h.bf16 %v2015
        %v2041 = vunpack.c.l.bf16 %v2016
        %v2042 = vunpack.c.h.bf16 %v2016
        %v2043 = vunpack.c.l.bf16 %v2017
        %v2044 = vunpack.c.h.bf16 %v2017
        %v2045 = vunpack.c.l.bf16 %v2018
        %v2046 = vunpack.c.h.bf16 %v2018
        %v2047 = vunpack.c.l.bf16 %v2019
        %v2048 = vunpack.c.h.bf16 %v2019
        %v2049 = vunpack.c.l.bf16 %v2020
        %v2050 = vunpack.c.h.bf16 %v2020
        %v2051 = vunpack.c.l.bf16 %v2021
        %v2052 = vunpack.c.h.bf16 %v2021
        %v2053 = vunpack.c.l.bf16 %v2022
        %v2054 = vunpack.c.h.bf16 %v2022
        %v2055 = vadd.f32 %v1971, %v2023
        %v2056 = vadd.f32 %v1972, %v2024
        %v2057 = vadd.f32 %v1973, %v2025
        %v2058 = vadd.f32 %v1974, %v2026
        %v2059 = vadd.f32 %v1975, %v2027
        %v2060 = vadd.f32 %v1976, %v2028
        %v2061 = vadd.f32 %v1977, %v2029
        %v2062 = vadd.f32 %v1978, %v2030
        %v2063 = vadd.f32 %v1979, %v2031
        %v2064 = vadd.f32 %v1980, %v2032
        %v2065 = vadd.f32 %v1981, %v2033
        %v2066 = vadd.f32 %v1982, %v2034
        %v2067 = vadd.f32 %v1983, %v2035
        %v2068 = vadd.f32 %v1984, %v2036
        %v2069 = vadd.f32 %v1985, %v2037
        %v2070 = vadd.f32 %v1986, %v2038
        %v2071 = vadd.f32 %v1987, %v2039
        %v2072 = vadd.f32 %v1988, %v2040
        %v2073 = vadd.f32 %v1989, %v2041
        %v2074 = vadd.f32 %v1990, %v2042
        %v2075 = vadd.f32 %v1991, %v2043
        %v2076 = vadd.f32 %v1992, %v2044
        %v2077 = vadd.f32 %v1993, %v2045
        %v2078 = vadd.f32 %v1994, %v2046
        %v2079 = vadd.f32 %v1995, %v2047
        %v2080 = vadd.f32 %v1996, %v2048
        %v2081 = vadd.f32 %v1997, %v2049
        %v2082 = vadd.f32 %v1998, %v2050
        %v2083 = vadd.f32 %v1999, %v2051
        %v2084 = vadd.f32 %v2000, %v2052
        %v2085 = vadd.f32 %v2001, %v2053
        %v2086 = vadd.f32 %v2002, %v2054
        %v2088 = vpack.i.b16 %v1820, %v1820
        %v2090 = vlaneseq
        %v2091 = vshrl.u32 %v2090, 7
        %v2092 = vsub.s32 0, %v2091
        %v2093 = vrot.slane %v2088, %v2092
        %v2094 = vmul.bf16 %v1781, %v2093
        %v2095 = vmul.bf16 %v1782, %v2093
        %v2096 = vmul.bf16 %v1783, %v2093
        %v2097 = vmul.bf16 %v1784, %v2093
        %v2098 = vmul.bf16 %v1785, %v2093
        %v2099 = vmul.bf16 %v1786, %v2093
        %v2100 = vmul.bf16 %v1787, %v2093
        %v2101 = vmul.bf16 %v1788, %v2093
        %v2102 = vmul.bf16 %v1789, %v2093
        %v2103 = vmul.bf16 %v1790, %v2093
        %v2104 = vmul.bf16 %v1791, %v2093
        %v2105 = vmul.bf16 %v1792, %v2093
        %v2106 = vmul.bf16 %v1793, %v2093
        %v2107 = vmul.bf16 %v1794, %v2093
        %v2108 = vmul.bf16 %v1795, %v2093
        %v2109 = vmul.bf16 %v1796, %v2093
        %v2110 = vunpack.c.l.bf16 %v2094
        %v2111 = vunpack.c.h.bf16 %v2094
        %v2112 = vunpack.c.l.bf16 %v2095
        %v2113 = vunpack.c.h.bf16 %v2095
        %v2114 = vunpack.c.l.bf16 %v2096
        %v2115 = vunpack.c.h.bf16 %v2096
        %v2116 = vunpack.c.l.bf16 %v2097
        %v2117 = vunpack.c.h.bf16 %v2097
        %v2118 = vunpack.c.l.bf16 %v2098
        %v2119 = vunpack.c.h.bf16 %v2098
        %v2120 = vunpack.c.l.bf16 %v2099
        %v2121 = vunpack.c.h.bf16 %v2099
        %v2122 = vunpack.c.l.bf16 %v2100
        %v2123 = vunpack.c.h.bf16 %v2100
        %v2124 = vunpack.c.l.bf16 %v2101
        %v2125 = vunpack.c.h.bf16 %v2101
        %v2126 = vunpack.c.l.bf16 %v2102
        %v2127 = vunpack.c.h.bf16 %v2102
        %v2128 = vunpack.c.l.bf16 %v2103
        %v2129 = vunpack.c.h.bf16 %v2103
        %v2130 = vunpack.c.l.bf16 %v2104
        %v2131 = vunpack.c.h.bf16 %v2104
        %v2132 = vunpack.c.l.bf16 %v2105
        %v2133 = vunpack.c.h.bf16 %v2105
        %v2134 = vunpack.c.l.bf16 %v2106
        %v2135 = vunpack.c.h.bf16 %v2106
        %v2136 = vunpack.c.l.bf16 %v2107
        %v2137 = vunpack.c.h.bf16 %v2107
        %v2138 = vunpack.c.l.bf16 %v2108
        %v2139 = vunpack.c.h.bf16 %v2108
        %v2140 = vunpack.c.l.bf16 %v2109
        %v2141 = vunpack.c.h.bf16 %v2109
        %v2142 = vadd.f32 %v2055, %v2110
        %v2143 = vadd.f32 %v2056, %v2111
        %v2144 = vadd.f32 %v2057, %v2112
        %v2145 = vadd.f32 %v2058, %v2113
        %v2146 = vadd.f32 %v2059, %v2114
        %v2147 = vadd.f32 %v2060, %v2115
        %v2148 = vadd.f32 %v2061, %v2116
        %v2149 = vadd.f32 %v2062, %v2117
        %v2150 = vadd.f32 %v2063, %v2118
        %v2151 = vadd.f32 %v2064, %v2119
        %v2152 = vadd.f32 %v2065, %v2120
        %v2153 = vadd.f32 %v2066, %v2121
        %v2154 = vadd.f32 %v2067, %v2122
        %v2155 = vadd.f32 %v2068, %v2123
        %v2156 = vadd.f32 %v2069, %v2124
        %v2157 = vadd.f32 %v2070, %v2125
        %v2158 = vadd.f32 %v2071, %v2126
        %v2159 = vadd.f32 %v2072, %v2127
        %v2160 = vadd.f32 %v2073, %v2128
        %v2161 = vadd.f32 %v2074, %v2129
        %v2162 = vadd.f32 %v2075, %v2130
        %v2163 = vadd.f32 %v2076, %v2131
        %v2164 = vadd.f32 %v2077, %v2132
        %v2165 = vadd.f32 %v2078, %v2133
        %v2166 = vadd.f32 %v2079, %v2134
        %v2167 = vadd.f32 %v2080, %v2135
        %v2168 = vadd.f32 %v2081, %v2136
        %v2169 = vadd.f32 %v2082, %v2137
        %v2170 = vadd.f32 %v2083, %v2138
        %v2171 = vadd.f32 %v2084, %v2139
        %v2172 = vadd.f32 %v2085, %v2140
        %v2173 = vadd.f32 %v2086, %v2141
        %v2174 = vshrl.u32 %v1820, 16
        %v2175 = vpack.i.b16 %v2174, %v2174
        %v2177 = vlaneseq
        %v2178 = vshrl.u32 %v2177, 7
        %v2179 = vsub.s32 0, %v2178
        %v2180 = vrot.slane %v2175, %v2179
        %v2181 = vmul.bf16 %v1763, %v2180
        %v2182 = vmul.bf16 %v1764, %v2180
        %v2183 = vmul.bf16 %v1765, %v2180
        %v2184 = vmul.bf16 %v1766, %v2180
        %v2185 = vmul.bf16 %v1767, %v2180
        %v2186 = vmul.bf16 %v1768, %v2180
        %v2187 = vmul.bf16 %v1769, %v2180
        %v2188 = vmul.bf16 %v1770, %v2180
        %v2189 = vmul.bf16 %v1771, %v2180
        %v2190 = vmul.bf16 %v1772, %v2180
        %v2191 = vmul.bf16 %v1773, %v2180
        %v2192 = vmul.bf16 %v1774, %v2180
        %v2193 = vmul.bf16 %v1775, %v2180
        %v2194 = vmul.bf16 %v1776, %v2180
        %v2195 = vmul.bf16 %v1777, %v2180
        %v2196 = vmul.bf16 %v1778, %v2180
        %v2197 = vunpack.c.l.bf16 %v2181
        %v2198 = vunpack.c.h.bf16 %v2181
        %v2199 = vunpack.c.l.bf16 %v2182
        %v2200 = vunpack.c.h.bf16 %v2182
        %v2201 = vunpack.c.l.bf16 %v2183
        %v2202 = vunpack.c.h.bf16 %v2183
        %v2203 = vunpack.c.l.bf16 %v2184
        %v2204 = vunpack.c.h.bf16 %v2184
        %v2205 = vunpack.c.l.bf16 %v2185
        %v2206 = vunpack.c.h.bf16 %v2185
        %v2207 = vunpack.c.l.bf16 %v2186
        %v2208 = vunpack.c.h.bf16 %v2186
        %v2209 = vunpack.c.l.bf16 %v2187
        %v2210 = vunpack.c.h.bf16 %v2187
        %v2211 = vunpack.c.l.bf16 %v2188
        %v2212 = vunpack.c.h.bf16 %v2188
        %v2213 = vunpack.c.l.bf16 %v2189
        %v2214 = vunpack.c.h.bf16 %v2189
        %v2215 = vunpack.c.l.bf16 %v2190
        %v2216 = vunpack.c.h.bf16 %v2190
        %v2217 = vunpack.c.l.bf16 %v2191
        %v2218 = vunpack.c.h.bf16 %v2191
        %v2219 = vunpack.c.l.bf16 %v2192
        %v2220 = vunpack.c.h.bf16 %v2192
        %v2221 = vunpack.c.l.bf16 %v2193
        %v2222 = vunpack.c.h.bf16 %v2193
        %v2223 = vunpack.c.l.bf16 %v2194
        %v2224 = vunpack.c.h.bf16 %v2194
        %v2225 = vunpack.c.l.bf16 %v2195
        %v2226 = vunpack.c.h.bf16 %v2195
        %v2227 = vunpack.c.l.bf16 %v2196
        %v2228 = vunpack.c.h.bf16 %v2196
        %v2229 = vadd.f32 %v2142, %v2197
        %v2230 = vadd.f32 %v2143, %v2198
        %v2231 = vadd.f32 %v2144, %v2199
        %v2232 = vadd.f32 %v2145, %v2200
        %v2233 = vadd.f32 %v2146, %v2201
        %v2234 = vadd.f32 %v2147, %v2202
        %v2235 = vadd.f32 %v2148, %v2203
        %v2236 = vadd.f32 %v2149, %v2204
        %v2237 = vadd.f32 %v2150, %v2205
        %v2238 = vadd.f32 %v2151, %v2206
        %v2239 = vadd.f32 %v2152, %v2207
        %v2240 = vadd.f32 %v2153, %v2208
        %v2241 = vadd.f32 %v2154, %v2209
        %v2242 = vadd.f32 %v2155, %v2210
        %v2243 = vadd.f32 %v2156, %v2211
        %v2244 = vadd.f32 %v2157, %v2212
        %v2245 = vadd.f32 %v2158, %v2213
        %v2246 = vadd.f32 %v2159, %v2214
        %v2247 = vadd.f32 %v2160, %v2215
        %v2248 = vadd.f32 %v2161, %v2216
        %v2249 = vadd.f32 %v2162, %v2217
        %v2250 = vadd.f32 %v2163, %v2218
        %v2251 = vadd.f32 %v2164, %v2219
        %v2252 = vadd.f32 %v2165, %v2220
        %v2253 = vadd.f32 %v2166, %v2221
        %v2254 = vadd.f32 %v2167, %v2222
        %v2255 = vadd.f32 %v2168, %v2223
        %v2256 = vadd.f32 %v2169, %v2224
        %v2257 = vadd.f32 %v2170, %v2225
        %v2258 = vadd.f32 %v2171, %v2226
        %v2259 = vadd.f32 %v2172, %v2227
        %v2260 = vadd.f32 %v2173, %v2228
        %v2261 = vlaneseq
        %v2262 = vshrl.u32 %v2261, 7
        %v2263 = vsub.s32 1, %v2262
        %v2264 = vrot.slane %v2088, %v2263
        %v2265 = vmul.bf16 %v1799, %v2264
        %v2266 = vmul.bf16 %v1800, %v2264
        %v2267 = vmul.bf16 %v1801, %v2264
        %v2268 = vmul.bf16 %v1802, %v2264
        %v2269 = vmul.bf16 %v1803, %v2264
        %v2270 = vmul.bf16 %v1804, %v2264
        %v2271 = vmul.bf16 %v1805, %v2264
        %v2272 = vmul.bf16 %v1806, %v2264
        %v2273 = vmul.bf16 %v1807, %v2264
        %v2274 = vmul.bf16 %v1808, %v2264
        %v2275 = vmul.bf16 %v1809, %v2264
        %v2276 = vmul.bf16 %v1810, %v2264
        %v2277 = vmul.bf16 %v1811, %v2264
        %v2278 = vmul.bf16 %v1812, %v2264
        %v2279 = vmul.bf16 %v1813, %v2264
        %v2280 = vmul.bf16 %v1814, %v2264
        %v2281 = vunpack.c.l.bf16 %v2265
        %v2282 = vunpack.c.h.bf16 %v2265
        %v2283 = vunpack.c.l.bf16 %v2266
        %v2284 = vunpack.c.h.bf16 %v2266
        %v2285 = vunpack.c.l.bf16 %v2267
        %v2286 = vunpack.c.h.bf16 %v2267
        %v2287 = vunpack.c.l.bf16 %v2268
        %v2288 = vunpack.c.h.bf16 %v2268
        %v2289 = vunpack.c.l.bf16 %v2269
        %v2290 = vunpack.c.h.bf16 %v2269
        %v2291 = vunpack.c.l.bf16 %v2270
        %v2292 = vunpack.c.h.bf16 %v2270
        %v2293 = vunpack.c.l.bf16 %v2271
        %v2294 = vunpack.c.h.bf16 %v2271
        %v2295 = vunpack.c.l.bf16 %v2272
        %v2296 = vunpack.c.h.bf16 %v2272
        %v2297 = vunpack.c.l.bf16 %v2273
        %v2298 = vunpack.c.h.bf16 %v2273
        %v2299 = vunpack.c.l.bf16 %v2274
        %v2300 = vunpack.c.h.bf16 %v2274
        %v2301 = vunpack.c.l.bf16 %v2275
        %v2302 = vunpack.c.h.bf16 %v2275
        %v2303 = vunpack.c.l.bf16 %v2276
        %v2304 = vunpack.c.h.bf16 %v2276
        %v2305 = vunpack.c.l.bf16 %v2277
        %v2306 = vunpack.c.h.bf16 %v2277
        %v2307 = vunpack.c.l.bf16 %v2278
        %v2308 = vunpack.c.h.bf16 %v2278
        %v2309 = vunpack.c.l.bf16 %v2279
        %v2310 = vunpack.c.h.bf16 %v2279
        %v2311 = vunpack.c.l.bf16 %v2280
        %v2312 = vunpack.c.h.bf16 %v2280
        %v2313 = vadd.f32 %v2229, %v2281
        %v2314 = vadd.f32 %v2230, %v2282
        %v2315 = vadd.f32 %v2231, %v2283
        %v2316 = vadd.f32 %v2232, %v2284
        %v2317 = vadd.f32 %v2233, %v2285
        %v2318 = vadd.f32 %v2234, %v2286
        %v2319 = vadd.f32 %v2235, %v2287
        %v2320 = vadd.f32 %v2236, %v2288
        %v2321 = vadd.f32 %v2237, %v2289
        %v2322 = vadd.f32 %v2238, %v2290
        %v2323 = vadd.f32 %v2239, %v2291
        %v2324 = vadd.f32 %v2240, %v2292
        %v2325 = vadd.f32 %v2241, %v2293
        %v2326 = vadd.f32 %v2242, %v2294
        %v2327 = vadd.f32 %v2243, %v2295
        %v2328 = vadd.f32 %v2244, %v2296
        %v2329 = vadd.f32 %v2245, %v2297
        %v2330 = vadd.f32 %v2246, %v2298
        %v2331 = vadd.f32 %v2247, %v2299
        %v2332 = vadd.f32 %v2248, %v2300
        %v2333 = vadd.f32 %v2249, %v2301
        %v2334 = vadd.f32 %v2250, %v2302
        %v2335 = vadd.f32 %v2251, %v2303
        %v2336 = vadd.f32 %v2252, %v2304
        %v2337 = vadd.f32 %v2253, %v2305
        %v2338 = vadd.f32 %v2254, %v2306
        %v2339 = vadd.f32 %v2255, %v2307
        %v2340 = vadd.f32 %v2256, %v2308
        %v2341 = vadd.f32 %v2257, %v2309
        %v2342 = vadd.f32 %v2258, %v2310
        %v2343 = vadd.f32 %v2259, %v2311
        %v2344 = vadd.f32 %v2260, %v2312
        %v2346 = vpack.i.b16 %v1821, %v1821
        %v2348 = vlaneseq
        %v2349 = vshrl.u32 %v2348, 7
        %v2350 = vsub.s32 0, %v2349
        %v2351 = vrot.slane %v2346, %v2350
        %v2352 = vmul.bf16 %v1782, %v2351
        %v2353 = vmul.bf16 %v1783, %v2351
        %v2354 = vmul.bf16 %v1784, %v2351
        %v2355 = vmul.bf16 %v1785, %v2351
        %v2356 = vmul.bf16 %v1786, %v2351
        %v2357 = vmul.bf16 %v1787, %v2351
        %v2358 = vmul.bf16 %v1788, %v2351
        %v2359 = vmul.bf16 %v1789, %v2351
        %v2360 = vmul.bf16 %v1790, %v2351
        %v2361 = vmul.bf16 %v1791, %v2351
        %v2362 = vmul.bf16 %v1792, %v2351
        %v2363 = vmul.bf16 %v1793, %v2351
        %v2364 = vmul.bf16 %v1794, %v2351
        %v2365 = vmul.bf16 %v1795, %v2351
        %v2366 = vmul.bf16 %v1796, %v2351
        %v2367 = vmul.bf16 %v1797, %v2351
        %v2368 = vunpack.c.l.bf16 %v2352
        %v2369 = vunpack.c.h.bf16 %v2352
        %v2370 = vunpack.c.l.bf16 %v2353
        %v2371 = vunpack.c.h.bf16 %v2353
        %v2372 = vunpack.c.l.bf16 %v2354
        %v2373 = vunpack.c.h.bf16 %v2354
        %v2374 = vunpack.c.l.bf16 %v2355
        %v2375 = vunpack.c.h.bf16 %v2355
        %v2376 = vunpack.c.l.bf16 %v2356
        %v2377 = vunpack.c.h.bf16 %v2356
        %v2378 = vunpack.c.l.bf16 %v2357
        %v2379 = vunpack.c.h.bf16 %v2357
        %v2380 = vunpack.c.l.bf16 %v2358
        %v2381 = vunpack.c.h.bf16 %v2358
        %v2382 = vunpack.c.l.bf16 %v2359
        %v2383 = vunpack.c.h.bf16 %v2359
        %v2384 = vunpack.c.l.bf16 %v2360
        %v2385 = vunpack.c.h.bf16 %v2360
        %v2386 = vunpack.c.l.bf16 %v2361
        %v2387 = vunpack.c.h.bf16 %v2361
        %v2388 = vunpack.c.l.bf16 %v2362
        %v2389 = vunpack.c.h.bf16 %v2362
        %v2390 = vunpack.c.l.bf16 %v2363
        %v2391 = vunpack.c.h.bf16 %v2363
        %v2392 = vunpack.c.l.bf16 %v2364
        %v2393 = vunpack.c.h.bf16 %v2364
        %v2394 = vunpack.c.l.bf16 %v2365
        %v2395 = vunpack.c.h.bf16 %v2365
        %v2396 = vunpack.c.l.bf16 %v2366
        %v2397 = vunpack.c.h.bf16 %v2366
        %v2398 = vunpack.c.l.bf16 %v2367
        %v2399 = vunpack.c.h.bf16 %v2367
        %v2400 = vadd.f32 %v2313, %v2368
        %v2401 = vadd.f32 %v2314, %v2369
        %v2402 = vadd.f32 %v2315, %v2370
        %v2403 = vadd.f32 %v2316, %v2371
        %v2404 = vadd.f32 %v2317, %v2372
        %v2405 = vadd.f32 %v2318, %v2373
        %v2406 = vadd.f32 %v2319, %v2374
        %v2407 = vadd.f32 %v2320, %v2375
        %v2408 = vadd.f32 %v2321, %v2376
        %v2409 = vadd.f32 %v2322, %v2377
        %v2410 = vadd.f32 %v2323, %v2378
        %v2411 = vadd.f32 %v2324, %v2379
        %v2412 = vadd.f32 %v2325, %v2380
        %v2413 = vadd.f32 %v2326, %v2381
        %v2414 = vadd.f32 %v2327, %v2382
        %v2415 = vadd.f32 %v2328, %v2383
        %v2416 = vadd.f32 %v2329, %v2384
        %v2417 = vadd.f32 %v2330, %v2385
        %v2418 = vadd.f32 %v2331, %v2386
        %v2419 = vadd.f32 %v2332, %v2387
        %v2420 = vadd.f32 %v2333, %v2388
        %v2421 = vadd.f32 %v2334, %v2389
        %v2422 = vadd.f32 %v2335, %v2390
        %v2423 = vadd.f32 %v2336, %v2391
        %v2424 = vadd.f32 %v2337, %v2392
        %v2425 = vadd.f32 %v2338, %v2393
        %v2426 = vadd.f32 %v2339, %v2394
        %v2427 = vadd.f32 %v2340, %v2395
        %v2428 = vadd.f32 %v2341, %v2396
        %v2429 = vadd.f32 %v2342, %v2397
        %v2430 = vadd.f32 %v2343, %v2398
        %v2431 = vadd.f32 %v2344, %v2399
        %v2432 = vshrl.u32 %v1821, 16
        %v2433 = vpack.i.b16 %v2432, %v2432
        %v2435 = vlaneseq
        %v2436 = vshrl.u32 %v2435, 7
        %v2437 = vsub.s32 0, %v2436
        %v2438 = vrot.slane %v2433, %v2437
        %v2439 = vmul.bf16 %v1764, %v2438
        %v2440 = vmul.bf16 %v1765, %v2438
        %v2441 = vmul.bf16 %v1766, %v2438
        %v2442 = vmul.bf16 %v1767, %v2438
        %v2443 = vmul.bf16 %v1768, %v2438
        %v2444 = vmul.bf16 %v1769, %v2438
        %v2445 = vmul.bf16 %v1770, %v2438
        %v2446 = vmul.bf16 %v1771, %v2438
        %v2447 = vmul.bf16 %v1772, %v2438
        %v2448 = vmul.bf16 %v1773, %v2438
        %v2449 = vmul.bf16 %v1774, %v2438
        %v2450 = vmul.bf16 %v1775, %v2438
        %v2451 = vmul.bf16 %v1776, %v2438
        %v2452 = vmul.bf16 %v1777, %v2438
        %v2453 = vmul.bf16 %v1778, %v2438
        %v2454 = vmul.bf16 %v1779, %v2438
        %v2455 = vunpack.c.l.bf16 %v2439
        %v2456 = vunpack.c.h.bf16 %v2439
        %v2457 = vunpack.c.l.bf16 %v2440
        %v2458 = vunpack.c.h.bf16 %v2440
        %v2459 = vunpack.c.l.bf16 %v2441
        %v2460 = vunpack.c.h.bf16 %v2441
        %v2461 = vunpack.c.l.bf16 %v2442
        %v2462 = vunpack.c.h.bf16 %v2442
        %v2463 = vunpack.c.l.bf16 %v2443
        %v2464 = vunpack.c.h.bf16 %v2443
        %v2465 = vunpack.c.l.bf16 %v2444
        %v2466 = vunpack.c.h.bf16 %v2444
        %v2467 = vunpack.c.l.bf16 %v2445
        %v2468 = vunpack.c.h.bf16 %v2445
        %v2469 = vunpack.c.l.bf16 %v2446
        %v2470 = vunpack.c.h.bf16 %v2446
        %v2471 = vunpack.c.l.bf16 %v2447
        %v2472 = vunpack.c.h.bf16 %v2447
        %v2473 = vunpack.c.l.bf16 %v2448
        %v2474 = vunpack.c.h.bf16 %v2448
        %v2475 = vunpack.c.l.bf16 %v2449
        %v2476 = vunpack.c.h.bf16 %v2449
        %v2477 = vunpack.c.l.bf16 %v2450
        %v2478 = vunpack.c.h.bf16 %v2450
        %v2479 = vunpack.c.l.bf16 %v2451
        %v2480 = vunpack.c.h.bf16 %v2451
        %v2481 = vunpack.c.l.bf16 %v2452
        %v2482 = vunpack.c.h.bf16 %v2452
        %v2483 = vunpack.c.l.bf16 %v2453
        %v2484 = vunpack.c.h.bf16 %v2453
        %v2485 = vunpack.c.l.bf16 %v2454
        %v2486 = vunpack.c.h.bf16 %v2454
        %v2487 = vadd.f32 %v2400, %v2455
        %v2488 = vadd.f32 %v2401, %v2456
        %v2489 = vadd.f32 %v2402, %v2457
        %v2490 = vadd.f32 %v2403, %v2458
        %v2491 = vadd.f32 %v2404, %v2459
        %v2492 = vadd.f32 %v2405, %v2460
        %v2493 = vadd.f32 %v2406, %v2461
        %v2494 = vadd.f32 %v2407, %v2462
        %v2495 = vadd.f32 %v2408, %v2463
        %v2496 = vadd.f32 %v2409, %v2464
        %v2497 = vadd.f32 %v2410, %v2465
        %v2498 = vadd.f32 %v2411, %v2466
        %v2499 = vadd.f32 %v2412, %v2467
        %v2500 = vadd.f32 %v2413, %v2468
        %v2501 = vadd.f32 %v2414, %v2469
        %v2502 = vadd.f32 %v2415, %v2470
        %v2503 = vadd.f32 %v2416, %v2471
        %v2504 = vadd.f32 %v2417, %v2472
        %v2505 = vadd.f32 %v2418, %v2473
        %v2506 = vadd.f32 %v2419, %v2474
        %v2507 = vadd.f32 %v2420, %v2475
        %v2508 = vadd.f32 %v2421, %v2476
        %v2509 = vadd.f32 %v2422, %v2477
        %v2510 = vadd.f32 %v2423, %v2478
        %v2511 = vadd.f32 %v2424, %v2479
        %v2512 = vadd.f32 %v2425, %v2480
        %v2513 = vadd.f32 %v2426, %v2481
        %v2514 = vadd.f32 %v2427, %v2482
        %v2515 = vadd.f32 %v2428, %v2483
        %v2516 = vadd.f32 %v2429, %v2484
        %v2517 = vadd.f32 %v2430, %v2485
        %v2518 = vadd.f32 %v2431, %v2486
        %v2519 = vlaneseq
        %v2520 = vshrl.u32 %v2519, 7
        %v2521 = vsub.s32 1, %v2520
        %v2522 = vrot.slane %v2346, %v2521
        %v2523 = vmul.bf16 %v1800, %v2522
        %v2524 = vmul.bf16 %v1801, %v2522
        %v2525 = vmul.bf16 %v1802, %v2522
        %v2526 = vmul.bf16 %v1803, %v2522
        %v2527 = vmul.bf16 %v1804, %v2522
        %v2528 = vmul.bf16 %v1805, %v2522
        %v2529 = vmul.bf16 %v1806, %v2522
        %v2530 = vmul.bf16 %v1807, %v2522
        %v2531 = vmul.bf16 %v1808, %v2522
        %v2532 = vmul.bf16 %v1809, %v2522
        %v2533 = vmul.bf16 %v1810, %v2522
        %v2534 = vmul.bf16 %v1811, %v2522
        %v2535 = vmul.bf16 %v1812, %v2522
        %v2536 = vmul.bf16 %v1813, %v2522
        %v2537 = vmul.bf16 %v1814, %v2522
        %v2538 = vmul.bf16 %v1815, %v2522
        %v2539 = vunpack.c.l.bf16 %v2523
        %v2540 = vunpack.c.h.bf16 %v2523
        %v2541 = vunpack.c.l.bf16 %v2524
        %v2542 = vunpack.c.h.bf16 %v2524
        %v2543 = vunpack.c.l.bf16 %v2525
        %v2544 = vunpack.c.h.bf16 %v2525
        %v2545 = vunpack.c.l.bf16 %v2526
        %v2546 = vunpack.c.h.bf16 %v2526
        %v2547 = vunpack.c.l.bf16 %v2527
        %v2548 = vunpack.c.h.bf16 %v2527
        %v2549 = vunpack.c.l.bf16 %v2528
        %v2550 = vunpack.c.h.bf16 %v2528
        %v2551 = vunpack.c.l.bf16 %v2529
        %v2552 = vunpack.c.h.bf16 %v2529
        %v2553 = vunpack.c.l.bf16 %v2530
        %v2554 = vunpack.c.h.bf16 %v2530
        %v2555 = vunpack.c.l.bf16 %v2531
        %v2556 = vunpack.c.h.bf16 %v2531
        %v2557 = vunpack.c.l.bf16 %v2532
        %v2558 = vunpack.c.h.bf16 %v2532
        %v2559 = vunpack.c.l.bf16 %v2533
        %v2560 = vunpack.c.h.bf16 %v2533
        %v2561 = vunpack.c.l.bf16 %v2534
        %v2562 = vunpack.c.h.bf16 %v2534
        %v2563 = vunpack.c.l.bf16 %v2535
        %v2564 = vunpack.c.h.bf16 %v2535
        %v2565 = vunpack.c.l.bf16 %v2536
        %v2566 = vunpack.c.h.bf16 %v2536
        %v2567 = vunpack.c.l.bf16 %v2537
        %v2568 = vunpack.c.h.bf16 %v2537
        %v2569 = vunpack.c.l.bf16 %v2538
        %v2570 = vunpack.c.h.bf16 %v2538
        %v2571 = vadd.f32 %v2487, %v2539
        %v2572 = vadd.f32 %v2488, %v2540
        %v2573 = vadd.f32 %v2489, %v2541
        %v2574 = vadd.f32 %v2490, %v2542
        %v2575 = vadd.f32 %v2491, %v2543
        %v2576 = vadd.f32 %v2492, %v2544
        %v2577 = vadd.f32 %v2493, %v2545
        %v2578 = vadd.f32 %v2494, %v2546
        %v2579 = vadd.f32 %v2495, %v2547
        %v2580 = vadd.f32 %v2496, %v2548
        %v2581 = vadd.f32 %v2497, %v2549
        %v2582 = vadd.f32 %v2498, %v2550
        %v2583 = vadd.f32 %v2499, %v2551
        %v2584 = vadd.f32 %v2500, %v2552
        %v2585 = vadd.f32 %v2501, %v2553
        %v2586 = vadd.f32 %v2502, %v2554
        %v2587 = vadd.f32 %v2503, %v2555
        %v2588 = vadd.f32 %v2504, %v2556
        %v2589 = vadd.f32 %v2505, %v2557
        %v2590 = vadd.f32 %v2506, %v2558
        %v2591 = vadd.f32 %v2507, %v2559
        %v2592 = vadd.f32 %v2508, %v2560
        %v2593 = vadd.f32 %v2509, %v2561
        %v2594 = vadd.f32 %v2510, %v2562
        %v2595 = vadd.f32 %v2511, %v2563
        %v2596 = vadd.f32 %v2512, %v2564
        %v2597 = vadd.f32 %v2513, %v2565
        %v2598 = vadd.f32 %v2514, %v2566
        %v2599 = vadd.f32 %v2515, %v2567
        %v2600 = vadd.f32 %v2516, %v2568
        %v2601 = vadd.f32 %v2517, %v2569
        %v2602 = vadd.f32 %v2518, %v2570
        %v2603 = vmax.f32 %v2571, 0.0
        %v2604 = vmax.f32 %v2572, 0.0
        %v2605 = vmax.f32 %v2573, 0.0
        %v2606 = vmax.f32 %v2574, 0.0
        %v2607 = vmax.f32 %v2575, 0.0
        %v2608 = vmax.f32 %v2576, 0.0
        %v2609 = vmax.f32 %v2577, 0.0
        %v2610 = vmax.f32 %v2578, 0.0
        %v2611 = vmax.f32 %v2579, 0.0
        %v2612 = vmax.f32 %v2580, 0.0
        %v2613 = vmax.f32 %v2581, 0.0
        %v2614 = vmax.f32 %v2582, 0.0
        %v2615 = vmax.f32 %v2583, 0.0
        %v2616 = vmax.f32 %v2584, 0.0
        %v2617 = vmax.f32 %v2585, 0.0
        %v2618 = vmax.f32 %v2586, 0.0
        %v2619 = vmax.f32 %v2587, 0.0
        %v2620 = vmax.f32 %v2588, 0.0
        %v2621 = vmax.f32 %v2589, 0.0
        %v2622 = vmax.f32 %v2590, 0.0
        %v2623 = vmax.f32 %v2591, 0.0
        %v2624 = vmax.f32 %v2592, 0.0
        %v2625 = vmax.f32 %v2593, 0.0
        %v2626 = vmax.f32 %v2594, 0.0
        %v2627 = vmax.f32 %v2595, 0.0
        %v2628 = vmax.f32 %v2596, 0.0
        %v2629 = vmax.f32 %v2597, 0.0
        %v2630 = vmax.f32 %v2598, 0.0
        %v2631 = vmax.f32 %v2599, 0.0
        %v2632 = vmax.f32 %v2600, 0.0
        %v2633 = vmax.f32 %v2601, 0.0
        %v2634 = vmax.f32 %v2602, 0.0
        %v2635 = vpack.c.bf16 %v2604, %v2603
        %v2636 = vpack.c.bf16 %v2606, %v2605
        %v2637 = vpack.c.bf16 %v2608, %v2607
        %v2638 = vpack.c.bf16 %v2610, %v2609
        %v2639 = vpack.c.bf16 %v2612, %v2611
        %v2640 = vpack.c.bf16 %v2614, %v2613
        %v2641 = vpack.c.bf16 %v2616, %v2615
        %v2642 = vpack.c.bf16 %v2618, %v2617
        %v2643 = vpack.c.bf16 %v2620, %v2619
        %v2644 = vpack.c.bf16 %v2622, %v2621
        %v2645 = vpack.c.bf16 %v2624, %v2623
        %v2646 = vpack.c.bf16 %v2626, %v2625
        %v2647 = vpack.c.bf16 %v2628, %v2627
        %v2648 = vpack.c.bf16 %v2630, %v2629
        %v2649 = vpack.c.bf16 %v2632, %v2631
        %v2650 = vpack.c.bf16 %v2634, %v2633
        %v2651 = vld [vmem:[#allocation11] sm:$0xf]
        %v2652 = vld [vmem:[#allocation11 + $0x4] sm:$0xf]
        %v2653 = vld [vmem:[#allocation11 + $0x8] sm:$0xf]
        %v2654 = vld [vmem:[#allocation11 + $0xc] sm:$0xf]
        %v2655 = vld [vmem:[#allocation11 + $0x10] sm:$0xf]
        %v2656 = vld [vmem:[#allocation11 + $0x14] sm:$0xf]
        %v2657 = vld [vmem:[#allocation11 + $0x18] sm:$0xf]
        %v2658 = vld [vmem:[#allocation11 + $0x1c] sm:$0xf]
        %v2659 = vld [vmem:[#allocation11 + $0x20] sm:$0xf]
        %v2660 = vld [vmem:[#allocation11 + $0x24] sm:$0xf]
        %v2661 = vld [vmem:[#allocation11 + $0x28] sm:$0xf]
        %v2662 = vld [vmem:[#allocation11 + $0x2c] sm:$0xf]
        %v2663 = vld [vmem:[#allocation11 + $0x30] sm:$0xf]
        %v2664 = vld [vmem:[#allocation11 + $0x34] sm:$0xf]
        %v2665 = vld [vmem:[#allocation11 + $0x38] sm:$0xf]
        %v2666 = vld [vmem:[#allocation11 + $0x3c] sm:$0xf]
        %v2667 = vld [vmem:[%s8] sm:$0x1]
        %v2669 = vlaneseq
        %v2670 = vshrl.u32 %v2669, 7
        %v2671 = vsub.s32 0, %v2670
        %v2672 = vrot.slane %v2667, %v2671
        %v2690 = vunpack.c.l.b16 %v2651
        %v2691 = vunpack.c.l.b16 %v2652
        %v2692 = vunpack.c.l.b16 %v2653
        %v2693 = vunpack.c.l.b16 %v2654
        %v2694 = vunpack.c.l.b16 %v2655
        %v2695 = vunpack.c.l.b16 %v2656
        %v2696 = vunpack.c.l.b16 %v2657
        %v2697 = vunpack.c.l.b16 %v2658
        %v2698 = vunpack.c.l.b16 %v2659
        %v2699 = vunpack.c.l.b16 %v2660
        %v2700 = vunpack.c.l.b16 %v2661
        %v2701 = vunpack.c.l.b16 %v2662
        %v2702 = vunpack.c.l.b16 %v2663
        %v2703 = vunpack.c.l.b16 %v2664
        %v2704 = vunpack.c.l.b16 %v2665
        %v2705 = vunpack.c.l.b16 %v2666
        %v2706 = vpack.c.b16 %v2691, %v2690
        %v2707 = vpack.c.b16 %v2693, %v2692
        %v2708 = vpack.c.b16 %v2695, %v2694
        %v2709 = vpack.c.b16 %v2697, %v2696
        %v2710 = vpack.c.b16 %v2699, %v2698
        %v2711 = vpack.c.b16 %v2701, %v2700
        %v2712 = vpack.c.b16 %v2703, %v2702
        %v2713 = vpack.c.b16 %v2705, %v2704
        %2722 = vmatprep.subr.bf16.mxu0 0
        %2723 = vmatpush1.bf16.msra.mxu0 %v2713
        %2724 = vmatprep.subr.bf16.mxu0 0
        %2725 = vmatpush1.bf16.msra.mxu0 %v2712
        %2726 = vmatprep.subr.bf16.mxu0 0
        %2727 = vmatpush1.bf16.msra.mxu0 %v2711
        %2728 = vmatprep.subr.bf16.mxu0 0
        %2729 = vmatpush1.bf16.msra.mxu0 %v2710
        %2730 = vmatprep.subr.bf16.mxu0 0
        %2731 = vmatpush1.bf16.msra.mxu0 %v2709
        %2732 = vmatprep.subr.bf16.mxu0 0
        %2733 = vmatpush1.bf16.msra.mxu0 %v2708
        %2734 = vmatprep.subr.bf16.mxu0 0
        %2735 = vmatpush1.bf16.msra.mxu0 %v2707
        %2736 = vmatprep.subr.bf16.mxu0 0
        %2737 = vmatpush1.bf16.msra.mxu0 %v2706
        %2738 = vmatprep.subr.bf16.mxu0 0
        %2739 = vmatpush2.bf16.msra.mxu0 0
        %2740 = vmatprep.subr.bf16.mxu0 0
        %2741 = vmatpush2.bf16.msra.mxu0 0
        %2742 = vmatprep.subr.bf16.mxu0 0
        %2743 = vmatpush2.bf16.msra.mxu0 0
        %2744 = vmatprep.subr.bf16.mxu0 0
        %2745 = vmatpush2.bf16.msra.mxu0 0
        %2746 = vmatprep.subr.bf16.mxu0 0
        %2747 = vmatpush2.bf16.msra.mxu0 0
        %2748 = vmatprep.subr.bf16.mxu0 0
        %2749 = vmatpush2.bf16.msra.mxu0 0
        %2750 = vmatprep.subr.bf16.mxu0 0
        %2751 = vmatpush2.bf16.msra.mxu0 0
        %2752 = vmatprep.subr.bf16.mxu0 0
        %2753 = vmatpush2.bf16.msra.mxu0 0
        %2754 = vmatprep.mubr.bf16.mxu0 0
        %2755 = vmatmul.mubr.bf16.gmra.mxu0 %v2635
        %v2756 = vpop.f32.mrf.mxu0
        %v2757 = vadd.f32 %v2672, %v2756
        %v2758 = vpop.f32.mrf.mxu0
        %v2759 = vpop.f32.mrf.mxu0
        %v2760 = vadd.f32 %v2672, %v2759
        %v2761 = vpop.f32.mrf.mxu0
        %2762 = vmatprep.mubr.bf16.mxu0 0
        %2763 = vmatmul.mubr.bf16.gmra.mxu0 %v2636
        %v2764 = vpop.f32.mrf.mxu0
        %v2765 = vadd.f32 %v2672, %v2764
        %v2766 = vpop.f32.mrf.mxu0
        %v2767 = vpop.f32.mrf.mxu0
        %v2768 = vadd.f32 %v2672, %v2767
        %v2769 = vpop.f32.mrf.mxu0
        %2770 = vmatprep.mubr.bf16.mxu0 0
        %2771 = vmatmul.mubr.bf16.gmra.mxu0 %v2637
        %v2772 = vpop.f32.mrf.mxu0
        %v2773 = vadd.f32 %v2672, %v2772
        %v2774 = vpop.f32.mrf.mxu0
        %v2775 = vpop.f32.mrf.mxu0
        %v2776 = vadd.f32 %v2672, %v2775
        %v2777 = vpop.f32.mrf.mxu0
        %2778 = vmatprep.mubr.bf16.mxu0 0
        %2779 = vmatmul.mubr.bf16.gmra.mxu0 %v2638
        %v2780 = vpop.f32.mrf.mxu0
        %v2781 = vadd.f32 %v2672, %v2780
        %v2782 = vpop.f32.mrf.mxu0
        %v2783 = vpop.f32.mrf.mxu0
        %v2784 = vadd.f32 %v2672, %v2783
        %v2785 = vpop.f32.mrf.mxu0
        %2786 = vmatprep.mubr.bf16.mxu0 0
        %2787 = vmatmul.mubr.bf16.gmra.mxu0 %v2639
        %v2788 = vpop.f32.mrf.mxu0
        %v2789 = vadd.f32 %v2672, %v2788
        %v2790 = vpop.f32.mrf.mxu0
        %v2791 = vpop.f32.mrf.mxu0
        %v2792 = vadd.f32 %v2672, %v2791
        %v2793 = vpop.f32.mrf.mxu0
        %2794 = vmatprep.mubr.bf16.mxu0 0
        %2795 = vmatmul.mubr.bf16.gmra.mxu0 %v2640
        %v2796 = vpop.f32.mrf.mxu0
        %v2797 = vadd.f32 %v2672, %v2796
        %v2798 = vpop.f32.mrf.mxu0
        %v2799 = vpop.f32.mrf.mxu0
        %v2800 = vadd.f32 %v2672, %v2799
        %v2801 = vpop.f32.mrf.mxu0
        %2802 = vmatprep.mubr.bf16.mxu0 0
        %2803 = vmatmul.mubr.bf16.gmra.mxu0 %v2641
        %v2804 = vpop.f32.mrf.mxu0
        %v2805 = vadd.f32 %v2672, %v2804
        %v2806 = vpop.f32.mrf.mxu0
        %v2807 = vpop.f32.mrf.mxu0
        %v2808 = vadd.f32 %v2672, %v2807
        %v2809 = vpop.f32.mrf.mxu0
        %2810 = vmatprep.mubr.bf16.mxu0 0
        %2811 = vmatmul.mubr.bf16.gmra.mxu0 %v2642
        %v2812 = vpop.f32.mrf.mxu0
        %v2813 = vadd.f32 %v2672, %v2812
        %v2814 = vpop.f32.mrf.mxu0
        %v2815 = vpop.f32.mrf.mxu0
        %v2816 = vadd.f32 %v2672, %v2815
        %v2817 = vpop.f32.mrf.mxu0
        %2818 = vmatprep.mubr.bf16.mxu0 0
        %2819 = vmatmul.mubr.bf16.gmra.mxu0 %v2643
        %v2820 = vpop.f32.mrf.mxu0
        %v2821 = vadd.f32 %v2672, %v2820
        %v2822 = vpop.f32.mrf.mxu0
        %v2823 = vpop.f32.mrf.mxu0
        %v2824 = vadd.f32 %v2672, %v2823
        %v2825 = vpop.f32.mrf.mxu0
        %2826 = vmatprep.mubr.bf16.mxu0 0
        %2827 = vmatmul.mubr.bf16.gmra.mxu0 %v2644
        %v2828 = vpop.f32.mrf.mxu0
        %v2829 = vadd.f32 %v2672, %v2828
        %v2830 = vpop.f32.mrf.mxu0
        %v2831 = vpop.f32.mrf.mxu0
        %v2832 = vadd.f32 %v2672, %v2831
        %v2833 = vpop.f32.mrf.mxu0
        %2834 = vmatprep.mubr.bf16.mxu0 0
        %2835 = vmatmul.mubr.bf16.gmra.mxu0 %v2645
        %v2836 = vpop.f32.mrf.mxu0
        %v2837 = vadd.f32 %v2672, %v2836
        %v2838 = vpop.f32.mrf.mxu0
        %v2839 = vpop.f32.mrf.mxu0
        %v2840 = vadd.f32 %v2672, %v2839
        %v2841 = vpop.f32.mrf.mxu0
        %2842 = vmatprep.mubr.bf16.mxu0 0
        %2843 = vmatmul.mubr.bf16.gmra.mxu0 %v2646
        %v2844 = vpop.f32.mrf.mxu0
        %v2845 = vadd.f32 %v2672, %v2844
        %v2846 = vpop.f32.mrf.mxu0
        %v2847 = vpop.f32.mrf.mxu0
        %v2848 = vadd.f32 %v2672, %v2847
        %v2849 = vpop.f32.mrf.mxu0
        %2850 = vmatprep.mubr.bf16.mxu0 0
        %2851 = vmatmul.mubr.bf16.gmra.mxu0 %v2647
        %v2852 = vpop.f32.mrf.mxu0
        %v2853 = vadd.f32 %v2672, %v2852
        %v2854 = vpop.f32.mrf.mxu0
        %v2855 = vpop.f32.mrf.mxu0
        %v2856 = vadd.f32 %v2672, %v2855
        %v2857 = vpop.f32.mrf.mxu0
        %2858 = vmatprep.mubr.bf16.mxu0 0
        %2859 = vmatmul.mubr.bf16.gmra.mxu0 %v2648
        %v2860 = vpop.f32.mrf.mxu0
        %v2861 = vadd.f32 %v2672, %v2860
        %v2862 = vpop.f32.mrf.mxu0
        %v2863 = vpop.f32.mrf.mxu0
        %v2864 = vadd.f32 %v2672, %v2863
        %v2865 = vpop.f32.mrf.mxu0
        %2866 = vmatprep.mubr.bf16.mxu0 0
        %2867 = vmatmul.mubr.bf16.gmra.mxu0 %v2649
        %v2868 = vpop.f32.mrf.mxu0
        %v2869 = vadd.f32 %v2672, %v2868
        %v2870 = vpop.f32.mrf.mxu0
        %v2871 = vpop.f32.mrf.mxu0
        %v2872 = vadd.f32 %v2672, %v2871
        %v2873 = vpop.f32.mrf.mxu0
        %2874 = vmatprep.mubr.bf16.mxu0 0
        %2875 = vmatmul.mubr.bf16.gmra.mxu0 %v2650
        %v2876 = vpop.f32.mrf.mxu0
        %v2877 = vadd.f32 %v2672, %v2876
        %v2878 = vpop.f32.mrf.mxu0
        %v2879 = vpop.f32.mrf.mxu0
        %v2880 = vadd.f32 %v2672, %v2879
        %v2881 = vpop.f32.mrf.mxu0
        %2882 = vdwg.mxu0
        %v2883 = vadd.f32 %v2757, %v588
        %v2884 = vadd.f32 %v2760, %v589
        %v2885 = vadd.f32 %v2765, %v590
        %v2886 = vadd.f32 %v2768, %v591
        %v2887 = vadd.f32 %v2773, %v592
        %v2888 = vadd.f32 %v2776, %v593
        %v2889 = vadd.f32 %v2781, %v594
        %v2890 = vadd.f32 %v2784, %v595
        %v2891 = vadd.f32 %v2789, %v596
        %v2892 = vadd.f32 %v2792, %v597
        %v2893 = vadd.f32 %v2797, %v598
        %v2894 = vadd.f32 %v2800, %v599
        %v2895 = vadd.f32 %v2805, %v600
        %v2896 = vadd.f32 %v2808, %v601
        %v2897 = vadd.f32 %v2813, %v602
        %v2898 = vadd.f32 %v2816, %v603
        %v2899 = vadd.f32 %v2821, %v604
        %v2900 = vadd.f32 %v2824, %v605
        %v2901 = vadd.f32 %v2829, %v606
        %v2902 = vadd.f32 %v2832, %v607
        %v2903 = vadd.f32 %v2837, %v608
        %v2904 = vadd.f32 %v2840, %v609
        %v2905 = vadd.f32 %v2845, %v610
        %v2906 = vadd.f32 %v2848, %v611
        %v2907 = vadd.f32 %v2853, %v612
        %v2908 = vadd.f32 %v2856, %v613
        %v2909 = vadd.f32 %v2861, %v614
        %v2910 = vadd.f32 %v2864, %v615
        %v2911 = vadd.f32 %v2869, %v616
        %v2912 = vadd.f32 %v2872, %v617
        %v2913 = vadd.f32 %v2877, %v618
        %v2914 = vadd.f32 %v2880, %v619
        %v2915 = vmax.f32 %v2883, 0.0
        %v2916 = vmax.f32 %v2884, 0.0
        %v2917 = vmax.f32 %v2885, 0.0
        %v2918 = vmax.f32 %v2886, 0.0
        %v2919 = vmax.f32 %v2887, 0.0
        %v2920 = vmax.f32 %v2888, 0.0
        %v2921 = vmax.f32 %v2889, 0.0
        %v2922 = vmax.f32 %v2890, 0.0
        %v2923 = vmax.f32 %v2891, 0.0
        %v2924 = vmax.f32 %v2892, 0.0
        %v2925 = vmax.f32 %v2893, 0.0
        %v2926 = vmax.f32 %v2894, 0.0
        %v2927 = vmax.f32 %v2895, 0.0
        %v2928 = vmax.f32 %v2896, 0.0
        %v2929 = vmax.f32 %v2897, 0.0
        %v2930 = vmax.f32 %v2898, 0.0
        %v2931 = vmax.f32 %v2899, 0.0
        %v2932 = vmax.f32 %v2900, 0.0
        %v2933 = vmax.f32 %v2901, 0.0
        %v2934 = vmax.f32 %v2902, 0.0
        %v2935 = vmax.f32 %v2903, 0.0
        %v2936 = vmax.f32 %v2904, 0.0
        %v2937 = vmax.f32 %v2905, 0.0
        %v2938 = vmax.f32 %v2906, 0.0
        %v2939 = vmax.f32 %v2907, 0.0
        %v2940 = vmax.f32 %v2908, 0.0
        %v2941 = vmax.f32 %v2909, 0.0
        %v2942 = vmax.f32 %v2910, 0.0
        %v2943 = vmax.f32 %v2911, 0.0
        %v2944 = vmax.f32 %v2912, 0.0
        %v2945 = vmax.f32 %v2913, 0.0
        %v2946 = vmax.f32 %v2914, 0.0
        %2947 = vst [vmem:[%s563] sm:$0xff] %v2915
        %2948 = vst [vmem:[%s563 + $0x8] sm:$0xff] %v2916
        %2949 = vst [vmem:[%s563 + $0x10] sm:$0xff] %v2917
        %2950 = vst [vmem:[%s563 + $0x18] sm:$0xff] %v2918
        %2951 = vst [vmem:[%s563 + $0x20] sm:$0xff] %v2919
        %2952 = vst [vmem:[%s563 + $0x28] sm:$0xff] %v2920
        %2953 = vst [vmem:[%s563 + $0x30] sm:$0xff] %v2921
        %2954 = vst [vmem:[%s563 + $0x38] sm:$0xff] %v2922
        %2955 = vst [vmem:[%s563 + $0x40] sm:$0xff] %v2923
        %2956 = vst [vmem:[%s563 + $0x48] sm:$0xff] %v2924
        %2957 = vst [vmem:[%s563 + $0x50] sm:$0xff] %v2925
        %2958 = vst [vmem:[%s563 + $0x58] sm:$0xff] %v2926
        %2959 = vst [vmem:[%s563 + $0x60] sm:$0xff] %v2927
        %2960 = vst [vmem:[%s563 + $0x68] sm:$0xff] %v2928
        %2961 = vst [vmem:[%s563 + $0x70] sm:$0xff] %v2929
        %2962 = vst [vmem:[%s563 + $0x78] sm:$0xff] %v2930
        %2963 = vst [vmem:[%s563 + $0x80] sm:$0xff] %v2931
        %2964 = vst [vmem:[%s563 + $0x88] sm:$0xff] %v2932
        %2965 = vst [vmem:[%s563 + $0x90] sm:$0xff] %v2933
        %2966 = vst [vmem:[%s563 + $0x98] sm:$0xff] %v2934
        %2967 = vst [vmem:[%s563 + $0xa0] sm:$0xff] %v2935
        %2968 = vst [vmem:[%s563 + $0xa8] sm:$0xff] %v2936
        %2969 = vst [vmem:[%s563 + $0xb0] sm:$0xff] %v2937
        %2970 = vst [vmem:[%s563 + $0xb8] sm:$0xff] %v2938
        %2971 = vst [vmem:[%s563 + $0xc0] sm:$0xff] %v2939
        %2972 = vst [vmem:[%s563 + $0xc8] sm:$0xff] %v2940
        %2973 = vst [vmem:[%s563 + $0xd0] sm:$0xff] %v2941
        %2974 = vst [vmem:[%s563 + $0xd8] sm:$0xff] %v2942
        %2975 = vst [vmem:[%s563 + $0xe0] sm:$0xff] %v2943
        %2976 = vst [vmem:[%s563 + $0xe8] sm:$0xff] %v2944
        %2977 = vst [vmem:[%s563 + $0xf0] sm:$0xff] %v2945
        %2978 = vst [vmem:[%s563 + $0xf8] sm:$0xff] %v2946
        %s2979 = sand.u32 %s322, 1
        %s2980 = scalar_lea.sflag [#allocation5], %s2979
        %s2981 = sand.u32 %s322, 1
        %s2982 = smul.addr %s2981, 256
        %s2983 = scalar_lea.vmem [#allocation12], %s2982
        // Predicated region
        $region89: #{tpu_custom_call.1} parent=63 // pred_check
          %p2984 = pneg %p332
        $region90: #{tpu_custom_call.1} parent=63 // pred_check_branch
          %2986 = sbr.rel (%p2984) target = $region92
        $region91: #{tpu_custom_call.1} parent=63 // pred_region
          %s2987 = smul.u32 16, %s37
          %s2989 = ssub.s32 4096, 4096
          %2990 = vsyncadd %s2980, %s2989
          %s2991 = smul.addr %s2987, 2
          %s2992 = smul.addr %s36, 32
          %s2993 = sadd.s32 %s2991, %s2992
          %s2994 = smul.addr %s2993, 128
          %s2995 = scalar_lea.hbm %s11, %s2994
          %s2996 = sshll.u32 %s2983, 4
          %s2997 = int_to_ptr.vmem [resolvable:$true] %s2996
          %3002 = dma.vmem_to_hbm [thread:$0]  %s2997, 4096, %s2995, %s2980, 128, 128, 8
        $region92: #{tpu_custom_call.1} parent=63 // pred_fallthru
          _
      $region64: #{tpu_custom_call.1} parent=5 // pred_fallthru
        _
      %p3003 = scmp.le.s32.totalorder 2, %s27
      // Predicated region
      $region93: #{tpu_custom_call.1} parent=5 // pred_check
        %p3004 = pneg %p3003
      $region94: #{tpu_custom_call.1} parent=5 // pred_check_branch
        %3006 = sbr.rel (%p3004) target = $region96
      $region95: #{tpu_custom_call.1} parent=5 // pred_region
        %s3007 = ssub.s32 %s27, 2
        // Predicated region
        $region97: #{tpu_custom_call.1} parent=95 // pred_check
          %p3008 = pneg %p338
        $region98: #{tpu_custom_call.1} parent=95 // pred_check_branch
          %3010 = sbr.rel (%p3008) target = $region100
        $region99: #{tpu_custom_call.1} parent=95 // pred_region
          %s3011 = sand.u32 %s323, 1
          %s3012 = scalar_lea.sflag [#allocation5], %s3011
          %s3013 = sand.u32 %s323, 1
          %s3014 = smul.addr %s3013, 256
          %s3015 = scalar_lea.vmem [#allocation12], %s3014
          %3016 = dma.done %s3012, 4096
        $region100: #{tpu_custom_call.1} parent=95 // pred_fallthru
          _
      $region96: #{tpu_custom_call.1} parent=5 // pred_fallthru
        _
    $region6: #{tpu_custom_call.1} parent=1 // loop_footer
      %s31 = sadd.s32 1, %s27
    $region7: #{tpu_custom_call.1} parent=1 // loop_footer_branch
      %26 = sbr.rel target = $region3
    $region8: #{tpu_custom_call.1} parent=1 // loop_exit
      _
    %3017 = vsyncpa [#allocation4], 1
    %s3018 = scalar_lea.sflag [#allocation4], 1
    %3019 = vsyncpa %s3018, 1
    %3020 = vsyncpa [#allocation7], 1
    %s3021 = scalar_lea.sflag [#allocation7], 1
    %3022 = vsyncpa %s3021, 1
    %3023 = vsyncpa [#allocation10], 1
    %3024 = vsyncpa [#allocation5], 1
    %s3025 = scalar_lea.sflag [#allocation5], 1
    %3026 = vsyncpa %s3025, 1

// kernel: tpu_custom_call.1
$region0: #{tpu_custom_call.1}
  #allocation0 [shape = 'u32[]', space=smem, size = 0x4, offset = 0x4, fixed_abs, tag = 'smem constant byte address 0x4 - core index']
  #allocation1 [shape = 'u32[144,128]{1,0:T(1,128)}', space=vmem, size = 0x12000, scoped, tag = 'internal scratch']
  #allocation2 [shape = 'f32[288,128]{1,0:T(8,128)}', space=vmem, size = 0x24000, scoped, tag = 'scratch operand']
  %s0 = inlined_call_operand.vmem [shape: f32[2,16,16,128], index: 0, kind: input, shape index: {}]
  %s1 = inlined_call_operand.hbm [shape: f32[2,16,16,128], index: 1, kind: input, shape index: {}]
  %s2 = inlined_call_operand.hbm [shape: f32[2,16,16,128], index: 2, kind: input, shape index: {}]
  %s3 = inlined_call_operand.vmem [shape: bf16[128,128], index: 3, kind: input, shape index: {}]
  %s4 = inlined_call_operand.hbm [shape: f32[1,128], index: 4, kind: input, shape index: {}]
  %s5 = inlined_call_operand.vmem [shape: f32[3,3,128], index: 5, kind: input, shape index: {}]
  %s6 = inlined_call_operand.hbm [shape: f32[1,128], index: 6, kind: input, shape index: {}]
  %s7 = inlined_call_operand.hbm [shape: bf16[128,128], index: 7, kind: input, shape index: {}]
  %s8 = inlined_call_operand.vmem [shape: f32[1,128], index: 8, kind: input, shape index: {}]
  %s9 = inlined_call_operand.vmem [shape: f32[288,1], index: 9, kind: input, shape index: {}]
  %s10 = inlined_call_operand.vmem [shape: f32[288,1], index: 10, kind: input, shape index: {}]
  %s11 = inlined_call_operand.hbm [shape: f32[2,16,16,128], index: 11, kind: output, shape index: {}]
  %s12 = sld [smem:[#allocation0]]
  $region101: #{tpu_custom_call.1} parent=0
    _
  %s14 = ssub.s32 1, %s12
  %s15 = scalar_select 0, %s14, %s12
  $region1: #{tpu_custom_call.1} parent=0
    #allocation3 [shape = 'u8[262144]{0}', space=vmem, size = 0x40000, scoped, tag = 'input window, operand 1']
    #allocation4 [shape = 's32[2]{0}', space=sflag, size = 0x8, scoped, tag = 'scoped memory for tpu_custom_call.1']
    #allocation5 [shape = 's32[2]{0}', space=sflag, size = 0x8, scoped, tag = 'scoped memory for tpu_custom_call.1']
    #allocation6 [shape = 'u8[16384]{0}', space=vmem, size = 0x4000, scoped, tag = 'input window, operand 2']
    #allocation7 [shape = 's32[2]{0}', space=sflag, size = 0x8, scoped, tag = 'scoped memory for tpu_custom_call.1']
    #allocation8 [shape = 'u8[512]{0}', space=vmem, size = 0x400, scoped, tag = 'input window, operand 4, single buffered']
    #allocation9 [shape = 'u8[512]{0}', space=vmem, size = 0x400, scoped, tag = 'input window, operand 6, single buffered']
    #allocation10 [shape = 's32[1]{0}', space=sflag, size = 0x4, scoped, tag = 'scoped memory for tpu_custom_call.1']
    #allocation11 [shape = 'u8[32768]{0}', space=vmem, size = 0x8000, scoped, tag = 'input window, operand 7, single buffered']
    #allocation12 [shape = 'u8[262144]{0}', space=vmem, size = 0x40000, scoped, tag = 'output window, operand 0']
    %16 = vsyncpa [#allocation4], 0
    %s17 = scalar_lea.sflag [#allocation4], 1
    %18 = vsyncpa %s17, 0
    %19 = vsyncpa [#allocation7], 0
    %s20 = scalar_lea.sflag [#allocation7], 1
    %21 = vsyncpa %s20, 0
    %22 = vsyncpa [#allocation10], 0
    %23 = vsyncpa [#allocation5], 0
    %s24 = scalar_lea.sflag [#allocation5], 1
    %25 = vsyncpa %s24, 0
    loop: start=0, step=1, limit=4
    $region2: #{tpu_custom_call.1} parent=1 // loop_pre_header
      _
    $region3: #{tpu_custom_call.1} parent=1 // loop_header
      %s27 = sphi 0, %s31
      %p28 = scmp.ge.s32.totalorder %s27, 4
      %s34 = sphi 0, %s46
      %s35 = sphi 0, %s42
      %s36 = sphi 0, %s34
      %s37 = sphi 0, %s35
      %s38 = sphi 0, %s36
      %s39 = sphi 0, %s37
      %s59 = sphi 0, %s61
      %s62 = sphi 0, %s59
      %s63 = sphi 0, %s62
      %s79 = sphi 0, %s63
      %s87 = sphi 0, %s89
      %s90 = sphi 0, %s87
      %s91 = sphi 0, %s90
      %s107 = sphi 0, %s91
      %s123 = sphi 0, %s125
      %s126 = sphi 0, %s123
      %s127 = sphi 0, %s126
      %s143 = sphi 0, %s127
      %s147 = sphi 0, %s147
      %s149 = sphi 0, %s147
      %s150 = sphi 0, %s149
      %s164 = sphi 0, %s150
      %s168 = sphi 0, %s168
      %s170 = sphi 0, %s168
      %s171 = sphi 0, %s170
      %s185 = sphi 0, %s171
      %s189 = sphi 0, %s189
      %s191 = sphi 0, %s189
      %s192 = sphi 0, %s191
      %s206 = sphi 0, %s192
      %s210 = sphi 0, %s210
      %s212 = sphi 0, %s210
      %s213 = sphi 0, %s212
      %s227 = sphi 0, %s213
      %s231 = sphi 0, %s231
      %s233 = sphi 0, %s231
      %s234 = sphi 0, %s233
      %s248 = sphi 0, %s234
      %s252 = sphi 0, %s252
      %s254 = sphi 0, %s252
      %s255 = sphi 0, %s254
      %s269 = sphi 0, %s255
      %s273 = sphi 0, %s273
      %s275 = sphi 0, %s273
      %s276 = sphi 0, %s275
      %s290 = sphi 0, %s276
      %s294 = sphi 0, %s294
      %s296 = sphi 0, %s294
      %s297 = sphi 0, %s296
      %s311 = sphi 0, %s297
      %s319 = sphi 0, %s321
      %s322 = sphi 0, %s319
      %s323 = sphi 0, %s322
      %s339 = sphi 0, %s323
    $region4: #{tpu_custom_call.1} parent=1 // loop_header_branch
      %30 = sbr.rel (%p28) target = $region8
    $region5: #{tpu_custom_call.1} parent=1 // loop_body
      %s32 = ssub.s32 %s27, 1
      %s33 = ssub.s32 %s27, 2
      %s40 = sadd.s32 1, %s35
      %p41 = scmp.ge.s32.totalorder %s40, 1
      %s42 = scalar_select %p41, 0, %s40
      %s43 = sadd.s32 1, %s34
      %s44 = scalar_select %p41, %s43, %s34
      %p45 = scmp.ge.s32.totalorder %s44, 2
      %s46 = scalar_select %p45, 0, %s44
      %s47 = smul.u32 %s35, 16
      %s48 = ssub.s32 %s47, 1
      %p49 = scmp.gt.s32.totalorder %s48, 0
      %s50 = scalar_select %p49, %s48, 0
      %s51 = smul.u32 %s42, 16
      %s52 = ssub.s32 %s51, 1
      %p53 = scmp.gt.s32.totalorder %s52, 0
      %s54 = scalar_select %p53, %s52, 0
      %s55 = ssub.s32 %s34, %s46
      %s56 = ssub.s32 %s50, %s54
      %s57 = sor.u32 %s55, %s56
      %p58 = scmp.eq.s32.totalorder %s57, 0
      %s60 = sadd.s32 %s59, 1
      %s61 = scalar_select %p58, %s59, %s60
      %p64 = pneg %p58
      %p65 = scmp.eq.s32.totalorder %s27, 1
      %p66 = por %p64, %p65
      %p67 = scmp.ne.s32.totalorder %s59, %s62
      %p68 = scmp.eq.s32.totalorder %s27, 0
      %p69 = por %p67, %p68
      %p70 = scmp.ne.s32.totalorder %s59, %s62
      %p71 = scmp.eq.s32.totalorder %s32, 1
      %p72 = por %p70, %p71
      %p73 = scmp.ne.s32.totalorder %s62, %s63
      %p74 = scmp.eq.s32.totalorder %s32, 0
      %p75 = por %p73, %p74
      %p76 = scmp.ne.s32.totalorder %s62, %s63
      %p77 = scmp.eq.s32.totalorder %s33, 1
      %p78 = por %p76, %p77
      %p80 = scmp.ne.s32.totalorder %s63, %s79
      %p81 = scmp.eq.s32.totalorder %s33, 0
      %p82 = por %p80, %p81
      %s83 = ssub.s32 %s34, %s46
      %s84 = ssub.s32 %s35, %s42
      %s85 = sor.u32 %s83, %s84
      %p86 = scmp.eq.s32.totalorder %s85, 0
      %s88 = sadd.s32 %s87, 1
      %s89 = scalar_select %p86, %s87, %s88
      %p92 = pneg %p86
      %p93 = scmp.eq.s32.totalorder %s27, 1
      %p94 = por %p92, %p93
      %p95 = scmp.ne.s32.totalorder %s87, %s90
      %p96 = scmp.eq.s32.totalorder %s27, 0
      %p97 = por %p95, %p96
      %p98 = scmp.ne.s32.totalorder %s87, %s90
      %p99 = scmp.eq.s32.totalorder %s32, 1
      %p100 = por %p98, %p99
      %p101 = scmp.ne.s32.totalorder %s90, %s91
      %p102 = scmp.eq.s32.totalorder %s32, 0
      %p103 = por %p101, %p102
      %p104 = scmp.ne.s32.totalorder %s90, %s91
      %p105 = scmp.eq.s32.totalorder %s33, 1
      %p106 = por %p104, %p105
      %p108 = scmp.ne.s32.totalorder %s91, %s107
      %p109 = scmp.eq.s32.totalorder %s33, 0
      %p110 = por %p108, %p109
      %s111 = smul.u32 %s35, 16
      %s112 = sadd.s32 %s111, 16
      %p113 = scmp.lt.s32.totalorder %s112, 15
      %s114 = scalar_select %p113, %s112, 15
      %s115 = smul.u32 %s42, 16
      %s116 = sadd.s32 %s115, 16
      %p117 = scmp.lt.s32.totalorder %s116, 15
      %s118 = scalar_select %p117, %s116, 15
      %s119 = ssub.s32 %s34, %s46
      %s120 = ssub.s32 %s114, %s118
      %s121 = sor.u32 %s119, %s120
      %p122 = scmp.eq.s32.totalorder %s121, 0
      %s124 = sadd.s32 %s123, 1
      %s125 = scalar_select %p122, %s123, %s124
      %p128 = pneg %p122
      %p129 = scmp.eq.s32.totalorder %s27, 1
      %p130 = por %p128, %p129
      %p131 = scmp.ne.s32.totalorder %s123, %s126
      %p132 = scmp.eq.s32.totalorder %s27, 0
      %p133 = por %p131, %p132
      %p134 = scmp.ne.s32.totalorder %s123, %s126
      %p135 = scmp.eq.s32.totalorder %s32, 1
      %p136 = por %p134, %p135
      %p137 = scmp.ne.s32.totalorder %s126, %s127
      %p138 = scmp.eq.s32.totalorder %s32, 0
      %p139 = por %p137, %p138
      %p140 = scmp.ne.s32.totalorder %s126, %s127
      %p141 = scmp.eq.s32.totalorder %s33, 1
      %p142 = por %p140, %p141
      %p144 = scmp.ne.s32.totalorder %s127, %s143
      %p145 = scmp.eq.s32.totalorder %s33, 0
      %p146 = por %p144, %p145
      %s148 = sadd.s32 %s147, 1
      %p151 = scmp.eq.s32.totalorder %s27, 1
      %p152 = scmp.ne.s32.totalorder %s147, %s149
      %p153 = scmp.eq.s32.totalorder %s27, 0
      %p154 = por %p152, %p153
      %p155 = scmp.ne.s32.totalorder %s147, %s149
      %p156 = scmp.eq.s32.totalorder %s32, 1
      %p157 = por %p155, %p156
      %p158 = scmp.ne.s32.totalorder %s149, %s150
      %p159 = scmp.eq.s32.totalorder %s32, 0
      %p160 = por %p158, %p159
      %p161 = scmp.ne.s32.totalorder %s149, %s150
      %p162 = scmp.eq.s32.totalorder %s33, 1
      %p163 = por %p161, %p162
      %p165 = scmp.ne.s32.totalorder %s150, %s164
      %p166 = scmp.eq.s32.totalorder %s33, 0
      %p167 = por %p165, %p166
      %s169 = sadd.s32 %s168, 1
      %p172 = scmp.eq.s32.totalorder %s27, 1
      %p173 = scmp.ne.s32.totalorder %s168, %s170
      %p174 = scmp.eq.s32.totalorder %s27, 0
      %p175 = por %p173, %p174
      %p176 = scmp.ne.s32.totalorder %s168, %s170
      %p177 = scmp.eq.s32.totalorder %s32, 1
      %p178 = por %p176, %p177
      %p179 = scmp.ne.s32.totalorder %s170, %s171
      %p180 = scmp.eq.s32.totalorder %s32, 0
      %p181 = por %p179, %p180
      %p182 = scmp.ne.s32.totalorder %s170, %s171
      %p183 = scmp.eq.s32.totalorder %s33, 1
      %p184 = por %p182, %p183
      %p186 = scmp.ne.s32.totalorder %s171, %s185
      %p187 = scmp.eq.s32.totalorder %s33, 0
      %p188 = por %p186, %p187
      %s190 = sadd.s32 %s189, 1
      %p193 = scmp.eq.s32.totalorder %s27, 1
      %p194 = scmp.ne.s32.totalorder %s189, %s191
      %p195 = scmp.eq.s32.totalorder %s27, 0
      %p196 = por %p194, %p195
      %p197 = scmp.ne.s32.totalorder %s189, %s191
      %p198 = scmp.eq.s32.totalorder %s32, 1
      %p199 = por %p197, %p198
      %p200 = scmp.ne.s32.totalorder %s191, %s192
      %p201 = scmp.eq.s32.totalorder %s32, 0
      %p202 = por %p200, %p201
      %p203 = scmp.ne.s32.totalorder %s191, %s192
      %p204 = scmp.eq.s32.totalorder %s33, 1
      %p205 = por %p203, %p204
      %p207 = scmp.ne.s32.totalorder %s192, %s206
      %p208 = scmp.eq.s32.totalorder %s33, 0
      %p209 = por %p207, %p208
      %s211 = sadd.s32 %s210, 1
      %p214 = scmp.eq.s32.totalorder %s27, 1
      %p215 = scmp.ne.s32.totalorder %s210, %s212
      %p216 = scmp.eq.s32.totalorder %s27, 0
      %p217 = por %p215, %p216
      %p218 = scmp.ne.s32.totalorder %s210, %s212
      %p219 = scmp.eq.s32.totalorder %s32, 1
      %p220 = por %p218, %p219
      %p221 = scmp.ne.s32.totalorder %s212, %s213
      %p222 = scmp.eq.s32.totalorder %s32, 0
      %p223 = por %p221, %p222
      %p224 = scmp.ne.s32.totalorder %s212, %s213
      %p225 = scmp.eq.s32.totalorder %s33, 1
      %p226 = por %p224, %p225
      %p228 = scmp.ne.s32.totalorder %s213, %s227
      %p229 = scmp.eq.s32.totalorder %s33, 0
      %p230 = por %p228, %p229
      %s232 = sadd.s32 %s231, 1
      %p235 = scmp.eq.s32.totalorder %s27, 1
      %p236 = scmp.ne.s32.totalorder %s231, %s233
      %p237 = scmp.eq.s32.totalorder %s27, 0
      %p238 = por %p236, %p237
      %p239 = scmp.ne.s32.totalorder %s231, %s233
      %p240 = scmp.eq.s32.totalorder %s32, 1
      %p241 = por %p239, %p240
      %p242 = scmp.ne.s32.totalorder %s233, %s234
      %p243 = scmp.eq.s32.totalorder %s32, 0
      %p244 = por %p242, %p243
      %p245 = scmp.ne.s32.totalorder %s233, %s234
      %p246 = scmp.eq.s32.totalorder %s33, 1
      %p247 = por %p245, %p246
      %p249 = scmp.ne.s32.totalorder %s234, %s248
      %p250 = scmp.eq.s32.totalorder %s33, 0
      %p251 = por %p249, %p250
      %s253 = sadd.s32 %s252, 1
      %p256 = scmp.eq.s32.totalorder %s27, 1
      %p257 = scmp.ne.s32.totalorder %s252, %s254
      %p258 = scmp.eq.s32.totalorder %s27, 0
      %p259 = por %p257, %p258
      %p260 = scmp.ne.s32.totalorder %s252, %s254
      %p261 = scmp.eq.s32.totalorder %s32, 1
      %p262 = por %p260, %p261
      %p263 = scmp.ne.s32.totalorder %s254, %s255
      %p264 = scmp.eq.s32.totalorder %s32, 0
      %p265 = por %p263, %p264
      %p266 = scmp.ne.s32.totalorder %s254, %s255
      %p267 = scmp.eq.s32.totalorder %s33, 1
      %p268 = por %p266, %p267
      %p270 = scmp.ne.s32.totalorder %s255, %s269
      %p271 = scmp.eq.s32.totalorder %s33, 0
      %p272 = por %p270, %p271
      %s274 = sadd.s32 %s273, 1
      %p277 = scmp.eq.s32.totalorder %s27, 1
      %p278 = scmp.ne.s32.totalorder %s273, %s275
      %p279 = scmp.eq.s32.totalorder %s27, 0
      %p280 = por %p278, %p279
      %p281 = scmp.ne.s32.totalorder %s273, %s275
      %p282 = scmp.eq.s32.totalorder %s32, 1
      %p283 = por %p281, %p282
      %p284 = scmp.ne.s32.totalorder %s275, %s276
      %p285 = scmp.eq.s32.totalorder %s32, 0
      %p286 = por %p284, %p285
      %p287 = scmp.ne.s32.totalorder %s275, %s276
      %p288 = scmp.eq.s32.totalorder %s33, 1
      %p289 = por %p287, %p288
      %p291 = scmp.ne.s32.totalorder %s276, %s290
      %p292 = scmp.eq.s32.totalorder %s33, 0
      %p293 = por %p291, %p292
      %s295 = sadd.s32 %s294, 1
      %p298 = scmp.eq.s32.totalorder %s27, 1
      %p299 = scmp.ne.s32.totalorder %s294, %s296
      %p300 = scmp.eq.s32.totalorder %s27, 0
      %p301 = por %p299, %p300
      %p302 = scmp.ne.s32.totalorder %s294, %s296
      %p303 = scmp.eq.s32.totalorder %s32, 1
      %p304 = por %p302, %p303
      %p305 = scmp.ne.s32.totalorder %s296, %s297
      %p306 = scmp.eq.s32.totalorder %s32, 0
      %p307 = por %p305, %p306
      %p308 = scmp.ne.s32.totalorder %s296, %s297
      %p309 = scmp.eq.s32.totalorder %s33, 1
      %p310 = por %p308, %p309
      %p312 = scmp.ne.s32.totalorder %s297, %s311
      %p313 = scmp.eq.s32.totalorder %s33, 0
      %p314 = por %p312, %p313
      %s315 = ssub.s32 %s34, %s46
      %s316 = ssub.s32 %s35, %s42
      %s317 = sor.u32 %s315, %s316
      %p318 = scmp.eq.s32.totalorder %s317, 0
      %s320 = sadd.s32 %s319, 1
      %s321 = scalar_select %p318, %s319, %s320
      %p324 = pneg %p318
      %p325 = scmp.eq.s32.totalorder %s27, 1
      %p326 = por %p324, %p325
      %p327 = scmp.ne.s32.totalorder %s319, %s322
      %p328 = scmp.eq.s32.totalorder %s27, 0
      %p329 = por %p327, %p328
      %p330 = scmp.ne.s32.totalorder %s319, %s322
      %p331 = scmp.eq.s32.totalorder %s32, 1
      %p332 = por %p330, %p331
      %p333 = scmp.ne.s32.totalorder %s322, %s323
      %p334 = scmp.eq.s32.totalorder %s32, 0
      %p335 = por %p333, %p334
      %p336 = scmp.ne.s32.totalorder %s322, %s323
      %p337 = scmp.eq.s32.totalorder %s33, 1
      %p338 = por %p336, %p337
      %p340 = scmp.ne.s32.totalorder %s323, %s339
      %p341 = scmp.eq.s32.totalorder %s33, 0
      %p342 = por %p340, %p341
      %p343 = scmp.le.s32.totalorder 1, %s27
      %p344 = scmp.lt.s32.totalorder %s27, 3
      %p345 = pnand %p343, %p344
      %p346 = pneg %p345
      // Predicated region
      $region9: #{tpu_custom_call.1} parent=5 // pred_check
        _
      $region10: #{tpu_custom_call.1} parent=5 // pred_check_branch
        %348 = sbr.rel (%p345) target = $region12
      $region11: #{tpu_custom_call.1} parent=5 // pred_region
        %s349 = ssub.s32 %s27, 1
        // Predicated region
        $region13: #{tpu_custom_call.1} parent=11 // pred_check
          %p350 = pneg %p160
        $region14: #{tpu_custom_call.1} parent=11 // pred_check_branch
          %352 = sbr.rel (%p350) target = $region16
        $region15: #{tpu_custom_call.1} parent=11 // pred_region
          _
        $region16: #{tpu_custom_call.1} parent=11 // pred_fallthru
          _
        // Predicated region
        $region17: #{tpu_custom_call.1} parent=11 // pred_check
          %p353 = pneg %p181
        $region18: #{tpu_custom_call.1} parent=11 // pred_check_branch
          %355 = sbr.rel (%p353) target = $region20
        $region19: #{tpu_custom_call.1} parent=11 // pred_region
          %s357 = ssub.s32 16, 16
          %358 = vsyncadd [#allocation7], %s357
          %s360 = sshll.u32 [#allocation8], 4
          %s361 = int_to_ptr.vmem [resolvable:$true] %s360
          %363 = dma.hbm_to_vmem [thread:$0]  %s4, 16, %s361, [#allocation7]
        $region20: #{tpu_custom_call.1} parent=11 // pred_fallthru
          _
        // Predicated region
        $region21: #{tpu_custom_call.1} parent=11 // pred_check
          %p364 = pneg %p202
        $region22: #{tpu_custom_call.1} parent=11 // pred_check_branch
          %366 = sbr.rel (%p364) target = $region24
        $region23: #{tpu_custom_call.1} parent=11 // pred_region
          _
        $region24: #{tpu_custom_call.1} parent=11 // pred_fallthru
          _
        // Predicated region
        $region25: #{tpu_custom_call.1} parent=11 // pred_check
          %p367 = pneg %p223
        $region26: #{tpu_custom_call.1} parent=11 // pred_check_branch
          %369 = sbr.rel (%p367) target = $region28
        $region27: #{tpu_custom_call.1} parent=11 // pred_region
          %s371 = ssub.s32 16, 16
          %372 = vsyncadd [#allocation10], %s371
          %s374 = sshll.u32 [#allocation9], 4
          %s375 = int_to_ptr.vmem [resolvable:$true] %s374
          %377 = dma.hbm_to_vmem [thread:$0]  %s6, 16, %s375, [#allocation10]
        $region28: #{tpu_custom_call.1} parent=11 // pred_fallthru
          _
        // Predicated region
        $region29: #{tpu_custom_call.1} parent=11 // pred_check
          %p378 = pneg %p244
        $region30: #{tpu_custom_call.1} parent=11 // pred_check_branch
          %380 = sbr.rel (%p378) target = $region32
        $region31: #{tpu_custom_call.1} parent=11 // pred_region
          %s382 = ssub.s32 1024, 1024
          %383 = vsyncadd [#allocation10], %s382
          %s384 = sshll.u32 [#allocation11], 4
          %s385 = int_to_ptr.vmem [resolvable:$true] %s384
          %390 = dma.hbm_to_vmem [thread:$0]  %s7, 1024, %s385, [#allocation10], 64, 64, 4
        $region32: #{tpu_custom_call.1} parent=11 // pred_fallthru
          _
        // Predicated region
        $region33: #{tpu_custom_call.1} parent=11 // pred_check
          %p391 = pneg %p265
        $region34: #{tpu_custom_call.1} parent=11 // pred_check_branch
          %393 = sbr.rel (%p391) target = $region36
        $region35: #{tpu_custom_call.1} parent=11 // pred_region
          _
        $region36: #{tpu_custom_call.1} parent=11 // pred_fallthru
          _
        // Predicated region
        $region37: #{tpu_custom_call.1} parent=11 // pred_check
          %p394 = pneg %p286
        $region38: #{tpu_custom_call.1} parent=11 // pred_check_branch
          %396 = sbr.rel (%p394) target = $region40
        $region39: #{tpu_custom_call.1} parent=11 // pred_region
          _
        $region40: #{tpu_custom_call.1} parent=11 // pred_fallthru
          _
        // Predicated region
        $region41: #{tpu_custom_call.1} parent=11 // pred_check
          %p397 = pneg %p307
        $region42: #{tpu_custom_call.1} parent=11 // pred_check_branch
          %399 = sbr.rel (%p397) target = $region44
        $region43: #{tpu_custom_call.1} parent=11 // pred_region
          _
        $region44: #{tpu_custom_call.1} parent=11 // pred_fallthru
          _
      $region12: #{tpu_custom_call.1} parent=5 // pred_fallthru
        _
      %p400 = scmp.lt.s32.totalorder %s27, 2
      // Predicated region
      $region45: #{tpu_custom_call.1} parent=5 // pred_check
        %p401 = pneg %p400
      $region46: #{tpu_custom_call.1} parent=5 // pred_check_branch
        %403 = sbr.rel (%p401) target = $region48
      $region47: #{tpu_custom_call.1} parent=5 // pred_region
        // Predicated region
        $region49: #{tpu_custom_call.1} parent=47 // pred_check
          %p404 = pneg %p69
        $region50: #{tpu_custom_call.1} parent=47 // pred_check_branch
          %406 = sbr.rel (%p404) target = $region52
        $region51: #{tpu_custom_call.1} parent=47 // pred_region
          %s407 = smul.u32 %s35, 16
          %s408 = ssub.s32 %s407, 1
          %p409 = scmp.gt.s32.totalorder %s408, 0
          %s410 = scalar_select %p409, %s408, 0
          %p411 = scmp.lt.s32.totalorder %s34, 1
          %s412 = scalar_select %p411, %s34, 1
          %p413 = scmp.lt.s32.totalorder %s410, 15
          %s414 = scalar_select %p413, %s410, 15
          %s415 = smul.addr %s414, 2
          %s416 = smul.addr %s412, 32
          %s417 = sadd.s32 %s415, %s416
          %s418 = smul.addr %s417, 8
          %s419 = scalar_lea.vmem %s0, %s418
          %s420 = smul.u32 %s35, 16
          %s421 = ssub.s32 %s420, 1
          %p422 = scmp.gt.s32.totalorder %s421, 0
          %s423 = scalar_select %p422, %s421, 0
        $region52: #{tpu_custom_call.1} parent=47 // pred_fallthru
          _
        // Predicated region
        $region53: #{tpu_custom_call.1} parent=47 // pred_check
          %p424 = pneg %p97
        $region54: #{tpu_custom_call.1} parent=47 // pred_check_branch
          %426 = sbr.rel (%p424) target = $region56
        $region55: #{tpu_custom_call.1} parent=47 // pred_region
          %s427 = sand.u32 %s87, 1
          %s428 = scalar_lea.sflag [#allocation4], %s427
          %s429 = sand.u32 %s87, 1
          %s430 = smul.addr %s429, 256
          %s431 = scalar_lea.vmem [#allocation3], %s430
          %s432 = smul.u32 16, %s35
          %s434 = ssub.s32 4096, 4096
          %435 = vsyncadd %s428, %s434
          %s436 = smul.addr %s432, 2
          %s437 = smul.addr %s34, 32
          %s438 = sadd.s32 %s436, %s437
          %s439 = smul.addr %s438, 128
          %s440 = scalar_lea.hbm %s1, %s439
          %s441 = sshll.u32 %s431, 4
          %s442 = int_to_ptr.vmem [resolvable:$true] %s441
          %447 = dma.hbm_to_vmem [thread:$0]  %s440, 4096, %s442, %s428, 128, 128, 8
        $region56: #{tpu_custom_call.1} parent=47 // pred_fallthru
          _
        // Predicated region
        $region57: #{tpu_custom_call.1} parent=47 // pred_check
          %p448 = pneg %p133
        $region58: #{tpu_custom_call.1} parent=47 // pred_check_branch
          %450 = sbr.rel (%p448) target = $region60
        $region59: #{tpu_custom_call.1} parent=47 // pred_region
          %s451 = sand.u32 %s27, 1
          %s452 = scalar_lea.sflag [#allocation7], %s451
          %s453 = sand.u32 %s123, 1
          %s454 = smul.addr %s453, 16
          %s455 = scalar_lea.vmem [#allocation6], %s454
          %s456 = smul.u32 %s35, 16
          %s457 = sadd.s32 %s456, 16
          %p458 = scmp.lt.s32.totalorder %s457, 15
          %s459 = scalar_select %p458, %s457, 15
          %s461 = ssub.s32 256, 256
          %462 = vsyncadd %s452, %s461
          %s463 = smul.addr %s459, 2
          %s464 = smul.addr %s34, 32
          %s465 = sadd.s32 %s463, %s464
          %s466 = smul.addr %s465, 128
          %s467 = scalar_lea.hbm %s2, %s466
          %s468 = sshll.u32 %s455, 4
          %s469 = int_to_ptr.vmem [resolvable:$true] %s468
          %474 = dma.hbm_to_vmem [thread:$0]  %s467, 256, %s469, %s452, 128, 128, 8
        $region60: #{tpu_custom_call.1} parent=47 // pred_fallthru
          _
      $region48: #{tpu_custom_call.1} parent=5 // pred_fallthru
        _
      %p475 = scmp.le.s32.totalorder 1, %s27
      %p476 = scmp.lt.s32.totalorder %s27, 3
      %p477 = pnand %p475, %p476
      %p478 = pneg %p477
      // Predicated region
      $region61: #{tpu_custom_call.1} parent=5 // pred_check
        _
      $region62: #{tpu_custom_call.1} parent=5 // pred_check_branch
        %480 = sbr.rel (%p477) target = $region64
      $region63: #{tpu_custom_call.1} parent=5 // pred_region
        %s481 = ssub.s32 %s27, 1
        %s482 = sand.u32 %s90, 1
        %s483 = scalar_lea.sflag [#allocation4], %s482
        %s484 = sand.u32 %s90, 1
        %s485 = smul.addr %s484, 256
        %s486 = scalar_lea.vmem [#allocation3], %s485
        // Predicated region
        $region65: #{tpu_custom_call.1} parent=63 // pred_check
          %p487 = pneg %p103
        $region66: #{tpu_custom_call.1} parent=63 // pred_check_branch
          %489 = sbr.rel (%p487) target = $region68
        $region67: #{tpu_custom_call.1} parent=63 // pred_region
          %490 = dma.done %s483, 4096
        $region68: #{tpu_custom_call.1} parent=63 // pred_fallthru
          _
        %s491 = sand.u32 %s32, 1
        %s492 = scalar_lea.sflag [#allocation7], %s491
        %s493 = sand.u32 %s126, 1
        %s494 = smul.addr %s493, 16
        %s495 = scalar_lea.vmem [#allocation6], %s494
        // Predicated region
        $region69: #{tpu_custom_call.1} parent=63 // pred_check
          %p496 = pneg %p139
        $region70: #{tpu_custom_call.1} parent=63 // pred_check_branch
          %498 = sbr.rel (%p496) target = $region72
        $region71: #{tpu_custom_call.1} parent=63 // pred_region
          %499 = dma.done %s492, 256
        $region72: #{tpu_custom_call.1} parent=63 // pred_fallthru
          _
        // Predicated region
        $region73: #{tpu_custom_call.1} parent=63 // pred_check
          %p500 = pneg %p181
        $region74: #{tpu_custom_call.1} parent=63 // pred_check_branch
          %502 = sbr.rel (%p500) target = $region76
        $region75: #{tpu_custom_call.1} parent=63 // pred_region
          %503 = dma.done [#allocation7], 16
        $region76: #{tpu_custom_call.1} parent=63 // pred_fallthru
          _
        // Predicated region
        $region77: #{tpu_custom_call.1} parent=63 // pred_check
          %p504 = pneg %p223
        $region78: #{tpu_custom_call.1} parent=63 // pred_check_branch
          %506 = sbr.rel (%p504) target = $region80
        $region79: #{tpu_custom_call.1} parent=63 // pred_region
          %507 = dma.done [#allocation10], 16
        $region80: #{tpu_custom_call.1} parent=63 // pred_fallthru
          _
        // Predicated region
        $region81: #{tpu_custom_call.1} parent=63 // pred_check
          %p508 = pneg %p244
        $region82: #{tpu_custom_call.1} parent=63 // pred_check_branch
          %510 = sbr.rel (%p508) target = $region84
        $region83: #{tpu_custom_call.1} parent=63 // pred_region
          %511 = dma.done [#allocation10], 1024
        $region84: #{tpu_custom_call.1} parent=63 // pred_fallthru
          _
        %s512 = smul.u32 %s37, 16
        %s513 = ssub.s32 %s512, 1
        %p514 = scmp.gt.s32.totalorder %s513, 0
        %s515 = scalar_select %p514, %s513, 0
        %p516 = scmp.lt.s32.totalorder %s36, 1
        %s517 = scalar_select %p516, %s36, 1
        %p518 = scmp.lt.s32.totalorder %s515, 15
        %s519 = scalar_select %p518, %s515, 15
        %s520 = smul.addr %s519, 2
        %s521 = smul.addr %s517, 32
        %s522 = sadd.s32 %s520, %s521
        %s523 = smul.addr %s522, 8
        %s524 = scalar_lea.vmem %s0, %s523
        %p525 = pneg %p75
        %p526 = pneg %p72
        %s527 = sand.u32 %s90, 1
        %s528 = scalar_lea.sflag [#allocation4], %s527
        %s529 = sand.u32 %s90, 1
        %s530 = smul.addr %s529, 256
        %s531 = scalar_lea.vmem [#allocation3], %s530
        %p532 = pneg %p103
        %p533 = pneg %p100
        %s534 = sand.u32 %s32, 1
        %s535 = scalar_lea.sflag [#allocation7], %s534
        %s536 = sand.u32 %s126, 1
        %s537 = smul.addr %s536, 16
        %s538 = scalar_lea.vmem [#allocation6], %s537
        %p539 = pneg %p139
        %p540 = pneg %p136
        %p541 = pneg %p160
        %p542 = pneg %p157
        %p543 = pneg %p181
        %p544 = pneg %p178
        %p545 = pneg %p202
        %p546 = pneg %p199
        %p547 = pneg %p223
        %p548 = pneg %p220
        %p549 = pneg %p244
        %p550 = pneg %p241
        %p551 = pneg %p265
        %p552 = pneg %p262
        %p553 = pneg %p286
        %p554 = pneg %p283
        %p555 = pneg %p307
        %p556 = pneg %p304
        %p557 = pneg %p335
        %p558 = pneg %p332
        %s559 = sand.u32 %s322, 1
        %s560 = scalar_lea.sflag [#allocation5], %s559
        %s561 = sand.u32 %s322, 1
        %s562 = smul.addr %s561, 256
        %s563 = scalar_lea.vmem [#allocation12], %s562
        %s564 = smul.u32 %s37, 16
        %s565 = ssub.s32 %s564, 1
        %p566 = scmp.gt.s32.totalorder %s565, 0
        %s567 = scalar_select %p566, %s565, 0
        %p568 = scmp.lt.s32.totalorder %s36, 1
        %s569 = scalar_select %p568, %s36, 1
        %p570 = scmp.lt.s32.totalorder %s567, 15
        %s571 = scalar_select %p570, %s567, 15
        %s572 = smul.addr %s571, 2
        %s573 = smul.addr %s569, 32
        %s574 = sadd.s32 %s572, %s573
        %s575 = smul.addr %s574, 8
        %s576 = scalar_lea.vmem %s0, %s575
        %s577 = smul.u32 %s37, 16
        %s578 = ssub.s32 %s577, 1
        %p579 = scmp.gt.s32.totalorder %s578, 0
        %s580 = scalar_select %p579, %s578, 0
        %s581 = smul.u32 16, %s37
        %s582 = smul.u32 %s37, 16
        %s583 = sadd.s32 %s582, 16
        %p584 = scmp.lt.s32.totalorder %s583, 15
        %s585 = scalar_select %p584, %s583, 15
        %s586 = smul.u32 16, %s37
        %v588 = vld [vmem:[%s486] sm:$0xff]
        %v589 = vld [vmem:[%s486 + $0x8] sm:$0xff]
        %v590 = vld [vmem:[%s486 + $0x10] sm:$0xff]
        %v591 = vld [vmem:[%s486 + $0x18] sm:$0xff]
        %v592 = vld [vmem:[%s486 + $0x20] sm:$0xff]
        %v593 = vld [vmem:[%s486 + $0x28] sm:$0xff]
        %v594 = vld [vmem:[%s486 + $0x30] sm:$0xff]
        %v595 = vld [vmem:[%s486 + $0x38] sm:$0xff]
        %v596 = vld [vmem:[%s486 + $0x40] sm:$0xff]
        %v597 = vld [vmem:[%s486 + $0x48] sm:$0xff]
        %v598 = vld [vmem:[%s486 + $0x50] sm:$0xff]
        %v599 = vld [vmem:[%s486 + $0x58] sm:$0xff]
        %v600 = vld [vmem:[%s486 + $0x60] sm:$0xff]
        %v601 = vld [vmem:[%s486 + $0x68] sm:$0xff]
        %v602 = vld [vmem:[%s486 + $0x70] sm:$0xff]
        %v603 = vld [vmem:[%s486 + $0x78] sm:$0xff]
        %v604 = vld [vmem:[%s486 + $0x80] sm:$0xff]
        %v605 = vld [vmem:[%s486 + $0x88] sm:$0xff]
        %v606 = vld [vmem:[%s486 + $0x90] sm:$0xff]
        %v607 = vld [vmem:[%s486 + $0x98] sm:$0xff]
        %v608 = vld [vmem:[%s486 + $0xa0] sm:$0xff]
        %v609 = vld [vmem:[%s486 + $0xa8] sm:$0xff]
        %v610 = vld [vmem:[%s486 + $0xb0] sm:$0xff]
        %v611 = vld [vmem:[%s486 + $0xb8] sm:$0xff]
        %v612 = vld [vmem:[%s486 + $0xc0] sm:$0xff]
        %v613 = vld [vmem:[%s486 + $0xc8] sm:$0xff]
        %v614 = vld [vmem:[%s486 + $0xd0] sm:$0xff]
        %v615 = vld [vmem:[%s486 + $0xd8] sm:$0xff]
        %v616 = vld [vmem:[%s486 + $0xe0] sm:$0xff]
        %v617 = vld [vmem:[%s486 + $0xe8] sm:$0xff]
        %v618 = vld [vmem:[%s486 + $0xf0] sm:$0xff]
        %v619 = vld [vmem:[%s486 + $0xf8] sm:$0xff]
        %v620 = vpack.c.bf16 %v589, %v588
        %v621 = vpack.c.bf16 %v591, %v590
        %v622 = vpack.c.bf16 %v593, %v592
        %v623 = vpack.c.bf16 %v595, %v594
        %v624 = vpack.c.bf16 %v597, %v596
        %v625 = vpack.c.bf16 %v599, %v598
        %v626 = vpack.c.bf16 %v601, %v600
        %v627 = vpack.c.bf16 %v603, %v602
        %v628 = vpack.c.bf16 %v605, %v604
        %v629 = vpack.c.bf16 %v607, %v606
        %v630 = vpack.c.bf16 %v609, %v608
        %v631 = vpack.c.bf16 %v611, %v610
        %v632 = vpack.c.bf16 %v613, %v612
        %v633 = vpack.c.bf16 %v615, %v614
        %v634 = vpack.c.bf16 %v617, %v616
        %v635 = vpack.c.bf16 %v619, %v618
        %v636 = vld [vmem:[%s3] sm:$0xf]
        %v637 = vld [vmem:[%s3 + $0x4] sm:$0xf]
        %v638 = vld [vmem:[%s3 + $0x8] sm:$0xf]
        %v639 = vld [vmem:[%s3 + $0xc] sm:$0xf]
        %v640 = vld [vmem:[%s3 + $0x10] sm:$0xf]
        %v641 = vld [vmem:[%s3 + $0x14] sm:$0xf]
        %v642 = vld [vmem:[%s3 + $0x18] sm:$0xf]
        %v643 = vld [vmem:[%s3 + $0x1c] sm:$0xf]
        %v644 = vld [vmem:[%s3 + $0x20] sm:$0xf]
        %v645 = vld [vmem:[%s3 + $0x24] sm:$0xf]
        %v646 = vld [vmem:[%s3 + $0x28] sm:$0xf]
        %v647 = vld [vmem:[%s3 + $0x2c] sm:$0xf]
        %v648 = vld [vmem:[%s3 + $0x30] sm:$0xf]
        %v649 = vld [vmem:[%s3 + $0x34] sm:$0xf]
        %v650 = vld [vmem:[%s3 + $0x38] sm:$0xf]
        %v651 = vld [vmem:[%s3 + $0x3c] sm:$0xf]
        %v652 = vld [vmem:[#allocation8] sm:$0x1]
        %v654 = vlaneseq
        %v655 = vshrl.u32 %v654, 7
        %v656 = vsub.s32 0, %v655
        %v657 = vrot.slane %v652, %v656
        %v675 = vunpack.c.l.b16 %v636
        %v676 = vunpack.c.l.b16 %v637
        %v677 = vunpack.c.l.b16 %v638
        %v678 = vunpack.c.l.b16 %v639
        %v679 = vunpack.c.l.b16 %v640
        %v680 = vunpack.c.l.b16 %v641
        %v681 = vunpack.c.l.b16 %v642
        %v682 = vunpack.c.l.b16 %v643
        %v683 = vunpack.c.l.b16 %v644
        %v684 = vunpack.c.l.b16 %v645
        %v685 = vunpack.c.l.b16 %v646
        %v686 = vunpack.c.l.b16 %v647
        %v687 = vunpack.c.l.b16 %v648
        %v688 = vunpack.c.l.b16 %v649
        %v689 = vunpack.c.l.b16 %v650
        %v690 = vunpack.c.l.b16 %v651
        %v691 = vpack.c.b16 %v676, %v675
        %v692 = vpack.c.b16 %v678, %v677
        %v693 = vpack.c.b16 %v680, %v679
        %v694 = vpack.c.b16 %v682, %v681
        %v695 = vpack.c.b16 %v684, %v683
        %v696 = vpack.c.b16 %v686, %v685
        %v697 = vpack.c.b16 %v688, %v687
        %v698 = vpack.c.b16 %v690, %v689
        %707 = vmatprep.subr.bf16.mxu0 0
        %708 = vmatpush1.bf16.msra.mxu0 %v698
        %709 = vmatprep.subr.bf16.mxu0 0
        %710 = vmatpush1.bf16.msra.mxu0 %v697
        %711 = vmatprep.subr.bf16.mxu0 0
        %712 = vmatpush1.bf16.msra.mxu0 %v696
        %713 = vmatprep.subr.bf16.mxu0 0
        %714 = vmatpush1.bf16.msra.mxu0 %v695
        %715 = vmatprep.subr.bf16.mxu0 0
        %716 = vmatpush1.bf16.msra.mxu0 %v694
        %717 = vmatprep.subr.bf16.mxu0 0
        %718 = vmatpush1.bf16.msra.mxu0 %v693
        %719 = vmatprep.subr.bf16.mxu0 0
        %720 = vmatpush1.bf16.msra.mxu0 %v692
        %721 = vmatprep.subr.bf16.mxu0 0
        %722 = vmatpush1.bf16.msra.mxu0 %v691
        %723 = vmatprep.subr.bf16.mxu0 0
        %724 = vmatpush2.bf16.msra.mxu0 0
        %725 = vmatprep.subr.bf16.mxu0 0
        %726 = vmatpush2.bf16.msra.mxu0 0
        %727 = vmatprep.subr.bf16.mxu0 0
        %728 = vmatpush2.bf16.msra.mxu0 0
        %729 = vmatprep.subr.bf16.mxu0 0
        %730 = vmatpush2.bf16.msra.mxu0 0
        %731 = vmatprep.subr.bf16.mxu0 0
        %732 = vmatpush2.bf16.msra.mxu0 0
        %733 = vmatprep.subr.bf16.mxu0 0
        %734 = vmatpush2.bf16.msra.mxu0 0
        %735 = vmatprep.subr.bf16.mxu0 0
        %736 = vmatpush2.bf16.msra.mxu0 0
        %737 = vmatprep.subr.bf16.mxu0 0
        %738 = vmatpush2.bf16.msra.mxu0 0
        %739 = vmatprep.mubr.bf16.mxu0 0
        %740 = vmatmul.mubr.bf16.gmra.mxu0 %v620
        %v741 = vpop.f32.mrf.mxu0
        %v742 = vadd.f32 %v657, %v741
        %v743 = vpop.f32.mrf.mxu0
        %v744 = vpop.f32.mrf.mxu0
        %v745 = vadd.f32 %v657, %v744
        %v746 = vpop.f32.mrf.mxu0
        %747 = vmatprep.mubr.bf16.mxu0 0
        %748 = vmatmul.mubr.bf16.gmra.mxu0 %v621
        %v749 = vpop.f32.mrf.mxu0
        %v750 = vadd.f32 %v657, %v749
        %v751 = vpop.f32.mrf.mxu0
        %v752 = vpop.f32.mrf.mxu0
        %v753 = vadd.f32 %v657, %v752
        %v754 = vpop.f32.mrf.mxu0
        %755 = vmatprep.mubr.bf16.mxu0 0
        %756 = vmatmul.mubr.bf16.gmra.mxu0 %v622
        %v757 = vpop.f32.mrf.mxu0
        %v758 = vadd.f32 %v657, %v757
        %v759 = vpop.f32.mrf.mxu0
        %v760 = vpop.f32.mrf.mxu0
        %v761 = vadd.f32 %v657, %v760
        %v762 = vpop.f32.mrf.mxu0
        %763 = vmatprep.mubr.bf16.mxu0 0
        %764 = vmatmul.mubr.bf16.gmra.mxu0 %v623
        %v765 = vpop.f32.mrf.mxu0
        %v766 = vadd.f32 %v657, %v765
        %v767 = vpop.f32.mrf.mxu0
        %v768 = vpop.f32.mrf.mxu0
        %v769 = vadd.f32 %v657, %v768
        %v770 = vpop.f32.mrf.mxu0
        %771 = vmatprep.mubr.bf16.mxu0 0
        %772 = vmatmul.mubr.bf16.gmra.mxu0 %v624
        %v773 = vpop.f32.mrf.mxu0
        %v774 = vadd.f32 %v657, %v773
        %v775 = vpop.f32.mrf.mxu0
        %v776 = vpop.f32.mrf.mxu0
        %v777 = vadd.f32 %v657, %v776
        %v778 = vpop.f32.mrf.mxu0
        %779 = vmatprep.mubr.bf16.mxu0 0
        %780 = vmatmul.mubr.bf16.gmra.mxu0 %v625
        %v781 = vpop.f32.mrf.mxu0
        %v782 = vadd.f32 %v657, %v781
        %v783 = vpop.f32.mrf.mxu0
        %v784 = vpop.f32.mrf.mxu0
        %v785 = vadd.f32 %v657, %v784
        %v786 = vpop.f32.mrf.mxu0
        %787 = vmatprep.mubr.bf16.mxu0 0
        %788 = vmatmul.mubr.bf16.gmra.mxu0 %v626
        %v789 = vpop.f32.mrf.mxu0
        %v790 = vadd.f32 %v657, %v789
        %v791 = vpop.f32.mrf.mxu0
        %v792 = vpop.f32.mrf.mxu0
        %v793 = vadd.f32 %v657, %v792
        %v794 = vpop.f32.mrf.mxu0
        %795 = vmatprep.mubr.bf16.mxu0 0
        %796 = vmatmul.mubr.bf16.gmra.mxu0 %v627
        %v797 = vpop.f32.mrf.mxu0
        %v798 = vadd.f32 %v657, %v797
        %v799 = vpop.f32.mrf.mxu0
        %v800 = vpop.f32.mrf.mxu0
        %v801 = vadd.f32 %v657, %v800
        %v802 = vpop.f32.mrf.mxu0
        %803 = vmatprep.mubr.bf16.mxu0 0
        %804 = vmatmul.mubr.bf16.gmra.mxu0 %v628
        %v805 = vpop.f32.mrf.mxu0
        %v806 = vadd.f32 %v657, %v805
        %v807 = vpop.f32.mrf.mxu0
        %v808 = vpop.f32.mrf.mxu0
        %v809 = vadd.f32 %v657, %v808
        %v810 = vpop.f32.mrf.mxu0
        %811 = vmatprep.mubr.bf16.mxu0 0
        %812 = vmatmul.mubr.bf16.gmra.mxu0 %v629
        %v813 = vpop.f32.mrf.mxu0
        %v814 = vadd.f32 %v657, %v813
        %v815 = vpop.f32.mrf.mxu0
        %v816 = vpop.f32.mrf.mxu0
        %v817 = vadd.f32 %v657, %v816
        %v818 = vpop.f32.mrf.mxu0
        %819 = vmatprep.mubr.bf16.mxu0 0
        %820 = vmatmul.mubr.bf16.gmra.mxu0 %v630
        %v821 = vpop.f32.mrf.mxu0
        %v822 = vadd.f32 %v657, %v821
        %v823 = vpop.f32.mrf.mxu0
        %v824 = vpop.f32.mrf.mxu0
        %v825 = vadd.f32 %v657, %v824
        %v826 = vpop.f32.mrf.mxu0
        %827 = vmatprep.mubr.bf16.mxu0 0
        %828 = vmatmul.mubr.bf16.gmra.mxu0 %v631
        %v829 = vpop.f32.mrf.mxu0
        %v830 = vadd.f32 %v657, %v829
        %v831 = vpop.f32.mrf.mxu0
        %v832 = vpop.f32.mrf.mxu0
        %v833 = vadd.f32 %v657, %v832
        %v834 = vpop.f32.mrf.mxu0
        %835 = vmatprep.mubr.bf16.mxu0 0
        %836 = vmatmul.mubr.bf16.gmra.mxu0 %v632
        %v837 = vpop.f32.mrf.mxu0
        %v838 = vadd.f32 %v657, %v837
        %v839 = vpop.f32.mrf.mxu0
        %v840 = vpop.f32.mrf.mxu0
        %v841 = vadd.f32 %v657, %v840
        %v842 = vpop.f32.mrf.mxu0
        %843 = vmatprep.mubr.bf16.mxu0 0
        %844 = vmatmul.mubr.bf16.gmra.mxu0 %v633
        %v845 = vpop.f32.mrf.mxu0
        %v846 = vadd.f32 %v657, %v845
        %v847 = vpop.f32.mrf.mxu0
        %v848 = vpop.f32.mrf.mxu0
        %v849 = vadd.f32 %v657, %v848
        %v850 = vpop.f32.mrf.mxu0
        %851 = vmatprep.mubr.bf16.mxu0 0
        %852 = vmatmul.mubr.bf16.gmra.mxu0 %v634
        %v853 = vpop.f32.mrf.mxu0
        %v854 = vadd.f32 %v657, %v853
        %v855 = vpop.f32.mrf.mxu0
        %v856 = vpop.f32.mrf.mxu0
        %v857 = vadd.f32 %v657, %v856
        %v858 = vpop.f32.mrf.mxu0
        %859 = vmatprep.mubr.bf16.mxu0 0
        %860 = vmatmul.mubr.bf16.gmra.mxu0 %v635
        %v861 = vpop.f32.mrf.mxu0
        %v862 = vadd.f32 %v657, %v861
        %v863 = vpop.f32.mrf.mxu0
        %v864 = vpop.f32.mrf.mxu0
        %v865 = vadd.f32 %v657, %v864
        %v866 = vpop.f32.mrf.mxu0
        %867 = vdwg.mxu0
        %v868 = vmax.f32 %v742, 0.0
        %v869 = vmax.f32 %v745, 0.0
        %v870 = vmax.f32 %v750, 0.0
        %v871 = vmax.f32 %v753, 0.0
        %v872 = vmax.f32 %v758, 0.0
        %v873 = vmax.f32 %v761, 0.0
        %v874 = vmax.f32 %v766, 0.0
        %v875 = vmax.f32 %v769, 0.0
        %v876 = vmax.f32 %v774, 0.0
        %v877 = vmax.f32 %v777, 0.0
        %v878 = vmax.f32 %v782, 0.0
        %v879 = vmax.f32 %v785, 0.0
        %v880 = vmax.f32 %v790, 0.0
        %v881 = vmax.f32 %v793, 0.0
        %v882 = vmax.f32 %v798, 0.0
        %v883 = vmax.f32 %v801, 0.0
        %v884 = vmax.f32 %v806, 0.0
        %v885 = vmax.f32 %v809, 0.0
        %v886 = vmax.f32 %v814, 0.0
        %v887 = vmax.f32 %v817, 0.0
        %v888 = vmax.f32 %v822, 0.0
        %v889 = vmax.f32 %v825, 0.0
        %v890 = vmax.f32 %v830, 0.0
        %v891 = vmax.f32 %v833, 0.0
        %v892 = vmax.f32 %v838, 0.0
        %v893 = vmax.f32 %v841, 0.0
        %v894 = vmax.f32 %v846, 0.0
        %v895 = vmax.f32 %v849, 0.0
        %v896 = vmax.f32 %v854, 0.0
        %v897 = vmax.f32 %v857, 0.0
        %v898 = vmax.f32 %v862, 0.0
        %v899 = vmax.f32 %v865, 0.0
        %900 = vst [vmem:[#allocation2 + $0x10] sm:$0xff] %v868
        %901 = vst [vmem:[#allocation2 + $0x18] sm:$0xff] %v869
        %902 = vst [vmem:[#allocation2 + $0x20] sm:$0xff] %v870
        %903 = vst [vmem:[#allocation2 + $0x28] sm:$0xff] %v871
        %904 = vst [vmem:[#allocation2 + $0x30] sm:$0xff] %v872
        %905 = vst [vmem:[#allocation2 + $0x38] sm:$0xff] %v873
        %906 = vst [vmem:[#allocation2 + $0x40] sm:$0xff] %v874
        %907 = vst [vmem:[#allocation2 + $0x48] sm:$0xff] %v875
        %908 = vst [vmem:[#allocation2 + $0x50] sm:$0xff] %v876
        %909 = vst [vmem:[#allocation2 + $0x58] sm:$0xff] %v877
        %910 = vst [vmem:[#allocation2 + $0x60] sm:$0xff] %v878
        %911 = vst [vmem:[#allocation2 + $0x68] sm:$0xff] %v879
        %912 = vst [vmem:[#allocation2 + $0x70] sm:$0xff] %v880
        %913 = vst [vmem:[#allocation2 + $0x78] sm:$0xff] %v881
        %914 = vst [vmem:[#allocation2 + $0x80] sm:$0xff] %v882
        %915 = vst [vmem:[#allocation2 + $0x88] sm:$0xff] %v883
        %916 = vst [vmem:[#allocation2 + $0x90] sm:$0xff] %v884
        %917 = vst [vmem:[#allocation2 + $0x98] sm:$0xff] %v885
        %918 = vst [vmem:[#allocation2 + $0xa0] sm:$0xff] %v886
        %919 = vst [vmem:[#allocation2 + $0xa8] sm:$0xff] %v887
        %920 = vst [vmem:[#allocation2 + $0xb0] sm:$0xff] %v888
        %921 = vst [vmem:[#allocation2 + $0xb8] sm:$0xff] %v889
        %922 = vst [vmem:[#allocation2 + $0xc0] sm:$0xff] %v890
        %923 = vst [vmem:[#allocation2 + $0xc8] sm:$0xff] %v891
        %924 = vst [vmem:[#allocation2 + $0xd0] sm:$0xff] %v892
        %925 = vst [vmem:[#allocation2 + $0xd8] sm:$0xff] %v893
        %926 = vst [vmem:[#allocation2 + $0xe0] sm:$0xff] %v894
        %927 = vst [vmem:[#allocation2 + $0xe8] sm:$0xff] %v895
        %928 = vst [vmem:[#allocation2 + $0xf0] sm:$0xff] %v896
        %929 = vst [vmem:[#allocation2 + $0xf8] sm:$0xff] %v897
        %930 = vst [vmem:[#allocation2 + $0x100] sm:$0xff] %v898
        %931 = vst [vmem:[#allocation2 + $0x108] sm:$0xff] %v899
        %v932 = vld [vmem:[%s576] sm:$0xff]
        %v933 = vld [vmem:[%s576 + $0x8] sm:$0xff]
        %v934 = vld [vmem:[%s495] sm:$0xff]
        %v935 = vld [vmem:[%s495 + $0x8] sm:$0xff]
        %v936 = vpack.c.bf16 %v933, %v932
        %v937 = vpack.c.bf16 %v935, %v934
        %v938 = vld [vmem:[%s3] sm:$0xf]
        %v939 = vld [vmem:[%s3 + $0x4] sm:$0xf]
        %v940 = vld [vmem:[%s3 + $0x8] sm:$0xf]
        %v941 = vld [vmem:[%s3 + $0xc] sm:$0xf]
        %v942 = vld [vmem:[%s3 + $0x10] sm:$0xf]
        %v943 = vld [vmem:[%s3 + $0x14] sm:$0xf]
        %v944 = vld [vmem:[%s3 + $0x18] sm:$0xf]
        %v945 = vld [vmem:[%s3 + $0x1c] sm:$0xf]
        %v946 = vld [vmem:[%s3 + $0x20] sm:$0xf]
        %v947 = vld [vmem:[%s3 + $0x24] sm:$0xf]
        %v948 = vld [vmem:[%s3 + $0x28] sm:$0xf]
        %v949 = vld [vmem:[%s3 + $0x2c] sm:$0xf]
        %v950 = vld [vmem:[%s3 + $0x30] sm:$0xf]
        %v951 = vld [vmem:[%s3 + $0x34] sm:$0xf]
        %v952 = vld [vmem:[%s3 + $0x38] sm:$0xf]
        %v953 = vld [vmem:[%s3 + $0x3c] sm:$0xf]
        %v954 = vld [vmem:[#allocation8] sm:$0x1]
        %v956 = vlaneseq
        %v957 = vshrl.u32 %v956, 7
        %v958 = vsub.s32 0, %v957
        %v959 = vrot.slane %v954, %v958
        %v977 = vunpack.c.l.b16 %v938
        %v978 = vunpack.c.l.b16 %v939
        %v979 = vunpack.c.l.b16 %v940
        %v980 = vunpack.c.l.b16 %v941
        %v981 = vunpack.c.l.b16 %v942
        %v982 = vunpack.c.l.b16 %v943
        %v983 = vunpack.c.l.b16 %v944
        %v984 = vunpack.c.l.b16 %v945
        %v985 = vunpack.c.l.b16 %v946
        %v986 = vunpack.c.l.b16 %v947
        %v987 = vunpack.c.l.b16 %v948
        %v988 = vunpack.c.l.b16 %v949
        %v989 = vunpack.c.l.b16 %v950
        %v990 = vunpack.c.l.b16 %v951
        %v991 = vunpack.c.l.b16 %v952
        %v992 = vunpack.c.l.b16 %v953
        %v993 = vpack.c.b16 %v978, %v977
        %v994 = vpack.c.b16 %v980, %v979
        %v995 = vpack.c.b16 %v982, %v981
        %v996 = vpack.c.b16 %v984, %v983
        %v997 = vpack.c.b16 %v986, %v985
        %v998 = vpack.c.b16 %v988, %v987
        %v999 = vpack.c.b16 %v990, %v989
        %v1000 = vpack.c.b16 %v992, %v991
        %1009 = vmatprep.subr.bf16.mxu0 0
        %1010 = vmatpush1.bf16.msra.mxu0 %v1000
        %1011 = vmatprep.subr.bf16.mxu0 0
        %1012 = vmatpush1.bf16.msra.mxu0 %v999
        %1013 = vmatprep.subr.bf16.mxu0 0
        %1014 = vmatpush1.bf16.msra.mxu0 %v998
        %1015 = vmatprep.subr.bf16.mxu0 0
        %1016 = vmatpush1.bf16.msra.mxu0 %v997
        %1017 = vmatprep.subr.bf16.mxu0 0
        %1018 = vmatpush1.bf16.msra.mxu0 %v996
        %1019 = vmatprep.subr.bf16.mxu0 0
        %1020 = vmatpush1.bf16.msra.mxu0 %v995
        %1021 = vmatprep.subr.bf16.mxu0 0
        %1022 = vmatpush1.bf16.msra.mxu0 %v994
        %1023 = vmatprep.subr.bf16.mxu0 0
        %1024 = vmatpush1.bf16.msra.mxu0 %v993
        %1025 = vmatprep.subr.bf16.mxu0 0
        %1026 = vmatpush2.bf16.msra.mxu0 0
        %1027 = vmatprep.subr.bf16.mxu0 0
        %1028 = vmatpush2.bf16.msra.mxu0 0
        %1029 = vmatprep.subr.bf16.mxu0 0
        %1030 = vmatpush2.bf16.msra.mxu0 0
        %1031 = vmatprep.subr.bf16.mxu0 0
        %1032 = vmatpush2.bf16.msra.mxu0 0
        %1033 = vmatprep.subr.bf16.mxu0 0
        %1034 = vmatpush2.bf16.msra.mxu0 0
        %1035 = vmatprep.subr.bf16.mxu0 0
        %1036 = vmatpush2.bf16.msra.mxu0 0
        %1037 = vmatprep.subr.bf16.mxu0 0
        %1038 = vmatpush2.bf16.msra.mxu0 0
        %1039 = vmatprep.subr.bf16.mxu0 0
        %1040 = vmatpush2.bf16.msra.mxu0 0
        %1041 = vmatprep.mubr.bf16.mxu0 0
        %1042 = vmatmul.mubr.bf16.gmra.mxu0 %v936
        %v1043 = vpop.f32.mrf.mxu0
        %v1044 = vadd.f32 %v959, %v1043
        %v1045 = vpop.f32.mrf.mxu0
        %v1046 = vpop.f32.mrf.mxu0
        %v1047 = vadd.f32 %v959, %v1046
        %v1048 = vpop.f32.mrf.mxu0
        %1049 = vmatprep.mubr.bf16.mxu0 0
        %1050 = vmatmul.mubr.bf16.gmra.mxu0 %v937
        %v1051 = vpop.f32.mrf.mxu0
        %v1052 = vadd.f32 %v959, %v1051
        %v1053 = vpop.f32.mrf.mxu0
        %v1054 = vpop.f32.mrf.mxu0
        %v1055 = vadd.f32 %v959, %v1054
        %v1056 = vpop.f32.mrf.mxu0
        %1057 = vdwg.mxu0
        %v1058 = vmax.f32 %v1044, 0.0
        %v1059 = vmax.f32 %v1047, 0.0
        %v1060 = vmax.f32 %v1052, 0.0
        %v1061 = vmax.f32 %v1055, 0.0
        %1062 = vst [vmem:[#allocation2] sm:$0xff] %v1058
        %1063 = vst [vmem:[#allocation2 + $0x8] sm:$0xff] %v1059
        %1064 = vst [vmem:[#allocation2 + $0x110] sm:$0xff] %v1060
        %1065 = vst [vmem:[#allocation2 + $0x118] sm:$0xff] %v1061
        %p1066 = scmp.eq.s32.totalorder %s37, 0
        // Predicated region
        $region85: #{tpu_custom_call.1} parent=63 // pred_check
          %p1067 = pneg %p1066
        $region86: #{tpu_custom_call.1} parent=63 // pred_check_branch
          %1069 = sbr.rel (%p1067) target = $region88
        $region87: #{tpu_custom_call.1} parent=63 // pred_region
          %1070 = vst [vmem:[#allocation2] sm:$0xff] 0.0
          %1071 = vst [vmem:[#allocation2 + $0x8] sm:$0xff] 0.0
          %1072 = vst [vmem:[#allocation2 + $0x110] sm:$0xff] 0.0
          %1073 = vst [vmem:[#allocation2 + $0x118] sm:$0xff] 0.0
        $region88: #{tpu_custom_call.1} parent=63 // pred_fallthru
          _
        %v1074 = vld [vmem:[#allocation2] sm:$0xff]
        %v1075 = vld [vmem:[#allocation2 + $0x8] sm:$0xff]
        %v1076 = vld [vmem:[#allocation2 + $0x10] sm:$0xff]
        %v1077 = vld [vmem:[#allocation2 + $0x18] sm:$0xff]
        %v1078 = vld [vmem:[#allocation2 + $0x20] sm:$0xff]
        %v1079 = vld [vmem:[#allocation2 + $0x28] sm:$0xff]
        %v1080 = vld [vmem:[#allocation2 + $0x30] sm:$0xff]
        %v1081 = vld [vmem:[#allocation2 + $0x38] sm:$0xff]
        %v1082 = vld [vmem:[#allocation2 + $0x40] sm:$0xff]
        %v1083 = vld [vmem:[#allocation2 + $0x48] sm:$0xff]
        %v1084 = vld [vmem:[#allocation2 + $0x50] sm:$0xff]
        %v1085 = vld [vmem:[#allocation2 + $0x58] sm:$0xff]
        %v1086 = vld [vmem:[#allocation2 + $0x60] sm:$0xff]
        %v1087 = vld [vmem:[#allocation2 + $0x68] sm:$0xff]
        %v1088 = vld [vmem:[#allocation2 + $0x70] sm:$0xff]
        %v1089 = vld [vmem:[#allocation2 + $0x78] sm:$0xff]
        %v1090 = vld [vmem:[#allocation2 + $0x80] sm:$0xff]
        %v1091 = vld [vmem:[#allocation2 + $0x88] sm:$0xff]
        %v1092 = vld [vmem:[#allocation2 + $0x90] sm:$0xff]
        %v1093 = vld [vmem:[#allocation2 + $0x98] sm:$0xff]
        %v1094 = vld [vmem:[#allocation2 + $0xa0] sm:$0xff]
        %v1095 = vld [vmem:[#allocation2 + $0xa8] sm:$0xff]
        %v1096 = vld [vmem:[#allocation2 + $0xb0] sm:$0xff]
        %v1097 = vld [vmem:[#allocation2 + $0xb8] sm:$0xff]
        %v1098 = vld [vmem:[#allocation2 + $0xc0] sm:$0xff]
        %v1099 = vld [vmem:[#allocation2 + $0xc8] sm:$0xff]
        %v1100 = vld [vmem:[#allocation2 + $0xd0] sm:$0xff]
        %v1101 = vld [vmem:[#allocation2 + $0xd8] sm:$0xff]
        %v1102 = vld [vmem:[#allocation2 + $0xe0] sm:$0xff]
        %v1103 = vld [vmem:[#allocation2 + $0xe8] sm:$0xff]
        %v1104 = vld [vmem:[#allocation2 + $0xf0] sm:$0xff]
        %v1105 = vld [vmem:[#allocation2 + $0xf8] sm:$0xff]
        %v1106 = vld [vmem:[#allocation2 + $0x100] sm:$0xff]
        %v1107 = vld [vmem:[#allocation2 + $0x108] sm:$0xff]
        %v1108 = vld [vmem:[#allocation2 + $0x110] sm:$0xff]
        %v1109 = vld [vmem:[#allocation2 + $0x118] sm:$0xff]
        %vm1146 = vcmask 1040384
        %v1147 = vrot.slane %v1074, 7
        %v1148 = vrot.slane %v1075, 7
        %v1149 = vsel %vm1146, %v1147, %v1148
        %v1150 = vrot.slane %v1076, 7
        %v1151 = vsel %vm1146, %v1148, %v1150
        %v1152 = vrot.slane %v1077, 7
        %v1153 = vsel %vm1146, %v1150, %v1152
        %v1154 = vrot.slane %v1078, 7
        %v1155 = vsel %vm1146, %v1152, %v1154
        %v1156 = vrot.slane %v1079, 7
        %v1157 = vsel %vm1146, %v1154, %v1156
        %v1158 = vrot.slane %v1080, 7
        %v1159 = vsel %vm1146, %v1156, %v1158
        %v1160 = vrot.slane %v1081, 7
        %v1161 = vsel %vm1146, %v1158, %v1160
        %v1162 = vrot.slane %v1082, 7
        %v1163 = vsel %vm1146, %v1160, %v1162
        %v1164 = vrot.slane %v1083, 7
        %v1165 = vsel %vm1146, %v1162, %v1164
        %v1166 = vrot.slane %v1084, 7
        %v1167 = vsel %vm1146, %v1164, %v1166
        %v1168 = vrot.slane %v1085, 7
        %v1169 = vsel %vm1146, %v1166, %v1168
        %v1170 = vrot.slane %v1086, 7
        %v1171 = vsel %vm1146, %v1168, %v1170
        %v1172 = vrot.slane %v1087, 7
        %v1173 = vsel %vm1146, %v1170, %v1172
        %v1174 = vrot.slane %v1088, 7
        %v1175 = vsel %vm1146, %v1172, %v1174
        %v1176 = vrot.slane %v1089, 7
        %v1177 = vsel %vm1146, %v1174, %v1176
        %v1178 = vrot.slane %v1090, 7
        %v1179 = vsel %vm1146, %v1176, %v1178
        %v1180 = vrot.slane %v1091, 7
        %v1181 = vsel %vm1146, %v1178, %v1180
        %v1182 = vrot.slane %v1092, 7
        %v1183 = vsel %vm1146, %v1180, %v1182
        %v1184 = vrot.slane %v1093, 7
        %v1185 = vsel %vm1146, %v1182, %v1184
        %v1186 = vrot.slane %v1094, 7
        %v1187 = vsel %vm1146, %v1184, %v1186
        %v1188 = vrot.slane %v1095, 7
        %v1189 = vsel %vm1146, %v1186, %v1188
        %v1190 = vrot.slane %v1096, 7
        %v1191 = vsel %vm1146, %v1188, %v1190
        %v1192 = vrot.slane %v1097, 7
        %v1193 = vsel %vm1146, %v1190, %v1192
        %v1194 = vrot.slane %v1098, 7
        %v1195 = vsel %vm1146, %v1192, %v1194
        %v1196 = vrot.slane %v1099, 7
        %v1197 = vsel %vm1146, %v1194, %v1196
        %v1198 = vrot.slane %v1100, 7
        %v1199 = vsel %vm1146, %v1196, %v1198
        %v1200 = vrot.slane %v1101, 7
        %v1201 = vsel %vm1146, %v1198, %v1200
        %v1202 = vrot.slane %v1102, 7
        %v1203 = vsel %vm1146, %v1200, %v1202
        %v1204 = vrot.slane %v1103, 7
        %v1205 = vsel %vm1146, %v1202, %v1204
        %v1206 = vrot.slane %v1104, 7
        %v1207 = vsel %vm1146, %v1204, %v1206
        %v1208 = vrot.slane %v1105, 7
        %v1209 = vsel %vm1146, %v1206, %v1208
        %v1210 = vrot.slane %v1106, 7
        %v1211 = vsel %vm1146, %v1208, %v1210
        %v1212 = vrot.slane %v1107, 7
        %v1213 = vsel %vm1146, %v1210, %v1212
        %v1214 = vrot.slane %v1108, 7
        %v1215 = vsel %vm1146, %v1212, %v1214
        %v1216 = vrot.slane %v1109, 7
        %v1217 = vsel %vm1146, %v1214, %v1216
        %v1254 = vsel %vm1146, %v1074, %v1147
        %vm1255 = vcmask 1046528
        %v1256 = vrot.slane %v1074, 1
        %v1257 = vrot.slane %v1075, 1
        %v1258 = vsel %vm1255, %v1256, %v1257
        %v1259 = vrot.slane %v1076, 1
        %v1260 = vsel %vm1255, %v1257, %v1259
        %v1261 = vrot.slane %v1077, 1
        %v1262 = vsel %vm1255, %v1259, %v1261
        %v1263 = vrot.slane %v1078, 1
        %v1264 = vsel %vm1255, %v1261, %v1263
        %v1265 = vrot.slane %v1079, 1
        %v1266 = vsel %vm1255, %v1263, %v1265
        %v1267 = vrot.slane %v1080, 1
        %v1268 = vsel %vm1255, %v1265, %v1267
        %v1269 = vrot.slane %v1081, 1
        %v1270 = vsel %vm1255, %v1267, %v1269
        %v1271 = vrot.slane %v1082, 1
        %v1272 = vsel %vm1255, %v1269, %v1271
        %v1273 = vrot.slane %v1083, 1
        %v1274 = vsel %vm1255, %v1271, %v1273
        %v1275 = vrot.slane %v1084, 1
        %v1276 = vsel %vm1255, %v1273, %v1275
        %v1277 = vrot.slane %v1085, 1
        %v1278 = vsel %vm1255, %v1275, %v1277
        %v1279 = vrot.slane %v1086, 1
        %v1280 = vsel %vm1255, %v1277, %v1279
        %v1281 = vrot.slane %v1087, 1
        %v1282 = vsel %vm1255, %v1279, %v1281
        %v1283 = vrot.slane %v1088, 1
        %v1284 = vsel %vm1255, %v1281, %v1283
        %v1285 = vrot.slane %v1089, 1
        %v1286 = vsel %vm1255, %v1283, %v1285
        %v1287 = vrot.slane %v1090, 1
        %v1288 = vsel %vm1255, %v1285, %v1287
        %v1289 = vrot.slane %v1091, 1
        %v1290 = vsel %vm1255, %v1287, %v1289
        %v1291 = vrot.slane %v1092, 1
        %v1292 = vsel %vm1255, %v1289, %v1291
        %v1293 = vrot.slane %v1093, 1
        %v1294 = vsel %vm1255, %v1291, %v1293
        %v1295 = vrot.slane %v1094, 1
        %v1296 = vsel %vm1255, %v1293, %v1295
        %v1297 = vrot.slane %v1095, 1
        %v1298 = vsel %vm1255, %v1295, %v1297
        %v1299 = vrot.slane %v1096, 1
        %v1300 = vsel %vm1255, %v1297, %v1299
        %v1301 = vrot.slane %v1097, 1
        %v1302 = vsel %vm1255, %v1299, %v1301
        %v1303 = vrot.slane %v1098, 1
        %v1304 = vsel %vm1255, %v1301, %v1303
        %v1305 = vrot.slane %v1099, 1
        %v1306 = vsel %vm1255, %v1303, %v1305
        %v1307 = vrot.slane %v1100, 1
        %v1308 = vsel %vm1255, %v1305, %v1307
        %v1309 = vrot.slane %v1101, 1
        %v1310 = vsel %vm1255, %v1307, %v1309
        %v1311 = vrot.slane %v1102, 1
        %v1312 = vsel %vm1255, %v1309, %v1311
        %v1313 = vrot.slane %v1103, 1
        %v1314 = vsel %vm1255, %v1311, %v1313
        %v1315 = vrot.slane %v1104, 1
        %v1316 = vsel %vm1255, %v1313, %v1315
        %v1317 = vrot.slane %v1105, 1
        %v1318 = vsel %vm1255, %v1315, %v1317
        %v1319 = vrot.slane %v1106, 1
        %v1320 = vsel %vm1255, %v1317, %v1319
        %v1321 = vrot.slane %v1107, 1
        %v1322 = vsel %vm1255, %v1319, %v1321
        %v1323 = vrot.slane %v1108, 1
        %v1324 = vsel %vm1255, %v1321, %v1323
        %v1325 = vrot.slane %v1109, 1
        %v1326 = vsel %vm1255, %v1323, %v1325
        %v1363 = vsel %vm1255, %v1325, %v1109
        %v1364 = vld [vmem:[%s9] sm:$0xff]
        %v1365 = vld [vmem:[%s9 + $0x8] sm:$0xff]
        %v1366 = vld [vmem:[%s9 + $0x10] sm:$0xff]
        %v1367 = vld [vmem:[%s9 + $0x18] sm:$0xff]
        %v1368 = vld [vmem:[%s9 + $0x20] sm:$0xff]
        %v1369 = vld [vmem:[%s9 + $0x28] sm:$0xff]
        %v1370 = vld [vmem:[%s9 + $0x30] sm:$0xff]
        %v1371 = vld [vmem:[%s9 + $0x38] sm:$0xff]
        %v1372 = vld [vmem:[%s9 + $0x40] sm:$0xff]
        %v1373 = vld [vmem:[%s9 + $0x48] sm:$0xff]
        %v1374 = vld [vmem:[%s9 + $0x50] sm:$0xff]
        %v1375 = vld [vmem:[%s9 + $0x58] sm:$0xff]
        %v1376 = vld [vmem:[%s9 + $0x60] sm:$0xff]
        %v1377 = vld [vmem:[%s9 + $0x68] sm:$0xff]
        %v1378 = vld [vmem:[%s9 + $0x70] sm:$0xff]
        %v1379 = vld [vmem:[%s9 + $0x78] sm:$0xff]
        %v1380 = vld [vmem:[%s9 + $0x80] sm:$0xff]
        %v1381 = vld [vmem:[%s9 + $0x88] sm:$0xff]
        %v1382 = vld [vmem:[%s9 + $0x90] sm:$0xff]
        %v1383 = vld [vmem:[%s9 + $0x98] sm:$0xff]
        %v1384 = vld [vmem:[%s9 + $0xa0] sm:$0xff]
        %v1385 = vld [vmem:[%s9 + $0xa8] sm:$0xff]
        %v1386 = vld [vmem:[%s9 + $0xb0] sm:$0xff]
        %v1387 = vld [vmem:[%s9 + $0xb8] sm:$0xff]
        %v1388 = vld [vmem:[%s9 + $0xc0] sm:$0xff]
        %v1389 = vld [vmem:[%s9 + $0xc8] sm:$0xff]
        %v1390 = vld [vmem:[%s9 + $0xd0] sm:$0xff]
        %v1391 = vld [vmem:[%s9 + $0xd8] sm:$0xff]
        %v1392 = vld [vmem:[%s9 + $0xe0] sm:$0xff]
        %v1393 = vld [vmem:[%s9 + $0xe8] sm:$0xff]
        %v1394 = vld [vmem:[%s9 + $0xf0] sm:$0xff]
        %v1395 = vld [vmem:[%s9 + $0xf8] sm:$0xff]
        %v1396 = vld [vmem:[%s9 + $0x100] sm:$0xff]
        %v1397 = vld [vmem:[%s9 + $0x108] sm:$0xff]
        %v1398 = vld [vmem:[%s9 + $0x110] sm:$0xff]
        %v1399 = vld [vmem:[%s9 + $0x118] sm:$0xff]
        %1401 = vset.pattern.permute.xlu0 0
        %1402 = vperm.xlu0 %1401, %v1364
        %v1403 = vpop.permute.xlu0 %1402
        %1406 = vset.pattern.permute.xlu0 0
        %1407 = vperm.xlu0 %1406, %v1365
        %v1408 = vpop.permute.xlu0 %1407
        %1411 = vset.pattern.permute.xlu0 0
        %1412 = vperm.xlu0 %1411, %v1366
        %v1413 = vpop.permute.xlu0 %1412
        %1416 = vset.pattern.permute.xlu0 0
        %1417 = vperm.xlu0 %1416, %v1367
        %v1418 = vpop.permute.xlu0 %1417
        %1421 = vset.pattern.permute.xlu0 0
        %1422 = vperm.xlu0 %1421, %v1368
        %v1423 = vpop.permute.xlu0 %1422
        %1426 = vset.pattern.permute.xlu0 0
        %1427 = vperm.xlu0 %1426, %v1369
        %v1428 = vpop.permute.xlu0 %1427
        %1431 = vset.pattern.permute.xlu0 0
        %1432 = vperm.xlu0 %1431, %v1370
        %v1433 = vpop.permute.xlu0 %1432
        %1436 = vset.pattern.permute.xlu0 0
        %1437 = vperm.xlu0 %1436, %v1371
        %v1438 = vpop.permute.xlu0 %1437
        %1441 = vset.pattern.permute.xlu0 0
        %1442 = vperm.xlu0 %1441, %v1372
        %v1443 = vpop.permute.xlu0 %1442
        %1446 = vset.pattern.permute.xlu0 0
        %1447 = vperm.xlu0 %1446, %v1373
        %v1448 = vpop.permute.xlu0 %1447
        %1451 = vset.pattern.permute.xlu0 0
        %1452 = vperm.xlu0 %1451, %v1374
        %v1453 = vpop.permute.xlu0 %1452
        %1456 = vset.pattern.permute.xlu0 0
        %1457 = vperm.xlu0 %1456, %v1375
        %v1458 = vpop.permute.xlu0 %1457
        %1461 = vset.pattern.permute.xlu0 0
        %1462 = vperm.xlu0 %1461, %v1376
        %v1463 = vpop.permute.xlu0 %1462
        %1466 = vset.pattern.permute.xlu0 0
        %1467 = vperm.xlu0 %1466, %v1377
        %v1468 = vpop.permute.xlu0 %1467
        %1471 = vset.pattern.permute.xlu0 0
        %1472 = vperm.xlu0 %1471, %v1378
        %v1473 = vpop.permute.xlu0 %1472
        %1476 = vset.pattern.permute.xlu0 0
        %1477 = vperm.xlu0 %1476, %v1379
        %v1478 = vpop.permute.xlu0 %1477
        %1481 = vset.pattern.permute.xlu0 0
        %1482 = vperm.xlu0 %1481, %v1380
        %v1483 = vpop.permute.xlu0 %1482
        %1486 = vset.pattern.permute.xlu0 0
        %1487 = vperm.xlu0 %1486, %v1381
        %v1488 = vpop.permute.xlu0 %1487
        %1491 = vset.pattern.permute.xlu0 0
        %1492 = vperm.xlu0 %1491, %v1382
        %v1493 = vpop.permute.xlu0 %1492
        %1496 = vset.pattern.permute.xlu0 0
        %1497 = vperm.xlu0 %1496, %v1383
        %v1498 = vpop.permute.xlu0 %1497
        %1501 = vset.pattern.permute.xlu0 0
        %1502 = vperm.xlu0 %1501, %v1384
        %v1503 = vpop.permute.xlu0 %1502
        %1506 = vset.pattern.permute.xlu0 0
        %1507 = vperm.xlu0 %1506, %v1385
        %v1508 = vpop.permute.xlu0 %1507
        %1511 = vset.pattern.permute.xlu0 0
        %1512 = vperm.xlu0 %1511, %v1386
        %v1513 = vpop.permute.xlu0 %1512
        %1516 = vset.pattern.permute.xlu0 0
        %1517 = vperm.xlu0 %1516, %v1387
        %v1518 = vpop.permute.xlu0 %1517
        %1521 = vset.pattern.permute.xlu0 0
        %1522 = vperm.xlu0 %1521, %v1388
        %v1523 = vpop.permute.xlu0 %1522
        %1526 = vset.pattern.permute.xlu0 0
        %1527 = vperm.xlu0 %1526, %v1389
        %v1528 = vpop.permute.xlu0 %1527
        %1531 = vset.pattern.permute.xlu0 0
        %1532 = vperm.xlu0 %1531, %v1390
        %v1533 = vpop.permute.xlu0 %1532
        %1536 = vset.pattern.permute.xlu0 0
        %1537 = vperm.xlu0 %1536, %v1391
        %v1538 = vpop.permute.xlu0 %1537
        %1541 = vset.pattern.permute.xlu0 0
        %1542 = vperm.xlu0 %1541, %v1392
        %v1543 = vpop.permute.xlu0 %1542
        %1546 = vset.pattern.permute.xlu0 0
        %1547 = vperm.xlu0 %1546, %v1393
        %v1548 = vpop.permute.xlu0 %1547
        %1551 = vset.pattern.permute.xlu0 0
        %1552 = vperm.xlu0 %1551, %v1394
        %v1553 = vpop.permute.xlu0 %1552
        %1556 = vset.pattern.permute.xlu0 0
        %1557 = vperm.xlu0 %1556, %v1395
        %v1558 = vpop.permute.xlu0 %1557
        %1561 = vset.pattern.permute.xlu0 0
        %1562 = vperm.xlu0 %1561, %v1396
        %v1563 = vpop.permute.xlu0 %1562
        %1566 = vset.pattern.permute.xlu0 0
        %1567 = vperm.xlu0 %1566, %v1397
        %v1568 = vpop.permute.xlu0 %1567
        %1571 = vset.pattern.permute.xlu0 0
        %1572 = vperm.xlu0 %1571, %v1398
        %v1573 = vpop.permute.xlu0 %1572
        %1576 = vset.pattern.permute.xlu0 0
        %1577 = vperm.xlu0 %1576, %v1399
        %v1578 = vpop.permute.xlu0 %1577
        %v1580 = vmul.f32 %v1254, %v1403
        %v1581 = vmul.f32 %v1149, %v1408
        %v1582 = vmul.f32 %v1151, %v1413
        %v1583 = vmul.f32 %v1153, %v1418
        %v1584 = vmul.f32 %v1155, %v1423
        %v1585 = vmul.f32 %v1157, %v1428
        %v1586 = vmul.f32 %v1159, %v1433
        %v1587 = vmul.f32 %v1161, %v1438
        %v1588 = vmul.f32 %v1163, %v1443
        %v1589 = vmul.f32 %v1165, %v1448
        %v1590 = vmul.f32 %v1167, %v1453
        %v1591 = vmul.f32 %v1169, %v1458
        %v1592 = vmul.f32 %v1171, %v1463
        %v1593 = vmul.f32 %v1173, %v1468
        %v1594 = vmul.f32 %v1175, %v1473
        %v1595 = vmul.f32 %v1177, %v1478
        %v1596 = vmul.f32 %v1179, %v1483
        %v1597 = vmul.f32 %v1181, %v1488
        %v1598 = vmul.f32 %v1183, %v1493
        %v1599 = vmul.f32 %v1185, %v1498
        %v1600 = vmul.f32 %v1187, %v1503
        %v1601 = vmul.f32 %v1189, %v1508
        %v1602 = vmul.f32 %v1191, %v1513
        %v1603 = vmul.f32 %v1193, %v1518
        %v1604 = vmul.f32 %v1195, %v1523
        %v1605 = vmul.f32 %v1197, %v1528
        %v1606 = vmul.f32 %v1199, %v1533
        %v1607 = vmul.f32 %v1201, %v1538
        %v1608 = vmul.f32 %v1203, %v1543
        %v1609 = vmul.f32 %v1205, %v1548
        %v1610 = vmul.f32 %v1207, %v1553
        %v1611 = vmul.f32 %v1209, %v1558
        %v1612 = vmul.f32 %v1211, %v1563
        %v1613 = vmul.f32 %v1213, %v1568
        %v1614 = vmul.f32 %v1215, %v1573
        %v1615 = vmul.f32 %v1217, %v1578
        %v1616 = vld [vmem:[%s10] sm:$0xff]
        %v1617 = vld [vmem:[%s10 + $0x8] sm:$0xff]
        %v1618 = vld [vmem:[%s10 + $0x10] sm:$0xff]
        %v1619 = vld [vmem:[%s10 + $0x18] sm:$0xff]
        %v1620 = vld [vmem:[%s10 + $0x20] sm:$0xff]
        %v1621 = vld [vmem:[%s10 + $0x28] sm:$0xff]
        %v1622 = vld [vmem:[%s10 + $0x30] sm:$0xff]
        %v1623 = vld [vmem:[%s10 + $0x38] sm:$0xff]
        %v1624 = vld [vmem:[%s10 + $0x40] sm:$0xff]
        %v1625 = vld [vmem:[%s10 + $0x48] sm:$0xff]
        %v1626 = vld [vmem:[%s10 + $0x50] sm:$0xff]
        %v1627 = vld [vmem:[%s10 + $0x58] sm:$0xff]
        %v1628 = vld [vmem:[%s10 + $0x60] sm:$0xff]
        %v1629 = vld [vmem:[%s10 + $0x68] sm:$0xff]
        %v1630 = vld [vmem:[%s10 + $0x70] sm:$0xff]
        %v1631 = vld [vmem:[%s10 + $0x78] sm:$0xff]
        %v1632 = vld [vmem:[%s10 + $0x80] sm:$0xff]
        %v1633 = vld [vmem:[%s10 + $0x88] sm:$0xff]
        %v1634 = vld [vmem:[%s10 + $0x90] sm:$0xff]
        %v1635 = vld [vmem:[%s10 + $0x98] sm:$0xff]
        %v1636 = vld [vmem:[%s10 + $0xa0] sm:$0xff]
        %v1637 = vld [vmem:[%s10 + $0xa8] sm:$0xff]
        %v1638 = vld [vmem:[%s10 + $0xb0] sm:$0xff]
        %v1639 = vld [vmem:[%s10 + $0xb8] sm:$0xff]
        %v1640 = vld [vmem:[%s10 + $0xc0] sm:$0xff]
        %v1641 = vld [vmem:[%s10 + $0xc8] sm:$0xff]
        %v1642 = vld [vmem:[%s10 + $0xd0] sm:$0xff]
        %v1643 = vld [vmem:[%s10 + $0xd8] sm:$0xff]
        %v1644 = vld [vmem:[%s10 + $0xe0] sm:$0xff]
        %v1645 = vld [vmem:[%s10 + $0xe8] sm:$0xff]
        %v1646 = vld [vmem:[%s10 + $0xf0] sm:$0xff]
        %v1647 = vld [vmem:[%s10 + $0xf8] sm:$0xff]
        %v1648 = vld [vmem:[%s10 + $0x100] sm:$0xff]
        %v1649 = vld [vmem:[%s10 + $0x108] sm:$0xff]
        %v1650 = vld [vmem:[%s10 + $0x110] sm:$0xff]
        %v1651 = vld [vmem:[%s10 + $0x118] sm:$0xff]
        %1653 = vset.pattern.permute.xlu0 0
        %1654 = vperm.xlu0 %1653, %v1616
        %v1655 = vpop.permute.xlu0 %1654
        %1658 = vset.pattern.permute.xlu0 0
        %1659 = vperm.xlu0 %1658, %v1617
        %v1660 = vpop.permute.xlu0 %1659
        %1663 = vset.pattern.permute.xlu0 0
        %1664 = vperm.xlu0 %1663, %v1618
        %v1665 = vpop.permute.xlu0 %1664
        %1668 = vset.pattern.permute.xlu0 0
        %1669 = vperm.xlu0 %1668, %v1619
        %v1670 = vpop.permute.xlu0 %1669
        %1673 = vset.pattern.permute.xlu0 0
        %1674 = vperm.xlu0 %1673, %v1620
        %v1675 = vpop.permute.xlu0 %1674
        %1678 = vset.pattern.permute.xlu0 0
        %1679 = vperm.xlu0 %1678, %v1621
        %v1680 = vpop.permute.xlu0 %1679
        %1683 = vset.pattern.permute.xlu0 0
        %1684 = vperm.xlu0 %1683, %v1622
        %v1685 = vpop.permute.xlu0 %1684
        %1688 = vset.pattern.permute.xlu0 0
        %1689 = vperm.xlu0 %1688, %v1623
        %v1690 = vpop.permute.xlu0 %1689
        %1693 = vset.pattern.permute.xlu0 0
        %1694 = vperm.xlu0 %1693, %v1624
        %v1695 = vpop.permute.xlu0 %1694
        %1698 = vset.pattern.permute.xlu0 0
        %1699 = vperm.xlu0 %1698, %v1625
        %v1700 = vpop.permute.xlu0 %1699
        %1703 = vset.pattern.permute.xlu0 0
        %1704 = vperm.xlu0 %1703, %v1626
        %v1705 = vpop.permute.xlu0 %1704
        %1708 = vset.pattern.permute.xlu0 0
        %1709 = vperm.xlu0 %1708, %v1627
        %v1710 = vpop.permute.xlu0 %1709
        %1713 = vset.pattern.permute.xlu0 0
        %1714 = vperm.xlu0 %1713, %v1628
        %v1715 = vpop.permute.xlu0 %1714
        %1718 = vset.pattern.permute.xlu0 0
        %1719 = vperm.xlu0 %1718, %v1629
        %v1720 = vpop.permute.xlu0 %1719
        %1723 = vset.pattern.permute.xlu0 0
        %1724 = vperm.xlu0 %1723, %v1630
        %v1725 = vpop.permute.xlu0 %1724
        %1728 = vset.pattern.permute.xlu0 0
        %1729 = vperm.xlu0 %1728, %v1631
        %v1730 = vpop.permute.xlu0 %1729
        %1733 = vset.pattern.permute.xlu0 0
        %1734 = vperm.xlu0 %1733, %v1632
        %v1735 = vpop.permute.xlu0 %1734
        %1738 = vset.pattern.permute.xlu0 0
        %1739 = vperm.xlu0 %1738, %v1633
        %v1740 = vpop.permute.xlu0 %1739
        %1743 = vset.pattern.permute.xlu0 0
        %1744 = vperm.xlu0 %1743, %v1634
        %v1745 = vpop.permute.xlu0 %1744
        %1748 = vset.pattern.permute.xlu0 0
        %1749 = vperm.xlu0 %1748, %v1635
        %v1750 = vpop.permute.xlu0 %1749
        %1753 = vset.pattern.permute.xlu0 0
        %1754 = vperm.xlu0 %1753, %v1636
        %v1755 = vpop.permute.xlu0 %1754
        %1758 = vset.pattern.permute.xlu0 0
        %1759 = vperm.xlu0 %1758, %v1637
        %v1760 = vpop.permute.xlu0 %1759
        %1763 = vset.pattern.permute.xlu0 0
        %1764 = vperm.xlu0 %1763, %v1638
        %v1765 = vpop.permute.xlu0 %1764
        %1768 = vset.pattern.permute.xlu0 0
        %1769 = vperm.xlu0 %1768, %v1639
        %v1770 = vpop.permute.xlu0 %1769
        %1773 = vset.pattern.permute.xlu0 0
        %1774 = vperm.xlu0 %1773, %v1640
        %v1775 = vpop.permute.xlu0 %1774
        %1778 = vset.pattern.permute.xlu0 0
        %1779 = vperm.xlu0 %1778, %v1641
        %v1780 = vpop.permute.xlu0 %1779
        %1783 = vset.pattern.permute.xlu0 0
        %1784 = vperm.xlu0 %1783, %v1642
        %v1785 = vpop.permute.xlu0 %1784
        %1788 = vset.pattern.permute.xlu0 0
        %1789 = vperm.xlu0 %1788, %v1643
        %v1790 = vpop.permute.xlu0 %1789
        %1793 = vset.pattern.permute.xlu0 0
        %1794 = vperm.xlu0 %1793, %v1644
        %v1795 = vpop.permute.xlu0 %1794
        %1798 = vset.pattern.permute.xlu0 0
        %1799 = vperm.xlu0 %1798, %v1645
        %v1800 = vpop.permute.xlu0 %1799
        %1803 = vset.pattern.permute.xlu0 0
        %1804 = vperm.xlu0 %1803, %v1646
        %v1805 = vpop.permute.xlu0 %1804
        %1808 = vset.pattern.permute.xlu0 0
        %1809 = vperm.xlu0 %1808, %v1647
        %v1810 = vpop.permute.xlu0 %1809
        %1813 = vset.pattern.permute.xlu0 0
        %1814 = vperm.xlu0 %1813, %v1648
        %v1815 = vpop.permute.xlu0 %1814
        %1818 = vset.pattern.permute.xlu0 0
        %1819 = vperm.xlu0 %1818, %v1649
        %v1820 = vpop.permute.xlu0 %1819
        %1823 = vset.pattern.permute.xlu0 0
        %1824 = vperm.xlu0 %1823, %v1650
        %v1825 = vpop.permute.xlu0 %1824
        %1828 = vset.pattern.permute.xlu0 0
        %1829 = vperm.xlu0 %1828, %v1651
        %v1830 = vpop.permute.xlu0 %1829
        %v1832 = vmul.f32 %v1258, %v1655
        %v1833 = vmul.f32 %v1260, %v1660
        %v1834 = vmul.f32 %v1262, %v1665
        %v1835 = vmul.f32 %v1264, %v1670
        %v1836 = vmul.f32 %v1266, %v1675
        %v1837 = vmul.f32 %v1268, %v1680
        %v1838 = vmul.f32 %v1270, %v1685
        %v1839 = vmul.f32 %v1272, %v1690
        %v1840 = vmul.f32 %v1274, %v1695
        %v1841 = vmul.f32 %v1276, %v1700
        %v1842 = vmul.f32 %v1278, %v1705
        %v1843 = vmul.f32 %v1280, %v1710
        %v1844 = vmul.f32 %v1282, %v1715
        %v1845 = vmul.f32 %v1284, %v1720
        %v1846 = vmul.f32 %v1286, %v1725
        %v1847 = vmul.f32 %v1288, %v1730
        %v1848 = vmul.f32 %v1290, %v1735
        %v1849 = vmul.f32 %v1292, %v1740
        %v1850 = vmul.f32 %v1294, %v1745
        %v1851 = vmul.f32 %v1296, %v1750
        %v1852 = vmul.f32 %v1298, %v1755
        %v1853 = vmul.f32 %v1300, %v1760
        %v1854 = vmul.f32 %v1302, %v1765
        %v1855 = vmul.f32 %v1304, %v1770
        %v1856 = vmul.f32 %v1306, %v1775
        %v1857 = vmul.f32 %v1308, %v1780
        %v1858 = vmul.f32 %v1310, %v1785
        %v1859 = vmul.f32 %v1312, %v1790
        %v1860 = vmul.f32 %v1314, %v1795
        %v1861 = vmul.f32 %v1316, %v1800
        %v1862 = vmul.f32 %v1318, %v1805
        %v1863 = vmul.f32 %v1320, %v1810
        %v1864 = vmul.f32 %v1322, %v1815
        %v1865 = vmul.f32 %v1324, %v1820
        %v1866 = vmul.f32 %v1326, %v1825
        %v1867 = vmul.f32 %v1363, %v1830
        %v1868 = vpack.c.bf16 %v1075, %v1074
        %v1869 = vpack.c.bf16 %v1077, %v1076
        %v1870 = vpack.c.bf16 %v1079, %v1078
        %v1871 = vpack.c.bf16 %v1081, %v1080
        %v1872 = vpack.c.bf16 %v1083, %v1082
        %v1873 = vpack.c.bf16 %v1085, %v1084
        %v1874 = vpack.c.bf16 %v1087, %v1086
        %v1875 = vpack.c.bf16 %v1089, %v1088
        %v1876 = vpack.c.bf16 %v1091, %v1090
        %v1877 = vpack.c.bf16 %v1093, %v1092
        %v1878 = vpack.c.bf16 %v1095, %v1094
        %v1879 = vpack.c.bf16 %v1097, %v1096
        %v1880 = vpack.c.bf16 %v1099, %v1098
        %v1881 = vpack.c.bf16 %v1101, %v1100
        %v1882 = vpack.c.bf16 %v1103, %v1102
        %v1883 = vpack.c.bf16 %v1105, %v1104
        %v1884 = vpack.c.bf16 %v1107, %v1106
        %v1885 = vpack.c.bf16 %v1109, %v1108
        %v1886 = vpack.c.bf16 %v1581, %v1580
        %v1887 = vpack.c.bf16 %v1583, %v1582
        %v1888 = vpack.c.bf16 %v1585, %v1584
        %v1889 = vpack.c.bf16 %v1587, %v1586
        %v1890 = vpack.c.bf16 %v1589, %v1588
        %v1891 = vpack.c.bf16 %v1591, %v1590
        %v1892 = vpack.c.bf16 %v1593, %v1592
        %v1893 = vpack.c.bf16 %v1595, %v1594
        %v1894 = vpack.c.bf16 %v1597, %v1596
        %v1895 = vpack.c.bf16 %v1599, %v1598
        %v1896 = vpack.c.bf16 %v1601, %v1600
        %v1897 = vpack.c.bf16 %v1603, %v1602
        %v1898 = vpack.c.bf16 %v1605, %v1604
        %v1899 = vpack.c.bf16 %v1607, %v1606
        %v1900 = vpack.c.bf16 %v1609, %v1608
        %v1901 = vpack.c.bf16 %v1611, %v1610
        %v1902 = vpack.c.bf16 %v1613, %v1612
        %v1903 = vpack.c.bf16 %v1615, %v1614
        %v1904 = vpack.c.bf16 %v1833, %v1832
        %v1905 = vpack.c.bf16 %v1835, %v1834
        %v1906 = vpack.c.bf16 %v1837, %v1836
        %v1907 = vpack.c.bf16 %v1839, %v1838
        %v1908 = vpack.c.bf16 %v1841, %v1840
        %v1909 = vpack.c.bf16 %v1843, %v1842
        %v1910 = vpack.c.bf16 %v1845, %v1844
        %v1911 = vpack.c.bf16 %v1847, %v1846
        %v1912 = vpack.c.bf16 %v1849, %v1848
        %v1913 = vpack.c.bf16 %v1851, %v1850
        %v1914 = vpack.c.bf16 %v1853, %v1852
        %v1915 = vpack.c.bf16 %v1855, %v1854
        %v1916 = vpack.c.bf16 %v1857, %v1856
        %v1917 = vpack.c.bf16 %v1859, %v1858
        %v1918 = vpack.c.bf16 %v1861, %v1860
        %v1919 = vpack.c.bf16 %v1863, %v1862
        %v1920 = vpack.c.bf16 %v1865, %v1864
        %v1921 = vpack.c.bf16 %v1867, %v1866
        %v1922 = vld [vmem:[%s5] sm:$0x7]
        %v1923 = vld [vmem:[%s5 + $0x4] sm:$0x7]
        %v1924 = vld [vmem:[%s5 + $0x8] sm:$0x7]
        %v1925 = vpack.c.bf16 %v1922, %v1922
        %v1926 = vpack.c.bf16 %v1923, %v1923
        %v1927 = vpack.c.bf16 %v1924, %v1924
        %v1928 = vld [vmem:[#allocation9] sm:$0x1]
        %v1930 = vlaneseq
        %v1931 = vshrl.u32 %v1930, 7
        %v1932 = vsub.s32 0, %v1931
        %v1933 = vrot.slane %v1928, %v1932
        %v1936 = vpack.i.b16 %v1925, %v1925
        %v1938 = vlaneseq
        %v1939 = vshrl.u32 %v1938, 7
        %v1940 = vsub.s32 0, %v1939
        %v1941 = vrot.slane %v1936, %v1940
        %v1942 = vmul.bf16 %v1886, %v1941
        %v1943 = vmul.bf16 %v1887, %v1941
        %v1944 = vmul.bf16 %v1888, %v1941
        %v1945 = vmul.bf16 %v1889, %v1941
        %v1946 = vmul.bf16 %v1890, %v1941
        %v1947 = vmul.bf16 %v1891, %v1941
        %v1948 = vmul.bf16 %v1892, %v1941
        %v1949 = vmul.bf16 %v1893, %v1941
        %v1950 = vmul.bf16 %v1894, %v1941
        %v1951 = vmul.bf16 %v1895, %v1941
        %v1952 = vmul.bf16 %v1896, %v1941
        %v1953 = vmul.bf16 %v1897, %v1941
        %v1954 = vmul.bf16 %v1898, %v1941
        %v1955 = vmul.bf16 %v1899, %v1941
        %v1956 = vmul.bf16 %v1900, %v1941
        %v1957 = vmul.bf16 %v1901, %v1941
        %v1958 = vunpack.c.l.bf16 %v1942
        %v1959 = vunpack.c.h.bf16 %v1942
        %v1960 = vunpack.c.l.bf16 %v1943
        %v1961 = vunpack.c.h.bf16 %v1943
        %v1962 = vunpack.c.l.bf16 %v1944
        %v1963 = vunpack.c.h.bf16 %v1944
        %v1964 = vunpack.c.l.bf16 %v1945
        %v1965 = vunpack.c.h.bf16 %v1945
        %v1966 = vunpack.c.l.bf16 %v1946
        %v1967 = vunpack.c.h.bf16 %v1946
        %v1968 = vunpack.c.l.bf16 %v1947
        %v1969 = vunpack.c.h.bf16 %v1947
        %v1970 = vunpack.c.l.bf16 %v1948
        %v1971 = vunpack.c.h.bf16 %v1948
        %v1972 = vunpack.c.l.bf16 %v1949
        %v1973 = vunpack.c.h.bf16 %v1949
        %v1974 = vunpack.c.l.bf16 %v1950
        %v1975 = vunpack.c.h.bf16 %v1950
        %v1976 = vunpack.c.l.bf16 %v1951
        %v1977 = vunpack.c.h.bf16 %v1951
        %v1978 = vunpack.c.l.bf16 %v1952
        %v1979 = vunpack.c.h.bf16 %v1952
        %v1980 = vunpack.c.l.bf16 %v1953
        %v1981 = vunpack.c.h.bf16 %v1953
        %v1982 = vunpack.c.l.bf16 %v1954
        %v1983 = vunpack.c.h.bf16 %v1954
        %v1984 = vunpack.c.l.bf16 %v1955
        %v1985 = vunpack.c.h.bf16 %v1955
        %v1986 = vunpack.c.l.bf16 %v1956
        %v1987 = vunpack.c.h.bf16 %v1956
        %v1988 = vunpack.c.l.bf16 %v1957
        %v1989 = vunpack.c.h.bf16 %v1957
        %v1990 = vadd.f32 %v1933, %v1958
        %v1991 = vadd.f32 %v1933, %v1959
        %v1992 = vadd.f32 %v1933, %v1960
        %v1993 = vadd.f32 %v1933, %v1961
        %v1994 = vadd.f32 %v1933, %v1962
        %v1995 = vadd.f32 %v1933, %v1963
        %v1996 = vadd.f32 %v1933, %v1964
        %v1997 = vadd.f32 %v1933, %v1965
        %v1998 = vadd.f32 %v1933, %v1966
        %v1999 = vadd.f32 %v1933, %v1967
        %v2000 = vadd.f32 %v1933, %v1968
        %v2001 = vadd.f32 %v1933, %v1969
        %v2002 = vadd.f32 %v1933, %v1970
        %v2003 = vadd.f32 %v1933, %v1971
        %v2004 = vadd.f32 %v1933, %v1972
        %v2005 = vadd.f32 %v1933, %v1973
        %v2006 = vadd.f32 %v1933, %v1974
        %v2007 = vadd.f32 %v1933, %v1975
        %v2008 = vadd.f32 %v1933, %v1976
        %v2009 = vadd.f32 %v1933, %v1977
        %v2010 = vadd.f32 %v1933, %v1978
        %v2011 = vadd.f32 %v1933, %v1979
        %v2012 = vadd.f32 %v1933, %v1980
        %v2013 = vadd.f32 %v1933, %v1981
        %v2014 = vadd.f32 %v1933, %v1982
        %v2015 = vadd.f32 %v1933, %v1983
        %v2016 = vadd.f32 %v1933, %v1984
        %v2017 = vadd.f32 %v1933, %v1985
        %v2018 = vadd.f32 %v1933, %v1986
        %v2019 = vadd.f32 %v1933, %v1987
        %v2020 = vadd.f32 %v1933, %v1988
        %v2021 = vadd.f32 %v1933, %v1989
        %v2022 = vshrl.u32 %v1925, 16
        %v2023 = vpack.i.b16 %v2022, %v2022
        %v2025 = vlaneseq
        %v2026 = vshrl.u32 %v2025, 7
        %v2027 = vsub.s32 0, %v2026
        %v2028 = vrot.slane %v2023, %v2027
        %v2029 = vmul.bf16 %v1868, %v2028
        %v2030 = vmul.bf16 %v1869, %v2028
        %v2031 = vmul.bf16 %v1870, %v2028
        %v2032 = vmul.bf16 %v1871, %v2028
        %v2033 = vmul.bf16 %v1872, %v2028
        %v2034 = vmul.bf16 %v1873, %v2028
        %v2035 = vmul.bf16 %v1874, %v2028
        %v2036 = vmul.bf16 %v1875, %v2028
        %v2037 = vmul.bf16 %v1876, %v2028
        %v2038 = vmul.bf16 %v1877, %v2028
        %v2039 = vmul.bf16 %v1878, %v2028
        %v2040 = vmul.bf16 %v1879, %v2028
        %v2041 = vmul.bf16 %v1880, %v2028
        %v2042 = vmul.bf16 %v1881, %v2028
        %v2043 = vmul.bf16 %v1882, %v2028
        %v2044 = vmul.bf16 %v1883, %v2028
        %v2045 = vunpack.c.l.bf16 %v2029
        %v2046 = vunpack.c.h.bf16 %v2029
        %v2047 = vunpack.c.l.bf16 %v2030
        %v2048 = vunpack.c.h.bf16 %v2030
        %v2049 = vunpack.c.l.bf16 %v2031
        %v2050 = vunpack.c.h.bf16 %v2031
        %v2051 = vunpack.c.l.bf16 %v2032
        %v2052 = vunpack.c.h.bf16 %v2032
        %v2053 = vunpack.c.l.bf16 %v2033
        %v2054 = vunpack.c.h.bf16 %v2033
        %v2055 = vunpack.c.l.bf16 %v2034
        %v2056 = vunpack.c.h.bf16 %v2034
        %v2057 = vunpack.c.l.bf16 %v2035
        %v2058 = vunpack.c.h.bf16 %v2035
        %v2059 = vunpack.c.l.bf16 %v2036
        %v2060 = vunpack.c.h.bf16 %v2036
        %v2061 = vunpack.c.l.bf16 %v2037
        %v2062 = vunpack.c.h.bf16 %v2037
        %v2063 = vunpack.c.l.bf16 %v2038
        %v2064 = vunpack.c.h.bf16 %v2038
        %v2065 = vunpack.c.l.bf16 %v2039
        %v2066 = vunpack.c.h.bf16 %v2039
        %v2067 = vunpack.c.l.bf16 %v2040
        %v2068 = vunpack.c.h.bf16 %v2040
        %v2069 = vunpack.c.l.bf16 %v2041
        %v2070 = vunpack.c.h.bf16 %v2041
        %v2071 = vunpack.c.l.bf16 %v2042
        %v2072 = vunpack.c.h.bf16 %v2042
        %v2073 = vunpack.c.l.bf16 %v2043
        %v2074 = vunpack.c.h.bf16 %v2043
        %v2075 = vunpack.c.l.bf16 %v2044
        %v2076 = vunpack.c.h.bf16 %v2044
        %v2077 = vadd.f32 %v1990, %v2045
        %v2078 = vadd.f32 %v1991, %v2046
        %v2079 = vadd.f32 %v1992, %v2047
        %v2080 = vadd.f32 %v1993, %v2048
        %v2081 = vadd.f32 %v1994, %v2049
        %v2082 = vadd.f32 %v1995, %v2050
        %v2083 = vadd.f32 %v1996, %v2051
        %v2084 = vadd.f32 %v1997, %v2052
        %v2085 = vadd.f32 %v1998, %v2053
        %v2086 = vadd.f32 %v1999, %v2054
        %v2087 = vadd.f32 %v2000, %v2055
        %v2088 = vadd.f32 %v2001, %v2056
        %v2089 = vadd.f32 %v2002, %v2057
        %v2090 = vadd.f32 %v2003, %v2058
        %v2091 = vadd.f32 %v2004, %v2059
        %v2092 = vadd.f32 %v2005, %v2060
        %v2093 = vadd.f32 %v2006, %v2061
        %v2094 = vadd.f32 %v2007, %v2062
        %v2095 = vadd.f32 %v2008, %v2063
        %v2096 = vadd.f32 %v2009, %v2064
        %v2097 = vadd.f32 %v2010, %v2065
        %v2098 = vadd.f32 %v2011, %v2066
        %v2099 = vadd.f32 %v2012, %v2067
        %v2100 = vadd.f32 %v2013, %v2068
        %v2101 = vadd.f32 %v2014, %v2069
        %v2102 = vadd.f32 %v2015, %v2070
        %v2103 = vadd.f32 %v2016, %v2071
        %v2104 = vadd.f32 %v2017, %v2072
        %v2105 = vadd.f32 %v2018, %v2073
        %v2106 = vadd.f32 %v2019, %v2074
        %v2107 = vadd.f32 %v2020, %v2075
        %v2108 = vadd.f32 %v2021, %v2076
        %v2109 = vlaneseq
        %v2110 = vshrl.u32 %v2109, 7
        %v2111 = vsub.s32 1, %v2110
        %v2112 = vrot.slane %v1936, %v2111
        %v2113 = vmul.bf16 %v1904, %v2112
        %v2114 = vmul.bf16 %v1905, %v2112
        %v2115 = vmul.bf16 %v1906, %v2112
        %v2116 = vmul.bf16 %v1907, %v2112
        %v2117 = vmul.bf16 %v1908, %v2112
        %v2118 = vmul.bf16 %v1909, %v2112
        %v2119 = vmul.bf16 %v1910, %v2112
        %v2120 = vmul.bf16 %v1911, %v2112
        %v2121 = vmul.bf16 %v1912, %v2112
        %v2122 = vmul.bf16 %v1913, %v2112
        %v2123 = vmul.bf16 %v1914, %v2112
        %v2124 = vmul.bf16 %v1915, %v2112
        %v2125 = vmul.bf16 %v1916, %v2112
        %v2126 = vmul.bf16 %v1917, %v2112
        %v2127 = vmul.bf16 %v1918, %v2112
        %v2128 = vmul.bf16 %v1919, %v2112
        %v2129 = vunpack.c.l.bf16 %v2113
        %v2130 = vunpack.c.h.bf16 %v2113
        %v2131 = vunpack.c.l.bf16 %v2114
        %v2132 = vunpack.c.h.bf16 %v2114
        %v2133 = vunpack.c.l.bf16 %v2115
        %v2134 = vunpack.c.h.bf16 %v2115
        %v2135 = vunpack.c.l.bf16 %v2116
        %v2136 = vunpack.c.h.bf16 %v2116
        %v2137 = vunpack.c.l.bf16 %v2117
        %v2138 = vunpack.c.h.bf16 %v2117
        %v2139 = vunpack.c.l.bf16 %v2118
        %v2140 = vunpack.c.h.bf16 %v2118
        %v2141 = vunpack.c.l.bf16 %v2119
        %v2142 = vunpack.c.h.bf16 %v2119
        %v2143 = vunpack.c.l.bf16 %v2120
        %v2144 = vunpack.c.h.bf16 %v2120
        %v2145 = vunpack.c.l.bf16 %v2121
        %v2146 = vunpack.c.h.bf16 %v2121
        %v2147 = vunpack.c.l.bf16 %v2122
        %v2148 = vunpack.c.h.bf16 %v2122
        %v2149 = vunpack.c.l.bf16 %v2123
        %v2150 = vunpack.c.h.bf16 %v2123
        %v2151 = vunpack.c.l.bf16 %v2124
        %v2152 = vunpack.c.h.bf16 %v2124
        %v2153 = vunpack.c.l.bf16 %v2125
        %v2154 = vunpack.c.h.bf16 %v2125
        %v2155 = vunpack.c.l.bf16 %v2126
        %v2156 = vunpack.c.h.bf16 %v2126
        %v2157 = vunpack.c.l.bf16 %v2127
        %v2158 = vunpack.c.h.bf16 %v2127
        %v2159 = vunpack.c.l.bf16 %v2128
        %v2160 = vunpack.c.h.bf16 %v2128
        %v2161 = vadd.f32 %v2077, %v2129
        %v2162 = vadd.f32 %v2078, %v2130
        %v2163 = vadd.f32 %v2079, %v2131
        %v2164 = vadd.f32 %v2080, %v2132
        %v2165 = vadd.f32 %v2081, %v2133
        %v2166 = vadd.f32 %v2082, %v2134
        %v2167 = vadd.f32 %v2083, %v2135
        %v2168 = vadd.f32 %v2084, %v2136
        %v2169 = vadd.f32 %v2085, %v2137
        %v2170 = vadd.f32 %v2086, %v2138
        %v2171 = vadd.f32 %v2087, %v2139
        %v2172 = vadd.f32 %v2088, %v2140
        %v2173 = vadd.f32 %v2089, %v2141
        %v2174 = vadd.f32 %v2090, %v2142
        %v2175 = vadd.f32 %v2091, %v2143
        %v2176 = vadd.f32 %v2092, %v2144
        %v2177 = vadd.f32 %v2093, %v2145
        %v2178 = vadd.f32 %v2094, %v2146
        %v2179 = vadd.f32 %v2095, %v2147
        %v2180 = vadd.f32 %v2096, %v2148
        %v2181 = vadd.f32 %v2097, %v2149
        %v2182 = vadd.f32 %v2098, %v2150
        %v2183 = vadd.f32 %v2099, %v2151
        %v2184 = vadd.f32 %v2100, %v2152
        %v2185 = vadd.f32 %v2101, %v2153
        %v2186 = vadd.f32 %v2102, %v2154
        %v2187 = vadd.f32 %v2103, %v2155
        %v2188 = vadd.f32 %v2104, %v2156
        %v2189 = vadd.f32 %v2105, %v2157
        %v2190 = vadd.f32 %v2106, %v2158
        %v2191 = vadd.f32 %v2107, %v2159
        %v2192 = vadd.f32 %v2108, %v2160
        %v2194 = vpack.i.b16 %v1926, %v1926
        %v2196 = vlaneseq
        %v2197 = vshrl.u32 %v2196, 7
        %v2198 = vsub.s32 0, %v2197
        %v2199 = vrot.slane %v2194, %v2198
        %v2200 = vmul.bf16 %v1887, %v2199
        %v2201 = vmul.bf16 %v1888, %v2199
        %v2202 = vmul.bf16 %v1889, %v2199
        %v2203 = vmul.bf16 %v1890, %v2199
        %v2204 = vmul.bf16 %v1891, %v2199
        %v2205 = vmul.bf16 %v1892, %v2199
        %v2206 = vmul.bf16 %v1893, %v2199
        %v2207 = vmul.bf16 %v1894, %v2199
        %v2208 = vmul.bf16 %v1895, %v2199
        %v2209 = vmul.bf16 %v1896, %v2199
        %v2210 = vmul.bf16 %v1897, %v2199
        %v2211 = vmul.bf16 %v1898, %v2199
        %v2212 = vmul.bf16 %v1899, %v2199
        %v2213 = vmul.bf16 %v1900, %v2199
        %v2214 = vmul.bf16 %v1901, %v2199
        %v2215 = vmul.bf16 %v1902, %v2199
        %v2216 = vunpack.c.l.bf16 %v2200
        %v2217 = vunpack.c.h.bf16 %v2200
        %v2218 = vunpack.c.l.bf16 %v2201
        %v2219 = vunpack.c.h.bf16 %v2201
        %v2220 = vunpack.c.l.bf16 %v2202
        %v2221 = vunpack.c.h.bf16 %v2202
        %v2222 = vunpack.c.l.bf16 %v2203
        %v2223 = vunpack.c.h.bf16 %v2203
        %v2224 = vunpack.c.l.bf16 %v2204
        %v2225 = vunpack.c.h.bf16 %v2204
        %v2226 = vunpack.c.l.bf16 %v2205
        %v2227 = vunpack.c.h.bf16 %v2205
        %v2228 = vunpack.c.l.bf16 %v2206
        %v2229 = vunpack.c.h.bf16 %v2206
        %v2230 = vunpack.c.l.bf16 %v2207
        %v2231 = vunpack.c.h.bf16 %v2207
        %v2232 = vunpack.c.l.bf16 %v2208
        %v2233 = vunpack.c.h.bf16 %v2208
        %v2234 = vunpack.c.l.bf16 %v2209
        %v2235 = vunpack.c.h.bf16 %v2209
        %v2236 = vunpack.c.l.bf16 %v2210
        %v2237 = vunpack.c.h.bf16 %v2210
        %v2238 = vunpack.c.l.bf16 %v2211
        %v2239 = vunpack.c.h.bf16 %v2211
        %v2240 = vunpack.c.l.bf16 %v2212
        %v2241 = vunpack.c.h.bf16 %v2212
        %v2242 = vunpack.c.l.bf16 %v2213
        %v2243 = vunpack.c.h.bf16 %v2213
        %v2244 = vunpack.c.l.bf16 %v2214
        %v2245 = vunpack.c.h.bf16 %v2214
        %v2246 = vunpack.c.l.bf16 %v2215
        %v2247 = vunpack.c.h.bf16 %v2215
        %v2248 = vadd.f32 %v2161, %v2216
        %v2249 = vadd.f32 %v2162, %v2217
        %v2250 = vadd.f32 %v2163, %v2218
        %v2251 = vadd.f32 %v2164, %v2219
        %v2252 = vadd.f32 %v2165, %v2220
        %v2253 = vadd.f32 %v2166, %v2221
        %v2254 = vadd.f32 %v2167, %v2222
        %v2255 = vadd.f32 %v2168, %v2223
        %v2256 = vadd.f32 %v2169, %v2224
        %v2257 = vadd.f32 %v2170, %v2225
        %v2258 = vadd.f32 %v2171, %v2226
        %v2259 = vadd.f32 %v2172, %v2227
        %v2260 = vadd.f32 %v2173, %v2228
        %v2261 = vadd.f32 %v2174, %v2229
        %v2262 = vadd.f32 %v2175, %v2230
        %v2263 = vadd.f32 %v2176, %v2231
        %v2264 = vadd.f32 %v2177, %v2232
        %v2265 = vadd.f32 %v2178, %v2233
        %v2266 = vadd.f32 %v2179, %v2234
        %v2267 = vadd.f32 %v2180, %v2235
        %v2268 = vadd.f32 %v2181, %v2236
        %v2269 = vadd.f32 %v2182, %v2237
        %v2270 = vadd.f32 %v2183, %v2238
        %v2271 = vadd.f32 %v2184, %v2239
        %v2272 = vadd.f32 %v2185, %v2240
        %v2273 = vadd.f32 %v2186, %v2241
        %v2274 = vadd.f32 %v2187, %v2242
        %v2275 = vadd.f32 %v2188, %v2243
        %v2276 = vadd.f32 %v2189, %v2244
        %v2277 = vadd.f32 %v2190, %v2245
        %v2278 = vadd.f32 %v2191, %v2246
        %v2279 = vadd.f32 %v2192, %v2247
        %v2280 = vshrl.u32 %v1926, 16
        %v2281 = vpack.i.b16 %v2280, %v2280
        %v2283 = vlaneseq
        %v2284 = vshrl.u32 %v2283, 7
        %v2285 = vsub.s32 0, %v2284
        %v2286 = vrot.slane %v2281, %v2285
        %v2287 = vmul.bf16 %v1869, %v2286
        %v2288 = vmul.bf16 %v1870, %v2286
        %v2289 = vmul.bf16 %v1871, %v2286
        %v2290 = vmul.bf16 %v1872, %v2286
        %v2291 = vmul.bf16 %v1873, %v2286
        %v2292 = vmul.bf16 %v1874, %v2286
        %v2293 = vmul.bf16 %v1875, %v2286
        %v2294 = vmul.bf16 %v1876, %v2286
        %v2295 = vmul.bf16 %v1877, %v2286
        %v2296 = vmul.bf16 %v1878, %v2286
        %v2297 = vmul.bf16 %v1879, %v2286
        %v2298 = vmul.bf16 %v1880, %v2286
        %v2299 = vmul.bf16 %v1881, %v2286
        %v2300 = vmul.bf16 %v1882, %v2286
        %v2301 = vmul.bf16 %v1883, %v2286
        %v2302 = vmul.bf16 %v1884, %v2286
        %v2303 = vunpack.c.l.bf16 %v2287
        %v2304 = vunpack.c.h.bf16 %v2287
        %v2305 = vunpack.c.l.bf16 %v2288
        %v2306 = vunpack.c.h.bf16 %v2288
        %v2307 = vunpack.c.l.bf16 %v2289
        %v2308 = vunpack.c.h.bf16 %v2289
        %v2309 = vunpack.c.l.bf16 %v2290
        %v2310 = vunpack.c.h.bf16 %v2290
        %v2311 = vunpack.c.l.bf16 %v2291
        %v2312 = vunpack.c.h.bf16 %v2291
        %v2313 = vunpack.c.l.bf16 %v2292
        %v2314 = vunpack.c.h.bf16 %v2292
        %v2315 = vunpack.c.l.bf16 %v2293
        %v2316 = vunpack.c.h.bf16 %v2293
        %v2317 = vunpack.c.l.bf16 %v2294
        %v2318 = vunpack.c.h.bf16 %v2294
        %v2319 = vunpack.c.l.bf16 %v2295
        %v2320 = vunpack.c.h.bf16 %v2295
        %v2321 = vunpack.c.l.bf16 %v2296
        %v2322 = vunpack.c.h.bf16 %v2296
        %v2323 = vunpack.c.l.bf16 %v2297
        %v2324 = vunpack.c.h.bf16 %v2297
        %v2325 = vunpack.c.l.bf16 %v2298
        %v2326 = vunpack.c.h.bf16 %v2298
        %v2327 = vunpack.c.l.bf16 %v2299
        %v2328 = vunpack.c.h.bf16 %v2299
        %v2329 = vunpack.c.l.bf16 %v2300
        %v2330 = vunpack.c.h.bf16 %v2300
        %v2331 = vunpack.c.l.bf16 %v2301
        %v2332 = vunpack.c.h.bf16 %v2301
        %v2333 = vunpack.c.l.bf16 %v2302
        %v2334 = vunpack.c.h.bf16 %v2302
        %v2335 = vadd.f32 %v2248, %v2303
        %v2336 = vadd.f32 %v2249, %v2304
        %v2337 = vadd.f32 %v2250, %v2305
        %v2338 = vadd.f32 %v2251, %v2306
        %v2339 = vadd.f32 %v2252, %v2307
        %v2340 = vadd.f32 %v2253, %v2308
        %v2341 = vadd.f32 %v2254, %v2309
        %v2342 = vadd.f32 %v2255, %v2310
        %v2343 = vadd.f32 %v2256, %v2311
        %v2344 = vadd.f32 %v2257, %v2312
        %v2345 = vadd.f32 %v2258, %v2313
        %v2346 = vadd.f32 %v2259, %v2314
        %v2347 = vadd.f32 %v2260, %v2315
        %v2348 = vadd.f32 %v2261, %v2316
        %v2349 = vadd.f32 %v2262, %v2317
        %v2350 = vadd.f32 %v2263, %v2318
        %v2351 = vadd.f32 %v2264, %v2319
        %v2352 = vadd.f32 %v2265, %v2320
        %v2353 = vadd.f32 %v2266, %v2321
        %v2354 = vadd.f32 %v2267, %v2322
        %v2355 = vadd.f32 %v2268, %v2323
        %v2356 = vadd.f32 %v2269, %v2324
        %v2357 = vadd.f32 %v2270, %v2325
        %v2358 = vadd.f32 %v2271, %v2326
        %v2359 = vadd.f32 %v2272, %v2327
        %v2360 = vadd.f32 %v2273, %v2328
        %v2361 = vadd.f32 %v2274, %v2329
        %v2362 = vadd.f32 %v2275, %v2330
        %v2363 = vadd.f32 %v2276, %v2331
        %v2364 = vadd.f32 %v2277, %v2332
        %v2365 = vadd.f32 %v2278, %v2333
        %v2366 = vadd.f32 %v2279, %v2334
        %v2367 = vlaneseq
        %v2368 = vshrl.u32 %v2367, 7
        %v2369 = vsub.s32 1, %v2368
        %v2370 = vrot.slane %v2194, %v2369
        %v2371 = vmul.bf16 %v1905, %v2370
        %v2372 = vmul.bf16 %v1906, %v2370
        %v2373 = vmul.bf16 %v1907, %v2370
        %v2374 = vmul.bf16 %v1908, %v2370
        %v2375 = vmul.bf16 %v1909, %v2370
        %v2376 = vmul.bf16 %v1910, %v2370
        %v2377 = vmul.bf16 %v1911, %v2370
        %v2378 = vmul.bf16 %v1912, %v2370
        %v2379 = vmul.bf16 %v1913, %v2370
        %v2380 = vmul.bf16 %v1914, %v2370
        %v2381 = vmul.bf16 %v1915, %v2370
        %v2382 = vmul.bf16 %v1916, %v2370
        %v2383 = vmul.bf16 %v1917, %v2370
        %v2384 = vmul.bf16 %v1918, %v2370
        %v2385 = vmul.bf16 %v1919, %v2370
        %v2386 = vmul.bf16 %v1920, %v2370
        %v2387 = vunpack.c.l.bf16 %v2371
        %v2388 = vunpack.c.h.bf16 %v2371
        %v2389 = vunpack.c.l.bf16 %v2372
        %v2390 = vunpack.c.h.bf16 %v2372
        %v2391 = vunpack.c.l.bf16 %v2373
        %v2392 = vunpack.c.h.bf16 %v2373
        %v2393 = vunpack.c.l.bf16 %v2374
        %v2394 = vunpack.c.h.bf16 %v2374
        %v2395 = vunpack.c.l.bf16 %v2375
        %v2396 = vunpack.c.h.bf16 %v2375
        %v2397 = vunpack.c.l.bf16 %v2376
        %v2398 = vunpack.c.h.bf16 %v2376
        %v2399 = vunpack.c.l.bf16 %v2377
        %v2400 = vunpack.c.h.bf16 %v2377
        %v2401 = vunpack.c.l.bf16 %v2378
        %v2402 = vunpack.c.h.bf16 %v2378
        %v2403 = vunpack.c.l.bf16 %v2379
        %v2404 = vunpack.c.h.bf16 %v2379
        %v2405 = vunpack.c.l.bf16 %v2380
        %v2406 = vunpack.c.h.bf16 %v2380
        %v2407 = vunpack.c.l.bf16 %v2381
        %v2408 = vunpack.c.h.bf16 %v2381
        %v2409 = vunpack.c.l.bf16 %v2382
        %v2410 = vunpack.c.h.bf16 %v2382
        %v2411 = vunpack.c.l.bf16 %v2383
        %v2412 = vunpack.c.h.bf16 %v2383
        %v2413 = vunpack.c.l.bf16 %v2384
        %v2414 = vunpack.c.h.bf16 %v2384
        %v2415 = vunpack.c.l.bf16 %v2385
        %v2416 = vunpack.c.h.bf16 %v2385
        %v2417 = vunpack.c.l.bf16 %v2386
        %v2418 = vunpack.c.h.bf16 %v2386
        %v2419 = vadd.f32 %v2335, %v2387
        %v2420 = vadd.f32 %v2336, %v2388
        %v2421 = vadd.f32 %v2337, %v2389
        %v2422 = vadd.f32 %v2338, %v2390
        %v2423 = vadd.f32 %v2339, %v2391
        %v2424 = vadd.f32 %v2340, %v2392
        %v2425 = vadd.f32 %v2341, %v2393
        %v2426 = vadd.f32 %v2342, %v2394
        %v2427 = vadd.f32 %v2343, %v2395
        %v2428 = vadd.f32 %v2344, %v2396
        %v2429 = vadd.f32 %v2345, %v2397
        %v2430 = vadd.f32 %v2346, %v2398
        %v2431 = vadd.f32 %v2347, %v2399
        %v2432 = vadd.f32 %v2348, %v2400
        %v2433 = vadd.f32 %v2349, %v2401
        %v2434 = vadd.f32 %v2350, %v2402
        %v2435 = vadd.f32 %v2351, %v2403
        %v2436 = vadd.f32 %v2352, %v2404
        %v2437 = vadd.f32 %v2353, %v2405
        %v2438 = vadd.f32 %v2354, %v2406
        %v2439 = vadd.f32 %v2355, %v2407
        %v2440 = vadd.f32 %v2356, %v2408
        %v2441 = vadd.f32 %v2357, %v2409
        %v2442 = vadd.f32 %v2358, %v2410
        %v2443 = vadd.f32 %v2359, %v2411
        %v2444 = vadd.f32 %v2360, %v2412
        %v2445 = vadd.f32 %v2361, %v2413
        %v2446 = vadd.f32 %v2362, %v2414
        %v2447 = vadd.f32 %v2363, %v2415
        %v2448 = vadd.f32 %v2364, %v2416
        %v2449 = vadd.f32 %v2365, %v2417
        %v2450 = vadd.f32 %v2366, %v2418
        %v2452 = vpack.i.b16 %v1927, %v1927
        %v2454 = vlaneseq
        %v2455 = vshrl.u32 %v2454, 7
        %v2456 = vsub.s32 0, %v2455
        %v2457 = vrot.slane %v2452, %v2456
        %v2458 = vmul.bf16 %v1888, %v2457
        %v2459 = vmul.bf16 %v1889, %v2457
        %v2460 = vmul.bf16 %v1890, %v2457
        %v2461 = vmul.bf16 %v1891, %v2457
        %v2462 = vmul.bf16 %v1892, %v2457
        %v2463 = vmul.bf16 %v1893, %v2457
        %v2464 = vmul.bf16 %v1894, %v2457
        %v2465 = vmul.bf16 %v1895, %v2457
        %v2466 = vmul.bf16 %v1896, %v2457
        %v2467 = vmul.bf16 %v1897, %v2457
        %v2468 = vmul.bf16 %v1898, %v2457
        %v2469 = vmul.bf16 %v1899, %v2457
        %v2470 = vmul.bf16 %v1900, %v2457
        %v2471 = vmul.bf16 %v1901, %v2457
        %v2472 = vmul.bf16 %v1902, %v2457
        %v2473 = vmul.bf16 %v1903, %v2457
        %v2474 = vunpack.c.l.bf16 %v2458
        %v2475 = vunpack.c.h.bf16 %v2458
        %v2476 = vunpack.c.l.bf16 %v2459
        %v2477 = vunpack.c.h.bf16 %v2459
        %v2478 = vunpack.c.l.bf16 %v2460
        %v2479 = vunpack.c.h.bf16 %v2460
        %v2480 = vunpack.c.l.bf16 %v2461
        %v2481 = vunpack.c.h.bf16 %v2461
        %v2482 = vunpack.c.l.bf16 %v2462
        %v2483 = vunpack.c.h.bf16 %v2462
        %v2484 = vunpack.c.l.bf16 %v2463
        %v2485 = vunpack.c.h.bf16 %v2463
        %v2486 = vunpack.c.l.bf16 %v2464
        %v2487 = vunpack.c.h.bf16 %v2464
        %v2488 = vunpack.c.l.bf16 %v2465
        %v2489 = vunpack.c.h.bf16 %v2465
        %v2490 = vunpack.c.l.bf16 %v2466
        %v2491 = vunpack.c.h.bf16 %v2466
        %v2492 = vunpack.c.l.bf16 %v2467
        %v2493 = vunpack.c.h.bf16 %v2467
        %v2494 = vunpack.c.l.bf16 %v2468
        %v2495 = vunpack.c.h.bf16 %v2468
        %v2496 = vunpack.c.l.bf16 %v2469
        %v2497 = vunpack.c.h.bf16 %v2469
        %v2498 = vunpack.c.l.bf16 %v2470
        %v2499 = vunpack.c.h.bf16 %v2470
        %v2500 = vunpack.c.l.bf16 %v2471
        %v2501 = vunpack.c.h.bf16 %v2471
        %v2502 = vunpack.c.l.bf16 %v2472
        %v2503 = vunpack.c.h.bf16 %v2472
        %v2504 = vunpack.c.l.bf16 %v2473
        %v2505 = vunpack.c.h.bf16 %v2473
        %v2506 = vadd.f32 %v2419, %v2474
        %v2507 = vadd.f32 %v2420, %v2475
        %v2508 = vadd.f32 %v2421, %v2476
        %v2509 = vadd.f32 %v2422, %v2477
        %v2510 = vadd.f32 %v2423, %v2478
        %v2511 = vadd.f32 %v2424, %v2479
        %v2512 = vadd.f32 %v2425, %v2480
        %v2513 = vadd.f32 %v2426, %v2481
        %v2514 = vadd.f32 %v2427, %v2482
        %v2515 = vadd.f32 %v2428, %v2483
        %v2516 = vadd.f32 %v2429, %v2484
        %v2517 = vadd.f32 %v2430, %v2485
        %v2518 = vadd.f32 %v2431, %v2486
        %v2519 = vadd.f32 %v2432, %v2487
        %v2520 = vadd.f32 %v2433, %v2488
        %v2521 = vadd.f32 %v2434, %v2489
        %v2522 = vadd.f32 %v2435, %v2490
        %v2523 = vadd.f32 %v2436, %v2491
        %v2524 = vadd.f32 %v2437, %v2492
        %v2525 = vadd.f32 %v2438, %v2493
        %v2526 = vadd.f32 %v2439, %v2494
        %v2527 = vadd.f32 %v2440, %v2495
        %v2528 = vadd.f32 %v2441, %v2496
        %v2529 = vadd.f32 %v2442, %v2497
        %v2530 = vadd.f32 %v2443, %v2498
        %v2531 = vadd.f32 %v2444, %v2499
        %v2532 = vadd.f32 %v2445, %v2500
        %v2533 = vadd.f32 %v2446, %v2501
        %v2534 = vadd.f32 %v2447, %v2502
        %v2535 = vadd.f32 %v2448, %v2503
        %v2536 = vadd.f32 %v2449, %v2504
        %v2537 = vadd.f32 %v2450, %v2505
        %v2538 = vshrl.u32 %v1927, 16
        %v2539 = vpack.i.b16 %v2538, %v2538
        %v2541 = vlaneseq
        %v2542 = vshrl.u32 %v2541, 7
        %v2543 = vsub.s32 0, %v2542
        %v2544 = vrot.slane %v2539, %v2543
        %v2545 = vmul.bf16 %v1870, %v2544
        %v2546 = vmul.bf16 %v1871, %v2544
        %v2547 = vmul.bf16 %v1872, %v2544
        %v2548 = vmul.bf16 %v1873, %v2544
        %v2549 = vmul.bf16 %v1874, %v2544
        %v2550 = vmul.bf16 %v1875, %v2544
        %v2551 = vmul.bf16 %v1876, %v2544
        %v2552 = vmul.bf16 %v1877, %v2544
        %v2553 = vmul.bf16 %v1878, %v2544
        %v2554 = vmul.bf16 %v1879, %v2544
        %v2555 = vmul.bf16 %v1880, %v2544
        %v2556 = vmul.bf16 %v1881, %v2544
        %v2557 = vmul.bf16 %v1882, %v2544
        %v2558 = vmul.bf16 %v1883, %v2544
        %v2559 = vmul.bf16 %v1884, %v2544
        %v2560 = vmul.bf16 %v1885, %v2544
        %v2561 = vunpack.c.l.bf16 %v2545
        %v2562 = vunpack.c.h.bf16 %v2545
        %v2563 = vunpack.c.l.bf16 %v2546
        %v2564 = vunpack.c.h.bf16 %v2546
        %v2565 = vunpack.c.l.bf16 %v2547
        %v2566 = vunpack.c.h.bf16 %v2547
        %v2567 = vunpack.c.l.bf16 %v2548
        %v2568 = vunpack.c.h.bf16 %v2548
        %v2569 = vunpack.c.l.bf16 %v2549
        %v2570 = vunpack.c.h.bf16 %v2549
        %v2571 = vunpack.c.l.bf16 %v2550
        %v2572 = vunpack.c.h.bf16 %v2550
        %v2573 = vunpack.c.l.bf16 %v2551
        %v2574 = vunpack.c.h.bf16 %v2551
        %v2575 = vunpack.c.l.bf16 %v2552
        %v2576 = vunpack.c.h.bf16 %v2552
        %v2577 = vunpack.c.l.bf16 %v2553
        %v2578 = vunpack.c.h.bf16 %v2553
        %v2579 = vunpack.c.l.bf16 %v2554
        %v2580 = vunpack.c.h.bf16 %v2554
        %v2581 = vunpack.c.l.bf16 %v2555
        %v2582 = vunpack.c.h.bf16 %v2555
        %v2583 = vunpack.c.l.bf16 %v2556
        %v2584 = vunpack.c.h.bf16 %v2556
        %v2585 = vunpack.c.l.bf16 %v2557
        %v2586 = vunpack.c.h.bf16 %v2557
        %v2587 = vunpack.c.l.bf16 %v2558
        %v2588 = vunpack.c.h.bf16 %v2558
        %v2589 = vunpack.c.l.bf16 %v2559
        %v2590 = vunpack.c.h.bf16 %v2559
        %v2591 = vunpack.c.l.bf16 %v2560
        %v2592 = vunpack.c.h.bf16 %v2560
        %v2593 = vadd.f32 %v2506, %v2561
        %v2594 = vadd.f32 %v2507, %v2562
        %v2595 = vadd.f32 %v2508, %v2563
        %v2596 = vadd.f32 %v2509, %v2564
        %v2597 = vadd.f32 %v2510, %v2565
        %v2598 = vadd.f32 %v2511, %v2566
        %v2599 = vadd.f32 %v2512, %v2567
        %v2600 = vadd.f32 %v2513, %v2568
        %v2601 = vadd.f32 %v2514, %v2569
        %v2602 = vadd.f32 %v2515, %v2570
        %v2603 = vadd.f32 %v2516, %v2571
        %v2604 = vadd.f32 %v2517, %v2572
        %v2605 = vadd.f32 %v2518, %v2573
        %v2606 = vadd.f32 %v2519, %v2574
        %v2607 = vadd.f32 %v2520, %v2575
        %v2608 = vadd.f32 %v2521, %v2576
        %v2609 = vadd.f32 %v2522, %v2577
        %v2610 = vadd.f32 %v2523, %v2578
        %v2611 = vadd.f32 %v2524, %v2579
        %v2612 = vadd.f32 %v2525, %v2580
        %v2613 = vadd.f32 %v2526, %v2581
        %v2614 = vadd.f32 %v2527, %v2582
        %v2615 = vadd.f32 %v2528, %v2583
        %v2616 = vadd.f32 %v2529, %v2584
        %v2617 = vadd.f32 %v2530, %v2585
        %v2618 = vadd.f32 %v2531, %v2586
        %v2619 = vadd.f32 %v2532, %v2587
        %v2620 = vadd.f32 %v2533, %v2588
        %v2621 = vadd.f32 %v2534, %v2589
        %v2622 = vadd.f32 %v2535, %v2590
        %v2623 = vadd.f32 %v2536, %v2591
        %v2624 = vadd.f32 %v2537, %v2592
        %v2625 = vlaneseq
        %v2626 = vshrl.u32 %v2625, 7
        %v2627 = vsub.s32 1, %v2626
        %v2628 = vrot.slane %v2452, %v2627
        %v2629 = vmul.bf16 %v1906, %v2628
        %v2630 = vmul.bf16 %v1907, %v2628
        %v2631 = vmul.bf16 %v1908, %v2628
        %v2632 = vmul.bf16 %v1909, %v2628
        %v2633 = vmul.bf16 %v1910, %v2628
        %v2634 = vmul.bf16 %v1911, %v2628
        %v2635 = vmul.bf16 %v1912, %v2628
        %v2636 = vmul.bf16 %v1913, %v2628
        %v2637 = vmul.bf16 %v1914, %v2628
        %v2638 = vmul.bf16 %v1915, %v2628
        %v2639 = vmul.bf16 %v1916, %v2628
        %v2640 = vmul.bf16 %v1917, %v2628
        %v2641 = vmul.bf16 %v1918, %v2628
        %v2642 = vmul.bf16 %v1919, %v2628
        %v2643 = vmul.bf16 %v1920, %v2628
        %v2644 = vmul.bf16 %v1921, %v2628
        %v2645 = vunpack.c.l.bf16 %v2629
        %v2646 = vunpack.c.h.bf16 %v2629
        %v2647 = vunpack.c.l.bf16 %v2630
        %v2648 = vunpack.c.h.bf16 %v2630
        %v2649 = vunpack.c.l.bf16 %v2631
        %v2650 = vunpack.c.h.bf16 %v2631
        %v2651 = vunpack.c.l.bf16 %v2632
        %v2652 = vunpack.c.h.bf16 %v2632
        %v2653 = vunpack.c.l.bf16 %v2633
        %v2654 = vunpack.c.h.bf16 %v2633
        %v2655 = vunpack.c.l.bf16 %v2634
        %v2656 = vunpack.c.h.bf16 %v2634
        %v2657 = vunpack.c.l.bf16 %v2635
        %v2658 = vunpack.c.h.bf16 %v2635
        %v2659 = vunpack.c.l.bf16 %v2636
        %v2660 = vunpack.c.h.bf16 %v2636
        %v2661 = vunpack.c.l.bf16 %v2637
        %v2662 = vunpack.c.h.bf16 %v2637
        %v2663 = vunpack.c.l.bf16 %v2638
        %v2664 = vunpack.c.h.bf16 %v2638
        %v2665 = vunpack.c.l.bf16 %v2639
        %v2666 = vunpack.c.h.bf16 %v2639
        %v2667 = vunpack.c.l.bf16 %v2640
        %v2668 = vunpack.c.h.bf16 %v2640
        %v2669 = vunpack.c.l.bf16 %v2641
        %v2670 = vunpack.c.h.bf16 %v2641
        %v2671 = vunpack.c.l.bf16 %v2642
        %v2672 = vunpack.c.h.bf16 %v2642
        %v2673 = vunpack.c.l.bf16 %v2643
        %v2674 = vunpack.c.h.bf16 %v2643
        %v2675 = vunpack.c.l.bf16 %v2644
        %v2676 = vunpack.c.h.bf16 %v2644
        %v2677 = vadd.f32 %v2593, %v2645
        %v2678 = vadd.f32 %v2594, %v2646
        %v2679 = vadd.f32 %v2595, %v2647
        %v2680 = vadd.f32 %v2596, %v2648
        %v2681 = vadd.f32 %v2597, %v2649
        %v2682 = vadd.f32 %v2598, %v2650
        %v2683 = vadd.f32 %v2599, %v2651
        %v2684 = vadd.f32 %v2600, %v2652
        %v2685 = vadd.f32 %v2601, %v2653
        %v2686 = vadd.f32 %v2602, %v2654
        %v2687 = vadd.f32 %v2603, %v2655
        %v2688 = vadd.f32 %v2604, %v2656
        %v2689 = vadd.f32 %v2605, %v2657
        %v2690 = vadd.f32 %v2606, %v2658
        %v2691 = vadd.f32 %v2607, %v2659
        %v2692 = vadd.f32 %v2608, %v2660
        %v2693 = vadd.f32 %v2609, %v2661
        %v2694 = vadd.f32 %v2610, %v2662
        %v2695 = vadd.f32 %v2611, %v2663
        %v2696 = vadd.f32 %v2612, %v2664
        %v2697 = vadd.f32 %v2613, %v2665
        %v2698 = vadd.f32 %v2614, %v2666
        %v2699 = vadd.f32 %v2615, %v2667
        %v2700 = vadd.f32 %v2616, %v2668
        %v2701 = vadd.f32 %v2617, %v2669
        %v2702 = vadd.f32 %v2618, %v2670
        %v2703 = vadd.f32 %v2619, %v2671
        %v2704 = vadd.f32 %v2620, %v2672
        %v2705 = vadd.f32 %v2621, %v2673
        %v2706 = vadd.f32 %v2622, %v2674
        %v2707 = vadd.f32 %v2623, %v2675
        %v2708 = vadd.f32 %v2624, %v2676
        %v2709 = vmax.f32 %v2677, 0.0
        %v2710 = vmax.f32 %v2678, 0.0
        %v2711 = vmax.f32 %v2679, 0.0
        %v2712 = vmax.f32 %v2680, 0.0
        %v2713 = vmax.f32 %v2681, 0.0
        %v2714 = vmax.f32 %v2682, 0.0
        %v2715 = vmax.f32 %v2683, 0.0
        %v2716 = vmax.f32 %v2684, 0.0
        %v2717 = vmax.f32 %v2685, 0.0
        %v2718 = vmax.f32 %v2686, 0.0
        %v2719 = vmax.f32 %v2687, 0.0
        %v2720 = vmax.f32 %v2688, 0.0
        %v2721 = vmax.f32 %v2689, 0.0
        %v2722 = vmax.f32 %v2690, 0.0
        %v2723 = vmax.f32 %v2691, 0.0
        %v2724 = vmax.f32 %v2692, 0.0
        %v2725 = vmax.f32 %v2693, 0.0
        %v2726 = vmax.f32 %v2694, 0.0
        %v2727 = vmax.f32 %v2695, 0.0
        %v2728 = vmax.f32 %v2696, 0.0
        %v2729 = vmax.f32 %v2697, 0.0
        %v2730 = vmax.f32 %v2698, 0.0
        %v2731 = vmax.f32 %v2699, 0.0
        %v2732 = vmax.f32 %v2700, 0.0
        %v2733 = vmax.f32 %v2701, 0.0
        %v2734 = vmax.f32 %v2702, 0.0
        %v2735 = vmax.f32 %v2703, 0.0
        %v2736 = vmax.f32 %v2704, 0.0
        %v2737 = vmax.f32 %v2705, 0.0
        %v2738 = vmax.f32 %v2706, 0.0
        %v2739 = vmax.f32 %v2707, 0.0
        %v2740 = vmax.f32 %v2708, 0.0
        %v2741 = vpack.c.bf16 %v2710, %v2709
        %v2742 = vpack.c.bf16 %v2712, %v2711
        %v2743 = vpack.c.bf16 %v2714, %v2713
        %v2744 = vpack.c.bf16 %v2716, %v2715
        %v2745 = vpack.c.bf16 %v2718, %v2717
        %v2746 = vpack.c.bf16 %v2720, %v2719
        %v2747 = vpack.c.bf16 %v2722, %v2721
        %v2748 = vpack.c.bf16 %v2724, %v2723
        %v2749 = vpack.c.bf16 %v2726, %v2725
        %v2750 = vpack.c.bf16 %v2728, %v2727
        %v2751 = vpack.c.bf16 %v2730, %v2729
        %v2752 = vpack.c.bf16 %v2732, %v2731
        %v2753 = vpack.c.bf16 %v2734, %v2733
        %v2754 = vpack.c.bf16 %v2736, %v2735
        %v2755 = vpack.c.bf16 %v2738, %v2737
        %v2756 = vpack.c.bf16 %v2740, %v2739
        %v2757 = vld [vmem:[#allocation11] sm:$0xf]
        %v2758 = vld [vmem:[#allocation11 + $0x4] sm:$0xf]
        %v2759 = vld [vmem:[#allocation11 + $0x8] sm:$0xf]
        %v2760 = vld [vmem:[#allocation11 + $0xc] sm:$0xf]
        %v2761 = vld [vmem:[#allocation11 + $0x10] sm:$0xf]
        %v2762 = vld [vmem:[#allocation11 + $0x14] sm:$0xf]
        %v2763 = vld [vmem:[#allocation11 + $0x18] sm:$0xf]
        %v2764 = vld [vmem:[#allocation11 + $0x1c] sm:$0xf]
        %v2765 = vld [vmem:[#allocation11 + $0x20] sm:$0xf]
        %v2766 = vld [vmem:[#allocation11 + $0x24] sm:$0xf]
        %v2767 = vld [vmem:[#allocation11 + $0x28] sm:$0xf]
        %v2768 = vld [vmem:[#allocation11 + $0x2c] sm:$0xf]
        %v2769 = vld [vmem:[#allocation11 + $0x30] sm:$0xf]
        %v2770 = vld [vmem:[#allocation11 + $0x34] sm:$0xf]
        %v2771 = vld [vmem:[#allocation11 + $0x38] sm:$0xf]
        %v2772 = vld [vmem:[#allocation11 + $0x3c] sm:$0xf]
        %v2773 = vld [vmem:[%s8] sm:$0x1]
        %v2775 = vlaneseq
        %v2776 = vshrl.u32 %v2775, 7
        %v2777 = vsub.s32 0, %v2776
        %v2778 = vrot.slane %v2773, %v2777
        %v2796 = vunpack.c.l.b16 %v2757
        %v2797 = vunpack.c.l.b16 %v2758
        %v2798 = vunpack.c.l.b16 %v2759
        %v2799 = vunpack.c.l.b16 %v2760
        %v2800 = vunpack.c.l.b16 %v2761
        %v2801 = vunpack.c.l.b16 %v2762
        %v2802 = vunpack.c.l.b16 %v2763
        %v2803 = vunpack.c.l.b16 %v2764
        %v2804 = vunpack.c.l.b16 %v2765
        %v2805 = vunpack.c.l.b16 %v2766
        %v2806 = vunpack.c.l.b16 %v2767
        %v2807 = vunpack.c.l.b16 %v2768
        %v2808 = vunpack.c.l.b16 %v2769
        %v2809 = vunpack.c.l.b16 %v2770
        %v2810 = vunpack.c.l.b16 %v2771
        %v2811 = vunpack.c.l.b16 %v2772
        %v2812 = vpack.c.b16 %v2797, %v2796
        %v2813 = vpack.c.b16 %v2799, %v2798
        %v2814 = vpack.c.b16 %v2801, %v2800
        %v2815 = vpack.c.b16 %v2803, %v2802
        %v2816 = vpack.c.b16 %v2805, %v2804
        %v2817 = vpack.c.b16 %v2807, %v2806
        %v2818 = vpack.c.b16 %v2809, %v2808
        %v2819 = vpack.c.b16 %v2811, %v2810
        %2828 = vmatprep.subr.bf16.mxu0 0
        %2829 = vmatpush1.bf16.msra.mxu0 %v2819
        %2830 = vmatprep.subr.bf16.mxu0 0
        %2831 = vmatpush1.bf16.msra.mxu0 %v2818
        %2832 = vmatprep.subr.bf16.mxu0 0
        %2833 = vmatpush1.bf16.msra.mxu0 %v2817
        %2834 = vmatprep.subr.bf16.mxu0 0
        %2835 = vmatpush1.bf16.msra.mxu0 %v2816
        %2836 = vmatprep.subr.bf16.mxu0 0
        %2837 = vmatpush1.bf16.msra.mxu0 %v2815
        %2838 = vmatprep.subr.bf16.mxu0 0
        %2839 = vmatpush1.bf16.msra.mxu0 %v2814
        %2840 = vmatprep.subr.bf16.mxu0 0
        %2841 = vmatpush1.bf16.msra.mxu0 %v2813
        %2842 = vmatprep.subr.bf16.mxu0 0
        %2843 = vmatpush1.bf16.msra.mxu0 %v2812
        %2844 = vmatprep.subr.bf16.mxu0 0
        %2845 = vmatpush2.bf16.msra.mxu0 0
        %2846 = vmatprep.subr.bf16.mxu0 0
        %2847 = vmatpush2.bf16.msra.mxu0 0
        %2848 = vmatprep.subr.bf16.mxu0 0
        %2849 = vmatpush2.bf16.msra.mxu0 0
        %2850 = vmatprep.subr.bf16.mxu0 0
        %2851 = vmatpush2.bf16.msra.mxu0 0
        %2852 = vmatprep.subr.bf16.mxu0 0
        %2853 = vmatpush2.bf16.msra.mxu0 0
        %2854 = vmatprep.subr.bf16.mxu0 0
        %2855 = vmatpush2.bf16.msra.mxu0 0
        %2856 = vmatprep.subr.bf16.mxu0 0
        %2857 = vmatpush2.bf16.msra.mxu0 0
        %2858 = vmatprep.subr.bf16.mxu0 0
        %2859 = vmatpush2.bf16.msra.mxu0 0
        %2860 = vmatprep.mubr.bf16.mxu0 0
        %2861 = vmatmul.mubr.bf16.gmra.mxu0 %v2741
        %v2862 = vpop.f32.mrf.mxu0
        %v2863 = vadd.f32 %v2778, %v2862
        %v2864 = vpop.f32.mrf.mxu0
        %v2865 = vpop.f32.mrf.mxu0
        %v2866 = vadd.f32 %v2778, %v2865
        %v2867 = vpop.f32.mrf.mxu0
        %2868 = vmatprep.mubr.bf16.mxu0 0
        %2869 = vmatmul.mubr.bf16.gmra.mxu0 %v2742
        %v2870 = vpop.f32.mrf.mxu0
        %v2871 = vadd.f32 %v2778, %v2870
        %v2872 = vpop.f32.mrf.mxu0
        %v2873 = vpop.f32.mrf.mxu0
        %v2874 = vadd.f32 %v2778, %v2873
        %v2875 = vpop.f32.mrf.mxu0
        %2876 = vmatprep.mubr.bf16.mxu0 0
        %2877 = vmatmul.mubr.bf16.gmra.mxu0 %v2743
        %v2878 = vpop.f32.mrf.mxu0
        %v2879 = vadd.f32 %v2778, %v2878
        %v2880 = vpop.f32.mrf.mxu0
        %v2881 = vpop.f32.mrf.mxu0
        %v2882 = vadd.f32 %v2778, %v2881
        %v2883 = vpop.f32.mrf.mxu0
        %2884 = vmatprep.mubr.bf16.mxu0 0
        %2885 = vmatmul.mubr.bf16.gmra.mxu0 %v2744
        %v2886 = vpop.f32.mrf.mxu0
        %v2887 = vadd.f32 %v2778, %v2886
        %v2888 = vpop.f32.mrf.mxu0
        %v2889 = vpop.f32.mrf.mxu0
        %v2890 = vadd.f32 %v2778, %v2889
        %v2891 = vpop.f32.mrf.mxu0
        %2892 = vmatprep.mubr.bf16.mxu0 0
        %2893 = vmatmul.mubr.bf16.gmra.mxu0 %v2745
        %v2894 = vpop.f32.mrf.mxu0
        %v2895 = vadd.f32 %v2778, %v2894
        %v2896 = vpop.f32.mrf.mxu0
        %v2897 = vpop.f32.mrf.mxu0
        %v2898 = vadd.f32 %v2778, %v2897
        %v2899 = vpop.f32.mrf.mxu0
        %2900 = vmatprep.mubr.bf16.mxu0 0
        %2901 = vmatmul.mubr.bf16.gmra.mxu0 %v2746
        %v2902 = vpop.f32.mrf.mxu0
        %v2903 = vadd.f32 %v2778, %v2902
        %v2904 = vpop.f32.mrf.mxu0
        %v2905 = vpop.f32.mrf.mxu0
        %v2906 = vadd.f32 %v2778, %v2905
        %v2907 = vpop.f32.mrf.mxu0
        %2908 = vmatprep.mubr.bf16.mxu0 0
        %2909 = vmatmul.mubr.bf16.gmra.mxu0 %v2747
        %v2910 = vpop.f32.mrf.mxu0
        %v2911 = vadd.f32 %v2778, %v2910
        %v2912 = vpop.f32.mrf.mxu0
        %v2913 = vpop.f32.mrf.mxu0
        %v2914 = vadd.f32 %v2778, %v2913
        %v2915 = vpop.f32.mrf.mxu0
        %2916 = vmatprep.mubr.bf16.mxu0 0
        %2917 = vmatmul.mubr.bf16.gmra.mxu0 %v2748
        %v2918 = vpop.f32.mrf.mxu0
        %v2919 = vadd.f32 %v2778, %v2918
        %v2920 = vpop.f32.mrf.mxu0
        %v2921 = vpop.f32.mrf.mxu0
        %v2922 = vadd.f32 %v2778, %v2921
        %v2923 = vpop.f32.mrf.mxu0
        %2924 = vmatprep.mubr.bf16.mxu0 0
        %2925 = vmatmul.mubr.bf16.gmra.mxu0 %v2749
        %v2926 = vpop.f32.mrf.mxu0
        %v2927 = vadd.f32 %v2778, %v2926
        %v2928 = vpop.f32.mrf.mxu0
        %v2929 = vpop.f32.mrf.mxu0
        %v2930 = vadd.f32 %v2778, %v2929
        %v2931 = vpop.f32.mrf.mxu0
        %2932 = vmatprep.mubr.bf16.mxu0 0
        %2933 = vmatmul.mubr.bf16.gmra.mxu0 %v2750
        %v2934 = vpop.f32.mrf.mxu0
        %v2935 = vadd.f32 %v2778, %v2934
        %v2936 = vpop.f32.mrf.mxu0
        %v2937 = vpop.f32.mrf.mxu0
        %v2938 = vadd.f32 %v2778, %v2937
        %v2939 = vpop.f32.mrf.mxu0
        %2940 = vmatprep.mubr.bf16.mxu0 0
        %2941 = vmatmul.mubr.bf16.gmra.mxu0 %v2751
        %v2942 = vpop.f32.mrf.mxu0
        %v2943 = vadd.f32 %v2778, %v2942
        %v2944 = vpop.f32.mrf.mxu0
        %v2945 = vpop.f32.mrf.mxu0
        %v2946 = vadd.f32 %v2778, %v2945
        %v2947 = vpop.f32.mrf.mxu0
        %2948 = vmatprep.mubr.bf16.mxu0 0
        %2949 = vmatmul.mubr.bf16.gmra.mxu0 %v2752
        %v2950 = vpop.f32.mrf.mxu0
        %v2951 = vadd.f32 %v2778, %v2950
        %v2952 = vpop.f32.mrf.mxu0
        %v2953 = vpop.f32.mrf.mxu0
        %v2954 = vadd.f32 %v2778, %v2953
        %v2955 = vpop.f32.mrf.mxu0
        %2956 = vmatprep.mubr.bf16.mxu0 0
        %2957 = vmatmul.mubr.bf16.gmra.mxu0 %v2753
        %v2958 = vpop.f32.mrf.mxu0
        %v2959 = vadd.f32 %v2778, %v2958
        %v2960 = vpop.f32.mrf.mxu0
        %v2961 = vpop.f32.mrf.mxu0
        %v2962 = vadd.f32 %v2778, %v2961
        %v2963 = vpop.f32.mrf.mxu0
        %2964 = vmatprep.mubr.bf16.mxu0 0
        %2965 = vmatmul.mubr.bf16.gmra.mxu0 %v2754
        %v2966 = vpop.f32.mrf.mxu0
        %v2967 = vadd.f32 %v2778, %v2966
        %v2968 = vpop.f32.mrf.mxu0
        %v2969 = vpop.f32.mrf.mxu0
        %v2970 = vadd.f32 %v2778, %v2969
        %v2971 = vpop.f32.mrf.mxu0
        %2972 = vmatprep.mubr.bf16.mxu0 0
        %2973 = vmatmul.mubr.bf16.gmra.mxu0 %v2755
        %v2974 = vpop.f32.mrf.mxu0
        %v2975 = vadd.f32 %v2778, %v2974
        %v2976 = vpop.f32.mrf.mxu0
        %v2977 = vpop.f32.mrf.mxu0
        %v2978 = vadd.f32 %v2778, %v2977
        %v2979 = vpop.f32.mrf.mxu0
        %2980 = vmatprep.mubr.bf16.mxu0 0
        %2981 = vmatmul.mubr.bf16.gmra.mxu0 %v2756
        %v2982 = vpop.f32.mrf.mxu0
        %v2983 = vadd.f32 %v2778, %v2982
        %v2984 = vpop.f32.mrf.mxu0
        %v2985 = vpop.f32.mrf.mxu0
        %v2986 = vadd.f32 %v2778, %v2985
        %v2987 = vpop.f32.mrf.mxu0
        %2988 = vdwg.mxu0
        %v2989 = vadd.f32 %v2863, %v588
        %v2990 = vadd.f32 %v2866, %v589
        %v2991 = vadd.f32 %v2871, %v590
        %v2992 = vadd.f32 %v2874, %v591
        %v2993 = vadd.f32 %v2879, %v592
        %v2994 = vadd.f32 %v2882, %v593
        %v2995 = vadd.f32 %v2887, %v594
        %v2996 = vadd.f32 %v2890, %v595
        %v2997 = vadd.f32 %v2895, %v596
        %v2998 = vadd.f32 %v2898, %v597
        %v2999 = vadd.f32 %v2903, %v598
        %v3000 = vadd.f32 %v2906, %v599
        %v3001 = vadd.f32 %v2911, %v600
        %v3002 = vadd.f32 %v2914, %v601
        %v3003 = vadd.f32 %v2919, %v602
        %v3004 = vadd.f32 %v2922, %v603
        %v3005 = vadd.f32 %v2927, %v604
        %v3006 = vadd.f32 %v2930, %v605
        %v3007 = vadd.f32 %v2935, %v606
        %v3008 = vadd.f32 %v2938, %v607
        %v3009 = vadd.f32 %v2943, %v608
        %v3010 = vadd.f32 %v2946, %v609
        %v3011 = vadd.f32 %v2951, %v610
        %v3012 = vadd.f32 %v2954, %v611
        %v3013 = vadd.f32 %v2959, %v612
        %v3014 = vadd.f32 %v2962, %v613
        %v3015 = vadd.f32 %v2967, %v614
        %v3016 = vadd.f32 %v2970, %v615
        %v3017 = vadd.f32 %v2975, %v616
        %v3018 = vadd.f32 %v2978, %v617
        %v3019 = vadd.f32 %v2983, %v618
        %v3020 = vadd.f32 %v2986, %v619
        %v3021 = vmax.f32 %v2989, 0.0
        %v3022 = vmax.f32 %v2990, 0.0
        %v3023 = vmax.f32 %v2991, 0.0
        %v3024 = vmax.f32 %v2992, 0.0
        %v3025 = vmax.f32 %v2993, 0.0
        %v3026 = vmax.f32 %v2994, 0.0
        %v3027 = vmax.f32 %v2995, 0.0
        %v3028 = vmax.f32 %v2996, 0.0
        %v3029 = vmax.f32 %v2997, 0.0
        %v3030 = vmax.f32 %v2998, 0.0
        %v3031 = vmax.f32 %v2999, 0.0
        %v3032 = vmax.f32 %v3000, 0.0
        %v3033 = vmax.f32 %v3001, 0.0
        %v3034 = vmax.f32 %v3002, 0.0
        %v3035 = vmax.f32 %v3003, 0.0
        %v3036 = vmax.f32 %v3004, 0.0
        %v3037 = vmax.f32 %v3005, 0.0
        %v3038 = vmax.f32 %v3006, 0.0
        %v3039 = vmax.f32 %v3007, 0.0
        %v3040 = vmax.f32 %v3008, 0.0
        %v3041 = vmax.f32 %v3009, 0.0
        %v3042 = vmax.f32 %v3010, 0.0
        %v3043 = vmax.f32 %v3011, 0.0
        %v3044 = vmax.f32 %v3012, 0.0
        %v3045 = vmax.f32 %v3013, 0.0
        %v3046 = vmax.f32 %v3014, 0.0
        %v3047 = vmax.f32 %v3015, 0.0
        %v3048 = vmax.f32 %v3016, 0.0
        %v3049 = vmax.f32 %v3017, 0.0
        %v3050 = vmax.f32 %v3018, 0.0
        %v3051 = vmax.f32 %v3019, 0.0
        %v3052 = vmax.f32 %v3020, 0.0
        %3053 = vst [vmem:[%s563] sm:$0xff] %v3021
        %3054 = vst [vmem:[%s563 + $0x8] sm:$0xff] %v3022
        %3055 = vst [vmem:[%s563 + $0x10] sm:$0xff] %v3023
        %3056 = vst [vmem:[%s563 + $0x18] sm:$0xff] %v3024
        %3057 = vst [vmem:[%s563 + $0x20] sm:$0xff] %v3025
        %3058 = vst [vmem:[%s563 + $0x28] sm:$0xff] %v3026
        %3059 = vst [vmem:[%s563 + $0x30] sm:$0xff] %v3027
        %3060 = vst [vmem:[%s563 + $0x38] sm:$0xff] %v3028
        %3061 = vst [vmem:[%s563 + $0x40] sm:$0xff] %v3029
        %3062 = vst [vmem:[%s563 + $0x48] sm:$0xff] %v3030
        %3063 = vst [vmem:[%s563 + $0x50] sm:$0xff] %v3031
        %3064 = vst [vmem:[%s563 + $0x58] sm:$0xff] %v3032
        %3065 = vst [vmem:[%s563 + $0x60] sm:$0xff] %v3033
        %3066 = vst [vmem:[%s563 + $0x68] sm:$0xff] %v3034
        %3067 = vst [vmem:[%s563 + $0x70] sm:$0xff] %v3035
        %3068 = vst [vmem:[%s563 + $0x78] sm:$0xff] %v3036
        %3069 = vst [vmem:[%s563 + $0x80] sm:$0xff] %v3037
        %3070 = vst [vmem:[%s563 + $0x88] sm:$0xff] %v3038
        %3071 = vst [vmem:[%s563 + $0x90] sm:$0xff] %v3039
        %3072 = vst [vmem:[%s563 + $0x98] sm:$0xff] %v3040
        %3073 = vst [vmem:[%s563 + $0xa0] sm:$0xff] %v3041
        %3074 = vst [vmem:[%s563 + $0xa8] sm:$0xff] %v3042
        %3075 = vst [vmem:[%s563 + $0xb0] sm:$0xff] %v3043
        %3076 = vst [vmem:[%s563 + $0xb8] sm:$0xff] %v3044
        %3077 = vst [vmem:[%s563 + $0xc0] sm:$0xff] %v3045
        %3078 = vst [vmem:[%s563 + $0xc8] sm:$0xff] %v3046
        %3079 = vst [vmem:[%s563 + $0xd0] sm:$0xff] %v3047
        %3080 = vst [vmem:[%s563 + $0xd8] sm:$0xff] %v3048
        %3081 = vst [vmem:[%s563 + $0xe0] sm:$0xff] %v3049
        %3082 = vst [vmem:[%s563 + $0xe8] sm:$0xff] %v3050
        %3083 = vst [vmem:[%s563 + $0xf0] sm:$0xff] %v3051
        %3084 = vst [vmem:[%s563 + $0xf8] sm:$0xff] %v3052
        %s3085 = sand.u32 %s322, 1
        %s3086 = scalar_lea.sflag [#allocation5], %s3085
        %s3087 = sand.u32 %s322, 1
        %s3088 = smul.addr %s3087, 256
        %s3089 = scalar_lea.vmem [#allocation12], %s3088
        // Predicated region
        $region89: #{tpu_custom_call.1} parent=63 // pred_check
          %p3090 = pneg %p332
        $region90: #{tpu_custom_call.1} parent=63 // pred_check_branch
          %3092 = sbr.rel (%p3090) target = $region92
        $region91: #{tpu_custom_call.1} parent=63 // pred_region
          %s3093 = smul.u32 16, %s37
          %s3095 = ssub.s32 4096, 4096
          %3096 = vsyncadd %s3086, %s3095
          %s3097 = smul.addr %s3093, 2
          %s3098 = smul.addr %s36, 32
          %s3099 = sadd.s32 %s3097, %s3098
          %s3100 = smul.addr %s3099, 128
          %s3101 = scalar_lea.hbm %s11, %s3100
          %s3102 = sshll.u32 %s3089, 4
          %s3103 = int_to_ptr.vmem [resolvable:$true] %s3102
          %3108 = dma.vmem_to_hbm [thread:$0]  %s3103, 4096, %s3101, %s3086, 128, 128, 8
        $region92: #{tpu_custom_call.1} parent=63 // pred_fallthru
          _
      $region64: #{tpu_custom_call.1} parent=5 // pred_fallthru
        _
      %p3109 = scmp.le.s32.totalorder 2, %s27
      // Predicated region
      $region93: #{tpu_custom_call.1} parent=5 // pred_check
        %p3110 = pneg %p3109
      $region94: #{tpu_custom_call.1} parent=5 // pred_check_branch
        %3112 = sbr.rel (%p3110) target = $region96
      $region95: #{tpu_custom_call.1} parent=5 // pred_region
        %s3113 = ssub.s32 %s27, 2
        // Predicated region
        $region97: #{tpu_custom_call.1} parent=95 // pred_check
          %p3114 = pneg %p338
        $region98: #{tpu_custom_call.1} parent=95 // pred_check_branch
          %3116 = sbr.rel (%p3114) target = $region100
        $region99: #{tpu_custom_call.1} parent=95 // pred_region
          %s3117 = sand.u32 %s323, 1
          %s3118 = scalar_lea.sflag [#allocation5], %s3117
          %s3119 = sand.u32 %s323, 1
          %s3120 = smul.addr %s3119, 256
          %s3121 = scalar_lea.vmem [#allocation12], %s3120
          %3122 = dma.done %s3118, 4096
        $region100: #{tpu_custom_call.1} parent=95 // pred_fallthru
          _
      $region96: #{tpu_custom_call.1} parent=5 // pred_fallthru
        _
    $region6: #{tpu_custom_call.1} parent=1 // loop_footer
      %s31 = sadd.s32 1, %s27
    $region7: #{tpu_custom_call.1} parent=1 // loop_footer_branch
      %26 = sbr.rel target = $region3
    $region8: #{tpu_custom_call.1} parent=1 // loop_exit
      _
    %3123 = vsyncpa [#allocation4], 1
    %s3124 = scalar_lea.sflag [#allocation4], 1
    %3125 = vsyncpa %s3124, 1
    %3126 = vsyncpa [#allocation7], 1
    %s3127 = scalar_lea.sflag [#allocation7], 1
    %3128 = vsyncpa %s3127, 1
    %3129 = vsyncpa [#allocation10], 1
    %3130 = vsyncpa [#allocation5], 1
    %s3131 = scalar_lea.sflag [#allocation5], 1
    %3132 = vsyncpa %s3131, 1

</llo_original>
